<compile_context>
chip_gen: v7x
topology: tpu7x:2x2x1
jax: 0.10.0
libtpu: 0.0.40
codegen_flags: <defaults>
</compile_context>

<pallas_src>
import functools
import math

import jax
import jax.numpy as jnp
from jax.experimental import pallas as pl
from jax.experimental.pallas import tpu as pltpu


def _silu(x):
    return x * jax.nn.sigmoid(x)


def _softmax_rows(s):
    # row softmax with the reciprocal pushed onto the EUP slot
    s = s - jnp.max(s, axis=-1, keepdims=True)
    ex = jnp.exp(s)
    return ex * pl.reciprocal(jnp.sum(ex, axis=-1, keepdims=True), approx=True)


# -----------------------------------------------------------------------------
# Kernel 1: cv1 + cv2 + pos-embed + one TransformerLayer per grid step + scatter
# -----------------------------------------------------------------------------
def _c3tr_core_kernel(x_ref, w1_ref, b1_ref, w2_ref, b2_ref, e_ref, kb_ref, sel_ref,
                      wq_ref, bq_ref, wk_ref, bk_ref, wv_ref, bv_ref,
                      wo_ref, bo_ref, wf1_ref, wf2_ref,
                      p_out_ref, y2_out_ref, z_scr, p_scr, *, num_heads):
    l = pl.program_id(0)
    n_layers = pl.num_programs(0)

    # ---- step 0: cv1 / cv2 (1x1 conv + folded BN + SiLU) + position embedding ----
    @pl.when(l == 0)
    def _init():
        xb = x_ref[...]                                               # (S, c1) bf16 rows
        p = _silu(jnp.dot(xb, w1_ref[...], preferred_element_type=jnp.float32)
                  + b1_ref[...])
        y2 = _silu(jnp.dot(xb, w2_ref[...], preferred_element_type=jnp.float32)
                   + b2_ref[...])
        # channels-first (c, S) bf16 output: lane-dense store, half the HBM traffic
        y2_out_ref[...] = jnp.transpose(y2, (1, 0)).astype(y2_out_ref.dtype)
        p_scr[...] = p                                                # kept for the scatter
        z_scr[...] = p + e_ref[...]                                   # residual stream (f32)

    # ---- one TransformerLayer per grid step (weights double-buffered by BlockSpec) ----
    z = z_scr[...]                                                    # (S, c) f32
    S, c = z.shape
    d = c // num_heads
    scale = 1.0 / math.sqrt(d)                                        # torch: head_dim ** -0.5
    kb = kb_ref[...]                                                  # (1, S): 0 sel / -1e9 masked

    zb = z.astype(jnp.bfloat16)
    q = jnp.dot(zb, wq_ref[0], preferred_element_type=jnp.float32) + bq_ref[0]
    k = jnp.dot(zb, wk_ref[0], preferred_element_type=jnp.float32) + bk_ref[0]
    v = jnp.dot(zb, wv_ref[0], preferred_element_type=jnp.float32) + bv_ref[0]
    qs = q * scale
    kbf = k.astype(jnp.bfloat16)
    vbf = v.astype(jnp.bfloat16)

    # TODO(synk): for S >~ 2048 tile the (S, S) score matrix over query blocks with an
    # online-softmax inner loop instead of materializing it whole (v7x 64 MiB VMEM).
    if d % 128 == 0:
        # lane-aligned head dim -> true head slicing (no wasted MXU passes)
        parts = []
        for hh in range(num_heads):
            qh = qs[:, hh * d:(hh + 1) * d].astype(jnp.bfloat16)
            kh = kbf[:, hh * d:(hh + 1) * d]
            vh = vbf[:, hh * d:(hh + 1) * d]
            s = jax.lax.dot_general(qh, kh, (((1,), (1,)), ((), ())),
                                    preferred_element_type=jnp.float32)
            attn = _softmax_rows(s + kb)
            parts.append(jnp.dot(attn.astype(jnp.bfloat16), vh,
                                 preferred_element_type=jnp.float32))
        ctx = jnp.concatenate(parts, axis=-1)
    else:
        # small head dim: head-channel masking (MXU lane padding absorbs the extra width)
        lane = jax.lax.broadcasted_iota(jnp.int32, (1, c), 1)
        head_masks = [(lane >= hh * d) & (lane < (hh + 1) * d) for hh in range(num_heads)]
        ctx = jnp.zeros((S, c), jnp.float32)
        for hm in head_masks:
            qh = jnp.where(hm, qs, 0.0).astype(jnp.bfloat16)
            s = jax.lax.dot_general(qh, kbf, (((1,), (1,)), ((), ())),
                                    preferred_element_type=jnp.float32)
            attn = _softmax_rows(s + kb)
            ctx_h = jnp.dot(attn.astype(jnp.bfloat16), vbf,
                            preferred_element_type=jnp.float32)
            ctx = ctx + jnp.where(hm, ctx_h, 0.0)                     # keep head-h channels

    o = jnp.dot(ctx.astype(jnp.bfloat16), wo_ref[0],
                preferred_element_type=jnp.float32) + bo_ref[0]
    z = o + z                                                         # attention residual
    f1 = jnp.dot(z.astype(jnp.bfloat16), wf1_ref[0], preferred_element_type=jnp.float32)
    z = jnp.dot(f1.astype(jnp.bfloat16), wf2_ref[0],
                preferred_element_type=jnp.float32) + z               # fc2(fc1(z)) + z
    z_scr[...] = z

    # ---- last step: scatter transformer output back over the selected positions ----
    @pl.when(l == n_layers - 1)
    def _finish():
        scattered = jnp.where(sel_ref[...] > 0.5, z, p_scr[...])      # torch: p0[m] = z
        p_out_ref[...] = jnp.transpose(scattered, (1, 0)).astype(p_out_ref.dtype)


# -----------------------------------------------------------------------------
# Kernel 2: cv3 over cat(m_out, cv2_out), channels-first, concat never materialized
# -----------------------------------------------------------------------------
def _cv3_kernel(m_ref, y2_ref, wa_ref, wb_ref, b_ref, o_ref):
    y = jnp.dot(wa_ref[...], m_ref[...], preferred_element_type=jnp.float32)
    y = y + jnp.dot(wb_ref[...], y2_ref[...], preferred_element_type=jnp.float32)
    o_ref[...] = _silu(y + b_ref[...]).astype(o_ref.dtype)


# -----------------------------------------------------------------------------
# Fixed 2-D sin/cos position embedding (matches the torch static method exactly,
# including the meshgrid(indexing='ij') flatten order over (w, h)).
# -----------------------------------------------------------------------------
def _build_2d_sincos_position_embedding(w, h, embed_dim, temperature=10000.0):
    assert embed_dim % 4 == 0, "Embed dimension must be divisible by 4"
    grid_w = jnp.arange(w, dtype=jnp.float32)
    grid_h = jnp.arange(h, dtype=jnp.float32)
    gw, gh = jnp.meshgrid(grid_w, grid_h, indexing="ij")                  # (w, h)
    pos_dim = embed_dim // 4
    omega = jnp.arange(pos_dim, dtype=jnp.float32) / pos_dim
    omega = 1.0 / (temperature ** omega)
    out_w = gw.reshape(-1, 1) * omega.reshape(1, -1)                      # (w*h, pos_dim)
    out_h = gh.reshape(-1, 1) * omega.reshape(1, -1)
    return jnp.concatenate([jnp.sin(out_w), jnp.cos(out_w),
                            jnp.sin(out_h), jnp.cos(out_h)], axis=1)      # (h*w, embed_dim)


# -----------------------------------------------------------------------------
# Tiling / VMEM helpers
# -----------------------------------------------------------------------------
def _pick_col_tile(S):
    # largest spatial tile that still yields >=2 grid steps (v7x megacore); else whole row
    for t in (2048, 1024, 512, 256):
        if S % t == 0 and S // t >= 2:
            return t
    return S


def _kernel1_vmem_bytes(S, c, c1):
    f32, bf16 = 4, 2
    resident = (S * c1 * bf16 + 2 * (c1 * c * bf16 + c * f32)   # x, cv1/cv2 params
                + S * c * f32 + 2 * S * f32                     # pos-embed, key-bias, sel
                + 2 * S * c * bf16                              # (c, S) bf16 outputs
                + 2 * S * c * f32)                              # z / p VMEM scratch
    per_layer = 2 * (6 * c * c * bf16 + 4 * c * f32)            # double-buffered layer weights
    temps = 2 * S * S * f32 + 10 * S * c * f32                  # scores + q/k/v/ctx/ffn temps
    est = int(1.5 * (resident + per_layer + temps))
    return int(min(64 << 20, max(16 << 20, est)))


# -----------------------------------------------------------------------------
# Synthetic, deterministic parameters with eval-mode BatchNorm folding
# -----------------------------------------------------------------------------
def _fold_bn(w, gamma, beta, mean, var, eps=1e-5):
    scale = gamma / jnp.sqrt(var + eps)                        # per output channel (last axis)
    return w * scale, beta - mean * scale


def init_params(key, c1, c2, n=1, e=0.5, num_heads=4):
    c = int(c2 * e)
    assert c % 4 == 0 and c % num_heads == 0
    kit = iter(jax.random.split(key, 64 + 32 * n))

    def nrm(shape, s=0.2):
        return s * jax.random.normal(next(kit), shape, jnp.float32)

    def bn_stats(cout):
        gamma = 1.0 + 0.1 * jax.random.normal(next(kit), (cout,), jnp.float32)
        beta = 0.1 * jax.random.normal(next(kit), (cout,), jnp.float32)
        mean = 0.1 * jax.random.normal(next(kit), (cout,), jnp.float32)
        var = 1.0 + 0.1 * jax.random.uniform(next(kit), (cout,), jnp.float32)
        return gamma, beta, mean, var

    def conv1x1(cin, cout):
        w = nrm((cin, cout))                                   # Conv2d weight, stored transposed
        wf, bf = _fold_bn(w, *bn_stats(cout))
        return wf, bf.reshape(1, cout)

    p = {}
    w1, b1 = conv1x1(c1, c)
    w2, b2 = conv1x1(c1, c)
    p["cv1_w"], p["cv1_b"] = w1.astype(jnp.bfloat16), b1
    p["cv2_w"], p["cv2_b"] = w2.astype(jnp.bfloat16), b2
    w3, b3 = conv1x1(2 * c, c2)                                # (2c, c2), (1, c2)
    p["cv3_wa_t"] = jnp.transpose(w3[:c]).astype(jnp.bfloat16)  # (c2, c) channels-first split
    p["cv3_wb_t"] = jnp.transpose(w3[c:]).astype(jnp.bfloat16)
    p["cv3_b"] = jnp.transpose(b3)                               # (c2, 1) f32

    # TransformerLayer params. The bias-free q/k/v Linear and the MHA in_proj are two
    # back-to-back linear maps -> folded into one effective (c, c) weight per stream.
    wq, bq, wk, bk, wv, bv, wo, bo, wf1, wf2 = ([] for _ in range(10))
    for _ in range(n):
        w_q, w_k, w_v = nrm((c, c)), nrm((c, c)), nrm((c, c))  # torch Linear (out, in)
        in_w = nrm((3 * c, c))                                 # MHA in_proj_weight
        in_b = 0.1 * jax.random.normal(next(kit), (3 * c,), jnp.float32)
        w_o = nrm((c, c))                                      # MHA out_proj weight
        b_o = 0.1 * jax.random.normal(next(kit), (c,), jnp.float32)
        w_f1, w_f2 = nrm((c, c)), nrm((c, c))
        wq.append(w_q.T @ in_w[0:c].T);      bq.append(in_b[0:c].reshape(1, c))
        wk.append(w_k.T @ in_w[c:2 * c].T);  bk.append(in_b[c:2 * c].reshape(1, c))
        wv.append(w_v.T @ in_w[2 * c:].T);   bv.append(in_b[2 * c:].reshape(1, c))
        wo.append(w_o.T);                    bo.append(b_o.reshape(1, c))
        wf1.append(w_f1.T);                  wf2.append(w_f2.T)

    def stk(vals, dt):
        return jnp.stack(vals).astype(dt)

    p["tr"] = {
        "wq": stk(wq, jnp.bfloat16), "bq": stk(bq, jnp.float32),
        "wk": stk(wk, jnp.bfloat16), "bk": stk(bk, jnp.float32),
        "wv": stk(wv, jnp.bfloat16), "bv": stk(bv, jnp.float32),
        "wo": stk(wo, jnp.bfloat16), "bo": stk(bo, jnp.float32),
        "wf1": stk(wf1, jnp.bfloat16), "wf2": stk(wf2, jnp.bfloat16),
    }
    p["num_heads"] = num_heads
    return p


# -----------------------------------------------------------------------------
# MaskedC3TR forward:  inputs = (x_NCHW, masks), returns NCHW — like PyTorch
# -----------------------------------------------------------------------------
def masked_c3tr(inputs, params):
    x_nchw, masks = inputs
    mask = masks[0]
    b, c1, h, w = x_nchw.shape
    assert b == 1, "multi-batch is not supported (matches the PyTorch assert)"
    c = params["cv1_w"].shape[1]
    c2 = params["cv3_b"].shape[0]
    num_heads = params["num_heads"]
    tr = params["tr"]
    n_layers = tr["wq"].shape[0]
    S = h * w

    # mask -> flat boolean over the h*w positions (avg-pool downsample if needed)
    mh, mw = mask.shape[-2], mask.shape[-1]
    mask3 = mask.reshape(1, mh, mw)
    if mw != w:
        s = mw // w
        assert mh == s * h and mw == s * w
        mask3 = jnp.mean(mask3.astype(jnp.float32).reshape(1, h, s, w, s),
                         axis=(2, 4)) > 0.5                     # == F.avg_pool2d(.,s,s,0) > 0.5
    m_flat = mask3.reshape(S).astype(jnp.bool_)
    key_bias = jnp.where(m_flat, 0.0, -1e9).astype(jnp.float32).reshape(1, S)
    sel = m_flat.astype(jnp.float32).reshape(S, 1)

    e = _build_2d_sincos_position_embedding(w, h, c)             # (S, c) compile-time constant

    # NCHW -> (h*w, c1) channels-last rows; bf16 operands for the MXU
    x2d = jnp.transpose(x_nchw.reshape(c1, S), (1, 0)).astype(jnp.bfloat16)

    const2 = lambda l: (0, 0)
    per_layer3 = lambda l: (l, 0, 0)
    w_spec = pl.BlockSpec((1, c, c), per_layer3)                 # double-buffered per-layer weights
    b_spec = pl.BlockSpec((1, 1, c), per_layer3)

    p_cf, y2_cf = pl.pallas_call(
        functools.partial(_c3tr_core_kernel, num_heads=num_heads),
        grid=(n_layers,),
        in_specs=[
            pl.BlockSpec((S, c1), const2),     # x2d
            pl.BlockSpec((c1, c), const2),     # cv1 w (bf16)
            pl.BlockSpec((1, c), const2),      # cv1 b (f32)
            pl.BlockSpec((c1, c), const2),     # cv2 w
            pl.BlockSpec((1, c), const2),      # cv2 b
            pl.BlockSpec((S, c), const2),      # position embedding
            pl.BlockSpec((1, S), const2),      # key-mask bias
            pl.BlockSpec((S, 1), const2),      # selection mask
            w_spec, b_spec,                    # wq, bq
            w_spec, b_spec,                    # wk, bk
            w_spec, b_spec,                    # wv, bv
            w_spec, b_spec,                    # wo, bo
            w_spec, w_spec,                    # wf1, wf2
        ],
        out_specs=(pl.BlockSpec((c, S), const2),
                   pl.BlockSpec((c, S), const2)),
        out_shape=(jax.ShapeDtypeStruct((c, S), jnp.bfloat16),   # scattered cv1/transformer map
                   jax.ShapeDtypeStruct((c, S), jnp.bfloat16)),  # cv2 features
        scratch_shapes=[pltpu.VMEM((S, c), jnp.float32),         # z (residual stream)
                        pltpu.VMEM((S, c), jnp.float32)],        # p (cv1 output for scatter)
        compiler_params=pltpu.CompilerParams(
            dimension_semantics=("arbitrary",),
            vmem_limit_bytes=_kernel1_vmem_bytes(S, c, c1)),
    )(x2d, params["cv1_w"], params["cv1_b"], params["cv2_w"], params["cv2_b"],
      e, key_bias, sel,
      tr["wq"], tr["bq"], tr["wk"], tr["bk"], tr["wv"], tr["bv"],
      tr["wo"], tr["bo"], tr["wf1"], tr["wf2"])

    # p_cf is already the scattered NCHW map (c, h*w); the module's
    # `x.transpose(1, 2).reshape(b, c2, h, w)` collapses to ONE transpose here
    # (a pure element permutation, reproduced verbatim).
    m_cf = jnp.transpose(p_cf.reshape(c, h, w), (1, 0, 2)).reshape(c, S)

    ts = _pick_col_tile(S)
    out_cf = pl.pallas_call(
        _cv3_kernel,
        grid=(S // ts,),
        in_specs=[pl.BlockSpec((c, ts), lambda i: (0, i)),
                  pl.BlockSpec((c, ts), lambda i: (0, i)),
                  pl.BlockSpec((c2, c), lambda i: (0, 0)),
                  pl.BlockSpec((c2, c), lambda i: (0, 0)),
                  pl.BlockSpec((c2, 1), lambda i: (0, 0))],
        out_specs=pl.BlockSpec((c2, ts), lambda i: (0, i)),
        out_shape=jax.ShapeDtypeStruct((c2, S), jnp.float32),
        compiler_params=pltpu.CompilerParams(dimension_semantics=("parallel",)),
    )(m_cf, y2_cf, params["cv3_wa_t"], params["cv3_wb_t"], params["cv3_b"])

    return out_cf.reshape(1, c2, h, w)                           # channels-first == NCHW


if __name__ == "__main__":
    key = jax.random.PRNGKey(0)
    kx, km, kp = jax.random.split(key, 3)

    # MaskedTransformerBlock asserts batch == 1; c_ = int(c2*e) must divide by 4.
    c1, c2, n = 16, 16, 2
    H = W = 16
    x = jax.random.normal(kx, (1, c1, H, W), jnp.float32)        # NCHW like PyTorch
    mask = jax.random.bernoulli(km, 0.5, (1, H, W))              # boolean ROI mask
    params = init_params(kp, c1, c2, n=n, e=0.5, num_heads=4)

    fwd = jax.jit(lambda xx, mm: masked_c3tr((xx, (mm,)), params))
    y = fwd(x, mask)
    jax.block_until_ready(y)
    assert y.shape == (1, c2, H, W) and y.dtype == jnp.float32
    print("KERNEL_OK")
</pallas_src>

<mosaic_0001>
module attributes {stable_mosaic.version = 11 : i64} {
  func.func @_cv3_kernel(%arg0: i32, %arg1: memref<8x256xbf16, #tpu.memory_space<vmem>>, %arg2: memref<8x256xbf16, #tpu.memory_space<vmem>>, %arg3: memref<16x8xbf16, #tpu.memory_space<vmem>>, %arg4: memref<16x8xbf16, #tpu.memory_space<vmem>>, %arg5: memref<16x1xf32, #tpu.memory_space<vmem>>, %arg6: memref<16x256xf32, #tpu.memory_space<vmem>>) attributes {dimension_semantics = [#tpu.dimension_semantics<parallel>], iteration_bounds = array<i64: 1>, scalar_prefetch = 0 : i64, scratch_operands = 0 : i64, tpu.core_type = #tpu.core_type<tc>, window_params = [{transform_indices = @transform_0, window_bounds = array<i64: 8, 256>}, {transform_indices = @transform_1, window_bounds = array<i64: 8, 256>}, {pipeline_mode = #tpu.pipeline_mode<synchronous>, transform_indices = @transform_2, window_bounds = array<i64: 16, 8>}, {pipeline_mode = #tpu.pipeline_mode<synchronous>, transform_indices = @transform_3, window_bounds = array<i64: 16, 8>}, {pipeline_mode = #tpu.pipeline_mode<synchronous>, transform_indices = @transform_4, window_bounds = array<i64: 16, 1>}, {transform_indices = @transform_5, window_bounds = array<i64: 16, 256>}]} {
    %c0 = arith.constant 0 : index
    %c0_0 = arith.constant 0 : index
    %0 = vector.load %arg3[%c0, %c0_0] : memref<16x8xbf16, #tpu.memory_space<vmem>>, vector<16x8xbf16>
    %c0_1 = arith.constant 0 : index
    %c0_2 = arith.constant 0 : index
    %1 = vector.load %arg1[%c0_1, %c0_2] : memref<8x256xbf16, #tpu.memory_space<vmem>>, vector<8x256xbf16>
    %cst = arith.constant dense<0.000000e+00> : vector<16x256xf32>
    %2 = tpu.matmul %0, %1, %cst {dimension_numbers = #tpu.dot_dimension_numbers<[1], [0], [0], [1], [0, 0, 1, 1], [], []>} : vector<16x8xbf16>, vector<8x256xbf16>, vector<16x256xf32> -> vector<16x256xf32>
    %c0_3 = arith.constant 0 : index
    %c0_4 = arith.constant 0 : index
    %3 = vector.load %arg4[%c0_3, %c0_4] : memref<16x8xbf16, #tpu.memory_space<vmem>>, vector<16x8xbf16>
    %c0_5 = arith.constant 0 : index
    %c0_6 = arith.constant 0 : index
    %4 = vector.load %arg2[%c0_5, %c0_6] : memref<8x256xbf16, #tpu.memory_space<vmem>>, vector<8x256xbf16>
    %cst_7 = arith.constant dense<0.000000e+00> : vector<16x256xf32>
    %5 = tpu.matmul %3, %4, %cst_7 {dimension_numbers = #tpu.dot_dimension_numbers<[1], [0], [0], [1], [0, 0, 1, 1], [], []>} : vector<16x8xbf16>, vector<8x256xbf16>, vector<16x256xf32> -> vector<16x256xf32>
    %6 = arith.addf %2, %5 : vector<16x256xf32>
    %c0_8 = arith.constant 0 : index
    %c0_9 = arith.constant 0 : index
    %7 = vector.load %arg5[%c0_8, %c0_9] : memref<16x1xf32, #tpu.memory_space<vmem>>, vector<16x1xf32>
    %8 = vector.broadcast %7 : vector<16x1xf32> to vector<16x256xf32>
    %9 = arith.addf %6, %8 : vector<16x256xf32>
    %10 = arith.negf %9 : vector<16x256xf32>
    %11 = math.exp %10 : vector<16x256xf32>
    %cst_10 = arith.constant 1.000000e+00 : f32
    %12 = vector.broadcast %cst_10 : f32 to vector<16x256xf32>
    %13 = arith.addf %12, %11 : vector<16x256xf32>
    %14 = arith.divf %12, %13 : vector<16x256xf32>
    %15 = arith.mulf %9, %14 : vector<16x256xf32>
    %c0_11 = arith.constant 0 : index
    %c0_12 = arith.constant 0 : index
    %16 = vector.load %arg6[%c0_11, %c0_12] : memref<16x256xf32, #tpu.memory_space<vmem>>, vector<16x256xf32>
    tpu.vector_store %arg6[%c0_11, %c0_12], %15 {strides = array<i32>} : memref<16x256xf32, #tpu.memory_space<vmem>>, vector<16x256xf32>,
    return
  }
  func.func @transform_0(%arg0: i32) -> (i32, i32) {
    %c0_i32 = arith.constant 0 : i32
    %c0_i32_0 = arith.constant 0 : i32
    return %c0_i32, %arg0 : i32, i32
  }
  func.func @transform_1(%arg0: i32) -> (i32, i32) {
    %c0_i32 = arith.constant 0 : i32
    %c0_i32_0 = arith.constant 0 : i32
    return %c0_i32, %arg0 : i32, i32
  }
  func.func @transform_2(%arg0: i32) -> (i32, i32) {
    %c0_i32 = arith.constant 0 : i32
    %c0_i32_0 = arith.constant 0 : i32
    %c0_i32_1 = arith.constant 0 : i32
    return %c0_i32, %c0_i32_0 : i32, i32
  }
  func.func @transform_3(%arg0: i32) -> (i32, i32) {
    %c0_i32 = arith.constant 0 : i32
    %c0_i32_0 = arith.constant 0 : i32
    %c0_i32_1 = arith.constant 0 : i32
    return %c0_i32, %c0_i32_0 : i32, i32
  }
  func.func @transform_4(%arg0: i32) -> (i32, i32) {
    %c0_i32 = arith.constant 0 : i32
    %c0_i32_0 = arith.constant 0 : i32
    %c0_i32_1 = arith.constant 0 : i32
    return %c0_i32, %c0_i32_0 : i32, i32
  }
  func.func @transform_5(%arg0: i32) -> (i32, i32) {
    %c0_i32 = arith.constant 0 : i32
    %c0_i32_0 = arith.constant 0 : i32
    return %c0_i32, %arg0 : i32, i32
  }
}

module attributes {stable_mosaic.version = 11 : i64} {
  func.func @_c3tr_core_kernel(%arg0: i32, %arg1: memref<256x16xbf16, #tpu.memory_space<vmem>>, %arg2: memref<16x8xbf16, #tpu.memory_space<vmem>>, %arg3: memref<1x8xf32, #tpu.memory_space<vmem>>, %arg4: memref<16x8xbf16, #tpu.memory_space<vmem>>, %arg5: memref<1x8xf32, #tpu.memory_space<vmem>>, %arg6: memref<256x8xf32, #tpu.memory_space<vmem>>, %arg7: memref<1x256xf32, #tpu.memory_space<vmem>>, %arg8: memref<256x1xf32, #tpu.memory_space<vmem>>, %arg9: memref<1x8x8xbf16, #tpu.memory_space<vmem>>, %arg10: memref<1x1x8xf32, #tpu.memory_space<vmem>>, %arg11: memref<1x8x8xbf16, #tpu.memory_space<vmem>>, %arg12: memref<1x1x8xf32, #tpu.memory_space<vmem>>, %arg13: memref<1x8x8xbf16, #tpu.memory_space<vmem>>, %arg14: memref<1x1x8xf32, #tpu.memory_space<vmem>>, %arg15: memref<1x8x8xbf16, #tpu.memory_space<vmem>>, %arg16: memref<1x1x8xf32, #tpu.memory_space<vmem>>, %arg17: memref<1x8x8xbf16, #tpu.memory_space<vmem>>, %arg18: memref<1x8x8xbf16, #tpu.memory_space<vmem>>, %arg19: memref<8x256xbf16, #tpu.memory_space<vmem>>, %arg20: memref<8x256xbf16, #tpu.memory_space<vmem>>, %arg21: memref<256x8xf32, #tpu.memory_space<vmem>>, %arg22: memref<256x8xf32, #tpu.memory_space<vmem>>) attributes {dimension_semantics = [#tpu.dimension_semantics<arbitrary>], iteration_bounds = array<i64: 2>, scalar_prefetch = 0 : i64, scratch_operands = 2 : i64, tpu.core_type = #tpu.core_type<tc>, window_params = [{pipeline_mode = #tpu.pipeline_mode<synchronous>, transform_indices = @transform_0, window_bounds = array<i64: 256, 16>}, {pipeline_mode = #tpu.pipeline_mode<synchronous>, transform_indices = @transform_1, window_bounds = array<i64: 16, 8>}, {pipeline_mode = #tpu.pipeline_mode<synchronous>, transform_indices = @transform_2, window_bounds = array<i64: 1, 8>}, {pipeline_mode = #tpu.pipeline_mode<synchronous>, transform_indices = @transform_3, window_bounds = array<i64: 16, 8>}, {pipeline_mode = #tpu.pipeline_mode<synchronous>, transform_indices = @transform_4, window_bounds = array<i64: 1, 8>}, {pipeline_mode = #tpu.pipeline_mode<synchronous>, transform_indices = @transform_5, window_bounds = array<i64: 256, 8>}, {pipeline_mode = #tpu.pipeline_mode<synchronous>, transform_indices = @transform_6, window_bounds = array<i64: 1, 256>}, {pipeline_mode = #tpu.pipeline_mode<synchronous>, transform_indices = @transform_7, window_bounds = array<i64: 256, 1>}, {transform_indices = @transform_8, window_bounds = array<i64: 1, 8, 8>}, {transform_indices = @transform_9, window_bounds = array<i64: 1, 1, 8>}, {transform_indices = @transform_10, window_bounds = array<i64: 1, 8, 8>}, {transform_indices = @transform_11, window_bounds = array<i64: 1, 1, 8>}, {transform_indices = @transform_12, window_bounds = array<i64: 1, 8, 8>}, {transform_indices = @transform_13, window_bounds = array<i64: 1, 1, 8>}, {transform_indices = @transform_14, window_bounds = array<i64: 1, 8, 8>}, {transform_indices = @transform_15, window_bounds = array<i64: 1, 1, 8>}, {transform_indices = @transform_16, window_bounds = array<i64: 1, 8, 8>}, {transform_indices = @transform_17, window_bounds = array<i64: 1, 8, 8>}, {pipeline_mode = #tpu.pipeline_mode<synchronous>, transform_indices = @transform_18, window_bounds = array<i64: 8, 256>}, {pipeline_mode = #tpu.pipeline_mode<synchronous>, transform_indices = @transform_19, window_bounds = array<i64: 8, 256>}]} {
    %c0_i32 = arith.constant 0 : i32
    %0 = arith.cmpi eq, %arg0, %c0_i32 : i32
    %1 = arith.extui %0 : i1 to i32
    %c0_i32_0 = arith.constant 0 : i32
    %2 = arith.cmpi ne, %1, %c0_i32_0 : i32
    scf.if %2 {
      %c0_72 = arith.constant 0 : index
      %c0_73 = arith.constant 0 : index
      %175 = vector.load %arg1[%c0_72, %c0_73] : memref<256x16xbf16, #tpu.memory_space<vmem>>, vector<256x16xbf16>
      %c0_74 = arith.constant 0 : index
      %c0_75 = arith.constant 0 : index
      %176 = vector.load %arg2[%c0_74, %c0_75] : memref<16x8xbf16, #tpu.memory_space<vmem>>, vector<16x8xbf16>
      %cst_76 = arith.constant dense<0.000000e+00> : vector<256x8xf32>
      %177 = tpu.matmul %175, %176, %cst_76 {dimension_numbers = #tpu.dot_dimension_numbers<[1], [0], [0], [1], [0, 0, 1, 1], [], []>} : vector<256x16xbf16>, vector<16x8xbf16>, vector<256x8xf32> -> vector<256x8xf32>
      %c0_77 = arith.constant 0 : index
      %c0_78 = arith.constant 0 : index
      %178 = vector.load %arg3[%c0_77, %c0_78] : memref<1x8xf32, #tpu.memory_space<vmem>>, vector<1x8xf32>
      %179 = vector.broadcast %178 : vector<1x8xf32> to vector<256x8xf32>
      %180 = arith.addf %177, %179 : vector<256x8xf32>
      %181 = arith.negf %180 : vector<256x8xf32>
      %182 = math.exp %181 : vector<256x8xf32>
      %cst_79 = arith.constant 1.000000e+00 : f32
      %183 = vector.broadcast %cst_79 : f32 to vector<256x8xf32>
      %184 = arith.addf %183, %182 : vector<256x8xf32>
      %185 = arith.divf %183, %184 : vector<256x8xf32>
      %186 = arith.mulf %180, %185 : vector<256x8xf32>
      %c0_80 = arith.constant 0 : index
      %c0_81 = arith.constant 0 : index
      %187 = vector.load %arg4[%c0_80, %c0_81] : memref<16x8xbf16, #tpu.memory_space<vmem>>, vector<16x8xbf16>
      %cst_82 = arith.constant dense<0.000000e+00> : vector<256x8xf32>
      %188 = tpu.matmul %175, %187, %cst_82 {dimension_numbers = #tpu.dot_dimension_numbers<[1], [0], [0], [1], [0, 0, 1, 1], [], []>} : vector<256x16xbf16>, vector<16x8xbf16>, vector<256x8xf32> -> vector<256x8xf32>
      %c0_83 = arith.constant 0 : index
      %c0_84 = arith.constant 0 : index
      %189 = vector.load %arg5[%c0_83, %c0_84] : memref<1x8xf32, #tpu.memory_space<vmem>>, vector<1x8xf32>
      %190 = vector.broadcast %189 : vector<1x8xf32> to vector<256x8xf32>
      %191 = arith.addf %188, %190 : vector<256x8xf32>
      %192 = arith.negf %191 : vector<256x8xf32>
      %193 = math.exp %192 : vector<256x8xf32>
      %cst_85 = arith.constant 1.000000e+00 : f32
      %194 = vector.broadcast %cst_85 : f32 to vector<256x8xf32>
      %195 = arith.addf %194, %193 : vector<256x8xf32>
      %196 = arith.divf %194, %195 : vector<256x8xf32>
      %197 = arith.mulf %191, %196 : vector<256x8xf32>
      %198 = tpu.transpose %197, [1, 0] : vector<256x8xf32> -> vector<8x256xf32>
      %199 = arith.truncf %198 : vector<8x256xf32> to vector<8x256xbf16>
      %c0_86 = arith.constant 0 : index
      %c0_87 = arith.constant 0 : index
      %200 = vector.load %arg20[%c0_86, %c0_87] : memref<8x256xbf16, #tpu.memory_space<vmem>>, vector<8x256xbf16>
      tpu.vector_store %arg20[%c0_86, %c0_87], %199 {strides = array<i32>} : memref<8x256xbf16, #tpu.memory_space<vmem>>, vector<8x256xbf16>,
      %c0_88 = arith.constant 0 : index
      %c0_89 = arith.constant 0 : index
      %201 = vector.load %arg22[%c0_88, %c0_89] : memref<256x8xf32, #tpu.memory_space<vmem>>, vector<256x8xf32>
      tpu.vector_store %arg22[%c0_88, %c0_89], %186 {strides = array<i32>} : memref<256x8xf32, #tpu.memory_space<vmem>>, vector<256x8xf32>,
      %c0_90 = arith.constant 0 : index
      %c0_91 = arith.constant 0 : index
      %202 = vector.load %arg6[%c0_90, %c0_91] : memref<256x8xf32, #tpu.memory_space<vmem>>, vector<256x8xf32>
      %203 = arith.addf %186, %202 : vector<256x8xf32>
      %c0_92 = arith.constant 0 : index
      %c0_93 = arith.constant 0 : index
      %204 = vector.load %arg21[%c0_92, %c0_93] : memref<256x8xf32, #tpu.memory_space<vmem>>, vector<256x8xf32>
      tpu.vector_store %arg21[%c0_92, %c0_93], %203 {strides = array<i32>} : memref<256x8xf32, #tpu.memory_space<vmem>>, vector<256x8xf32>,
    } else {
    }
    %c0 = arith.constant 0 : index
    %c0_1 = arith.constant 0 : index
    %3 = vector.load %arg21[%c0, %c0_1] : memref<256x8xf32, #tpu.memory_space<vmem>>, vector<256x8xf32>
    %c0_2 = arith.constant 0 : index
    %c0_3 = arith.constant 0 : index
    %4 = vector.load %arg7[%c0_2, %c0_3] : memref<1x256xf32, #tpu.memory_space<vmem>>, vector<1x256xf32>
    %5 = arith.truncf %3 : vector<256x8xf32> to vector<256x8xbf16>
    %c0_4 = arith.constant 0 : index
    %c0_5 = arith.constant 0 : index
    %c0_6 = arith.constant 0 : index
    %6 = vector.load %arg9[%c0_4, %c0_5, %c0_6] : memref<1x8x8xbf16, #tpu.memory_space<vmem>>, vector<1x8x8xbf16>
    %7 = vector.shape_cast %6 : vector<1x8x8xbf16> to vector<8x8xbf16>
    %cst = arith.constant dense<0.000000e+00> : vector<256x8xf32>
    %8 = tpu.matmul %5, %7, %cst {dimension_numbers = #tpu.dot_dimension_numbers<[1], [0], [0], [1], [0, 0, 1, 1], [], []>} : vector<256x8xbf16>, vector<8x8xbf16>, vector<256x8xf32> -> vector<256x8xf32>
    %c0_7 = arith.constant 0 : index
    %c0_8 = arith.constant 0 : index
    %c0_9 = arith.constant 0 : index
    %9 = vector.load %arg10[%c0_7, %c0_8, %c0_9] : memref<1x1x8xf32, #tpu.memory_space<vmem>>, vector<1x1x8xf32>
    %10 = vector.shape_cast %9 : vector<1x1x8xf32> to vector<1x8xf32>
    %11 = vector.broadcast %10 : vector<1x8xf32> to vector<256x8xf32>
    %12 = arith.addf %8, %11 : vector<256x8xf32>
    %c0_10 = arith.constant 0 : index
    %c0_11 = arith.constant 0 : index
    %c0_12 = arith.constant 0 : index
    %13 = vector.load %arg11[%c0_10, %c0_11, %c0_12] : memref<1x8x8xbf16, #tpu.memory_space<vmem>>, vector<1x8x8xbf16>
    %14 = vector.shape_cast %13 : vector<1x8x8xbf16> to vector<8x8xbf16>
    %cst_13 = arith.constant dense<0.000000e+00> : vector<256x8xf32>
    %15 = tpu.matmul %5, %14, %cst_13 {dimension_numbers = #tpu.dot_dimension_numbers<[1], [0], [0], [1], [0, 0, 1, 1], [], []>} : vector<256x8xbf16>, vector<8x8xbf16>, vector<256x8xf32> -> vector<256x8xf32>
    %c0_14 = arith.constant 0 : index
    %c0_15 = arith.constant 0 : index
    %c0_16 = arith.constant 0 : index
    %16 = vector.load %arg12[%c0_14, %c0_15, %c0_16] : memref<1x1x8xf32, #tpu.memory_space<vmem>>, vector<1x1x8xf32>
    %17 = vector.shape_cast %16 : vector<1x1x8xf32> to vector<1x8xf32>
    %18 = vector.broadcast %17 : vector<1x8xf32> to vector<256x8xf32>
    %19 = arith.addf %15, %18 : vector<256x8xf32>
    %c0_17 = arith.constant 0 : index
    %c0_18 = arith.constant 0 : index
    %c0_19 = arith.constant 0 : index
    %20 = vector.load %arg13[%c0_17, %c0_18, %c0_19] : memref<1x8x8xbf16, #tpu.memory_space<vmem>>, vector<1x8x8xbf16>
    %21 = vector.shape_cast %20 : vector<1x8x8xbf16> to vector<8x8xbf16>
    %cst_20 = arith.constant dense<0.000000e+00> : vector<256x8xf32>
    %22 = tpu.matmul %5, %21, %cst_20 {dimension_numbers = #tpu.dot_dimension_numbers<[1], [0], [0], [1], [0, 0, 1, 1], [], []>} : vector<256x8xbf16>, vector<8x8xbf16>, vector<256x8xf32> -> vector<256x8xf32>
    %c0_21 = arith.constant 0 : index
    %c0_22 = arith.constant 0 : index
    %c0_23 = arith.constant 0 : index
    %23 = vector.load %arg14[%c0_21, %c0_22, %c0_23] : memref<1x1x8xf32, #tpu.memory_space<vmem>>, vector<1x1x8xf32>
    %24 = vector.shape_cast %23 : vector<1x1x8xf32> to vector<1x8xf32>
    %25 = vector.broadcast %24 : vector<1x8xf32> to vector<256x8xf32>
    %26 = arith.addf %22, %25 : vector<256x8xf32>
    %cst_24 = arith.constant 0.707106769 : f32
    %27 = vector.broadcast %cst_24 : f32 to vector<256x8xf32>
    %28 = arith.mulf %12, %27 : vector<256x8xf32>
    %29 = arith.truncf %19 : vector<256x8xf32> to vector<256x8xbf16>
    %30 = arith.truncf %26 : vector<256x8xf32> to vector<256x8xbf16>
    %31 = tpu.iota {dimensions = array<i32: 1>} : vector<1x8xi32>
    %c0_i32_25 = arith.constant 0 : i32
    %32 = vector.broadcast %c0_i32_25 : i32 to vector<1x8xi32>
    %33 = arith.cmpi sge, %31, %32 : vector<1x8xi32>
    %c2_i32 = arith.constant 2 : i32
    %34 = vector.broadcast %c2_i32 : i32 to vector<1x8xi32>
    %35 = arith.cmpi slt, %31, %34 : vector<1x8xi32>
    %36 = arith.andi %33, %35 : vector<1x8xi1>
    %c2_i32_26 = arith.constant 2 : i32
    %37 = vector.broadcast %c2_i32_26 : i32 to vector<1x8xi32>
    %38 = arith.cmpi sge, %31, %37 : vector<1x8xi32>
    %c4_i32 = arith.constant 4 : i32
    %39 = vector.broadcast %c4_i32 : i32 to vector<1x8xi32>
    %40 = arith.cmpi slt, %31, %39 : vector<1x8xi32>
    %41 = arith.andi %38, %40 : vector<1x8xi1>
    %c4_i32_27 = arith.constant 4 : i32
    %42 = vector.broadcast %c4_i32_27 : i32 to vector<1x8xi32>
    %43 = arith.cmpi sge, %31, %42 : vector<1x8xi32>
    %c6_i32 = arith.constant 6 : i32
    %44 = vector.broadcast %c6_i32 : i32 to vector<1x8xi32>
    %45 = arith.cmpi slt, %31, %44 : vector<1x8xi32>
    %46 = arith.andi %43, %45 : vector<1x8xi1>
    %c6_i32_28 = arith.constant 6 : i32
    %47 = vector.broadcast %c6_i32_28 : i32 to vector<1x8xi32>
    %48 = arith.cmpi sge, %31, %47 : vector<1x8xi32>
    %c8_i32 = arith.constant 8 : i32
    %49 = vector.broadcast %c8_i32 : i32 to vector<1x8xi32>
    %50 = arith.cmpi slt, %31, %49 : vector<1x8xi32>
    %51 = arith.andi %48, %50 : vector<1x8xi1>
    %cst_29 = arith.constant 0.000000e+00 : f32
    %52 = vector.broadcast %cst_29 : f32 to vector<256x8xf32>
    %cst_30 = arith.constant 0.000000e+00 : f32
    %53 = vector.shape_cast %36 : vector<1x8xi1> to vector<1x8xi1>
    %54 = vector.broadcast %53 : vector<1x8xi1> to vector<256x8xi1>
    %55 = vector.broadcast %cst_30 : f32 to vector<256x8xf32>
    %56 = arith.select %54, %28, %55 : vector<256x8xi1>, vector<256x8xf32>
    %57 = arith.truncf %56 : vector<256x8xf32> to vector<256x8xbf16>
    %cst_31 = arith.constant dense<0.000000e+00> : vector<256x256xf32>
    %58 = tpu.matmul %57, %29, %cst_31 {dimension_numbers = #tpu.dot_dimension_numbers<[1], [1], [0], [0], [0, 0, 1, 0], [], []>} : vector<256x8xbf16>, vector<256x8xbf16>, vector<256x256xf32> -> vector<256x256xf32>
    %59 = vector.broadcast %4 : vector<1x256xf32> to vector<256x256xf32>
    %60 = arith.addf %58, %59 : vector<256x256xf32>
    %cst_32 = arith.constant dense<0xFF800000> : vector<256xf32>
    %61 = vector.multi_reduction <maximumf>, %60, %cst_32 [1] : vector<256x256xf32> to vector<256xf32>
    %62 = vector.shape_cast %61 : vector<256xf32> to vector<256x1xf32>
    %63 = vector.broadcast %62 : vector<256x1xf32> to vector<256x256xf32>
    %64 = arith.subf %60, %63 : vector<256x256xf32>
    %65 = math.exp %64 : vector<256x256xf32>
    %cst_33 = arith.constant dense<0.000000e+00> : vector<256xf32>
    %66 = vector.multi_reduction <add>, %65, %cst_33 [1] : vector<256x256xf32> to vector<256xf32>
    %67 = vector.shape_cast %66 : vector<256xf32> to vector<256x1xf32>
    %68 = tpu.reciprocal %67 {approx = true} : vector<256x1xf32> -> vector<256x1xf32>
    %69 = vector.broadcast %68 : vector<256x1xf32> to vector<256x256xf32>
    %70 = arith.mulf %65, %69 : vector<256x256xf32>
    %71 = arith.truncf %70 : vector<256x256xf32> to vector<256x256xbf16>
    %cst_34 = arith.constant dense<0.000000e+00> : vector<256x8xf32>
    %72 = tpu.matmul %71, %30, %cst_34 {dimension_numbers = #tpu.dot_dimension_numbers<[1], [0], [0], [1], [0, 0, 1, 1], [], []>} : vector<256x256xbf16>, vector<256x8xbf16>, vector<256x8xf32> -> vector<256x8xf32>
    %cst_35 = arith.constant 0.000000e+00 : f32
    %73 = vector.shape_cast %36 : vector<1x8xi1> to vector<1x8xi1>
    %74 = vector.broadcast %73 : vector<1x8xi1> to vector<256x8xi1>
    %75 = vector.broadcast %cst_35 : f32 to vector<256x8xf32>
    %76 = arith.select %74, %72, %75 : vector<256x8xi1>, vector<256x8xf32>
    %77 = arith.addf %52, %76 : vector<256x8xf32>
    %cst_36 = arith.constant 0.000000e+00 : f32
    %78 = vector.shape_cast %41 : vector<1x8xi1> to vector<1x8xi1>
    %79 = vector.broadcast %78 : vector<1x8xi1> to vector<256x8xi1>
    %80 = vector.broadcast %cst_36 : f32 to vector<256x8xf32>
    %81 = arith.select %79, %28, %80 : vector<256x8xi1>, vector<256x8xf32>
    %82 = arith.truncf %81 : vector<256x8xf32> to vector<256x8xbf16>
    %cst_37 = arith.constant dense<0.000000e+00> : vector<256x256xf32>
    %83 = tpu.matmul %82, %29, %cst_37 {dimension_numbers = #tpu.dot_dimension_numbers<[1], [1], [0], [0], [0, 0, 1, 0], [], []>} : vector<256x8xbf16>, vector<256x8xbf16>, vector<256x256xf32> -> vector<256x256xf32>
    %84 = vector.broadcast %4 : vector<1x256xf32> to vector<256x256xf32>
    %85 = arith.addf %83, %84 : vector<256x256xf32>
    %cst_38 = arith.constant dense<0xFF800000> : vector<256xf32>
    %86 = vector.multi_reduction <maximumf>, %85, %cst_38 [1] : vector<256x256xf32> to vector<256xf32>
    %87 = vector.shape_cast %86 : vector<256xf32> to vector<256x1xf32>
    %88 = vector.broadcast %87 : vector<256x1xf32> to vector<256x256xf32>
    %89 = arith.subf %85, %88 : vector<256x256xf32>
    %90 = math.exp %89 : vector<256x256xf32>
    %cst_39 = arith.constant dense<0.000000e+00> : vector<256xf32>
    %91 = vector.multi_reduction <add>, %90, %cst_39 [1] : vector<256x256xf32> to vector<256xf32>
    %92 = vector.shape_cast %91 : vector<256xf32> to vector<256x1xf32>
    %93 = tpu.reciprocal %92 {approx = true} : vector<256x1xf32> -> vector<256x1xf32>
    %94 = vector.broadcast %93 : vector<256x1xf32> to vector<256x256xf32>
    %95 = arith.mulf %90, %94 : vector<256x256xf32>
    %96 = arith.truncf %95 : vector<256x256xf32> to vector<256x256xbf16>
    %cst_40 = arith.constant dense<0.000000e+00> : vector<256x8xf32>
    %97 = tpu.matmul %96, %30, %cst_40 {dimension_numbers = #tpu.dot_dimension_numbers<[1], [0], [0], [1], [0, 0, 1, 1], [], []>} : vector<256x256xbf16>, vector<256x8xbf16>, vector<256x8xf32> -> vector<256x8xf32>
    %cst_41 = arith.constant 0.000000e+00 : f32
    %98 = vector.shape_cast %41 : vector<1x8xi1> to vector<1x8xi1>
    %99 = vector.broadcast %98 : vector<1x8xi1> to vector<256x8xi1>
    %100 = vector.broadcast %cst_41 : f32 to vector<256x8xf32>
    %101 = arith.select %99, %97, %100 : vector<256x8xi1>, vector<256x8xf32>
    %102 = arith.addf %77, %101 : vector<256x8xf32>
    %cst_42 = arith.constant 0.000000e+00 : f32
    %103 = vector.shape_cast %46 : vector<1x8xi1> to vector<1x8xi1>
    %104 = vector.broadcast %103 : vector<1x8xi1> to vector<256x8xi1>
    %105 = vector.broadcast %cst_42 : f32 to vector<256x8xf32>
    %106 = arith.select %104, %28, %105 : vector<256x8xi1>, vector<256x8xf32>
    %107 = arith.truncf %106 : vector<256x8xf32> to vector<256x8xbf16>
    %cst_43 = arith.constant dense<0.000000e+00> : vector<256x256xf32>
    %108 = tpu.matmul %107, %29, %cst_43 {dimension_numbers = #tpu.dot_dimension_numbers<[1], [1], [0], [0], [0, 0, 1, 0], [], []>} : vector<256x8xbf16>, vector<256x8xbf16>, vector<256x256xf32> -> vector<256x256xf32>
    %109 = vector.broadcast %4 : vector<1x256xf32> to vector<256x256xf32>
    %110 = arith.addf %108, %109 : vector<256x256xf32>
    %cst_44 = arith.constant dense<0xFF800000> : vector<256xf32>
    %111 = vector.multi_reduction <maximumf>, %110, %cst_44 [1] : vector<256x256xf32> to vector<256xf32>
    %112 = vector.shape_cast %111 : vector<256xf32> to vector<256x1xf32>
    %113 = vector.broadcast %112 : vector<256x1xf32> to vector<256x256xf32>
    %114 = arith.subf %110, %113 : vector<256x256xf32>
    %115 = math.exp %114 : vector<256x256xf32>
    %cst_45 = arith.constant dense<0.000000e+00> : vector<256xf32>
    %116 = vector.multi_reduction <add>, %115, %cst_45 [1] : vector<256x256xf32> to vector<256xf32>
    %117 = vector.shape_cast %116 : vector<256xf32> to vector<256x1xf32>
    %118 = tpu.reciprocal %117 {approx = true} : vector<256x1xf32> -> vector<256x1xf32>
    %119 = vector.broadcast %118 : vector<256x1xf32> to vector<256x256xf32>
    %120 = arith.mulf %115, %119 : vector<256x256xf32>
    %121 = arith.truncf %120 : vector<256x256xf32> to vector<256x256xbf16>
    %cst_46 = arith.constant dense<0.000000e+00> : vector<256x8xf32>
    %122 = tpu.matmul %121, %30, %cst_46 {dimension_numbers = #tpu.dot_dimension_numbers<[1], [0], [0], [1], [0, 0, 1, 1], [], []>} : vector<256x256xbf16>, vector<256x8xbf16>, vector<256x8xf32> -> vector<256x8xf32>
    %cst_47 = arith.constant 0.000000e+00 : f32
    %123 = vector.shape_cast %46 : vector<1x8xi1> to vector<1x8xi1>
    %124 = vector.broadcast %123 : vector<1x8xi1> to vector<256x8xi1>
    %125 = vector.broadcast %cst_47 : f32 to vector<256x8xf32>
    %126 = arith.select %124, %122, %125 : vector<256x8xi1>, vector<256x8xf32>
    %127 = arith.addf %102, %126 : vector<256x8xf32>
    %cst_48 = arith.constant 0.000000e+00 : f32
    %128 = vector.shape_cast %51 : vector<1x8xi1> to vector<1x8xi1>
    %129 = vector.broadcast %128 : vector<1x8xi1> to vector<256x8xi1>
    %130 = vector.broadcast %cst_48 : f32 to vector<256x8xf32>
    %131 = arith.select %129, %28, %130 : vector<256x8xi1>, vector<256x8xf32>
    %132 = arith.truncf %131 : vector<256x8xf32> to vector<256x8xbf16>
    %cst_49 = arith.constant dense<0.000000e+00> : vector<256x256xf32>
    %133 = tpu.matmul %132, %29, %cst_49 {dimension_numbers = #tpu.dot_dimension_numbers<[1], [1], [0], [0], [0, 0, 1, 0], [], []>} : vector<256x8xbf16>, vector<256x8xbf16>, vector<256x256xf32> -> vector<256x256xf32>
    %134 = vector.broadcast %4 : vector<1x256xf32> to vector<256x256xf32>
    %135 = arith.addf %133, %134 : vector<256x256xf32>
    %cst_50 = arith.constant dense<0xFF800000> : vector<256xf32>
    %136 = vector.multi_reduction <maximumf>, %135, %cst_50 [1] : vector<256x256xf32> to vector<256xf32>
    %137 = vector.shape_cast %136 : vector<256xf32> to vector<256x1xf32>
    %138 = vector.broadcast %137 : vector<256x1xf32> to vector<256x256xf32>
    %139 = arith.subf %135, %138 : vector<256x256xf32>
    %140 = math.exp %139 : vector<256x256xf32>
    %cst_51 = arith.constant dense<0.000000e+00> : vector<256xf32>
    %141 = vector.multi_reduction <add>, %140, %cst_51 [1] : vector<256x256xf32> to vector<256xf32>
    %142 = vector.shape_cast %141 : vector<256xf32> to vector<256x1xf32>
    %143 = tpu.reciprocal %142 {approx = true} : vector<256x1xf32> -> vector<256x1xf32>
    %144 = vector.broadcast %143 : vector<256x1xf32> to vector<256x256xf32>
    %145 = arith.mulf %140, %144 : vector<256x256xf32>
    %146 = arith.truncf %145 : vector<256x256xf32> to vector<256x256xbf16>
    %cst_52 = arith.constant dense<0.000000e+00> : vector<256x8xf32>
    %147 = tpu.matmul %146, %30, %cst_52 {dimension_numbers = #tpu.dot_dimension_numbers<[1], [0], [0], [1], [0, 0, 1, 1], [], []>} : vector<256x256xbf16>, vector<256x8xbf16>, vector<256x8xf32> -> vector<256x8xf32>
    %cst_53 = arith.constant 0.000000e+00 : f32
    %148 = vector.shape_cast %51 : vector<1x8xi1> to vector<1x8xi1>
    %149 = vector.broadcast %148 : vector<1x8xi1> to vector<256x8xi1>
    %150 = vector.broadcast %cst_53 : f32 to vector<256x8xf32>
    %151 = arith.select %149, %147, %150 : vector<256x8xi1>, vector<256x8xf32>
    %152 = arith.addf %127, %151 : vector<256x8xf32>
    %153 = arith.truncf %152 : vector<256x8xf32> to vector<256x8xbf16>
    %c0_54 = arith.constant 0 : index
    %c0_55 = arith.constant 0 : index
    %c0_56 = arith.constant 0 : index
    %154 = vector.load %arg15[%c0_54, %c0_55, %c0_56] : memref<1x8x8xbf16, #tpu.memory_space<vmem>>, vector<1x8x8xbf16>
    %155 = vector.shape_cast %154 : vector<1x8x8xbf16> to vector<8x8xbf16>
    %cst_57 = arith.constant dense<0.000000e+00> : vector<256x8xf32>
    %156 = tpu.matmul %153, %155, %cst_57 {dimension_numbers = #tpu.dot_dimension_numbers<[1], [0], [0], [1], [0, 0, 1, 1], [], []>} : vector<256x8xbf16>, vector<8x8xbf16>, vector<256x8xf32> -> vector<256x8xf32>
    %c0_58 = arith.constant 0 : index
    %c0_59 = arith.constant 0 : index
    %c0_60 = arith.constant 0 : index
    %157 = vector.load %arg16[%c0_58, %c0_59, %c0_60] : memref<1x1x8xf32, #tpu.memory_space<vmem>>, vector<1x1x8xf32>
    %158 = vector.shape_cast %157 : vector<1x1x8xf32> to vector<1x8xf32>
    %159 = vector.broadcast %158 : vector<1x8xf32> to vector<256x8xf32>
    %160 = arith.addf %156, %159 : vector<256x8xf32>
    %161 = arith.addf %160, %3 : vector<256x8xf32>
    %162 = arith.truncf %161 : vector<256x8xf32> to vector<256x8xbf16>
    %c0_61 = arith.constant 0 : index
    %c0_62 = arith.constant 0 : index
    %c0_63 = arith.constant 0 : index
    %163 = vector.load %arg17[%c0_61, %c0_62, %c0_63] : memref<1x8x8xbf16, #tpu.memory_space<vmem>>, vector<1x8x8xbf16>
    %164 = vector.shape_cast %163 : vector<1x8x8xbf16> to vector<8x8xbf16>
    %cst_64 = arith.constant dense<0.000000e+00> : vector<256x8xf32>
    %165 = tpu.matmul %162, %164, %cst_64 {dimension_numbers = #tpu.dot_dimension_numbers<[1], [0], [0], [1], [0, 0, 1, 1], [], []>} : vector<256x8xbf16>, vector<8x8xbf16>, vector<256x8xf32> -> vector<256x8xf32>
    %166 = arith.truncf %165 : vector<256x8xf32> to vector<256x8xbf16>
    %c0_65 = arith.constant 0 : index
    %c0_66 = arith.constant 0 : index
    %c0_67 = arith.constant 0 : index
    %167 = vector.load %arg18[%c0_65, %c0_66, %c0_67] : memref<1x8x8xbf16, #tpu.memory_space<vmem>>, vector<1x8x8xbf16>
    %168 = vector.shape_cast %167 : vector<1x8x8xbf16> to vector<8x8xbf16>
    %cst_68 = arith.constant dense<0.000000e+00> : vector<256x8xf32>
    %169 = tpu.matmul %166, %168, %cst_68 {dimension_numbers = #tpu.dot_dimension_numbers<[1], [0], [0], [1], [0, 0, 1, 1], [], []>} : vector<256x8xbf16>, vector<8x8xbf16>, vector<256x8xf32> -> vector<256x8xf32>
    %170 = arith.addf %169, %161 : vector<256x8xf32>
    %c0_69 = arith.constant 0 : index
    %c0_70 = arith.constant 0 : index
    %171 = vector.load %arg21[%c0_69, %c0_70] : memref<256x8xf32, #tpu.memory_space<vmem>>, vector<256x8xf32>
    tpu.vector_store %arg21[%c0_69, %c0_70], %170 {strides = array<i32>} : memref<256x8xf32, #tpu.memory_space<vmem>>, vector<256x8xf32>,
    %c1_i32 = arith.constant 1 : i32
    %172 = arith.cmpi eq, %arg0, %c1_i32 : i32
    %173 = arith.extui %172 : i1 to i32
    %c0_i32_71 = arith.constant 0 : i32
    %174 = arith.cmpi ne, %173, %c0_i32_71 : i32
    scf.if %174 {
      %c0_72 = arith.constant 0 : index
      %c0_73 = arith.constant 0 : index
      %175 = vector.load %arg8[%c0_72, %c0_73] : memref<256x1xf32, #tpu.memory_space<vmem>>, vector<256x1xf32>
      %cst_74 = arith.constant 5.000000e-01 : f32
      %176 = vector.broadcast %cst_74 : f32 to vector<256x1xf32>
      %177 = arith.cmpf ogt, %175, %176 : vector<256x1xf32>
      %c0_75 = arith.constant 0 : index
      %c0_76 = arith.constant 0 : index
      %178 = vector.load %arg22[%c0_75, %c0_76] : memref<256x8xf32, #tpu.memory_space<vmem>>, vector<256x8xf32>
      %179 = vector.shape_cast %177 : vector<256x1xi1> to vector<256x1xi1>
      %180 = vector.broadcast %179 : vector<256x1xi1> to vector<256x8xi1>
      %181 = arith.select %180, %170, %178 : vector<256x8xi1>, vector<256x8xf32>
      %182 = tpu.transpose %181, [1, 0] : vector<256x8xf32> -> vector<8x256xf32>
      %183 = arith.truncf %182 : vector<8x256xf32> to vector<8x256xbf16>
      %c0_77 = arith.constant 0 : index
      %c0_78 = arith.constant 0 : index
      %184 = vector.load %arg19[%c0_77, %c0_78] : memref<8x256xbf16, #tpu.memory_space<vmem>>, vector<8x256xbf16>
      tpu.vector_store %arg19[%c0_77, %c0_78], %183 {strides = array<i32>} : memref<8x256xbf16, #tpu.memory_space<vmem>>, vector<8x256xbf16>,
    } else {
    }
    return
  }
  func.func @transform_0(%arg0: i32) -> (i32, i32) {
    %c0_i32 = arith.constant 0 : i32
    %c0_i32_0 = arith.constant 0 : i32
    %c0_i32_1 = arith.constant 0 : i32
    return %c0_i32, %c0_i32_0 : i32, i32
  }
  func.func @transform_1(%arg0: i32) -> (i32, i32) {
    %c0_i32 = arith.constant 0 : i32
    %c0_i32_0 = arith.constant 0 : i32
    %c0_i32_1 = arith.constant 0 : i32
    return %c0_i32, %c0_i32_0 : i32, i32
  }
  func.func @transform_2(%arg0: i32) -> (i32, i32) {
    %c0_i32 = arith.constant 0 : i32
    %c0_i32_0 = arith.constant 0 : i32
    %c0_i32_1 = arith.constant 0 : i32
    return %c0_i32, %c0_i32_0 : i32, i32
  }
  func.func @transform_3(%arg0: i32) -> (i32, i32) {
    %c0_i32 = arith.constant 0 : i32
    %c0_i32_0 = arith.constant 0 : i32
    %c0_i32_1 = arith.constant 0 : i32
    return %c0_i32, %c0_i32_0 : i32, i32
  }
  func.func @transform_4(%arg0: i32) -> (i32, i32) {
    %c0_i32 = arith.constant 0 : i32
    %c0_i32_0 = arith.constant 0 : i32
    %c0_i32_1 = arith.constant 0 : i32
    return %c0_i32, %c0_i32_0 : i32, i32
  }
  func.func @transform_5(%arg0: i32) -> (i32, i32) {
    %c0_i32 = arith.constant 0 : i32
    %c0_i32_0 = arith.constant 0 : i32
    %c0_i32_1 = arith.constant 0 : i32
    return %c0_i32, %c0_i32_0 : i32, i32
  }
  func.func @transform_6(%arg0: i32) -> (i32, i32) {
    %c0_i32 = arith.constant 0 : i32
    %c0_i32_0 = arith.constant 0 : i32
    %c0_i32_1 = arith.constant 0 : i32
    return %c0_i32, %c0_i32_0 : i32, i32
  }
  func.func @transform_7(%arg0: i32) -> (i32, i32) {
    %c0_i32 = arith.constant 0 : i32
    %c0_i32_0 = arith.constant 0 : i32
    %c0_i32_1 = arith.constant 0 : i32
    return %c0_i32, %c0_i32_0 : i32, i32
  }
  func.func @transform_8(%arg0: i32) -> (i32, i32, i32) {
    %c0_i32 = arith.constant 0 : i32
    %c0_i32_0 = arith.constant 0 : i32
    %c0_i32_1 = arith.constant 0 : i32
    return %arg0, %c0_i32, %c0_i32_0 : i32, i32, i32
  }
  func.func @transform_9(%arg0: i32) -> (i32, i32, i32) {
    %c0_i32 = arith.constant 0 : i32
    %c0_i32_0 = arith.constant 0 : i32
    %c0_i32_1 = arith.constant 0 : i32
    return %arg0, %c0_i32, %c0_i32_0 : i32, i32, i32
  }
  func.func @transform_10(%arg0: i32) -> (i32, i32, i32) {
    %c0_i32 = arith.constant 0 : i32
    %c0_i32_0 = arith.constant 0 : i32
    %c0_i32_1 = arith.constant 0 : i32
    return %arg0, %c0_i32, %c0_i32_0 : i32, i32, i32
  }
  func.func @transform_11(%arg0: i32) -> (i32, i32, i32) {
    %c0_i32 = arith.constant 0 : i32
    %c0_i32_0 = arith.constant 0 : i32
    %c0_i32_1 = arith.constant 0 : i32
    return %arg0, %c0_i32, %c0_i32_0 : i32, i32, i32
  }
  func.func @transform_12(%arg0: i32) -> (i32, i32, i32) {
    %c0_i32 = arith.constant 0 : i32
    %c0_i32_0 = arith.constant 0 : i32
    %c0_i32_1 = arith.constant 0 : i32
    return %arg0, %c0_i32, %c0_i32_0 : i32, i32, i32
  }
  func.func @transform_13(%arg0: i32) -> (i32, i32, i32) {
    %c0_i32 = arith.constant 0 : i32
    %c0_i32_0 = arith.constant 0 : i32
    %c0_i32_1 = arith.constant 0 : i32
    return %arg0, %c0_i32, %c0_i32_0 : i32, i32, i32
  }
  func.func @transform_14(%arg0: i32) -> (i32, i32, i32) {
    %c0_i32 = arith.constant 0 : i32
    %c0_i32_0 = arith.constant 0 : i32
    %c0_i32_1 = arith.constant 0 : i32
    return %arg0, %c0_i32, %c0_i32_0 : i32, i32, i32
  }
  func.func @transform_15(%arg0: i32) -> (i32, i32, i32) {
    %c0_i32 = arith.constant 0 : i32
    %c0_i32_0 = arith.constant 0 : i32
    %c0_i32_1 = arith.constant 0 : i32
    return %arg0, %c0_i32, %c0_i32_0 : i32, i32, i32
  }
  func.func @transform_16(%arg0: i32) -> (i32, i32, i32) {
    %c0_i32 = arith.constant 0 : i32
    %c0_i32_0 = arith.constant 0 : i32
    %c0_i32_1 = arith.constant 0 : i32
    return %arg0, %c0_i32, %c0_i32_0 : i32, i32, i32
  }
  func.func @transform_17(%arg0: i32) -> (i32, i32, i32) {
    %c0_i32 = arith.constant 0 : i32
    %c0_i32_0 = arith.constant 0 : i32
    %c0_i32_1 = arith.constant 0 : i32
    return %arg0, %c0_i32, %c0_i32_0 : i32, i32, i32
  }
  func.func @transform_18(%arg0: i32) -> (i32, i32) {
    %c0_i32 = arith.constant 0 : i32
    %c0_i32_0 = arith.constant 0 : i32
    %c0_i32_1 = arith.constant 0 : i32
    return %c0_i32, %c0_i32_0 : i32, i32
  }
  func.func @transform_19(%arg0: i32) -> (i32, i32) {
    %c0_i32 = arith.constant 0 : i32
    %c0_i32_0 = arith.constant 0 : i32
    %c0_i32_1 = arith.constant 0 : i32
    return %c0_i32, %c0_i32_0 : i32, i32
  }
}

</mosaic_0001>

<llo_original>
// kernel: mul.22
$region0: #{mul.22}
  %s0 = inlined_call_operand.vmem [shape: f32[16,16], index: 0, kind: input, shape index: {}]
  %s1 = inlined_call_operand.vmem [shape: f32[256], index: 1, kind: output, shape index: {}]
  $region1: #{mul.22} parent=0
    #allocation0 [shape = 'u8[4096]{0}', space=vmem, size = 0x1000, scoped, tag = 'scoped mem for output reshape']
    %s2 = smov 3
    %v3 = vld [vmem:[%s0] ss:$8 sm:%s2]
    %vm4 = vcmask 130048
    %5 = vst.msk [vmem:[#allocation0] sm:$0x3] %vm4, %v3
    %s6 = scalar_lea.vmem %s0, 7
    %s7 = smov 3
    %v8 = vld [vmem:[%s6] ss:$8 sm:%s7]
    %9 = vrot.lane.b32.xlu0 %v8, 112
    %v10 = vpop.permute.xlu0 %9
    %vm11 = vcmask 1048448
    %12 = vst.msk [vmem:[#allocation0] sm:$0x3] %vm11, %v10
    %s13 = scalar_lea.vmem %s0, 6
    %s14 = smov 3
    %v15 = vld [vmem:[%s13] ss:$8 sm:%s14]
    %16 = vrot.lane.b32.xlu0 %v15, 96
    %v17 = vpop.permute.xlu0 %16
    %vm18 = vcmask 917248
    %19 = vst.msk [vmem:[#allocation0] sm:$0x3] %vm18, %v17
    %s20 = scalar_lea.vmem %s0, 5
    %s21 = smov 3
    %v22 = vld [vmem:[%s20] ss:$8 sm:%s21]
    %23 = vrot.lane.b32.xlu0 %v22, 80
    %v24 = vpop.permute.xlu0 %23
    %vm25 = vcmask 786048
    %26 = vst.msk [vmem:[#allocation0] sm:$0x3] %vm25, %v24
    %s27 = scalar_lea.vmem %s0, 4
    %s28 = smov 3
    %v29 = vld [vmem:[%s27] ss:$8 sm:%s28]
    %30 = vrot.lane.b32.xlu0 %v29, 64
    %v31 = vpop.permute.xlu0 %30
    %vm32 = vcmask 654848
    %33 = vst.msk [vmem:[#allocation0] sm:$0x3] %vm32, %v31
    %s34 = scalar_lea.vmem %s0, 3
    %s35 = smov 3
    %v36 = vld [vmem:[%s34] ss:$8 sm:%s35]
    %37 = vrot.lane.b32.xlu0 %v36, 48
    %v38 = vpop.permute.xlu0 %37
    %vm39 = vcmask 523648
    %40 = vst.msk [vmem:[#allocation0] sm:$0x3] %vm39, %v38
    %s41 = scalar_lea.vmem %s0, 2
    %s42 = smov 3
    %v43 = vld [vmem:[%s41] ss:$8 sm:%s42]
    %44 = vrot.lane.b32.xlu0 %v43, 32
    %v45 = vpop.permute.xlu0 %44
    %vm46 = vcmask 392448
    %47 = vst.msk [vmem:[#allocation0] sm:$0x3] %vm46, %v45
    %s48 = scalar_lea.vmem %s0, 1
    %s49 = smov 3
    %v50 = vld [vmem:[%s48] ss:$8 sm:%s49]
    %51 = vrot.lane.b32.xlu0 %v50, 16
    %v52 = vpop.permute.xlu0 %51
    %vm53 = vcmask 261248
    %54 = vst.msk [vmem:[#allocation0] sm:$0x3] %vm53, %v52
    %s56 = sshllo.u32 0, 2
    %v58 = vld [vmem:[#allocation0] sm:%s56]
    %s59 = sshllo.u32 0, 2
    %60 = vst [vmem:[%s1] sm:%s59] %v58

// kernel: _lambda_.3
$region0: #{_lambda_.3}
  #allocation0 [shape = 'u32[]', space=smem, size = 0x4, offset = 0x4, fixed_abs, tag = 'smem constant byte address 0x4 - core index']
  #allocation1 [shape = 'u32[144,128]{1,0:T(1,128)}', space=vmem, size = 0x12000, scoped, tag = 'internal scratch']
  %s0 = inlined_call_operand.vmem [shape: bf16[8,256], index: 0, kind: input, shape index: {}]
  %s1 = inlined_call_operand.vmem [shape: bf16[8,256], index: 1, kind: input, shape index: {}]
  %s2 = inlined_call_operand.vmem [shape: bf16[16,8], index: 2, kind: input, shape index: {}]
  %s3 = inlined_call_operand.vmem [shape: bf16[16,8], index: 3, kind: input, shape index: {}]
  %s4 = inlined_call_operand.vmem [shape: f32[16,1], index: 4, kind: input, shape index: {}]
  %s5 = inlined_call_operand.vmem [shape: f32[16,256], index: 5, kind: output, shape index: {}]
  %s6 = sld [smem:[#allocation0]]
  $region30: #{_lambda_.3} parent=0
    _
  %s8 = ssub.s32 1, %s6
  %s9 = scalar_select 0, %s8, %s6
  // Predicated region
  $region2: #{_lambda_.3} parent=0 // pred_check
    _
  $region3: #{_lambda_.3} parent=0 // pred_check_branch
    %11 = sbr.rel (0) target = $region5
  $region4: #{_lambda_.3} parent=0 // pred_region
    _
  $region5: #{_lambda_.3} parent=0 // pred_fallthru
    _
  // Predicated region
  $region6: #{_lambda_.3} parent=0 // pred_check
    _
  $region7: #{_lambda_.3} parent=0 // pred_check_branch
    %13 = sbr.rel (0) target = $region9
  $region8: #{_lambda_.3} parent=0 // pred_region
    _
  $region9: #{_lambda_.3} parent=0 // pred_fallthru
    _
  // Predicated region
  $region10: #{_lambda_.3} parent=0 // pred_check
    _
  $region11: #{_lambda_.3} parent=0 // pred_check_branch
    %15 = sbr.rel (0) target = $region13
  $region12: #{_lambda_.3} parent=0 // pred_region
    _
  $region13: #{_lambda_.3} parent=0 // pred_fallthru
    _
  // Predicated region
  $region14: #{_lambda_.3} parent=0 // pred_check
    _
  $region15: #{_lambda_.3} parent=0 // pred_check_branch
    %17 = sbr.rel (0) target = $region17
  $region16: #{_lambda_.3} parent=0 // pred_region
    _
  $region17: #{_lambda_.3} parent=0 // pred_fallthru
    _
  // Predicated region
  $region18: #{_lambda_.3} parent=0 // pred_check
    _
  $region19: #{_lambda_.3} parent=0 // pred_check_branch
    %19 = sbr.rel (0) target = $region21
  $region20: #{_lambda_.3} parent=0 // pred_region
    _
  $region21: #{_lambda_.3} parent=0 // pred_fallthru
    _
  %v21 = vld [vmem:[%s2] sm:$0xf]
  %v22 = vld [vmem:[%s2 + $0x4] sm:$0xf]
  %v23 = vld [vmem:[%s0] sm:$0xff]
  %v24 = vld [vmem:[%s3] sm:$0xf]
  %v25 = vld [vmem:[%s3 + $0x4] sm:$0xf]
  %v26 = vld [vmem:[%s1] sm:$0xff]
  %v29 = vunpack.c.l.b16 %v24
  %v30 = vunpack.c.l.b16 %v25
  %v31 = vpack.c.b16 %v30, %v29
  %v33 = vunpack.c.l.b16 %v26
  %v34 = vunpack.c.h.b16 %v26
  %v35 = vpack.c.b16 %v33, %v33
  %v36 = vpack.c.b16 %v34, %v34
  %vm37 = vcmask 64512
  %v39 = vsel %vm37, %v31, 0
  %vm41 = vcmask 1043456
  %v43 = vsel %vm41, %v35, 0
  %v46 = vsel %vm41, %v36, 0
  %48 = vmatprep.subr.bf16.mxu0 %v46
  %49 = vmatpush1.bf16.msra.mxu0 %v43
  %50 = vmatprep.subr.bf16.mxu0 0
  %51 = vmatpush1.bf16.msra.mxu0 0
  %52 = vmatprep.subr.bf16.mxu0 0
  %53 = vmatpush1.bf16.msra.mxu0 0
  %54 = vmatprep.subr.bf16.mxu0 0
  %55 = vmatpush1.bf16.msra.mxu0 0
  %56 = vmatprep.subr.bf16.mxu0 0
  %57 = vmatpush1.bf16.msra.mxu0 0
  %58 = vmatprep.subr.bf16.mxu0 0
  %59 = vmatpush1.bf16.msra.mxu0 0
  %60 = vmatprep.subr.bf16.mxu0 0
  %61 = vmatpush1.bf16.msra.mxu0 0
  %62 = vmatprep.subr.bf16.mxu0 0
  %63 = vmatpush1.bf16.msra.mxu0 0
  %64 = vmatprep.subr.bf16.mxu0 0
  %65 = vmatpush1.bf16.msra.mxu0 0
  %66 = vmatprep.subr.bf16.mxu0 0
  %67 = vmatpush1.bf16.msra.mxu0 0
  %68 = vmatprep.subr.bf16.mxu0 0
  %69 = vmatpush1.bf16.msra.mxu0 0
  %70 = vmatprep.subr.bf16.mxu0 0
  %71 = vmatpush1.bf16.msra.mxu0 0
  %72 = vmatprep.subr.bf16.mxu0 0
  %73 = vmatpush1.bf16.msra.mxu0 0
  %74 = vmatprep.subr.bf16.mxu0 0
  %75 = vmatpush1.bf16.msra.mxu0 0
  %76 = vmatprep.subr.bf16.mxu0 0
  %77 = vmatpush1.bf16.msra.mxu0 0
  %78 = vmatprep.subr.bf16.mxu0 0
  %79 = vmatpush1.bf16.msra.mxu0 0
  %80 = vmatprep.mubr.bf16.mxu0 0
  %81 = vmatmul.mubr.bf16.gmra.mrb[0].mxu0 %v39
  %v82 = vpop.f32.mrb[0].mxu0
  %v83 = vadd.f32 0.0, %v82
  %v84 = vpop.f32.mrb[0].mxu0
  %v85 = vadd.f32 0.0, %v84
  %v86 = vpop.f32.mrb[0].mxu0
  %v87 = vadd.f32 0.0, %v86
  %v88 = vpop.f32.mrb[0].mxu0
  %v89 = vadd.f32 0.0, %v88
  %90 = vdwg.mxu0
  %v93 = vunpack.c.l.b16 %v21
  %v94 = vunpack.c.l.b16 %v22
  %v95 = vpack.c.b16 %v94, %v93
  %v97 = vunpack.c.l.b16 %v23
  %v98 = vunpack.c.h.b16 %v23
  %v99 = vpack.c.b16 %v97, %v97
  %v100 = vpack.c.b16 %v98, %v98
  %v102 = vsel %vm37, %v95, 0
  %v105 = vsel %vm41, %v99, 0
  %v108 = vsel %vm41, %v100, 0
  %110 = vmatprep.subr.bf16.mxu0 %v108
  %111 = vmatpush1.bf16.msra.mxu0 %v105
  %112 = vmatprep.subr.bf16.mxu0 0
  %113 = vmatpush1.bf16.msra.mxu0 0
  %114 = vmatprep.subr.bf16.mxu0 0
  %115 = vmatpush1.bf16.msra.mxu0 0
  %116 = vmatprep.subr.bf16.mxu0 0
  %117 = vmatpush1.bf16.msra.mxu0 0
  %118 = vmatprep.subr.bf16.mxu0 0
  %119 = vmatpush1.bf16.msra.mxu0 0
  %120 = vmatprep.subr.bf16.mxu0 0
  %121 = vmatpush1.bf16.msra.mxu0 0
  %122 = vmatprep.subr.bf16.mxu0 0
  %123 = vmatpush1.bf16.msra.mxu0 0
  %124 = vmatprep.subr.bf16.mxu0 0
  %125 = vmatpush1.bf16.msra.mxu0 0
  %126 = vmatprep.subr.bf16.mxu0 0
  %127 = vmatpush1.bf16.msra.mxu0 0
  %128 = vmatprep.subr.bf16.mxu0 0
  %129 = vmatpush1.bf16.msra.mxu0 0
  %130 = vmatprep.subr.bf16.mxu0 0
  %131 = vmatpush1.bf16.msra.mxu0 0
  %132 = vmatprep.subr.bf16.mxu0 0
  %133 = vmatpush1.bf16.msra.mxu0 0
  %134 = vmatprep.subr.bf16.mxu0 0
  %135 = vmatpush1.bf16.msra.mxu0 0
  %136 = vmatprep.subr.bf16.mxu0 0
  %137 = vmatpush1.bf16.msra.mxu0 0
  %138 = vmatprep.subr.bf16.mxu0 0
  %139 = vmatpush1.bf16.msra.mxu0 0
  %140 = vmatprep.subr.bf16.mxu0 0
  %141 = vmatpush1.bf16.msra.mxu0 0
  %142 = vmatprep.mubr.bf16.mxu0 0
  %143 = vmatmul.mubr.bf16.gmra.mrb[0].mxu0 %v102
  %v144 = vpop.f32.mrb[0].mxu0
  %v145 = vadd.f32 %v83, %v144
  %v146 = vpop.f32.mrb[0].mxu0
  %v147 = vadd.f32 %v85, %v146
  %v148 = vpop.f32.mrb[0].mxu0
  %v149 = vadd.f32 %v87, %v148
  %v150 = vpop.f32.mrb[0].mxu0
  %v151 = vadd.f32 %v89, %v150
  %152 = vdwg.mxu0
  %v153 = vld [vmem:[%s4] sm:$0xff]
  %v154 = vld [vmem:[%s4 + $0x8] sm:$0xff]
  %156 = vset.pattern.permute.xlu0 0
  %157 = vperm.xlu0 %156, %v153
  %v158 = vpop.permute.xlu0 %157
  %161 = vset.pattern.permute.xlu0 0
  %162 = vperm.xlu0 %161, %v154
  %v163 = vpop.permute.xlu0 %162
  %v165 = vadd.f32 %v145, %v158
  %v166 = vadd.f32 %v147, %v158
  %v167 = vadd.f32 %v149, %v163
  %v168 = vadd.f32 %v151, %v163
  %v169 = vxor.u32 %v165, 2147483648
  %v170 = vxor.u32 %v166, 2147483648
  %v171 = vxor.u32 %v167, 2147483648
  %v172 = vxor.u32 %v168, 2147483648
  %v173 = vmul.f32 %v169, 1.442695
  %v174 = vpow.pop %v173
  %v175 = vmul.f32 %v170, 1.442695
  %v176 = vpow.pop %v175
  %v177 = vmul.f32 %v171, 1.442695
  %v178 = vpow.pop %v177
  %v179 = vmul.f32 %v172, 1.442695
  %v180 = vpow.pop %v179
  %v181 = vadd.f32 %v174, 1.0
  %v182 = vadd.f32 %v176, 1.0
  %v183 = vadd.f32 %v178, 1.0
  %v184 = vadd.f32 %v180, 1.0
  %v185 = vrcp.pop %v181
  %v186 = vmul.f32 1.0, %v185
  %v187 = vrcp.pop %v182
  %v188 = vmul.f32 1.0, %v187
  %v189 = vrcp.pop %v183
  %v190 = vmul.f32 1.0, %v189
  %v191 = vrcp.pop %v184
  %v192 = vmul.f32 1.0, %v191
  %v193 = vmul.f32 %v165, %v186
  %v194 = vmul.f32 %v166, %v188
  %v195 = vmul.f32 %v167, %v190
  %v196 = vmul.f32 %v168, %v192
  %197 = vst [vmem:[%s5] sm:$0xff] %v193
  %198 = vst [vmem:[%s5 + $0x8] sm:$0xff] %v194
  %199 = vst [vmem:[%s5 + $0x10] sm:$0xff] %v195
  %200 = vst [vmem:[%s5 + $0x18] sm:$0xff] %v196
  // Predicated region
  $region22: #{_lambda_.3} parent=0 // pred_check
    _
  $region23: #{_lambda_.3} parent=0 // pred_check_branch
    %202 = sbr.rel (0) target = $region25
  $region24: #{_lambda_.3} parent=0 // pred_region
    _
  $region25: #{_lambda_.3} parent=0 // pred_fallthru
    _
  // Predicated region
  $region26: #{_lambda_.3} parent=0 // pred_check
    _
  $region27: #{_lambda_.3} parent=0 // pred_check_branch
    %204 = sbr.rel (0) target = $region29
  $region28: #{_lambda_.3} parent=0 // pred_region
    _
  $region29: #{_lambda_.3} parent=0 // pred_fallthru
    _

// kernel: _lambda_.2
$region0: #{_lambda_.2}
  #allocation0 [shape = 'u32[]', space=smem, size = 0x4, offset = 0x4, fixed_abs, tag = 'smem constant byte address 0x4 - core index']
  #allocation1 [shape = 'u32[144,128]{1,0:T(1,128)}', space=vmem, size = 0x12000, scoped, tag = 'internal scratch']
  #allocation2 [shape = 'f32[256,8]{1,0:T(8,128)}', space=vmem, size = 0x20000, scoped, tag = 'scratch operand']
  #allocation3 [shape = 'f32[256,8]{1,0:T(8,128)}', space=vmem, size = 0x20000, scoped, tag = 'scratch operand']
  %s0 = inlined_call_operand.vmem [shape: bf16[256,16], index: 0, kind: input, shape index: {}]
  %s1 = inlined_call_operand.vmem [shape: bf16[16,8], index: 1, kind: input, shape index: {}]
  %s2 = inlined_call_operand.vmem [shape: f32[1,8], index: 2, kind: input, shape index: {}]
  %s3 = inlined_call_operand.vmem [shape: bf16[16,8], index: 3, kind: input, shape index: {}]
  %s4 = inlined_call_operand.vmem [shape: f32[1,8], index: 4, kind: input, shape index: {}]
  %s5 = inlined_call_operand.vmem [shape: f32[256,8], index: 5, kind: input, shape index: {}]
  %s6 = inlined_call_operand.vmem [shape: f32[1,256], index: 6, kind: input, shape index: {}]
  %s7 = inlined_call_operand.vmem [shape: f32[256,1], index: 7, kind: input, shape index: {}]
  %s8 = inlined_call_operand.vmem [shape: bf16[2,8,8], index: 8, kind: input, shape index: {}]
  %s9 = inlined_call_operand.vmem [shape: f32[2,1,8], index: 9, kind: input, shape index: {}]
  %s10 = inlined_call_operand.vmem [shape: bf16[2,8,8], index: 10, kind: input, shape index: {}]
  %s11 = inlined_call_operand.vmem [shape: f32[2,1,8], index: 11, kind: input, shape index: {}]
  %s12 = inlined_call_operand.vmem [shape: bf16[2,8,8], index: 12, kind: input, shape index: {}]
  %s13 = inlined_call_operand.vmem [shape: f32[2,1,8], index: 13, kind: input, shape index: {}]
  %s14 = inlined_call_operand.vmem [shape: bf16[2,8,8], index: 14, kind: input, shape index: {}]
  %s15 = inlined_call_operand.vmem [shape: f32[2,1,8], index: 15, kind: input, shape index: {}]
  %s16 = inlined_call_operand.vmem [shape: bf16[2,8,8], index: 16, kind: input, shape index: {}]
  %s17 = inlined_call_operand.vmem [shape: bf16[2,8,8], index: 17, kind: input, shape index: {}]
  %s18 = inlined_call_operand.vmem [shape: bf16[8,256], index: 18, kind: output, shape index: {0}]
  %s19 = inlined_call_operand.vmem [shape: bf16[8,256], index: 19, kind: output, shape index: {1}]
  %20 = xla_tuple %s18, %s19
  %s21 = sld [smem:[#allocation0]]
  $region121: #{_lambda_.2} parent=0
    _
  %s23 = ssub.s32 1, %s21
  %s24 = scalar_select 0, %s23, %s21
  loop: start=0, step=1, limit=4
  $region2: #{_lambda_.2} parent=0 // loop_pre_header
    _
  $region3: #{_lambda_.2} parent=0 // loop_header
    %s26 = sphi 0, %s30
    %p27 = scmp.ge.s32.totalorder %s26, 4
    %s34 = sphi 0, %s34
    %s36 = sphi 0, %s34
    %s37 = sphi 0, %s36
    %s51 = sphi 0, %s37
    %s55 = sphi 0, %s55
    %s57 = sphi 0, %s55
    %s58 = sphi 0, %s57
    %s72 = sphi 0, %s58
    %s76 = sphi 0, %s76
    %s78 = sphi 0, %s76
    %s79 = sphi 0, %s78
    %s93 = sphi 0, %s79
    %s97 = sphi 0, %s97
    %s99 = sphi 0, %s97
    %s100 = sphi 0, %s99
    %s114 = sphi 0, %s100
    %s118 = sphi 0, %s118
    %s120 = sphi 0, %s118
    %s121 = sphi 0, %s120
    %s135 = sphi 0, %s121
    %s139 = sphi 0, %s139
    %s141 = sphi 0, %s139
    %s142 = sphi 0, %s141
    %s156 = sphi 0, %s142
    %s160 = sphi 0, %s160
    %s162 = sphi 0, %s160
    %s163 = sphi 0, %s162
    %s177 = sphi 0, %s163
    %s181 = sphi 0, %s181
    %s183 = sphi 0, %s181
    %s184 = sphi 0, %s183
    %s198 = sphi 0, %s184
    %s204 = sphi 0, %s206
    %s207 = sphi 0, %s204
    %s208 = sphi 0, %s207
    %s224 = sphi 0, %s208
    %s230 = sphi 0, %s232
    %s233 = sphi 0, %s230
    %s234 = sphi 0, %s233
    %s250 = sphi 0, %s234
    %s256 = sphi 0, %s258
    %s259 = sphi 0, %s256
    %s260 = sphi 0, %s259
    %s276 = sphi 0, %s260
    %s282 = sphi 0, %s284
    %s285 = sphi 0, %s282
    %s286 = sphi 0, %s285
    %s302 = sphi 0, %s286
    %s308 = sphi 0, %s310
    %s311 = sphi 0, %s308
    %s312 = sphi 0, %s311
    %s328 = sphi 0, %s312
    %s334 = sphi 0, %s336
    %s337 = sphi 0, %s334
    %s338 = sphi 0, %s337
    %s354 = sphi 0, %s338
    %s360 = sphi 0, %s362
    %s363 = sphi 0, %s360
    %s364 = sphi 0, %s363
    %s380 = sphi 0, %s364
    %s386 = sphi 0, %s388
    %s389 = sphi 0, %s386
    %s390 = sphi 0, %s389
    %s406 = sphi 0, %s390
    %s412 = sphi 0, %s414
    %s415 = sphi 0, %s412
    %s416 = sphi 0, %s415
    %s432 = sphi 0, %s416
    %s438 = sphi 0, %s440
    %s441 = sphi 0, %s438
    %s442 = sphi 0, %s441
    %s458 = sphi 0, %s442
    %s462 = sphi 0, %s462
    %s464 = sphi 0, %s462
    %s465 = sphi 0, %s464
    %s479 = sphi 0, %s465
    %s483 = sphi 0, %s483
    %s485 = sphi 0, %s483
    %s486 = sphi 0, %s485
    %s500 = sphi 0, %s486
  $region4: #{_lambda_.2} parent=0 // loop_header_branch
    %29 = sbr.rel (%p27) target = $region8
  $region5: #{_lambda_.2} parent=0 // loop_body
    %s31 = ssub.s32 %s26, 1
    %s32 = ssub.s32 %s26, 2
    %s33 = sadd.s32 %s26, 1
    %s35 = sadd.s32 %s34, 1
    %p38 = scmp.eq.s32.totalorder %s26, 1
    %p39 = scmp.ne.s32.totalorder %s34, %s36
    %p40 = scmp.eq.s32.totalorder %s26, 0
    %p41 = por %p39, %p40
    %p42 = scmp.ne.s32.totalorder %s34, %s36
    %p43 = scmp.eq.s32.totalorder %s31, 1
    %p44 = por %p42, %p43
    %p45 = scmp.ne.s32.totalorder %s36, %s37
    %p46 = scmp.eq.s32.totalorder %s31, 0
    %p47 = por %p45, %p46
    %p48 = scmp.ne.s32.totalorder %s36, %s37
    %p49 = scmp.eq.s32.totalorder %s32, 1
    %p50 = por %p48, %p49
    %p52 = scmp.ne.s32.totalorder %s37, %s51
    %p53 = scmp.eq.s32.totalorder %s32, 0
    %p54 = por %p52, %p53
    %s56 = sadd.s32 %s55, 1
    %p59 = scmp.eq.s32.totalorder %s26, 1
    %p60 = scmp.ne.s32.totalorder %s55, %s57
    %p61 = scmp.eq.s32.totalorder %s26, 0
    %p62 = por %p60, %p61
    %p63 = scmp.ne.s32.totalorder %s55, %s57
    %p64 = scmp.eq.s32.totalorder %s31, 1
    %p65 = por %p63, %p64
    %p66 = scmp.ne.s32.totalorder %s57, %s58
    %p67 = scmp.eq.s32.totalorder %s31, 0
    %p68 = por %p66, %p67
    %p69 = scmp.ne.s32.totalorder %s57, %s58
    %p70 = scmp.eq.s32.totalorder %s32, 1
    %p71 = por %p69, %p70
    %p73 = scmp.ne.s32.totalorder %s58, %s72
    %p74 = scmp.eq.s32.totalorder %s32, 0
    %p75 = por %p73, %p74
    %s77 = sadd.s32 %s76, 1
    %p80 = scmp.eq.s32.totalorder %s26, 1
    %p81 = scmp.ne.s32.totalorder %s76, %s78
    %p82 = scmp.eq.s32.totalorder %s26, 0
    %p83 = por %p81, %p82
    %p84 = scmp.ne.s32.totalorder %s76, %s78
    %p85 = scmp.eq.s32.totalorder %s31, 1
    %p86 = por %p84, %p85
    %p87 = scmp.ne.s32.totalorder %s78, %s79
    %p88 = scmp.eq.s32.totalorder %s31, 0
    %p89 = por %p87, %p88
    %p90 = scmp.ne.s32.totalorder %s78, %s79
    %p91 = scmp.eq.s32.totalorder %s32, 1
    %p92 = por %p90, %p91
    %p94 = scmp.ne.s32.totalorder %s79, %s93
    %p95 = scmp.eq.s32.totalorder %s32, 0
    %p96 = por %p94, %p95
    %s98 = sadd.s32 %s97, 1
    %p101 = scmp.eq.s32.totalorder %s26, 1
    %p102 = scmp.ne.s32.totalorder %s97, %s99
    %p103 = scmp.eq.s32.totalorder %s26, 0
    %p104 = por %p102, %p103
    %p105 = scmp.ne.s32.totalorder %s97, %s99
    %p106 = scmp.eq.s32.totalorder %s31, 1
    %p107 = por %p105, %p106
    %p108 = scmp.ne.s32.totalorder %s99, %s100
    %p109 = scmp.eq.s32.totalorder %s31, 0
    %p110 = por %p108, %p109
    %p111 = scmp.ne.s32.totalorder %s99, %s100
    %p112 = scmp.eq.s32.totalorder %s32, 1
    %p113 = por %p111, %p112
    %p115 = scmp.ne.s32.totalorder %s100, %s114
    %p116 = scmp.eq.s32.totalorder %s32, 0
    %p117 = por %p115, %p116
    %s119 = sadd.s32 %s118, 1
    %p122 = scmp.eq.s32.totalorder %s26, 1
    %p123 = scmp.ne.s32.totalorder %s118, %s120
    %p124 = scmp.eq.s32.totalorder %s26, 0
    %p125 = por %p123, %p124
    %p126 = scmp.ne.s32.totalorder %s118, %s120
    %p127 = scmp.eq.s32.totalorder %s31, 1
    %p128 = por %p126, %p127
    %p129 = scmp.ne.s32.totalorder %s120, %s121
    %p130 = scmp.eq.s32.totalorder %s31, 0
    %p131 = por %p129, %p130
    %p132 = scmp.ne.s32.totalorder %s120, %s121
    %p133 = scmp.eq.s32.totalorder %s32, 1
    %p134 = por %p132, %p133
    %p136 = scmp.ne.s32.totalorder %s121, %s135
    %p137 = scmp.eq.s32.totalorder %s32, 0
    %p138 = por %p136, %p137
    %s140 = sadd.s32 %s139, 1
    %p143 = scmp.eq.s32.totalorder %s26, 1
    %p144 = scmp.ne.s32.totalorder %s139, %s141
    %p145 = scmp.eq.s32.totalorder %s26, 0
    %p146 = por %p144, %p145
    %p147 = scmp.ne.s32.totalorder %s139, %s141
    %p148 = scmp.eq.s32.totalorder %s31, 1
    %p149 = por %p147, %p148
    %p150 = scmp.ne.s32.totalorder %s141, %s142
    %p151 = scmp.eq.s32.totalorder %s31, 0
    %p152 = por %p150, %p151
    %p153 = scmp.ne.s32.totalorder %s141, %s142
    %p154 = scmp.eq.s32.totalorder %s32, 1
    %p155 = por %p153, %p154
    %p157 = scmp.ne.s32.totalorder %s142, %s156
    %p158 = scmp.eq.s32.totalorder %s32, 0
    %p159 = por %p157, %p158
    %s161 = sadd.s32 %s160, 1
    %p164 = scmp.eq.s32.totalorder %s26, 1
    %p165 = scmp.ne.s32.totalorder %s160, %s162
    %p166 = scmp.eq.s32.totalorder %s26, 0
    %p167 = por %p165, %p166
    %p168 = scmp.ne.s32.totalorder %s160, %s162
    %p169 = scmp.eq.s32.totalorder %s31, 1
    %p170 = por %p168, %p169
    %p171 = scmp.ne.s32.totalorder %s162, %s163
    %p172 = scmp.eq.s32.totalorder %s31, 0
    %p173 = por %p171, %p172
    %p174 = scmp.ne.s32.totalorder %s162, %s163
    %p175 = scmp.eq.s32.totalorder %s32, 1
    %p176 = por %p174, %p175
    %p178 = scmp.ne.s32.totalorder %s163, %s177
    %p179 = scmp.eq.s32.totalorder %s32, 0
    %p180 = por %p178, %p179
    %s182 = sadd.s32 %s181, 1
    %p185 = scmp.eq.s32.totalorder %s26, 1
    %p186 = scmp.ne.s32.totalorder %s181, %s183
    %p187 = scmp.eq.s32.totalorder %s26, 0
    %p188 = por %p186, %p187
    %p189 = scmp.ne.s32.totalorder %s181, %s183
    %p190 = scmp.eq.s32.totalorder %s31, 1
    %p191 = por %p189, %p190
    %p192 = scmp.ne.s32.totalorder %s183, %s184
    %p193 = scmp.eq.s32.totalorder %s31, 0
    %p194 = por %p192, %p193
    %p195 = scmp.ne.s32.totalorder %s183, %s184
    %p196 = scmp.eq.s32.totalorder %s32, 1
    %p197 = por %p195, %p196
    %p199 = scmp.ne.s32.totalorder %s184, %s198
    %p200 = scmp.eq.s32.totalorder %s32, 0
    %p201 = por %p199, %p200
    %s202 = ssub.s32 %s26, %s33
    %p203 = scmp.eq.s32.totalorder %s202, 0
    %s205 = sadd.s32 %s204, 1
    %s206 = scalar_select %p203, %s204, %s205
    %p209 = pneg %p203
    %p210 = scmp.eq.s32.totalorder %s26, 1
    %p211 = por %p209, %p210
    %p212 = scmp.ne.s32.totalorder %s204, %s207
    %p213 = scmp.eq.s32.totalorder %s26, 0
    %p214 = por %p212, %p213
    %p215 = scmp.ne.s32.totalorder %s204, %s207
    %p216 = scmp.eq.s32.totalorder %s31, 1
    %p217 = por %p215, %p216
    %p218 = scmp.ne.s32.totalorder %s207, %s208
    %p219 = scmp.eq.s32.totalorder %s31, 0
    %p220 = por %p218, %p219
    %p221 = scmp.ne.s32.totalorder %s207, %s208
    %p222 = scmp.eq.s32.totalorder %s32, 1
    %p223 = por %p221, %p222
    %p225 = scmp.ne.s32.totalorder %s208, %s224
    %p226 = scmp.eq.s32.totalorder %s32, 0
    %p227 = por %p225, %p226
    %s228 = ssub.s32 %s26, %s33
    %p229 = scmp.eq.s32.totalorder %s228, 0
    %s231 = sadd.s32 %s230, 1
    %s232 = scalar_select %p229, %s230, %s231
    %p235 = pneg %p229
    %p236 = scmp.eq.s32.totalorder %s26, 1
    %p237 = por %p235, %p236
    %p238 = scmp.ne.s32.totalorder %s230, %s233
    %p239 = scmp.eq.s32.totalorder %s26, 0
    %p240 = por %p238, %p239
    %p241 = scmp.ne.s32.totalorder %s230, %s233
    %p242 = scmp.eq.s32.totalorder %s31, 1
    %p243 = por %p241, %p242
    %p244 = scmp.ne.s32.totalorder %s233, %s234
    %p245 = scmp.eq.s32.totalorder %s31, 0
    %p246 = por %p244, %p245
    %p247 = scmp.ne.s32.totalorder %s233, %s234
    %p248 = scmp.eq.s32.totalorder %s32, 1
    %p249 = por %p247, %p248
    %p251 = scmp.ne.s32.totalorder %s234, %s250
    %p252 = scmp.eq.s32.totalorder %s32, 0
    %p253 = por %p251, %p252
    %s254 = ssub.s32 %s26, %s33
    %p255 = scmp.eq.s32.totalorder %s254, 0
    %s257 = sadd.s32 %s256, 1
    %s258 = scalar_select %p255, %s256, %s257
    %p261 = pneg %p255
    %p262 = scmp.eq.s32.totalorder %s26, 1
    %p263 = por %p261, %p262
    %p264 = scmp.ne.s32.totalorder %s256, %s259
    %p265 = scmp.eq.s32.totalorder %s26, 0
    %p266 = por %p264, %p265
    %p267 = scmp.ne.s32.totalorder %s256, %s259
    %p268 = scmp.eq.s32.totalorder %s31, 1
    %p269 = por %p267, %p268
    %p270 = scmp.ne.s32.totalorder %s259, %s260
    %p271 = scmp.eq.s32.totalorder %s31, 0
    %p272 = por %p270, %p271
    %p273 = scmp.ne.s32.totalorder %s259, %s260
    %p274 = scmp.eq.s32.totalorder %s32, 1
    %p275 = por %p273, %p274
    %p277 = scmp.ne.s32.totalorder %s260, %s276
    %p278 = scmp.eq.s32.totalorder %s32, 0
    %p279 = por %p277, %p278
    %s280 = ssub.s32 %s26, %s33
    %p281 = scmp.eq.s32.totalorder %s280, 0
    %s283 = sadd.s32 %s282, 1
    %s284 = scalar_select %p281, %s282, %s283
    %p287 = pneg %p281
    %p288 = scmp.eq.s32.totalorder %s26, 1
    %p289 = por %p287, %p288
    %p290 = scmp.ne.s32.totalorder %s282, %s285
    %p291 = scmp.eq.s32.totalorder %s26, 0
    %p292 = por %p290, %p291
    %p293 = scmp.ne.s32.totalorder %s282, %s285
    %p294 = scmp.eq.s32.totalorder %s31, 1
    %p295 = por %p293, %p294
    %p296 = scmp.ne.s32.totalorder %s285, %s286
    %p297 = scmp.eq.s32.totalorder %s31, 0
    %p298 = por %p296, %p297
    %p299 = scmp.ne.s32.totalorder %s285, %s286
    %p300 = scmp.eq.s32.totalorder %s32, 1
    %p301 = por %p299, %p300
    %p303 = scmp.ne.s32.totalorder %s286, %s302
    %p304 = scmp.eq.s32.totalorder %s32, 0
    %p305 = por %p303, %p304
    %s306 = ssub.s32 %s26, %s33
    %p307 = scmp.eq.s32.totalorder %s306, 0
    %s309 = sadd.s32 %s308, 1
    %s310 = scalar_select %p307, %s308, %s309
    %p313 = pneg %p307
    %p314 = scmp.eq.s32.totalorder %s26, 1
    %p315 = por %p313, %p314
    %p316 = scmp.ne.s32.totalorder %s308, %s311
    %p317 = scmp.eq.s32.totalorder %s26, 0
    %p318 = por %p316, %p317
    %p319 = scmp.ne.s32.totalorder %s308, %s311
    %p320 = scmp.eq.s32.totalorder %s31, 1
    %p321 = por %p319, %p320
    %p322 = scmp.ne.s32.totalorder %s311, %s312
    %p323 = scmp.eq.s32.totalorder %s31, 0
    %p324 = por %p322, %p323
    %p325 = scmp.ne.s32.totalorder %s311, %s312
    %p326 = scmp.eq.s32.totalorder %s32, 1
    %p327 = por %p325, %p326
    %p329 = scmp.ne.s32.totalorder %s312, %s328
    %p330 = scmp.eq.s32.totalorder %s32, 0
    %p331 = por %p329, %p330
    %s332 = ssub.s32 %s26, %s33
    %p333 = scmp.eq.s32.totalorder %s332, 0
    %s335 = sadd.s32 %s334, 1
    %s336 = scalar_select %p333, %s334, %s335
    %p339 = pneg %p333
    %p340 = scmp.eq.s32.totalorder %s26, 1
    %p341 = por %p339, %p340
    %p342 = scmp.ne.s32.totalorder %s334, %s337
    %p343 = scmp.eq.s32.totalorder %s26, 0
    %p344 = por %p342, %p343
    %p345 = scmp.ne.s32.totalorder %s334, %s337
    %p346 = scmp.eq.s32.totalorder %s31, 1
    %p347 = por %p345, %p346
    %p348 = scmp.ne.s32.totalorder %s337, %s338
    %p349 = scmp.eq.s32.totalorder %s31, 0
    %p350 = por %p348, %p349
    %p351 = scmp.ne.s32.totalorder %s337, %s338
    %p352 = scmp.eq.s32.totalorder %s32, 1
    %p353 = por %p351, %p352
    %p355 = scmp.ne.s32.totalorder %s338, %s354
    %p356 = scmp.eq.s32.totalorder %s32, 0
    %p357 = por %p355, %p356
    %s358 = ssub.s32 %s26, %s33
    %p359 = scmp.eq.s32.totalorder %s358, 0
    %s361 = sadd.s32 %s360, 1
    %s362 = scalar_select %p359, %s360, %s361
    %p365 = pneg %p359
    %p366 = scmp.eq.s32.totalorder %s26, 1
    %p367 = por %p365, %p366
    %p368 = scmp.ne.s32.totalorder %s360, %s363
    %p369 = scmp.eq.s32.totalorder %s26, 0
    %p370 = por %p368, %p369
    %p371 = scmp.ne.s32.totalorder %s360, %s363
    %p372 = scmp.eq.s32.totalorder %s31, 1
    %p373 = por %p371, %p372
    %p374 = scmp.ne.s32.totalorder %s363, %s364
    %p375 = scmp.eq.s32.totalorder %s31, 0
    %p376 = por %p374, %p375
    %p377 = scmp.ne.s32.totalorder %s363, %s364
    %p378 = scmp.eq.s32.totalorder %s32, 1
    %p379 = por %p377, %p378
    %p381 = scmp.ne.s32.totalorder %s364, %s380
    %p382 = scmp.eq.s32.totalorder %s32, 0
    %p383 = por %p381, %p382
    %s384 = ssub.s32 %s26, %s33
    %p385 = scmp.eq.s32.totalorder %s384, 0
    %s387 = sadd.s32 %s386, 1
    %s388 = scalar_select %p385, %s386, %s387
    %p391 = pneg %p385
    %p392 = scmp.eq.s32.totalorder %s26, 1
    %p393 = por %p391, %p392
    %p394 = scmp.ne.s32.totalorder %s386, %s389
    %p395 = scmp.eq.s32.totalorder %s26, 0
    %p396 = por %p394, %p395
    %p397 = scmp.ne.s32.totalorder %s386, %s389
    %p398 = scmp.eq.s32.totalorder %s31, 1
    %p399 = por %p397, %p398
    %p400 = scmp.ne.s32.totalorder %s389, %s390
    %p401 = scmp.eq.s32.totalorder %s31, 0
    %p402 = por %p400, %p401
    %p403 = scmp.ne.s32.totalorder %s389, %s390
    %p404 = scmp.eq.s32.totalorder %s32, 1
    %p405 = por %p403, %p404
    %p407 = scmp.ne.s32.totalorder %s390, %s406
    %p408 = scmp.eq.s32.totalorder %s32, 0
    %p409 = por %p407, %p408
    %s410 = ssub.s32 %s26, %s33
    %p411 = scmp.eq.s32.totalorder %s410, 0
    %s413 = sadd.s32 %s412, 1
    %s414 = scalar_select %p411, %s412, %s413
    %p417 = pneg %p411
    %p418 = scmp.eq.s32.totalorder %s26, 1
    %p419 = por %p417, %p418
    %p420 = scmp.ne.s32.totalorder %s412, %s415
    %p421 = scmp.eq.s32.totalorder %s26, 0
    %p422 = por %p420, %p421
    %p423 = scmp.ne.s32.totalorder %s412, %s415
    %p424 = scmp.eq.s32.totalorder %s31, 1
    %p425 = por %p423, %p424
    %p426 = scmp.ne.s32.totalorder %s415, %s416
    %p427 = scmp.eq.s32.totalorder %s31, 0
    %p428 = por %p426, %p427
    %p429 = scmp.ne.s32.totalorder %s415, %s416
    %p430 = scmp.eq.s32.totalorder %s32, 1
    %p431 = por %p429, %p430
    %p433 = scmp.ne.s32.totalorder %s416, %s432
    %p434 = scmp.eq.s32.totalorder %s32, 0
    %p435 = por %p433, %p434
    %s436 = ssub.s32 %s26, %s33
    %p437 = scmp.eq.s32.totalorder %s436, 0
    %s439 = sadd.s32 %s438, 1
    %s440 = scalar_select %p437, %s438, %s439
    %p443 = pneg %p437
    %p444 = scmp.eq.s32.totalorder %s26, 1
    %p445 = por %p443, %p444
    %p446 = scmp.ne.s32.totalorder %s438, %s441
    %p447 = scmp.eq.s32.totalorder %s26, 0
    %p448 = por %p446, %p447
    %p449 = scmp.ne.s32.totalorder %s438, %s441
    %p450 = scmp.eq.s32.totalorder %s31, 1
    %p451 = por %p449, %p450
    %p452 = scmp.ne.s32.totalorder %s441, %s442
    %p453 = scmp.eq.s32.totalorder %s31, 0
    %p454 = por %p452, %p453
    %p455 = scmp.ne.s32.totalorder %s441, %s442
    %p456 = scmp.eq.s32.totalorder %s32, 1
    %p457 = por %p455, %p456
    %p459 = scmp.ne.s32.totalorder %s442, %s458
    %p460 = scmp.eq.s32.totalorder %s32, 0
    %p461 = por %p459, %p460
    %s463 = sadd.s32 %s462, 1
    %p466 = scmp.eq.s32.totalorder %s26, 1
    %p467 = scmp.ne.s32.totalorder %s462, %s464
    %p468 = scmp.eq.s32.totalorder %s26, 0
    %p469 = por %p467, %p468
    %p470 = scmp.ne.s32.totalorder %s462, %s464
    %p471 = scmp.eq.s32.totalorder %s31, 1
    %p472 = por %p470, %p471
    %p473 = scmp.ne.s32.totalorder %s464, %s465
    %p474 = scmp.eq.s32.totalorder %s31, 0
    %p475 = por %p473, %p474
    %p476 = scmp.ne.s32.totalorder %s464, %s465
    %p477 = scmp.eq.s32.totalorder %s32, 1
    %p478 = por %p476, %p477
    %p480 = scmp.ne.s32.totalorder %s465, %s479
    %p481 = scmp.eq.s32.totalorder %s32, 0
    %p482 = por %p480, %p481
    %s484 = sadd.s32 %s483, 1
    %p487 = scmp.eq.s32.totalorder %s26, 1
    %p488 = scmp.ne.s32.totalorder %s483, %s485
    %p489 = scmp.eq.s32.totalorder %s26, 0
    %p490 = por %p488, %p489
    %p491 = scmp.ne.s32.totalorder %s483, %s485
    %p492 = scmp.eq.s32.totalorder %s31, 1
    %p493 = por %p491, %p492
    %p494 = scmp.ne.s32.totalorder %s485, %s486
    %p495 = scmp.eq.s32.totalorder %s31, 0
    %p496 = por %p494, %p495
    %p497 = scmp.ne.s32.totalorder %s485, %s486
    %p498 = scmp.eq.s32.totalorder %s32, 1
    %p499 = por %p497, %p498
    %p501 = scmp.ne.s32.totalorder %s486, %s500
    %p502 = scmp.eq.s32.totalorder %s32, 0
    %p503 = por %p501, %p502
    %p504 = scmp.le.s32.totalorder 1, %s26
    %p505 = scmp.lt.s32.totalorder %s26, 3
    %p506 = pnand %p504, %p505
    %p507 = pneg %p506
    // Predicated region
    $region9: #{_lambda_.2} parent=5 // pred_check
      _
    $region10: #{_lambda_.2} parent=5 // pred_check_branch
      %509 = sbr.rel (%p506) target = $region12
    $region11: #{_lambda_.2} parent=5 // pred_region
      %s510 = ssub.s32 %s26, 1
      // Predicated region
      $region13: #{_lambda_.2} parent=11 // pred_check
        %p511 = pneg %p47
      $region14: #{_lambda_.2} parent=11 // pred_check_branch
        %513 = sbr.rel (%p511) target = $region16
      $region15: #{_lambda_.2} parent=11 // pred_region
        _
      $region16: #{_lambda_.2} parent=11 // pred_fallthru
        _
      // Predicated region
      $region17: #{_lambda_.2} parent=11 // pred_check
        %p514 = pneg %p68
      $region18: #{_lambda_.2} parent=11 // pred_check_branch
        %516 = sbr.rel (%p514) target = $region20
      $region19: #{_lambda_.2} parent=11 // pred_region
        _
      $region20: #{_lambda_.2} parent=11 // pred_fallthru
        _
      // Predicated region
      $region21: #{_lambda_.2} parent=11 // pred_check
        %p517 = pneg %p89
      $region22: #{_lambda_.2} parent=11 // pred_check_branch
        %519 = sbr.rel (%p517) target = $region24
      $region23: #{_lambda_.2} parent=11 // pred_region
        _
      $region24: #{_lambda_.2} parent=11 // pred_fallthru
        _
      // Predicated region
      $region25: #{_lambda_.2} parent=11 // pred_check
        %p520 = pneg %p110
      $region26: #{_lambda_.2} parent=11 // pred_check_branch
        %522 = sbr.rel (%p520) target = $region28
      $region27: #{_lambda_.2} parent=11 // pred_region
        _
      $region28: #{_lambda_.2} parent=11 // pred_fallthru
        _
      // Predicated region
      $region29: #{_lambda_.2} parent=11 // pred_check
        %p523 = pneg %p131
      $region30: #{_lambda_.2} parent=11 // pred_check_branch
        %525 = sbr.rel (%p523) target = $region32
      $region31: #{_lambda_.2} parent=11 // pred_region
        _
      $region32: #{_lambda_.2} parent=11 // pred_fallthru
        _
      // Predicated region
      $region33: #{_lambda_.2} parent=11 // pred_check
        %p526 = pneg %p152
      $region34: #{_lambda_.2} parent=11 // pred_check_branch
        %528 = sbr.rel (%p526) target = $region36
      $region35: #{_lambda_.2} parent=11 // pred_region
        _
      $region36: #{_lambda_.2} parent=11 // pred_fallthru
        _
      // Predicated region
      $region37: #{_lambda_.2} parent=11 // pred_check
        %p529 = pneg %p173
      $region38: #{_lambda_.2} parent=11 // pred_check_branch
        %531 = sbr.rel (%p529) target = $region40
      $region39: #{_lambda_.2} parent=11 // pred_region
        _
      $region40: #{_lambda_.2} parent=11 // pred_fallthru
        _
      // Predicated region
      $region41: #{_lambda_.2} parent=11 // pred_check
        %p532 = pneg %p194
      $region42: #{_lambda_.2} parent=11 // pred_check_branch
        %534 = sbr.rel (%p532) target = $region44
      $region43: #{_lambda_.2} parent=11 // pred_region
        _
      $region44: #{_lambda_.2} parent=11 // pred_fallthru
        _
    $region12: #{_lambda_.2} parent=5 // pred_fallthru
      _
    %p535 = scmp.lt.s32.totalorder %s26, 2
    // Predicated region
    $region45: #{_lambda_.2} parent=5 // pred_check
      %p536 = pneg %p535
    $region46: #{_lambda_.2} parent=5 // pred_check_branch
      %538 = sbr.rel (%p536) target = $region48
    $region47: #{_lambda_.2} parent=5 // pred_region
      // Predicated region
      $region49: #{_lambda_.2} parent=47 // pred_check
        %p539 = pneg %p214
      $region50: #{_lambda_.2} parent=47 // pred_check_branch
        %541 = sbr.rel (%p539) target = $region52
      $region51: #{_lambda_.2} parent=47 // pred_region
        %p542 = scmp.lt.s32.totalorder %s26, 1
        %s543 = scalar_select %p542, %s26, 1
        %s544 = smul.addr %s543, 4
        %s545 = scalar_lea.vmem %s8, %s544
      $region52: #{_lambda_.2} parent=47 // pred_fallthru
        _
      // Predicated region
      $region53: #{_lambda_.2} parent=47 // pred_check
        %p546 = pneg %p240
      $region54: #{_lambda_.2} parent=47 // pred_check_branch
        %548 = sbr.rel (%p546) target = $region56
      $region55: #{_lambda_.2} parent=47 // pred_region
        %p549 = scmp.lt.s32.totalorder %s26, 1
        %s550 = scalar_select %p549, %s26, 1
        %s551 = scalar_lea.vmem %s9, %s550
      $region56: #{_lambda_.2} parent=47 // pred_fallthru
        _
      // Predicated region
      $region57: #{_lambda_.2} parent=47 // pred_check
        %p552 = pneg %p266
      $region58: #{_lambda_.2} parent=47 // pred_check_branch
        %554 = sbr.rel (%p552) target = $region60
      $region59: #{_lambda_.2} parent=47 // pred_region
        %p555 = scmp.lt.s32.totalorder %s26, 1
        %s556 = scalar_select %p555, %s26, 1
        %s557 = smul.addr %s556, 4
        %s558 = scalar_lea.vmem %s10, %s557
      $region60: #{_lambda_.2} parent=47 // pred_fallthru
        _
      // Predicated region
      $region61: #{_lambda_.2} parent=47 // pred_check
        %p559 = pneg %p292
      $region62: #{_lambda_.2} parent=47 // pred_check_branch
        %561 = sbr.rel (%p559) target = $region64
      $region63: #{_lambda_.2} parent=47 // pred_region
        %p562 = scmp.lt.s32.totalorder %s26, 1
        %s563 = scalar_select %p562, %s26, 1
        %s564 = scalar_lea.vmem %s11, %s563
      $region64: #{_lambda_.2} parent=47 // pred_fallthru
        _
      // Predicated region
      $region65: #{_lambda_.2} parent=47 // pred_check
        %p565 = pneg %p318
      $region66: #{_lambda_.2} parent=47 // pred_check_branch
        %567 = sbr.rel (%p565) target = $region68
      $region67: #{_lambda_.2} parent=47 // pred_region
        %p568 = scmp.lt.s32.totalorder %s26, 1
        %s569 = scalar_select %p568, %s26, 1
        %s570 = smul.addr %s569, 4
        %s571 = scalar_lea.vmem %s12, %s570
      $region68: #{_lambda_.2} parent=47 // pred_fallthru
        _
      // Predicated region
      $region69: #{_lambda_.2} parent=47 // pred_check
        %p572 = pneg %p344
      $region70: #{_lambda_.2} parent=47 // pred_check_branch
        %574 = sbr.rel (%p572) target = $region72
      $region71: #{_lambda_.2} parent=47 // pred_region
        %p575 = scmp.lt.s32.totalorder %s26, 1
        %s576 = scalar_select %p575, %s26, 1
        %s577 = scalar_lea.vmem %s13, %s576
      $region72: #{_lambda_.2} parent=47 // pred_fallthru
        _
      // Predicated region
      $region73: #{_lambda_.2} parent=47 // pred_check
        %p578 = pneg %p370
      $region74: #{_lambda_.2} parent=47 // pred_check_branch
        %580 = sbr.rel (%p578) target = $region76
      $region75: #{_lambda_.2} parent=47 // pred_region
        %p581 = scmp.lt.s32.totalorder %s26, 1
        %s582 = scalar_select %p581, %s26, 1
        %s583 = smul.addr %s582, 4
        %s584 = scalar_lea.vmem %s14, %s583
      $region76: #{_lambda_.2} parent=47 // pred_fallthru
        _
      // Predicated region
      $region77: #{_lambda_.2} parent=47 // pred_check
        %p585 = pneg %p396
      $region78: #{_lambda_.2} parent=47 // pred_check_branch
        %587 = sbr.rel (%p585) target = $region80
      $region79: #{_lambda_.2} parent=47 // pred_region
        %p588 = scmp.lt.s32.totalorder %s26, 1
        %s589 = scalar_select %p588, %s26, 1
        %s590 = scalar_lea.vmem %s15, %s589
      $region80: #{_lambda_.2} parent=47 // pred_fallthru
        _
      // Predicated region
      $region81: #{_lambda_.2} parent=47 // pred_check
        %p591 = pneg %p422
      $region82: #{_lambda_.2} parent=47 // pred_check_branch
        %593 = sbr.rel (%p591) target = $region84
      $region83: #{_lambda_.2} parent=47 // pred_region
        %p594 = scmp.lt.s32.totalorder %s26, 1
        %s595 = scalar_select %p594, %s26, 1
        %s596 = smul.addr %s595, 4
        %s597 = scalar_lea.vmem %s16, %s596
      $region84: #{_lambda_.2} parent=47 // pred_fallthru
        _
      // Predicated region
      $region85: #{_lambda_.2} parent=47 // pred_check
        %p598 = pneg %p448
      $region86: #{_lambda_.2} parent=47 // pred_check_branch
        %600 = sbr.rel (%p598) target = $region88
      $region87: #{_lambda_.2} parent=47 // pred_region
        %p601 = scmp.lt.s32.totalorder %s26, 1
        %s602 = scalar_select %p601, %s26, 1
        %s603 = smul.addr %s602, 4
        %s604 = scalar_lea.vmem %s17, %s603
      $region88: #{_lambda_.2} parent=47 // pred_fallthru
        _
    $region48: #{_lambda_.2} parent=5 // pred_fallthru
      _
    %p605 = scmp.le.s32.totalorder 1, %s26
    %p606 = scmp.lt.s32.totalorder %s26, 3
    %p607 = pnand %p605, %p606
    %p608 = pneg %p607
    // Predicated region
    $region89: #{_lambda_.2} parent=5 // pred_check
      _
    $region90: #{_lambda_.2} parent=5 // pred_check_branch
      %610 = sbr.rel (%p607) target = $region92
    $region91: #{_lambda_.2} parent=5 // pred_region
      %s611 = ssub.s32 %s26, 1
      %p612 = pneg %p47
      %p613 = pneg %p44
      %p614 = pneg %p68
      %p615 = pneg %p65
      %p616 = pneg %p89
      %p617 = pneg %p86
      %p618 = pneg %p110
      %p619 = pneg %p107
      %p620 = pneg %p131
      %p621 = pneg %p128
      %p622 = pneg %p152
      %p623 = pneg %p149
      %p624 = pneg %p173
      %p625 = pneg %p170
      %p626 = pneg %p194
      %p627 = pneg %p191
      %p628 = scmp.lt.s32.totalorder %s31, 1
      %s629 = scalar_select %p628, %s31, 1
      %s630 = smul.addr %s629, 4
      %s631 = scalar_lea.vmem %s8, %s630
      %p632 = pneg %p220
      %p633 = pneg %p217
      %p634 = scmp.lt.s32.totalorder %s31, 1
      %s635 = scalar_select %p634, %s31, 1
      %s636 = scalar_lea.vmem %s9, %s635
      %p637 = pneg %p246
      %p638 = pneg %p243
      %p639 = scmp.lt.s32.totalorder %s31, 1
      %s640 = scalar_select %p639, %s31, 1
      %s641 = smul.addr %s640, 4
      %s642 = scalar_lea.vmem %s10, %s641
      %p643 = pneg %p272
      %p644 = pneg %p269
      %p645 = scmp.lt.s32.totalorder %s31, 1
      %s646 = scalar_select %p645, %s31, 1
      %s647 = scalar_lea.vmem %s11, %s646
      %p648 = pneg %p298
      %p649 = pneg %p295
      %p650 = scmp.lt.s32.totalorder %s31, 1
      %s651 = scalar_select %p650, %s31, 1
      %s652 = smul.addr %s651, 4
      %s653 = scalar_lea.vmem %s12, %s652
      %p654 = pneg %p324
      %p655 = pneg %p321
      %p656 = scmp.lt.s32.totalorder %s31, 1
      %s657 = scalar_select %p656, %s31, 1
      %s658 = scalar_lea.vmem %s13, %s657
      %p659 = pneg %p350
      %p660 = pneg %p347
      %p661 = scmp.lt.s32.totalorder %s31, 1
      %s662 = scalar_select %p661, %s31, 1
      %s663 = smul.addr %s662, 4
      %s664 = scalar_lea.vmem %s14, %s663
      %p665 = pneg %p376
      %p666 = pneg %p373
      %p667 = scmp.lt.s32.totalorder %s31, 1
      %s668 = scalar_select %p667, %s31, 1
      %s669 = scalar_lea.vmem %s15, %s668
      %p670 = pneg %p402
      %p671 = pneg %p399
      %p672 = scmp.lt.s32.totalorder %s31, 1
      %s673 = scalar_select %p672, %s31, 1
      %s674 = smul.addr %s673, 4
      %s675 = scalar_lea.vmem %s16, %s674
      %p676 = pneg %p428
      %p677 = pneg %p425
      %p678 = scmp.lt.s32.totalorder %s31, 1
      %s679 = scalar_select %p678, %s31, 1
      %s680 = smul.addr %s679, 4
      %s681 = scalar_lea.vmem %s17, %s680
      %p682 = pneg %p454
      %p683 = pneg %p451
      %p684 = pneg %p475
      %p685 = pneg %p472
      %p686 = pneg %p496
      %p687 = pneg %p493
      %p688 = scmp.lt.s32.totalorder %s31, 1
      %s689 = scalar_select %p688, %s31, 1
      %s690 = smul.addr %s689, 4
      %s691 = scalar_lea.vmem %s8, %s690
      %p692 = scmp.lt.s32.totalorder %s31, 1
      %s693 = scalar_select %p692, %s31, 1
      %s694 = scalar_lea.vmem %s9, %s693
      %p695 = scmp.lt.s32.totalorder %s31, 1
      %s696 = scalar_select %p695, %s31, 1
      %s697 = smul.addr %s696, 4
      %s698 = scalar_lea.vmem %s10, %s697
      %p699 = scmp.lt.s32.totalorder %s31, 1
      %s700 = scalar_select %p699, %s31, 1
      %s701 = scalar_lea.vmem %s11, %s700
      %p702 = scmp.lt.s32.totalorder %s31, 1
      %s703 = scalar_select %p702, %s31, 1
      %s704 = smul.addr %s703, 4
      %s705 = scalar_lea.vmem %s12, %s704
      %p706 = scmp.lt.s32.totalorder %s31, 1
      %s707 = scalar_select %p706, %s31, 1
      %s708 = scalar_lea.vmem %s13, %s707
      %p709 = scmp.lt.s32.totalorder %s31, 1
      %s710 = scalar_select %p709, %s31, 1
      %s711 = smul.addr %s710, 4
      %s712 = scalar_lea.vmem %s14, %s711
      %p713 = scmp.lt.s32.totalorder %s31, 1
      %s714 = scalar_select %p713, %s31, 1
      %s715 = scalar_lea.vmem %s15, %s714
      %p716 = scmp.lt.s32.totalorder %s31, 1
      %s717 = scalar_select %p716, %s31, 1
      %s718 = smul.addr %s717, 4
      %s719 = scalar_lea.vmem %s16, %s718
      %p720 = scmp.lt.s32.totalorder %s31, 1
      %s721 = scalar_select %p720, %s31, 1
      %s722 = smul.addr %s721, 4
      %s723 = scalar_lea.vmem %s17, %s722
      %p725 = scmp.eq.s32.totalorder %s31, 0
      // Predicated region
      $region93: #{_lambda_.2} parent=91 // pred_check
        %p726 = pneg %p725
      $region94: #{_lambda_.2} parent=91 // pred_check_branch
        %728 = sbr.rel (%p726) target = $region96
      $region95: #{_lambda_.2} parent=91 // pred_region
        %v729 = vld [vmem:[%s0] sm:$0xf]
        %v730 = vld [vmem:[%s0 + $0x4] sm:$0xf]
        %v731 = vld [vmem:[%s0 + $0x8] sm:$0xf]
        %v732 = vld [vmem:[%s0 + $0xc] sm:$0xf]
        %v733 = vld [vmem:[%s0 + $0x10] sm:$0xf]
        %v734 = vld [vmem:[%s0 + $0x14] sm:$0xf]
        %v735 = vld [vmem:[%s0 + $0x18] sm:$0xf]
        %v736 = vld [vmem:[%s0 + $0x1c] sm:$0xf]
        %v737 = vld [vmem:[%s0 + $0x20] sm:$0xf]
        %v738 = vld [vmem:[%s0 + $0x24] sm:$0xf]
        %v739 = vld [vmem:[%s0 + $0x28] sm:$0xf]
        %v740 = vld [vmem:[%s0 + $0x2c] sm:$0xf]
        %v741 = vld [vmem:[%s0 + $0x30] sm:$0xf]
        %v742 = vld [vmem:[%s0 + $0x34] sm:$0xf]
        %v743 = vld [vmem:[%s0 + $0x38] sm:$0xf]
        %v744 = vld [vmem:[%s0 + $0x3c] sm:$0xf]
        %v745 = vld [vmem:[%s0 + $0x40] sm:$0xf]
        %v746 = vld [vmem:[%s0 + $0x44] sm:$0xf]
        %v747 = vld [vmem:[%s0 + $0x48] sm:$0xf]
        %v748 = vld [vmem:[%s0 + $0x4c] sm:$0xf]
        %v749 = vld [vmem:[%s0 + $0x50] sm:$0xf]
        %v750 = vld [vmem:[%s0 + $0x54] sm:$0xf]
        %v751 = vld [vmem:[%s0 + $0x58] sm:$0xf]
        %v752 = vld [vmem:[%s0 + $0x5c] sm:$0xf]
        %v753 = vld [vmem:[%s0 + $0x60] sm:$0xf]
        %v754 = vld [vmem:[%s0 + $0x64] sm:$0xf]
        %v755 = vld [vmem:[%s0 + $0x68] sm:$0xf]
        %v756 = vld [vmem:[%s0 + $0x6c] sm:$0xf]
        %v757 = vld [vmem:[%s0 + $0x70] sm:$0xf]
        %v758 = vld [vmem:[%s0 + $0x74] sm:$0xf]
        %v759 = vld [vmem:[%s0 + $0x78] sm:$0xf]
        %v760 = vld [vmem:[%s0 + $0x7c] sm:$0xf]
        %v761 = vld [vmem:[%s1] sm:$0xf]
        %v762 = vld [vmem:[%s1 + $0x4] sm:$0xf]
        %v763 = vld [vmem:[%s2] sm:$0x1]
        %v765 = vlaneseq
        %v766 = vshrl.u32 %v765, 7
        %v767 = vsub.s32 0, %v766
        %v768 = vrot.slane %v763, %v767
        %v802 = vunpack.c.l.b16 %v729
        %v803 = vunpack.c.l.b16 %v730
        %v804 = vunpack.c.l.b16 %v731
        %v805 = vunpack.c.l.b16 %v732
        %v806 = vunpack.c.l.b16 %v733
        %v807 = vunpack.c.l.b16 %v734
        %v808 = vunpack.c.l.b16 %v735
        %v809 = vunpack.c.l.b16 %v736
        %v810 = vunpack.c.l.b16 %v737
        %v811 = vunpack.c.l.b16 %v738
        %v812 = vunpack.c.l.b16 %v739
        %v813 = vunpack.c.l.b16 %v740
        %v814 = vunpack.c.l.b16 %v741
        %v815 = vunpack.c.l.b16 %v742
        %v816 = vunpack.c.l.b16 %v743
        %v817 = vunpack.c.l.b16 %v744
        %v818 = vunpack.c.l.b16 %v745
        %v819 = vunpack.c.l.b16 %v746
        %v820 = vunpack.c.l.b16 %v747
        %v821 = vunpack.c.l.b16 %v748
        %v822 = vunpack.c.l.b16 %v749
        %v823 = vunpack.c.l.b16 %v750
        %v824 = vunpack.c.l.b16 %v751
        %v825 = vunpack.c.l.b16 %v752
        %v826 = vunpack.c.l.b16 %v753
        %v827 = vunpack.c.l.b16 %v754
        %v828 = vunpack.c.l.b16 %v755
        %v829 = vunpack.c.l.b16 %v756
        %v830 = vunpack.c.l.b16 %v757
        %v831 = vunpack.c.l.b16 %v758
        %v832 = vunpack.c.l.b16 %v759
        %v833 = vunpack.c.l.b16 %v760
        %v834 = vpack.c.b16 %v803, %v802
        %v835 = vpack.c.b16 %v805, %v804
        %v836 = vpack.c.b16 %v807, %v806
        %v837 = vpack.c.b16 %v809, %v808
        %v838 = vpack.c.b16 %v811, %v810
        %v839 = vpack.c.b16 %v813, %v812
        %v840 = vpack.c.b16 %v815, %v814
        %v841 = vpack.c.b16 %v817, %v816
        %v842 = vpack.c.b16 %v819, %v818
        %v843 = vpack.c.b16 %v821, %v820
        %v844 = vpack.c.b16 %v823, %v822
        %v845 = vpack.c.b16 %v825, %v824
        %v846 = vpack.c.b16 %v827, %v826
        %v847 = vpack.c.b16 %v829, %v828
        %v848 = vpack.c.b16 %v831, %v830
        %v849 = vpack.c.b16 %v833, %v832
        %v852 = vunpack.c.l.b16 %v761
        %v853 = vunpack.c.l.b16 %v762
        %v854 = vpack.c.b16 %v853, %v852
        %vm856 = vcmask 130048
        %v858 = vsel %vm856, %v834, 0
        %v861 = vsel %vm856, %v835, 0
        %v864 = vsel %vm856, %v836, 0
        %v867 = vsel %vm856, %v837, 0
        %v870 = vsel %vm856, %v838, 0
        %v873 = vsel %vm856, %v839, 0
        %v876 = vsel %vm856, %v840, 0
        %v879 = vsel %vm856, %v841, 0
        %v882 = vsel %vm856, %v842, 0
        %v885 = vsel %vm856, %v843, 0
        %v888 = vsel %vm856, %v844, 0
        %v891 = vsel %vm856, %v845, 0
        %v894 = vsel %vm856, %v846, 0
        %v897 = vsel %vm856, %v847, 0
        %v900 = vsel %vm856, %v848, 0
        %v903 = vsel %vm856, %v849, 0
        %905 = vmatprep.subr.bf16.mxu0 0
        %906 = vmatpush1.bf16.msra.mxu0 %v854
        %907 = vmatprep.subr.bf16.mxu0 0
        %908 = vmatpush1.bf16.msra.mxu0 0
        %909 = vmatprep.subr.bf16.mxu0 0
        %910 = vmatpush1.bf16.msra.mxu0 0
        %911 = vmatprep.subr.bf16.mxu0 0
        %912 = vmatpush1.bf16.msra.mxu0 0
        %913 = vmatprep.subr.bf16.mxu0 0
        %914 = vmatpush1.bf16.msra.mxu0 0
        %915 = vmatprep.subr.bf16.mxu0 0
        %916 = vmatpush1.bf16.msra.mxu0 0
        %917 = vmatprep.subr.bf16.mxu0 0
        %918 = vmatpush1.bf16.msra.mxu0 0
        %919 = vmatprep.subr.bf16.mxu0 0
        %920 = vmatpush1.bf16.msra.mxu0 0
        %921 = vmatprep.subr.bf16.mxu0 0
        %922 = vmatpush1.bf16.msra.mxu0 0
        %923 = vmatprep.subr.bf16.mxu0 0
        %924 = vmatpush1.bf16.msra.mxu0 0
        %925 = vmatprep.subr.bf16.mxu0 0
        %926 = vmatpush1.bf16.msra.mxu0 0
        %927 = vmatprep.subr.bf16.mxu0 0
        %928 = vmatpush1.bf16.msra.mxu0 0
        %929 = vmatprep.subr.bf16.mxu0 0
        %930 = vmatpush1.bf16.msra.mxu0 0
        %931 = vmatprep.subr.bf16.mxu0 0
        %932 = vmatpush1.bf16.msra.mxu0 0
        %933 = vmatprep.subr.bf16.mxu0 0
        %934 = vmatpush1.bf16.msra.mxu0 0
        %935 = vmatprep.subr.bf16.mxu0 0
        %936 = vmatpush1.bf16.msra.mxu0 0
        %937 = vmatprep.mubr.bf16.mxu0 0
        %938 = vmatmul.mubr.bf16.gmra.mrb[0].mxu0 %v858
        %v939 = vpop.f32.mrb[0].mxu0
        %v940 = vadd.f32 %v768, %v939
        %v941 = vpop.f32.mrb[0].mxu0
        %v942 = vpop.f32.mrb[0].mxu0
        %v943 = vadd.f32 %v768, %v942
        %v944 = vpop.f32.mrb[0].mxu0
        %945 = vmatprep.mubr.bf16.mxu0 0
        %946 = vmatmul.mubr.bf16.gmra.mrb[0].mxu0 %v861
        %v947 = vpop.f32.mrb[0].mxu0
        %v948 = vadd.f32 %v768, %v947
        %v949 = vpop.f32.mrb[0].mxu0
        %v950 = vpop.f32.mrb[0].mxu0
        %v951 = vadd.f32 %v768, %v950
        %v952 = vpop.f32.mrb[0].mxu0
        %953 = vmatprep.mubr.bf16.mxu0 0
        %954 = vmatmul.mubr.bf16.gmra.mrb[0].mxu0 %v864
        %v955 = vpop.f32.mrb[0].mxu0
        %v956 = vadd.f32 %v768, %v955
        %v957 = vpop.f32.mrb[0].mxu0
        %v958 = vpop.f32.mrb[0].mxu0
        %v959 = vadd.f32 %v768, %v958
        %v960 = vpop.f32.mrb[0].mxu0
        %961 = vmatprep.mubr.bf16.mxu0 0
        %962 = vmatmul.mubr.bf16.gmra.mrb[0].mxu0 %v867
        %v963 = vpop.f32.mrb[0].mxu0
        %v964 = vadd.f32 %v768, %v963
        %v965 = vpop.f32.mrb[0].mxu0
        %v966 = vpop.f32.mrb[0].mxu0
        %v967 = vadd.f32 %v768, %v966
        %v968 = vpop.f32.mrb[0].mxu0
        %969 = vmatprep.mubr.bf16.mxu0 0
        %970 = vmatmul.mubr.bf16.gmra.mrb[0].mxu0 %v870
        %v971 = vpop.f32.mrb[0].mxu0
        %v972 = vadd.f32 %v768, %v971
        %v973 = vpop.f32.mrb[0].mxu0
        %v974 = vpop.f32.mrb[0].mxu0
        %v975 = vadd.f32 %v768, %v974
        %v976 = vpop.f32.mrb[0].mxu0
        %977 = vmatprep.mubr.bf16.mxu0 0
        %978 = vmatmul.mubr.bf16.gmra.mrb[0].mxu0 %v873
        %v979 = vpop.f32.mrb[0].mxu0
        %v980 = vadd.f32 %v768, %v979
        %v981 = vpop.f32.mrb[0].mxu0
        %v982 = vpop.f32.mrb[0].mxu0
        %v983 = vadd.f32 %v768, %v982
        %v984 = vpop.f32.mrb[0].mxu0
        %985 = vmatprep.mubr.bf16.mxu0 0
        %986 = vmatmul.mubr.bf16.gmra.mrb[0].mxu0 %v876
        %v987 = vpop.f32.mrb[0].mxu0
        %v988 = vadd.f32 %v768, %v987
        %v989 = vpop.f32.mrb[0].mxu0
        %v990 = vpop.f32.mrb[0].mxu0
        %v991 = vadd.f32 %v768, %v990
        %v992 = vpop.f32.mrb[0].mxu0
        %993 = vmatprep.mubr.bf16.mxu0 0
        %994 = vmatmul.mubr.bf16.gmra.mrb[0].mxu0 %v879
        %v995 = vpop.f32.mrb[0].mxu0
        %v996 = vadd.f32 %v768, %v995
        %v997 = vpop.f32.mrb[0].mxu0
        %v998 = vpop.f32.mrb[0].mxu0
        %v999 = vadd.f32 %v768, %v998
        %v1000 = vpop.f32.mrb[0].mxu0
        %1001 = vmatprep.mubr.bf16.mxu0 0
        %1002 = vmatmul.mubr.bf16.gmra.mrb[0].mxu0 %v882
        %v1003 = vpop.f32.mrb[0].mxu0
        %v1004 = vadd.f32 %v768, %v1003
        %v1005 = vpop.f32.mrb[0].mxu0
        %v1006 = vpop.f32.mrb[0].mxu0
        %v1007 = vadd.f32 %v768, %v1006
        %v1008 = vpop.f32.mrb[0].mxu0
        %1009 = vmatprep.mubr.bf16.mxu0 0
        %1010 = vmatmul.mubr.bf16.gmra.mrb[0].mxu0 %v885
        %v1011 = vpop.f32.mrb[0].mxu0
        %v1012 = vadd.f32 %v768, %v1011
        %v1013 = vpop.f32.mrb[0].mxu0
        %v1014 = vpop.f32.mrb[0].mxu0
        %v1015 = vadd.f32 %v768, %v1014
        %v1016 = vpop.f32.mrb[0].mxu0
        %1017 = vmatprep.mubr.bf16.mxu0 0
        %1018 = vmatmul.mubr.bf16.gmra.mrb[0].mxu0 %v888
        %v1019 = vpop.f32.mrb[0].mxu0
        %v1020 = vadd.f32 %v768, %v1019
        %v1021 = vpop.f32.mrb[0].mxu0
        %v1022 = vpop.f32.mrb[0].mxu0
        %v1023 = vadd.f32 %v768, %v1022
        %v1024 = vpop.f32.mrb[0].mxu0
        %1025 = vmatprep.mubr.bf16.mxu0 0
        %1026 = vmatmul.mubr.bf16.gmra.mrb[0].mxu0 %v891
        %v1027 = vpop.f32.mrb[0].mxu0
        %v1028 = vadd.f32 %v768, %v1027
        %v1029 = vpop.f32.mrb[0].mxu0
        %v1030 = vpop.f32.mrb[0].mxu0
        %v1031 = vadd.f32 %v768, %v1030
        %v1032 = vpop.f32.mrb[0].mxu0
        %1033 = vmatprep.mubr.bf16.mxu0 0
        %1034 = vmatmul.mubr.bf16.gmra.mrb[0].mxu0 %v894
        %v1035 = vpop.f32.mrb[0].mxu0
        %v1036 = vadd.f32 %v768, %v1035
        %v1037 = vpop.f32.mrb[0].mxu0
        %v1038 = vpop.f32.mrb[0].mxu0
        %v1039 = vadd.f32 %v768, %v1038
        %v1040 = vpop.f32.mrb[0].mxu0
        %1041 = vmatprep.mubr.bf16.mxu0 0
        %1042 = vmatmul.mubr.bf16.gmra.mrb[0].mxu0 %v897
        %v1043 = vpop.f32.mrb[0].mxu0
        %v1044 = vadd.f32 %v768, %v1043
        %v1045 = vpop.f32.mrb[0].mxu0
        %v1046 = vpop.f32.mrb[0].mxu0
        %v1047 = vadd.f32 %v768, %v1046
        %v1048 = vpop.f32.mrb[0].mxu0
        %1049 = vmatprep.mubr.bf16.mxu0 0
        %1050 = vmatmul.mubr.bf16.gmra.mrb[0].mxu0 %v900
        %v1051 = vpop.f32.mrb[0].mxu0
        %v1052 = vadd.f32 %v768, %v1051
        %v1053 = vpop.f32.mrb[0].mxu0
        %v1054 = vpop.f32.mrb[0].mxu0
        %v1055 = vadd.f32 %v768, %v1054
        %v1056 = vpop.f32.mrb[0].mxu0
        %1057 = vmatprep.mubr.bf16.mxu0 0
        %1058 = vmatmul.mubr.bf16.gmra.mrb[0].mxu0 %v903
        %v1059 = vpop.f32.mrb[0].mxu0
        %v1060 = vadd.f32 %v768, %v1059
        %v1061 = vpop.f32.mrb[0].mxu0
        %v1062 = vpop.f32.mrb[0].mxu0
        %v1063 = vadd.f32 %v768, %v1062
        %v1064 = vpop.f32.mrb[0].mxu0
        %1065 = vdwg.mxu0
        %v1066 = vxor.u32 %v940, 2147483648
        %v1067 = vxor.u32 %v943, 2147483648
        %v1068 = vxor.u32 %v948, 2147483648
        %v1069 = vxor.u32 %v951, 2147483648
        %v1070 = vxor.u32 %v956, 2147483648
        %v1071 = vxor.u32 %v959, 2147483648
        %v1072 = vxor.u32 %v964, 2147483648
        %v1073 = vxor.u32 %v967, 2147483648
        %v1074 = vxor.u32 %v972, 2147483648
        %v1075 = vxor.u32 %v975, 2147483648
        %v1076 = vxor.u32 %v980, 2147483648
        %v1077 = vxor.u32 %v983, 2147483648
        %v1078 = vxor.u32 %v988, 2147483648
        %v1079 = vxor.u32 %v991, 2147483648
        %v1080 = vxor.u32 %v996, 2147483648
        %v1081 = vxor.u32 %v999, 2147483648
        %v1082 = vxor.u32 %v1004, 2147483648
        %v1083 = vxor.u32 %v1007, 2147483648
        %v1084 = vxor.u32 %v1012, 2147483648
        %v1085 = vxor.u32 %v1015, 2147483648
        %v1086 = vxor.u32 %v1020, 2147483648
        %v1087 = vxor.u32 %v1023, 2147483648
        %v1088 = vxor.u32 %v1028, 2147483648
        %v1089 = vxor.u32 %v1031, 2147483648
        %v1090 = vxor.u32 %v1036, 2147483648
        %v1091 = vxor.u32 %v1039, 2147483648
        %v1092 = vxor.u32 %v1044, 2147483648
        %v1093 = vxor.u32 %v1047, 2147483648
        %v1094 = vxor.u32 %v1052, 2147483648
        %v1095 = vxor.u32 %v1055, 2147483648
        %v1096 = vxor.u32 %v1060, 2147483648
        %v1097 = vxor.u32 %v1063, 2147483648
        %v1098 = vmul.f32 %v1066, 1.442695
        %v1099 = vpow.pop %v1098
        %v1100 = vmul.f32 %v1067, 1.442695
        %v1101 = vpow.pop %v1100
        %v1102 = vmul.f32 %v1068, 1.442695
        %v1103 = vpow.pop %v1102
        %v1104 = vmul.f32 %v1069, 1.442695
        %v1105 = vpow.pop %v1104
        %v1106 = vmul.f32 %v1070, 1.442695
        %v1107 = vpow.pop %v1106
        %v1108 = vmul.f32 %v1071, 1.442695
        %v1109 = vpow.pop %v1108
        %v1110 = vmul.f32 %v1072, 1.442695
        %v1111 = vpow.pop %v1110
        %v1112 = vmul.f32 %v1073, 1.442695
        %v1113 = vpow.pop %v1112
        %v1114 = vmul.f32 %v1074, 1.442695
        %v1115 = vpow.pop %v1114
        %v1116 = vmul.f32 %v1075, 1.442695
        %v1117 = vpow.pop %v1116
        %v1118 = vmul.f32 %v1076, 1.442695
        %v1119 = vpow.pop %v1118
        %v1120 = vmul.f32 %v1077, 1.442695
        %v1121 = vpow.pop %v1120
        %v1122 = vmul.f32 %v1078, 1.442695
        %v1123 = vpow.pop %v1122
        %v1124 = vmul.f32 %v1079, 1.442695
        %v1125 = vpow.pop %v1124
        %v1126 = vmul.f32 %v1080, 1.442695
        %v1127 = vpow.pop %v1126
        %v1128 = vmul.f32 %v1081, 1.442695
        %v1129 = vpow.pop %v1128
        %v1130 = vmul.f32 %v1082, 1.442695
        %v1131 = vpow.pop %v1130
        %v1132 = vmul.f32 %v1083, 1.442695
        %v1133 = vpow.pop %v1132
        %v1134 = vmul.f32 %v1084, 1.442695
        %v1135 = vpow.pop %v1134
        %v1136 = vmul.f32 %v1085, 1.442695
        %v1137 = vpow.pop %v1136
        %v1138 = vmul.f32 %v1086, 1.442695
        %v1139 = vpow.pop %v1138
        %v1140 = vmul.f32 %v1087, 1.442695
        %v1141 = vpow.pop %v1140
        %v1142 = vmul.f32 %v1088, 1.442695
        %v1143 = vpow.pop %v1142
        %v1144 = vmul.f32 %v1089, 1.442695
        %v1145 = vpow.pop %v1144
        %v1146 = vmul.f32 %v1090, 1.442695
        %v1147 = vpow.pop %v1146
        %v1148 = vmul.f32 %v1091, 1.442695
        %v1149 = vpow.pop %v1148
        %v1150 = vmul.f32 %v1092, 1.442695
        %v1151 = vpow.pop %v1150
        %v1152 = vmul.f32 %v1093, 1.442695
        %v1153 = vpow.pop %v1152
        %v1154 = vmul.f32 %v1094, 1.442695
        %v1155 = vpow.pop %v1154
        %v1156 = vmul.f32 %v1095, 1.442695
        %v1157 = vpow.pop %v1156
        %v1158 = vmul.f32 %v1096, 1.442695
        %v1159 = vpow.pop %v1158
        %v1160 = vmul.f32 %v1097, 1.442695
        %v1161 = vpow.pop %v1160
        %v1162 = vadd.f32 %v1099, 1.0
        %v1163 = vadd.f32 %v1101, 1.0
        %v1164 = vadd.f32 %v1103, 1.0
        %v1165 = vadd.f32 %v1105, 1.0
        %v1166 = vadd.f32 %v1107, 1.0
        %v1167 = vadd.f32 %v1109, 1.0
        %v1168 = vadd.f32 %v1111, 1.0
        %v1169 = vadd.f32 %v1113, 1.0
        %v1170 = vadd.f32 %v1115, 1.0
        %v1171 = vadd.f32 %v1117, 1.0
        %v1172 = vadd.f32 %v1119, 1.0
        %v1173 = vadd.f32 %v1121, 1.0
        %v1174 = vadd.f32 %v1123, 1.0
        %v1175 = vadd.f32 %v1125, 1.0
        %v1176 = vadd.f32 %v1127, 1.0
        %v1177 = vadd.f32 %v1129, 1.0
        %v1178 = vadd.f32 %v1131, 1.0
        %v1179 = vadd.f32 %v1133, 1.0
        %v1180 = vadd.f32 %v1135, 1.0
        %v1181 = vadd.f32 %v1137, 1.0
        %v1182 = vadd.f32 %v1139, 1.0
        %v1183 = vadd.f32 %v1141, 1.0
        %v1184 = vadd.f32 %v1143, 1.0
        %v1185 = vadd.f32 %v1145, 1.0
        %v1186 = vadd.f32 %v1147, 1.0
        %v1187 = vadd.f32 %v1149, 1.0
        %v1188 = vadd.f32 %v1151, 1.0
        %v1189 = vadd.f32 %v1153, 1.0
        %v1190 = vadd.f32 %v1155, 1.0
        %v1191 = vadd.f32 %v1157, 1.0
        %v1192 = vadd.f32 %v1159, 1.0
        %v1193 = vadd.f32 %v1161, 1.0
        %v1194 = vrcp.pop %v1162
        %v1195 = vmul.f32 1.0, %v1194
        %v1196 = vrcp.pop %v1163
        %v1197 = vmul.f32 1.0, %v1196
        %v1198 = vrcp.pop %v1164
        %v1199 = vmul.f32 1.0, %v1198
        %v1200 = vrcp.pop %v1165
        %v1201 = vmul.f32 1.0, %v1200
        %v1202 = vrcp.pop %v1166
        %v1203 = vmul.f32 1.0, %v1202
        %v1204 = vrcp.pop %v1167
        %v1205 = vmul.f32 1.0, %v1204
        %v1206 = vrcp.pop %v1168
        %v1207 = vmul.f32 1.0, %v1206
        %v1208 = vrcp.pop %v1169
        %v1209 = vmul.f32 1.0, %v1208
        %v1210 = vrcp.pop %v1170
        %v1211 = vmul.f32 1.0, %v1210
        %v1212 = vrcp.pop %v1171
        %v1213 = vmul.f32 1.0, %v1212
        %v1214 = vrcp.pop %v1172
        %v1215 = vmul.f32 1.0, %v1214
        %v1216 = vrcp.pop %v1173
        %v1217 = vmul.f32 1.0, %v1216
        %v1218 = vrcp.pop %v1174
        %v1219 = vmul.f32 1.0, %v1218
        %v1220 = vrcp.pop %v1175
        %v1221 = vmul.f32 1.0, %v1220
        %v1222 = vrcp.pop %v1176
        %v1223 = vmul.f32 1.0, %v1222
        %v1224 = vrcp.pop %v1177
        %v1225 = vmul.f32 1.0, %v1224
        %v1226 = vrcp.pop %v1178
        %v1227 = vmul.f32 1.0, %v1226
        %v1228 = vrcp.pop %v1179
        %v1229 = vmul.f32 1.0, %v1228
        %v1230 = vrcp.pop %v1180
        %v1231 = vmul.f32 1.0, %v1230
        %v1232 = vrcp.pop %v1181
        %v1233 = vmul.f32 1.0, %v1232
        %v1234 = vrcp.pop %v1182
        %v1235 = vmul.f32 1.0, %v1234
        %v1236 = vrcp.pop %v1183
        %v1237 = vmul.f32 1.0, %v1236
        %v1238 = vrcp.pop %v1184
        %v1239 = vmul.f32 1.0, %v1238
        %v1240 = vrcp.pop %v1185
        %v1241 = vmul.f32 1.0, %v1240
        %v1242 = vrcp.pop %v1186
        %v1243 = vmul.f32 1.0, %v1242
        %v1244 = vrcp.pop %v1187
        %v1245 = vmul.f32 1.0, %v1244
        %v1246 = vrcp.pop %v1188
        %v1247 = vmul.f32 1.0, %v1246
        %v1248 = vrcp.pop %v1189
        %v1249 = vmul.f32 1.0, %v1248
        %v1250 = vrcp.pop %v1190
        %v1251 = vmul.f32 1.0, %v1250
        %v1252 = vrcp.pop %v1191
        %v1253 = vmul.f32 1.0, %v1252
        %v1254 = vrcp.pop %v1192
        %v1255 = vmul.f32 1.0, %v1254
        %v1256 = vrcp.pop %v1193
        %v1257 = vmul.f32 1.0, %v1256
        %v1258 = vmul.f32 %v940, %v1195
        %v1259 = vmul.f32 %v943, %v1197
        %v1260 = vmul.f32 %v948, %v1199
        %v1261 = vmul.f32 %v951, %v1201
        %v1262 = vmul.f32 %v956, %v1203
        %v1263 = vmul.f32 %v959, %v1205
        %v1264 = vmul.f32 %v964, %v1207
        %v1265 = vmul.f32 %v967, %v1209
        %v1266 = vmul.f32 %v972, %v1211
        %v1267 = vmul.f32 %v975, %v1213
        %v1268 = vmul.f32 %v980, %v1215
        %v1269 = vmul.f32 %v983, %v1217
        %v1270 = vmul.f32 %v988, %v1219
        %v1271 = vmul.f32 %v991, %v1221
        %v1272 = vmul.f32 %v996, %v1223
        %v1273 = vmul.f32 %v999, %v1225
        %v1274 = vmul.f32 %v1004, %v1227
        %v1275 = vmul.f32 %v1007, %v1229
        %v1276 = vmul.f32 %v1012, %v1231
        %v1277 = vmul.f32 %v1015, %v1233
        %v1278 = vmul.f32 %v1020, %v1235
        %v1279 = vmul.f32 %v1023, %v1237
        %v1280 = vmul.f32 %v1028, %v1239
        %v1281 = vmul.f32 %v1031, %v1241
        %v1282 = vmul.f32 %v1036, %v1243
        %v1283 = vmul.f32 %v1039, %v1245
        %v1284 = vmul.f32 %v1044, %v1247
        %v1285 = vmul.f32 %v1047, %v1249
        %v1286 = vmul.f32 %v1052, %v1251
        %v1287 = vmul.f32 %v1055, %v1253
        %v1288 = vmul.f32 %v1060, %v1255
        %v1289 = vmul.f32 %v1063, %v1257
        %v1290 = vld [vmem:[%s3] sm:$0xf]
        %v1291 = vld [vmem:[%s3 + $0x4] sm:$0xf]
        %v1292 = vld [vmem:[%s4] sm:$0x1]
        %v1294 = vlaneseq
        %v1295 = vshrl.u32 %v1294, 7
        %v1296 = vsub.s32 0, %v1295
        %v1297 = vrot.slane %v1292, %v1296
        %v1301 = vunpack.c.l.b16 %v1290
        %v1302 = vunpack.c.l.b16 %v1291
        %v1303 = vpack.c.b16 %v1302, %v1301
        %1305 = vmatprep.subr.bf16.mxu0 0
        %1306 = vmatpush1.bf16.msra.mxu0 %v1303
        %1307 = vmatprep.subr.bf16.mxu0 0
        %1308 = vmatpush1.bf16.msra.mxu0 0
        %1309 = vmatprep.subr.bf16.mxu0 0
        %1310 = vmatpush1.bf16.msra.mxu0 0
        %1311 = vmatprep.subr.bf16.mxu0 0
        %1312 = vmatpush1.bf16.msra.mxu0 0
        %1313 = vmatprep.subr.bf16.mxu0 0
        %1314 = vmatpush1.bf16.msra.mxu0 0
        %1315 = vmatprep.subr.bf16.mxu0 0
        %1316 = vmatpush1.bf16.msra.mxu0 0
        %1317 = vmatprep.subr.bf16.mxu0 0
        %1318 = vmatpush1.bf16.msra.mxu0 0
        %1319 = vmatprep.subr.bf16.mxu0 0
        %1320 = vmatpush1.bf16.msra.mxu0 0
        %1321 = vmatprep.subr.bf16.mxu0 0
        %1322 = vmatpush1.bf16.msra.mxu0 0
        %1323 = vmatprep.subr.bf16.mxu0 0
        %1324 = vmatpush1.bf16.msra.mxu0 0
        %1325 = vmatprep.subr.bf16.mxu0 0
        %1326 = vmatpush1.bf16.msra.mxu0 0
        %1327 = vmatprep.subr.bf16.mxu0 0
        %1328 = vmatpush1.bf16.msra.mxu0 0
        %1329 = vmatprep.subr.bf16.mxu0 0
        %1330 = vmatpush1.bf16.msra.mxu0 0
        %1331 = vmatprep.subr.bf16.mxu0 0
        %1332 = vmatpush1.bf16.msra.mxu0 0
        %1333 = vmatprep.subr.bf16.mxu0 0
        %1334 = vmatpush1.bf16.msra.mxu0 0
        %1335 = vmatprep.subr.bf16.mxu0 0
        %1336 = vmatpush1.bf16.msra.mxu0 0
        %1337 = vmatprep.mubr.bf16.mxu0 0
        %1338 = vmatmul.mubr.bf16.gmra.mrb[0].mxu0 %v858
        %v1339 = vpop.f32.mrb[0].mxu0
        %v1340 = vadd.f32 %v1297, %v1339
        %v1341 = vpop.f32.mrb[0].mxu0
        %v1342 = vpop.f32.mrb[0].mxu0
        %v1343 = vadd.f32 %v1297, %v1342
        %v1344 = vpop.f32.mrb[0].mxu0
        %1345 = vmatprep.mubr.bf16.mxu0 0
        %1346 = vmatmul.mubr.bf16.gmra.mrb[0].mxu0 %v861
        %v1347 = vpop.f32.mrb[0].mxu0
        %v1348 = vadd.f32 %v1297, %v1347
        %v1349 = vpop.f32.mrb[0].mxu0
        %v1350 = vpop.f32.mrb[0].mxu0
        %v1351 = vadd.f32 %v1297, %v1350
        %v1352 = vpop.f32.mrb[0].mxu0
        %1353 = vmatprep.mubr.bf16.mxu0 0
        %1354 = vmatmul.mubr.bf16.gmra.mrb[0].mxu0 %v864
        %v1355 = vpop.f32.mrb[0].mxu0
        %v1356 = vadd.f32 %v1297, %v1355
        %v1357 = vpop.f32.mrb[0].mxu0
        %v1358 = vpop.f32.mrb[0].mxu0
        %v1359 = vadd.f32 %v1297, %v1358
        %v1360 = vpop.f32.mrb[0].mxu0
        %1361 = vmatprep.mubr.bf16.mxu0 0
        %1362 = vmatmul.mubr.bf16.gmra.mrb[0].mxu0 %v867
        %v1363 = vpop.f32.mrb[0].mxu0
        %v1364 = vadd.f32 %v1297, %v1363
        %v1365 = vpop.f32.mrb[0].mxu0
        %v1366 = vpop.f32.mrb[0].mxu0
        %v1367 = vadd.f32 %v1297, %v1366
        %v1368 = vpop.f32.mrb[0].mxu0
        %1369 = vmatprep.mubr.bf16.mxu0 0
        %1370 = vmatmul.mubr.bf16.gmra.mrb[0].mxu0 %v870
        %v1371 = vpop.f32.mrb[0].mxu0
        %v1372 = vadd.f32 %v1297, %v1371
        %v1373 = vpop.f32.mrb[0].mxu0
        %v1374 = vpop.f32.mrb[0].mxu0
        %v1375 = vadd.f32 %v1297, %v1374
        %v1376 = vpop.f32.mrb[0].mxu0
        %1377 = vmatprep.mubr.bf16.mxu0 0
        %1378 = vmatmul.mubr.bf16.gmra.mrb[0].mxu0 %v873
        %v1379 = vpop.f32.mrb[0].mxu0
        %v1380 = vadd.f32 %v1297, %v1379
        %v1381 = vpop.f32.mrb[0].mxu0
        %v1382 = vpop.f32.mrb[0].mxu0
        %v1383 = vadd.f32 %v1297, %v1382
        %v1384 = vpop.f32.mrb[0].mxu0
        %1385 = vmatprep.mubr.bf16.mxu0 0
        %1386 = vmatmul.mubr.bf16.gmra.mrb[0].mxu0 %v876
        %v1387 = vpop.f32.mrb[0].mxu0
        %v1388 = vadd.f32 %v1297, %v1387
        %v1389 = vpop.f32.mrb[0].mxu0
        %v1390 = vpop.f32.mrb[0].mxu0
        %v1391 = vadd.f32 %v1297, %v1390
        %v1392 = vpop.f32.mrb[0].mxu0
        %1393 = vmatprep.mubr.bf16.mxu0 0
        %1394 = vmatmul.mubr.bf16.gmra.mrb[0].mxu0 %v879
        %v1395 = vpop.f32.mrb[0].mxu0
        %v1396 = vadd.f32 %v1297, %v1395
        %v1397 = vpop.f32.mrb[0].mxu0
        %v1398 = vpop.f32.mrb[0].mxu0
        %v1399 = vadd.f32 %v1297, %v1398
        %v1400 = vpop.f32.mrb[0].mxu0
        %1401 = vmatprep.mubr.bf16.mxu0 0
        %1402 = vmatmul.mubr.bf16.gmra.mrb[0].mxu0 %v882
        %v1403 = vpop.f32.mrb[0].mxu0
        %v1404 = vadd.f32 %v1297, %v1403
        %v1405 = vpop.f32.mrb[0].mxu0
        %v1406 = vpop.f32.mrb[0].mxu0
        %v1407 = vadd.f32 %v1297, %v1406
        %v1408 = vpop.f32.mrb[0].mxu0
        %1409 = vmatprep.mubr.bf16.mxu0 0
        %1410 = vmatmul.mubr.bf16.gmra.mrb[0].mxu0 %v885
        %v1411 = vpop.f32.mrb[0].mxu0
        %v1412 = vadd.f32 %v1297, %v1411
        %v1413 = vpop.f32.mrb[0].mxu0
        %v1414 = vpop.f32.mrb[0].mxu0
        %v1415 = vadd.f32 %v1297, %v1414
        %v1416 = vpop.f32.mrb[0].mxu0
        %1417 = vmatprep.mubr.bf16.mxu0 0
        %1418 = vmatmul.mubr.bf16.gmra.mrb[0].mxu0 %v888
        %v1419 = vpop.f32.mrb[0].mxu0
        %v1420 = vadd.f32 %v1297, %v1419
        %v1421 = vpop.f32.mrb[0].mxu0
        %v1422 = vpop.f32.mrb[0].mxu0
        %v1423 = vadd.f32 %v1297, %v1422
        %v1424 = vpop.f32.mrb[0].mxu0
        %1425 = vmatprep.mubr.bf16.mxu0 0
        %1426 = vmatmul.mubr.bf16.gmra.mrb[0].mxu0 %v891
        %v1427 = vpop.f32.mrb[0].mxu0
        %v1428 = vadd.f32 %v1297, %v1427
        %v1429 = vpop.f32.mrb[0].mxu0
        %v1430 = vpop.f32.mrb[0].mxu0
        %v1431 = vadd.f32 %v1297, %v1430
        %v1432 = vpop.f32.mrb[0].mxu0
        %1433 = vmatprep.mubr.bf16.mxu0 0
        %1434 = vmatmul.mubr.bf16.gmra.mrb[0].mxu0 %v894
        %v1435 = vpop.f32.mrb[0].mxu0
        %v1436 = vadd.f32 %v1297, %v1435
        %v1437 = vpop.f32.mrb[0].mxu0
        %v1438 = vpop.f32.mrb[0].mxu0
        %v1439 = vadd.f32 %v1297, %v1438
        %v1440 = vpop.f32.mrb[0].mxu0
        %1441 = vmatprep.mubr.bf16.mxu0 0
        %1442 = vmatmul.mubr.bf16.gmra.mrb[0].mxu0 %v897
        %v1443 = vpop.f32.mrb[0].mxu0
        %v1444 = vadd.f32 %v1297, %v1443
        %v1445 = vpop.f32.mrb[0].mxu0
        %v1446 = vpop.f32.mrb[0].mxu0
        %v1447 = vadd.f32 %v1297, %v1446
        %v1448 = vpop.f32.mrb[0].mxu0
        %1449 = vmatprep.mubr.bf16.mxu0 0
        %1450 = vmatmul.mubr.bf16.gmra.mrb[0].mxu0 %v900
        %v1451 = vpop.f32.mrb[0].mxu0
        %v1452 = vadd.f32 %v1297, %v1451
        %v1453 = vpop.f32.mrb[0].mxu0
        %v1454 = vpop.f32.mrb[0].mxu0
        %v1455 = vadd.f32 %v1297, %v1454
        %v1456 = vpop.f32.mrb[0].mxu0
        %1457 = vmatprep.mubr.bf16.mxu0 0
        %1458 = vmatmul.mubr.bf16.gmra.mrb[0].mxu0 %v903
        %v1459 = vpop.f32.mrb[0].mxu0
        %v1460 = vadd.f32 %v1297, %v1459
        %v1461 = vpop.f32.mrb[0].mxu0
        %v1462 = vpop.f32.mrb[0].mxu0
        %v1463 = vadd.f32 %v1297, %v1462
        %v1464 = vpop.f32.mrb[0].mxu0
        %1465 = vdwg.mxu0
        %v1466 = vxor.u32 %v1340, 2147483648
        %v1467 = vxor.u32 %v1343, 2147483648
        %v1468 = vxor.u32 %v1348, 2147483648
        %v1469 = vxor.u32 %v1351, 2147483648
        %v1470 = vxor.u32 %v1356, 2147483648
        %v1471 = vxor.u32 %v1359, 2147483648
        %v1472 = vxor.u32 %v1364, 2147483648
        %v1473 = vxor.u32 %v1367, 2147483648
        %v1474 = vxor.u32 %v1372, 2147483648
        %v1475 = vxor.u32 %v1375, 2147483648
        %v1476 = vxor.u32 %v1380, 2147483648
        %v1477 = vxor.u32 %v1383, 2147483648
        %v1478 = vxor.u32 %v1388, 2147483648
        %v1479 = vxor.u32 %v1391, 2147483648
        %v1480 = vxor.u32 %v1396, 2147483648
        %v1481 = vxor.u32 %v1399, 2147483648
        %v1482 = vxor.u32 %v1404, 2147483648
        %v1483 = vxor.u32 %v1407, 2147483648
        %v1484 = vxor.u32 %v1412, 2147483648
        %v1485 = vxor.u32 %v1415, 2147483648
        %v1486 = vxor.u32 %v1420, 2147483648
        %v1487 = vxor.u32 %v1423, 2147483648
        %v1488 = vxor.u32 %v1428, 2147483648
        %v1489 = vxor.u32 %v1431, 2147483648
        %v1490 = vxor.u32 %v1436, 2147483648
        %v1491 = vxor.u32 %v1439, 2147483648
        %v1492 = vxor.u32 %v1444, 2147483648
        %v1493 = vxor.u32 %v1447, 2147483648
        %v1494 = vxor.u32 %v1452, 2147483648
        %v1495 = vxor.u32 %v1455, 2147483648
        %v1496 = vxor.u32 %v1460, 2147483648
        %v1497 = vxor.u32 %v1463, 2147483648
        %v1498 = vmul.f32 %v1466, 1.442695
        %v1499 = vpow.pop %v1498
        %v1500 = vmul.f32 %v1467, 1.442695
        %v1501 = vpow.pop %v1500
        %v1502 = vmul.f32 %v1468, 1.442695
        %v1503 = vpow.pop %v1502
        %v1504 = vmul.f32 %v1469, 1.442695
        %v1505 = vpow.pop %v1504
        %v1506 = vmul.f32 %v1470, 1.442695
        %v1507 = vpow.pop %v1506
        %v1508 = vmul.f32 %v1471, 1.442695
        %v1509 = vpow.pop %v1508
        %v1510 = vmul.f32 %v1472, 1.442695
        %v1511 = vpow.pop %v1510
        %v1512 = vmul.f32 %v1473, 1.442695
        %v1513 = vpow.pop %v1512
        %v1514 = vmul.f32 %v1474, 1.442695
        %v1515 = vpow.pop %v1514
        %v1516 = vmul.f32 %v1475, 1.442695
        %v1517 = vpow.pop %v1516
        %v1518 = vmul.f32 %v1476, 1.442695
        %v1519 = vpow.pop %v1518
        %v1520 = vmul.f32 %v1477, 1.442695
        %v1521 = vpow.pop %v1520
        %v1522 = vmul.f32 %v1478, 1.442695
        %v1523 = vpow.pop %v1522
        %v1524 = vmul.f32 %v1479, 1.442695
        %v1525 = vpow.pop %v1524
        %v1526 = vmul.f32 %v1480, 1.442695
        %v1527 = vpow.pop %v1526
        %v1528 = vmul.f32 %v1481, 1.442695
        %v1529 = vpow.pop %v1528
        %v1530 = vmul.f32 %v1482, 1.442695
        %v1531 = vpow.pop %v1530
        %v1532 = vmul.f32 %v1483, 1.442695
        %v1533 = vpow.pop %v1532
        %v1534 = vmul.f32 %v1484, 1.442695
        %v1535 = vpow.pop %v1534
        %v1536 = vmul.f32 %v1485, 1.442695
        %v1537 = vpow.pop %v1536
        %v1538 = vmul.f32 %v1486, 1.442695
        %v1539 = vpow.pop %v1538
        %v1540 = vmul.f32 %v1487, 1.442695
        %v1541 = vpow.pop %v1540
        %v1542 = vmul.f32 %v1488, 1.442695
        %v1543 = vpow.pop %v1542
        %v1544 = vmul.f32 %v1489, 1.442695
        %v1545 = vpow.pop %v1544
        %v1546 = vmul.f32 %v1490, 1.442695
        %v1547 = vpow.pop %v1546
        %v1548 = vmul.f32 %v1491, 1.442695
        %v1549 = vpow.pop %v1548
        %v1550 = vmul.f32 %v1492, 1.442695
        %v1551 = vpow.pop %v1550
        %v1552 = vmul.f32 %v1493, 1.442695
        %v1553 = vpow.pop %v1552
        %v1554 = vmul.f32 %v1494, 1.442695
        %v1555 = vpow.pop %v1554
        %v1556 = vmul.f32 %v1495, 1.442695
        %v1557 = vpow.pop %v1556
        %v1558 = vmul.f32 %v1496, 1.442695
        %v1559 = vpow.pop %v1558
        %v1560 = vmul.f32 %v1497, 1.442695
        %v1561 = vpow.pop %v1560
        %v1562 = vadd.f32 %v1499, 1.0
        %v1563 = vadd.f32 %v1501, 1.0
        %v1564 = vadd.f32 %v1503, 1.0
        %v1565 = vadd.f32 %v1505, 1.0
        %v1566 = vadd.f32 %v1507, 1.0
        %v1567 = vadd.f32 %v1509, 1.0
        %v1568 = vadd.f32 %v1511, 1.0
        %v1569 = vadd.f32 %v1513, 1.0
        %v1570 = vadd.f32 %v1515, 1.0
        %v1571 = vadd.f32 %v1517, 1.0
        %v1572 = vadd.f32 %v1519, 1.0
        %v1573 = vadd.f32 %v1521, 1.0
        %v1574 = vadd.f32 %v1523, 1.0
        %v1575 = vadd.f32 %v1525, 1.0
        %v1576 = vadd.f32 %v1527, 1.0
        %v1577 = vadd.f32 %v1529, 1.0
        %v1578 = vadd.f32 %v1531, 1.0
        %v1579 = vadd.f32 %v1533, 1.0
        %v1580 = vadd.f32 %v1535, 1.0
        %v1581 = vadd.f32 %v1537, 1.0
        %v1582 = vadd.f32 %v1539, 1.0
        %v1583 = vadd.f32 %v1541, 1.0
        %v1584 = vadd.f32 %v1543, 1.0
        %v1585 = vadd.f32 %v1545, 1.0
        %v1586 = vadd.f32 %v1547, 1.0
        %v1587 = vadd.f32 %v1549, 1.0
        %v1588 = vadd.f32 %v1551, 1.0
        %v1589 = vadd.f32 %v1553, 1.0
        %v1590 = vadd.f32 %v1555, 1.0
        %v1591 = vadd.f32 %v1557, 1.0
        %v1592 = vadd.f32 %v1559, 1.0
        %v1593 = vadd.f32 %v1561, 1.0
        %v1594 = vrcp.pop %v1562
        %v1595 = vmul.f32 1.0, %v1594
        %v1596 = vrcp.pop %v1563
        %v1597 = vmul.f32 1.0, %v1596
        %v1598 = vrcp.pop %v1564
        %v1599 = vmul.f32 1.0, %v1598
        %v1600 = vrcp.pop %v1565
        %v1601 = vmul.f32 1.0, %v1600
        %v1602 = vrcp.pop %v1566
        %v1603 = vmul.f32 1.0, %v1602
        %v1604 = vrcp.pop %v1567
        %v1605 = vmul.f32 1.0, %v1604
        %v1606 = vrcp.pop %v1568
        %v1607 = vmul.f32 1.0, %v1606
        %v1608 = vrcp.pop %v1569
        %v1609 = vmul.f32 1.0, %v1608
        %v1610 = vrcp.pop %v1570
        %v1611 = vmul.f32 1.0, %v1610
        %v1612 = vrcp.pop %v1571
        %v1613 = vmul.f32 1.0, %v1612
        %v1614 = vrcp.pop %v1572
        %v1615 = vmul.f32 1.0, %v1614
        %v1616 = vrcp.pop %v1573
        %v1617 = vmul.f32 1.0, %v1616
        %v1618 = vrcp.pop %v1574
        %v1619 = vmul.f32 1.0, %v1618
        %v1620 = vrcp.pop %v1575
        %v1621 = vmul.f32 1.0, %v1620
        %v1622 = vrcp.pop %v1576
        %v1623 = vmul.f32 1.0, %v1622
        %v1624 = vrcp.pop %v1577
        %v1625 = vmul.f32 1.0, %v1624
        %v1626 = vrcp.pop %v1578
        %v1627 = vmul.f32 1.0, %v1626
        %v1628 = vrcp.pop %v1579
        %v1629 = vmul.f32 1.0, %v1628
        %v1630 = vrcp.pop %v1580
        %v1631 = vmul.f32 1.0, %v1630
        %v1632 = vrcp.pop %v1581
        %v1633 = vmul.f32 1.0, %v1632
        %v1634 = vrcp.pop %v1582
        %v1635 = vmul.f32 1.0, %v1634
        %v1636 = vrcp.pop %v1583
        %v1637 = vmul.f32 1.0, %v1636
        %v1638 = vrcp.pop %v1584
        %v1639 = vmul.f32 1.0, %v1638
        %v1640 = vrcp.pop %v1585
        %v1641 = vmul.f32 1.0, %v1640
        %v1642 = vrcp.pop %v1586
        %v1643 = vmul.f32 1.0, %v1642
        %v1644 = vrcp.pop %v1587
        %v1645 = vmul.f32 1.0, %v1644
        %v1646 = vrcp.pop %v1588
        %v1647 = vmul.f32 1.0, %v1646
        %v1648 = vrcp.pop %v1589
        %v1649 = vmul.f32 1.0, %v1648
        %v1650 = vrcp.pop %v1590
        %v1651 = vmul.f32 1.0, %v1650
        %v1652 = vrcp.pop %v1591
        %v1653 = vmul.f32 1.0, %v1652
        %v1654 = vrcp.pop %v1592
        %v1655 = vmul.f32 1.0, %v1654
        %v1656 = vrcp.pop %v1593
        %v1657 = vmul.f32 1.0, %v1656
        %v1658 = vmul.f32 %v1340, %v1595
        %v1659 = vmul.f32 %v1343, %v1597
        %v1660 = vmul.f32 %v1348, %v1599
        %v1661 = vmul.f32 %v1351, %v1601
        %v1662 = vmul.f32 %v1356, %v1603
        %v1663 = vmul.f32 %v1359, %v1605
        %v1664 = vmul.f32 %v1364, %v1607
        %v1665 = vmul.f32 %v1367, %v1609
        %v1666 = vmul.f32 %v1372, %v1611
        %v1667 = vmul.f32 %v1375, %v1613
        %v1668 = vmul.f32 %v1380, %v1615
        %v1669 = vmul.f32 %v1383, %v1617
        %v1670 = vmul.f32 %v1388, %v1619
        %v1671 = vmul.f32 %v1391, %v1621
        %v1672 = vmul.f32 %v1396, %v1623
        %v1673 = vmul.f32 %v1399, %v1625
        %v1674 = vmul.f32 %v1404, %v1627
        %v1675 = vmul.f32 %v1407, %v1629
        %v1676 = vmul.f32 %v1412, %v1631
        %v1677 = vmul.f32 %v1415, %v1633
        %v1678 = vmul.f32 %v1420, %v1635
        %v1679 = vmul.f32 %v1423, %v1637
        %v1680 = vmul.f32 %v1428, %v1639
        %v1681 = vmul.f32 %v1431, %v1641
        %v1682 = vmul.f32 %v1436, %v1643
        %v1683 = vmul.f32 %v1439, %v1645
        %v1684 = vmul.f32 %v1444, %v1647
        %v1685 = vmul.f32 %v1447, %v1649
        %v1686 = vmul.f32 %v1452, %v1651
        %v1687 = vmul.f32 %v1455, %v1653
        %v1688 = vmul.f32 %v1460, %v1655
        %v1689 = vmul.f32 %v1463, %v1657
        %1690 = vxpose.xlu0.b32.start [1/16] %v1658, 128
        %1691 = vxpose.xlu0.b32.cont [2/16] %v1659, 128
        %1692 = vxpose.xlu0.b32.cont [3/16] %v1660, 128
        %1693 = vxpose.xlu0.b32.cont [4/16] %v1661, 128
        %1694 = vxpose.xlu0.b32.cont [5/16] %v1662, 128
        %1695 = vxpose.xlu0.b32.cont [6/16] %v1663, 128
        %1696 = vxpose.xlu0.b32.cont [7/16] %v1664, 128
        %1697 = vxpose.xlu0.b32.cont [8/16] %v1665, 128
        %1698 = vxpose.xlu0.b32.cont [9/16] %v1666, 128
        %1699 = vxpose.xlu0.b32.cont [10/16] %v1667, 128
        %1700 = vxpose.xlu0.b32.cont [11/16] %v1668, 128
        %1701 = vxpose.xlu0.b32.cont [12/16] %v1669, 128
        %1702 = vxpose.xlu0.b32.cont [13/16] %v1670, 128
        %1703 = vxpose.xlu0.b32.cont [14/16] %v1671, 128
        %1704 = vxpose.xlu0.b32.cont [15/16] %v1672, 128
        %1705 = vxpose.xlu0.b32.end [16/16] %v1673, 128
        %v1706 = vpop.trf.xlu0
        %v1707 = vpop.trf.xlu0
        %v1708 = vpop.trf.xlu0
        %v1709 = vpop.trf.xlu0
        %v1710 = vpop.trf.xlu0
        %v1711 = vpop.trf.xlu0
        %v1712 = vpop.trf.xlu0
        %v1713 = vpop.trf.xlu0
        %v1714 = vpop.trf.xlu0
        %v1715 = vpop.trf.xlu0
        %v1716 = vpop.trf.xlu0
        %v1717 = vpop.trf.xlu0
        %v1718 = vpop.trf.xlu0
        %v1719 = vpop.trf.xlu0
        %v1720 = vpop.trf.xlu0
        %v1721 = vpop.trf.xlu0
        %1722 = vxpose.xlu0.b32.start [1/16] %v1674, 128
        %1723 = vxpose.xlu0.b32.cont [2/16] %v1675, 128
        %1724 = vxpose.xlu0.b32.cont [3/16] %v1676, 128
        %1725 = vxpose.xlu0.b32.cont [4/16] %v1677, 128
        %1726 = vxpose.xlu0.b32.cont [5/16] %v1678, 128
        %1727 = vxpose.xlu0.b32.cont [6/16] %v1679, 128
        %1728 = vxpose.xlu0.b32.cont [7/16] %v1680, 128
        %1729 = vxpose.xlu0.b32.cont [8/16] %v1681, 128
        %1730 = vxpose.xlu0.b32.cont [9/16] %v1682, 128
        %1731 = vxpose.xlu0.b32.cont [10/16] %v1683, 128
        %1732 = vxpose.xlu0.b32.cont [11/16] %v1684, 128
        %1733 = vxpose.xlu0.b32.cont [12/16] %v1685, 128
        %1734 = vxpose.xlu0.b32.cont [13/16] %v1686, 128
        %1735 = vxpose.xlu0.b32.cont [14/16] %v1687, 128
        %1736 = vxpose.xlu0.b32.cont [15/16] %v1688, 128
        %1737 = vxpose.xlu0.b32.end [16/16] %v1689, 128
        %v1738 = vpop.trf.xlu0
        %v1739 = vpop.trf.xlu0
        %v1740 = vpop.trf.xlu0
        %v1741 = vpop.trf.xlu0
        %v1742 = vpop.trf.xlu0
        %v1743 = vpop.trf.xlu0
        %v1744 = vpop.trf.xlu0
        %v1745 = vpop.trf.xlu0
        %v1746 = vpop.trf.xlu0
        %v1747 = vpop.trf.xlu0
        %v1748 = vpop.trf.xlu0
        %v1749 = vpop.trf.xlu0
        %v1750 = vpop.trf.xlu0
        %v1751 = vpop.trf.xlu0
        %v1752 = vpop.trf.xlu0
        %v1753 = vpop.trf.xlu0
        %v1754 = vpack.c.bf16 %v1706, %v1706
        %v1755 = vpack.c.bf16 %v1738, %v1738
        %v1758 = vunpack.c.l.b16 %v1754
        %v1759 = vunpack.c.l.b16 %v1755
        %v1760 = vpack.c.b16 %v1759, %v1758
        %1762 = vst [vmem:[%s19] sm:$0xff] %v1760
        %vm1763 = vcmask 64512
        %1764 = vst.msk [vmem:[#allocation3] sm:$0xff] %vm1763, %v1258
        %1765 = vst.msk [vmem:[#allocation3 + $0x8] sm:$0xff] %vm1763, %v1259
        %1766 = vst.msk [vmem:[#allocation3 + $0x10] sm:$0xff] %vm1763, %v1260
        %1767 = vst.msk [vmem:[#allocation3 + $0x18] sm:$0xff] %vm1763, %v1261
        %1768 = vst.msk [vmem:[#allocation3 + $0x20] sm:$0xff] %vm1763, %v1262
        %1769 = vst.msk [vmem:[#allocation3 + $0x28] sm:$0xff] %vm1763, %v1263
        %1770 = vst.msk [vmem:[#allocation3 + $0x30] sm:$0xff] %vm1763, %v1264
        %1771 = vst.msk [vmem:[#allocation3 + $0x38] sm:$0xff] %vm1763, %v1265
        %1772 = vst.msk [vmem:[#allocation3 + $0x40] sm:$0xff] %vm1763, %v1266
        %1773 = vst.msk [vmem:[#allocation3 + $0x48] sm:$0xff] %vm1763, %v1267
        %1774 = vst.msk [vmem:[#allocation3 + $0x50] sm:$0xff] %vm1763, %v1268
        %1775 = vst.msk [vmem:[#allocation3 + $0x58] sm:$0xff] %vm1763, %v1269
        %1776 = vst.msk [vmem:[#allocation3 + $0x60] sm:$0xff] %vm1763, %v1270
        %1777 = vst.msk [vmem:[#allocation3 + $0x68] sm:$0xff] %vm1763, %v1271
        %1778 = vst.msk [vmem:[#allocation3 + $0x70] sm:$0xff] %vm1763, %v1272
        %1779 = vst.msk [vmem:[#allocation3 + $0x78] sm:$0xff] %vm1763, %v1273
        %1780 = vst.msk [vmem:[#allocation3 + $0x80] sm:$0xff] %vm1763, %v1274
        %1781 = vst.msk [vmem:[#allocation3 + $0x88] sm:$0xff] %vm1763, %v1275
        %1782 = vst.msk [vmem:[#allocation3 + $0x90] sm:$0xff] %vm1763, %v1276
        %1783 = vst.msk [vmem:[#allocation3 + $0x98] sm:$0xff] %vm1763, %v1277
        %1784 = vst.msk [vmem:[#allocation3 + $0xa0] sm:$0xff] %vm1763, %v1278
        %1785 = vst.msk [vmem:[#allocation3 + $0xa8] sm:$0xff] %vm1763, %v1279
        %1786 = vst.msk [vmem:[#allocation3 + $0xb0] sm:$0xff] %vm1763, %v1280
        %1787 = vst.msk [vmem:[#allocation3 + $0xb8] sm:$0xff] %vm1763, %v1281
        %1788 = vst.msk [vmem:[#allocation3 + $0xc0] sm:$0xff] %vm1763, %v1282
        %1789 = vst.msk [vmem:[#allocation3 + $0xc8] sm:$0xff] %vm1763, %v1283
        %1790 = vst.msk [vmem:[#allocation3 + $0xd0] sm:$0xff] %vm1763, %v1284
        %1791 = vst.msk [vmem:[#allocation3 + $0xd8] sm:$0xff] %vm1763, %v1285
        %1792 = vst.msk [vmem:[#allocation3 + $0xe0] sm:$0xff] %vm1763, %v1286
        %1793 = vst.msk [vmem:[#allocation3 + $0xe8] sm:$0xff] %vm1763, %v1287
        %1794 = vst.msk [vmem:[#allocation3 + $0xf0] sm:$0xff] %vm1763, %v1288
        %1795 = vst.msk [vmem:[#allocation3 + $0xf8] sm:$0xff] %vm1763, %v1289
        %v1796 = vld [vmem:[%s5] sm:$0xff]
        %v1797 = vld [vmem:[%s5 + $0x8] sm:$0xff]
        %v1798 = vld [vmem:[%s5 + $0x10] sm:$0xff]
        %v1799 = vld [vmem:[%s5 + $0x18] sm:$0xff]
        %v1800 = vld [vmem:[%s5 + $0x20] sm:$0xff]
        %v1801 = vld [vmem:[%s5 + $0x28] sm:$0xff]
        %v1802 = vld [vmem:[%s5 + $0x30] sm:$0xff]
        %v1803 = vld [vmem:[%s5 + $0x38] sm:$0xff]
        %v1804 = vld [vmem:[%s5 + $0x40] sm:$0xff]
        %v1805 = vld [vmem:[%s5 + $0x48] sm:$0xff]
        %v1806 = vld [vmem:[%s5 + $0x50] sm:$0xff]
        %v1807 = vld [vmem:[%s5 + $0x58] sm:$0xff]
        %v1808 = vld [vmem:[%s5 + $0x60] sm:$0xff]
        %v1809 = vld [vmem:[%s5 + $0x68] sm:$0xff]
        %v1810 = vld [vmem:[%s5 + $0x70] sm:$0xff]
        %v1811 = vld [vmem:[%s5 + $0x78] sm:$0xff]
        %v1812 = vld [vmem:[%s5 + $0x80] sm:$0xff]
        %v1813 = vld [vmem:[%s5 + $0x88] sm:$0xff]
        %v1814 = vld [vmem:[%s5 + $0x90] sm:$0xff]
        %v1815 = vld [vmem:[%s5 + $0x98] sm:$0xff]
        %v1816 = vld [vmem:[%s5 + $0xa0] sm:$0xff]
        %v1817 = vld [vmem:[%s5 + $0xa8] sm:$0xff]
        %v1818 = vld [vmem:[%s5 + $0xb0] sm:$0xff]
        %v1819 = vld [vmem:[%s5 + $0xb8] sm:$0xff]
        %v1820 = vld [vmem:[%s5 + $0xc0] sm:$0xff]
        %v1821 = vld [vmem:[%s5 + $0xc8] sm:$0xff]
        %v1822 = vld [vmem:[%s5 + $0xd0] sm:$0xff]
        %v1823 = vld [vmem:[%s5 + $0xd8] sm:$0xff]
        %v1824 = vld [vmem:[%s5 + $0xe0] sm:$0xff]
        %v1825 = vld [vmem:[%s5 + $0xe8] sm:$0xff]
        %v1826 = vld [vmem:[%s5 + $0xf0] sm:$0xff]
        %v1827 = vld [vmem:[%s5 + $0xf8] sm:$0xff]
        %v1828 = vadd.f32 %v1258, %v1796
        %v1829 = vadd.f32 %v1259, %v1797
        %v1830 = vadd.f32 %v1260, %v1798
        %v1831 = vadd.f32 %v1261, %v1799
        %v1832 = vadd.f32 %v1262, %v1800
        %v1833 = vadd.f32 %v1263, %v1801
        %v1834 = vadd.f32 %v1264, %v1802
        %v1835 = vadd.f32 %v1265, %v1803
        %v1836 = vadd.f32 %v1266, %v1804
        %v1837 = vadd.f32 %v1267, %v1805
        %v1838 = vadd.f32 %v1268, %v1806
        %v1839 = vadd.f32 %v1269, %v1807
        %v1840 = vadd.f32 %v1270, %v1808
        %v1841 = vadd.f32 %v1271, %v1809
        %v1842 = vadd.f32 %v1272, %v1810
        %v1843 = vadd.f32 %v1273, %v1811
        %v1844 = vadd.f32 %v1274, %v1812
        %v1845 = vadd.f32 %v1275, %v1813
        %v1846 = vadd.f32 %v1276, %v1814
        %v1847 = vadd.f32 %v1277, %v1815
        %v1848 = vadd.f32 %v1278, %v1816
        %v1849 = vadd.f32 %v1279, %v1817
        %v1850 = vadd.f32 %v1280, %v1818
        %v1851 = vadd.f32 %v1281, %v1819
        %v1852 = vadd.f32 %v1282, %v1820
        %v1853 = vadd.f32 %v1283, %v1821
        %v1854 = vadd.f32 %v1284, %v1822
        %v1855 = vadd.f32 %v1285, %v1823
        %v1856 = vadd.f32 %v1286, %v1824
        %v1857 = vadd.f32 %v1287, %v1825
        %v1858 = vadd.f32 %v1288, %v1826
        %v1859 = vadd.f32 %v1289, %v1827
        %1860 = vst.msk [vmem:[#allocation2] sm:$0xff] %vm1763, %v1828
        %1861 = vst.msk [vmem:[#allocation2 + $0x8] sm:$0xff] %vm1763, %v1829
        %1862 = vst.msk [vmem:[#allocation2 + $0x10] sm:$0xff] %vm1763, %v1830
        %1863 = vst.msk [vmem:[#allocation2 + $0x18] sm:$0xff] %vm1763, %v1831
        %1864 = vst.msk [vmem:[#allocation2 + $0x20] sm:$0xff] %vm1763, %v1832
        %1865 = vst.msk [vmem:[#allocation2 + $0x28] sm:$0xff] %vm1763, %v1833
        %1866 = vst.msk [vmem:[#allocation2 + $0x30] sm:$0xff] %vm1763, %v1834
        %1867 = vst.msk [vmem:[#allocation2 + $0x38] sm:$0xff] %vm1763, %v1835
        %1868 = vst.msk [vmem:[#allocation2 + $0x40] sm:$0xff] %vm1763, %v1836
        %1869 = vst.msk [vmem:[#allocation2 + $0x48] sm:$0xff] %vm1763, %v1837
        %1870 = vst.msk [vmem:[#allocation2 + $0x50] sm:$0xff] %vm1763, %v1838
        %1871 = vst.msk [vmem:[#allocation2 + $0x58] sm:$0xff] %vm1763, %v1839
        %1872 = vst.msk [vmem:[#allocation2 + $0x60] sm:$0xff] %vm1763, %v1840
        %1873 = vst.msk [vmem:[#allocation2 + $0x68] sm:$0xff] %vm1763, %v1841
        %1874 = vst.msk [vmem:[#allocation2 + $0x70] sm:$0xff] %vm1763, %v1842
        %1875 = vst.msk [vmem:[#allocation2 + $0x78] sm:$0xff] %vm1763, %v1843
        %1876 = vst.msk [vmem:[#allocation2 + $0x80] sm:$0xff] %vm1763, %v1844
        %1877 = vst.msk [vmem:[#allocation2 + $0x88] sm:$0xff] %vm1763, %v1845
        %1878 = vst.msk [vmem:[#allocation2 + $0x90] sm:$0xff] %vm1763, %v1846
        %1879 = vst.msk [vmem:[#allocation2 + $0x98] sm:$0xff] %vm1763, %v1847
        %1880 = vst.msk [vmem:[#allocation2 + $0xa0] sm:$0xff] %vm1763, %v1848
        %1881 = vst.msk [vmem:[#allocation2 + $0xa8] sm:$0xff] %vm1763, %v1849
        %1882 = vst.msk [vmem:[#allocation2 + $0xb0] sm:$0xff] %vm1763, %v1850
        %1883 = vst.msk [vmem:[#allocation2 + $0xb8] sm:$0xff] %vm1763, %v1851
        %1884 = vst.msk [vmem:[#allocation2 + $0xc0] sm:$0xff] %vm1763, %v1852
        %1885 = vst.msk [vmem:[#allocation2 + $0xc8] sm:$0xff] %vm1763, %v1853
        %1886 = vst.msk [vmem:[#allocation2 + $0xd0] sm:$0xff] %vm1763, %v1854
        %1887 = vst.msk [vmem:[#allocation2 + $0xd8] sm:$0xff] %vm1763, %v1855
        %1888 = vst.msk [vmem:[#allocation2 + $0xe0] sm:$0xff] %vm1763, %v1856
        %1889 = vst.msk [vmem:[#allocation2 + $0xe8] sm:$0xff] %vm1763, %v1857
        %1890 = vst.msk [vmem:[#allocation2 + $0xf0] sm:$0xff] %vm1763, %v1858
        %1891 = vst.msk [vmem:[#allocation2 + $0xf8] sm:$0xff] %vm1763, %v1859
      $region96: #{_lambda_.2} parent=91 // pred_fallthru
        _
      %v1892 = vld [vmem:[#allocation2] sm:$0xff]
      %v1893 = vld [vmem:[#allocation2 + $0x8] sm:$0xff]
      %v1894 = vld [vmem:[#allocation2 + $0x10] sm:$0xff]
      %v1895 = vld [vmem:[#allocation2 + $0x18] sm:$0xff]
      %v1896 = vld [vmem:[#allocation2 + $0x20] sm:$0xff]
      %v1897 = vld [vmem:[#allocation2 + $0x28] sm:$0xff]
      %v1898 = vld [vmem:[#allocation2 + $0x30] sm:$0xff]
      %v1899 = vld [vmem:[#allocation2 + $0x38] sm:$0xff]
      %v1900 = vld [vmem:[#allocation2 + $0x40] sm:$0xff]
      %v1901 = vld [vmem:[#allocation2 + $0x48] sm:$0xff]
      %v1902 = vld [vmem:[#allocation2 + $0x50] sm:$0xff]
      %v1903 = vld [vmem:[#allocation2 + $0x58] sm:$0xff]
      %v1904 = vld [vmem:[#allocation2 + $0x60] sm:$0xff]
      %v1905 = vld [vmem:[#allocation2 + $0x68] sm:$0xff]
      %v1906 = vld [vmem:[#allocation2 + $0x70] sm:$0xff]
      %v1907 = vld [vmem:[#allocation2 + $0x78] sm:$0xff]
      %v1908 = vld [vmem:[#allocation2 + $0x80] sm:$0xff]
      %v1909 = vld [vmem:[#allocation2 + $0x88] sm:$0xff]
      %v1910 = vld [vmem:[#allocation2 + $0x90] sm:$0xff]
      %v1911 = vld [vmem:[#allocation2 + $0x98] sm:$0xff]
      %v1912 = vld [vmem:[#allocation2 + $0xa0] sm:$0xff]
      %v1913 = vld [vmem:[#allocation2 + $0xa8] sm:$0xff]
      %v1914 = vld [vmem:[#allocation2 + $0xb0] sm:$0xff]
      %v1915 = vld [vmem:[#allocation2 + $0xb8] sm:$0xff]
      %v1916 = vld [vmem:[#allocation2 + $0xc0] sm:$0xff]
      %v1917 = vld [vmem:[#allocation2 + $0xc8] sm:$0xff]
      %v1918 = vld [vmem:[#allocation2 + $0xd0] sm:$0xff]
      %v1919 = vld [vmem:[#allocation2 + $0xd8] sm:$0xff]
      %v1920 = vld [vmem:[#allocation2 + $0xe0] sm:$0xff]
      %v1921 = vld [vmem:[#allocation2 + $0xe8] sm:$0xff]
      %v1922 = vld [vmem:[#allocation2 + $0xf0] sm:$0xff]
      %v1923 = vld [vmem:[#allocation2 + $0xf8] sm:$0xff]
      %v1924 = vld [vmem:[%s6] sm:$0x3]
      %v1925 = vpack.c.bf16 %v1893, %v1892
      %v1926 = vpack.c.bf16 %v1895, %v1894
      %v1927 = vpack.c.bf16 %v1897, %v1896
      %v1928 = vpack.c.bf16 %v1899, %v1898
      %v1929 = vpack.c.bf16 %v1901, %v1900
      %v1930 = vpack.c.bf16 %v1903, %v1902
      %v1931 = vpack.c.bf16 %v1905, %v1904
      %v1932 = vpack.c.bf16 %v1907, %v1906
      %v1933 = vpack.c.bf16 %v1909, %v1908
      %v1934 = vpack.c.bf16 %v1911, %v1910
      %v1935 = vpack.c.bf16 %v1913, %v1912
      %v1936 = vpack.c.bf16 %v1915, %v1914
      %v1937 = vpack.c.bf16 %v1917, %v1916
      %v1938 = vpack.c.bf16 %v1919, %v1918
      %v1939 = vpack.c.bf16 %v1921, %v1920
      %v1940 = vpack.c.bf16 %v1923, %v1922
      %v1941 = vld [vmem:[%s691] sm:$0xf]
      %v1942 = vld [vmem:[%s694] sm:$0x1]
      %v1944 = vlaneseq
      %v1945 = vshrl.u32 %v1944, 7
      %v1946 = vsub.s32 0, %v1945
      %v1947 = vrot.slane %v1942, %v1946
      %vm1949 = vcmask 64512
      %v1951 = vsel %vm1949, %v1925, 0
      %v1954 = vsel %vm1949, %v1926, 0
      %v1957 = vsel %vm1949, %v1927, 0
      %v1960 = vsel %vm1949, %v1928, 0
      %v1963 = vsel %vm1949, %v1929, 0
      %v1966 = vsel %vm1949, %v1930, 0
      %v1969 = vsel %vm1949, %v1931, 0
      %v1972 = vsel %vm1949, %v1932, 0
      %v1975 = vsel %vm1949, %v1933, 0
      %v1978 = vsel %vm1949, %v1934, 0
      %v1981 = vsel %vm1949, %v1935, 0
      %v1984 = vsel %vm1949, %v1936, 0
      %v1987 = vsel %vm1949, %v1937, 0
      %v1990 = vsel %vm1949, %v1938, 0
      %v1993 = vsel %vm1949, %v1939, 0
      %v1996 = vsel %vm1949, %v1940, 0
      %vm1998 = vcmask 1043456
      %v2000 = vsel %vm1998, %v1941, 0
      %2002 = vmatprep.subr.bf16.mxu0 0
      %2003 = vmatpush1.bf16.msra.mxu0 %v2000
      %2004 = vmatprep.subr.bf16.mxu0 0
      %2005 = vmatpush1.bf16.msra.mxu0 0
      %2006 = vmatprep.subr.bf16.mxu0 0
      %2007 = vmatpush1.bf16.msra.mxu0 0
      %2008 = vmatprep.subr.bf16.mxu0 0
      %2009 = vmatpush1.bf16.msra.mxu0 0
      %2010 = vmatprep.subr.bf16.mxu0 0
      %2011 = vmatpush1.bf16.msra.mxu0 0
      %2012 = vmatprep.subr.bf16.mxu0 0
      %2013 = vmatpush1.bf16.msra.mxu0 0
      %2014 = vmatprep.subr.bf16.mxu0 0
      %2015 = vmatpush1.bf16.msra.mxu0 0
      %2016 = vmatprep.subr.bf16.mxu0 0
      %2017 = vmatpush1.bf16.msra.mxu0 0
      %2018 = vmatprep.subr.bf16.mxu0 0
      %2019 = vmatpush1.bf16.msra.mxu0 0
      %2020 = vmatprep.subr.bf16.mxu0 0
      %2021 = vmatpush1.bf16.msra.mxu0 0
      %2022 = vmatprep.subr.bf16.mxu0 0
      %2023 = vmatpush1.bf16.msra.mxu0 0
      %2024 = vmatprep.subr.bf16.mxu0 0
      %2025 = vmatpush1.bf16.msra.mxu0 0
      %2026 = vmatprep.subr.bf16.mxu0 0
      %2027 = vmatpush1.bf16.msra.mxu0 0
      %2028 = vmatprep.subr.bf16.mxu0 0
      %2029 = vmatpush1.bf16.msra.mxu0 0
      %2030 = vmatprep.subr.bf16.mxu0 0
      %2031 = vmatpush1.bf16.msra.mxu0 0
      %2032 = vmatprep.subr.bf16.mxu0 0
      %2033 = vmatpush1.bf16.msra.mxu0 0
      %2034 = vmatprep.mubr.bf16.mxu0 0
      %2035 = vmatmul.mubr.bf16.gmra.mrb[0].mxu0 %v1951
      %v2036 = vpop.f32.mrb[0].mxu0
      %v2037 = vadd.f32 %v1947, %v2036
      %v2038 = vpop.f32.mrb[0].mxu0
      %v2039 = vpop.f32.mrb[0].mxu0
      %v2040 = vadd.f32 %v1947, %v2039
      %v2041 = vpop.f32.mrb[0].mxu0
      %2042 = vmatprep.mubr.bf16.mxu0 0
      %2043 = vmatmul.mubr.bf16.gmra.mrb[0].mxu0 %v1954
      %v2044 = vpop.f32.mrb[0].mxu0
      %v2045 = vadd.f32 %v1947, %v2044
      %v2046 = vpop.f32.mrb[0].mxu0
      %v2047 = vpop.f32.mrb[0].mxu0
      %v2048 = vadd.f32 %v1947, %v2047
      %v2049 = vpop.f32.mrb[0].mxu0
      %2050 = vmatprep.mubr.bf16.mxu0 0
      %2051 = vmatmul.mubr.bf16.gmra.mrb[0].mxu0 %v1957
      %v2052 = vpop.f32.mrb[0].mxu0
      %v2053 = vadd.f32 %v1947, %v2052
      %v2054 = vpop.f32.mrb[0].mxu0
      %v2055 = vpop.f32.mrb[0].mxu0
      %v2056 = vadd.f32 %v1947, %v2055
      %v2057 = vpop.f32.mrb[0].mxu0
      %2058 = vmatprep.mubr.bf16.mxu0 0
      %2059 = vmatmul.mubr.bf16.gmra.mrb[0].mxu0 %v1960
      %v2060 = vpop.f32.mrb[0].mxu0
      %v2061 = vadd.f32 %v1947, %v2060
      %v2062 = vpop.f32.mrb[0].mxu0
      %v2063 = vpop.f32.mrb[0].mxu0
      %v2064 = vadd.f32 %v1947, %v2063
      %v2065 = vpop.f32.mrb[0].mxu0
      %2066 = vmatprep.mubr.bf16.mxu0 0
      %2067 = vmatmul.mubr.bf16.gmra.mrb[0].mxu0 %v1963
      %v2068 = vpop.f32.mrb[0].mxu0
      %v2069 = vadd.f32 %v1947, %v2068
      %v2070 = vpop.f32.mrb[0].mxu0
      %v2071 = vpop.f32.mrb[0].mxu0
      %v2072 = vadd.f32 %v1947, %v2071
      %v2073 = vpop.f32.mrb[0].mxu0
      %2074 = vmatprep.mubr.bf16.mxu0 0
      %2075 = vmatmul.mubr.bf16.gmra.mrb[0].mxu0 %v1966
      %v2076 = vpop.f32.mrb[0].mxu0
      %v2077 = vadd.f32 %v1947, %v2076
      %v2078 = vpop.f32.mrb[0].mxu0
      %v2079 = vpop.f32.mrb[0].mxu0
      %v2080 = vadd.f32 %v1947, %v2079
      %v2081 = vpop.f32.mrb[0].mxu0
      %2082 = vmatprep.mubr.bf16.mxu0 0
      %2083 = vmatmul.mubr.bf16.gmra.mrb[0].mxu0 %v1969
      %v2084 = vpop.f32.mrb[0].mxu0
      %v2085 = vadd.f32 %v1947, %v2084
      %v2086 = vpop.f32.mrb[0].mxu0
      %v2087 = vpop.f32.mrb[0].mxu0
      %v2088 = vadd.f32 %v1947, %v2087
      %v2089 = vpop.f32.mrb[0].mxu0
      %2090 = vmatprep.mubr.bf16.mxu0 0
      %2091 = vmatmul.mubr.bf16.gmra.mrb[0].mxu0 %v1972
      %v2092 = vpop.f32.mrb[0].mxu0
      %v2093 = vadd.f32 %v1947, %v2092
      %v2094 = vpop.f32.mrb[0].mxu0
      %v2095 = vpop.f32.mrb[0].mxu0
      %v2096 = vadd.f32 %v1947, %v2095
      %v2097 = vpop.f32.mrb[0].mxu0
      %2098 = vmatprep.mubr.bf16.mxu0 0
      %2099 = vmatmul.mubr.bf16.gmra.mrb[0].mxu0 %v1975
      %v2100 = vpop.f32.mrb[0].mxu0
      %v2101 = vadd.f32 %v1947, %v2100
      %v2102 = vpop.f32.mrb[0].mxu0
      %v2103 = vpop.f32.mrb[0].mxu0
      %v2104 = vadd.f32 %v1947, %v2103
      %v2105 = vpop.f32.mrb[0].mxu0
      %2106 = vmatprep.mubr.bf16.mxu0 0
      %2107 = vmatmul.mubr.bf16.gmra.mrb[0].mxu0 %v1978
      %v2108 = vpop.f32.mrb[0].mxu0
      %v2109 = vadd.f32 %v1947, %v2108
      %v2110 = vpop.f32.mrb[0].mxu0
      %v2111 = vpop.f32.mrb[0].mxu0
      %v2112 = vadd.f32 %v1947, %v2111
      %v2113 = vpop.f32.mrb[0].mxu0
      %2114 = vmatprep.mubr.bf16.mxu0 0
      %2115 = vmatmul.mubr.bf16.gmra.mrb[0].mxu0 %v1981
      %v2116 = vpop.f32.mrb[0].mxu0
      %v2117 = vadd.f32 %v1947, %v2116
      %v2118 = vpop.f32.mrb[0].mxu0
      %v2119 = vpop.f32.mrb[0].mxu0
      %v2120 = vadd.f32 %v1947, %v2119
      %v2121 = vpop.f32.mrb[0].mxu0
      %2122 = vmatprep.mubr.bf16.mxu0 0
      %2123 = vmatmul.mubr.bf16.gmra.mrb[0].mxu0 %v1984
      %v2124 = vpop.f32.mrb[0].mxu0
      %v2125 = vadd.f32 %v1947, %v2124
      %v2126 = vpop.f32.mrb[0].mxu0
      %v2127 = vpop.f32.mrb[0].mxu0
      %v2128 = vadd.f32 %v1947, %v2127
      %v2129 = vpop.f32.mrb[0].mxu0
      %2130 = vmatprep.mubr.bf16.mxu0 0
      %2131 = vmatmul.mubr.bf16.gmra.mrb[0].mxu0 %v1987
      %v2132 = vpop.f32.mrb[0].mxu0
      %v2133 = vadd.f32 %v1947, %v2132
      %v2134 = vpop.f32.mrb[0].mxu0
      %v2135 = vpop.f32.mrb[0].mxu0
      %v2136 = vadd.f32 %v1947, %v2135
      %v2137 = vpop.f32.mrb[0].mxu0
      %2138 = vmatprep.mubr.bf16.mxu0 0
      %2139 = vmatmul.mubr.bf16.gmra.mrb[0].mxu0 %v1990
      %v2140 = vpop.f32.mrb[0].mxu0
      %v2141 = vadd.f32 %v1947, %v2140
      %v2142 = vpop.f32.mrb[0].mxu0
      %v2143 = vpop.f32.mrb[0].mxu0
      %v2144 = vadd.f32 %v1947, %v2143
      %v2145 = vpop.f32.mrb[0].mxu0
      %2146 = vmatprep.mubr.bf16.mxu0 0
      %2147 = vmatmul.mubr.bf16.gmra.mrb[0].mxu0 %v1993
      %v2148 = vpop.f32.mrb[0].mxu0
      %v2149 = vadd.f32 %v1947, %v2148
      %v2150 = vpop.f32.mrb[0].mxu0
      %v2151 = vpop.f32.mrb[0].mxu0
      %v2152 = vadd.f32 %v1947, %v2151
      %v2153 = vpop.f32.mrb[0].mxu0
      %2154 = vmatprep.mubr.bf16.mxu0 0
      %2155 = vmatmul.mubr.bf16.gmra.mrb[0].mxu0 %v1996
      %v2156 = vpop.f32.mrb[0].mxu0
      %v2157 = vadd.f32 %v1947, %v2156
      %v2158 = vpop.f32.mrb[0].mxu0
      %v2159 = vpop.f32.mrb[0].mxu0
      %v2160 = vadd.f32 %v1947, %v2159
      %v2161 = vpop.f32.mrb[0].mxu0
      %2162 = vdwg.mxu0
      %v2163 = vld [vmem:[%s698] sm:$0xf]
      %v2164 = vld [vmem:[%s701] sm:$0x1]
      %v2166 = vlaneseq
      %v2167 = vshrl.u32 %v2166, 7
      %v2168 = vsub.s32 0, %v2167
      %v2169 = vrot.slane %v2164, %v2168
      %v2172 = vsel %vm1998, %v2163, 0
      %2174 = vmatprep.subr.bf16.mxu0 0
      %2175 = vmatpush1.bf16.msra.mxu0 %v2172
      %2176 = vmatprep.subr.bf16.mxu0 0
      %2177 = vmatpush1.bf16.msra.mxu0 0
      %2178 = vmatprep.subr.bf16.mxu0 0
      %2179 = vmatpush1.bf16.msra.mxu0 0
      %2180 = vmatprep.subr.bf16.mxu0 0
      %2181 = vmatpush1.bf16.msra.mxu0 0
      %2182 = vmatprep.subr.bf16.mxu0 0
      %2183 = vmatpush1.bf16.msra.mxu0 0
      %2184 = vmatprep.subr.bf16.mxu0 0
      %2185 = vmatpush1.bf16.msra.mxu0 0
      %2186 = vmatprep.subr.bf16.mxu0 0
      %2187 = vmatpush1.bf16.msra.mxu0 0
      %2188 = vmatprep.subr.bf16.mxu0 0
      %2189 = vmatpush1.bf16.msra.mxu0 0
      %2190 = vmatprep.subr.bf16.mxu0 0
      %2191 = vmatpush1.bf16.msra.mxu0 0
      %2192 = vmatprep.subr.bf16.mxu0 0
      %2193 = vmatpush1.bf16.msra.mxu0 0
      %2194 = vmatprep.subr.bf16.mxu0 0
      %2195 = vmatpush1.bf16.msra.mxu0 0
      %2196 = vmatprep.subr.bf16.mxu0 0
      %2197 = vmatpush1.bf16.msra.mxu0 0
      %2198 = vmatprep.subr.bf16.mxu0 0
      %2199 = vmatpush1.bf16.msra.mxu0 0
      %2200 = vmatprep.subr.bf16.mxu0 0
      %2201 = vmatpush1.bf16.msra.mxu0 0
      %2202 = vmatprep.subr.bf16.mxu0 0
      %2203 = vmatpush1.bf16.msra.mxu0 0
      %2204 = vmatprep.subr.bf16.mxu0 0
      %2205 = vmatpush1.bf16.msra.mxu0 0
      %2206 = vmatprep.mubr.bf16.mxu0 0
      %2207 = vmatmul.mubr.bf16.gmra.mrb[0].mxu0 %v1951
      %v2208 = vpop.f32.mrb[0].mxu0
      %v2209 = vadd.f32 %v2169, %v2208
      %v2210 = vpop.f32.mrb[0].mxu0
      %v2211 = vpop.f32.mrb[0].mxu0
      %v2212 = vadd.f32 %v2169, %v2211
      %v2213 = vpop.f32.mrb[0].mxu0
      %2214 = vmatprep.mubr.bf16.mxu0 0
      %2215 = vmatmul.mubr.bf16.gmra.mrb[0].mxu0 %v1954
      %v2216 = vpop.f32.mrb[0].mxu0
      %v2217 = vadd.f32 %v2169, %v2216
      %v2218 = vpop.f32.mrb[0].mxu0
      %v2219 = vpop.f32.mrb[0].mxu0
      %v2220 = vadd.f32 %v2169, %v2219
      %v2221 = vpop.f32.mrb[0].mxu0
      %2222 = vmatprep.mubr.bf16.mxu0 0
      %2223 = vmatmul.mubr.bf16.gmra.mrb[0].mxu0 %v1957
      %v2224 = vpop.f32.mrb[0].mxu0
      %v2225 = vadd.f32 %v2169, %v2224
      %v2226 = vpop.f32.mrb[0].mxu0
      %v2227 = vpop.f32.mrb[0].mxu0
      %v2228 = vadd.f32 %v2169, %v2227
      %v2229 = vpop.f32.mrb[0].mxu0
      %2230 = vmatprep.mubr.bf16.mxu0 0
      %2231 = vmatmul.mubr.bf16.gmra.mrb[0].mxu0 %v1960
      %v2232 = vpop.f32.mrb[0].mxu0
      %v2233 = vadd.f32 %v2169, %v2232
      %v2234 = vpop.f32.mrb[0].mxu0
      %v2235 = vpop.f32.mrb[0].mxu0
      %v2236 = vadd.f32 %v2169, %v2235
      %v2237 = vpop.f32.mrb[0].mxu0
      %2238 = vmatprep.mubr.bf16.mxu0 0
      %2239 = vmatmul.mubr.bf16.gmra.mrb[0].mxu0 %v1963
      %v2240 = vpop.f32.mrb[0].mxu0
      %v2241 = vadd.f32 %v2169, %v2240
      %v2242 = vpop.f32.mrb[0].mxu0
      %v2243 = vpop.f32.mrb[0].mxu0
      %v2244 = vadd.f32 %v2169, %v2243
      %v2245 = vpop.f32.mrb[0].mxu0
      %2246 = vmatprep.mubr.bf16.mxu0 0
      %2247 = vmatmul.mubr.bf16.gmra.mrb[0].mxu0 %v1966
      %v2248 = vpop.f32.mrb[0].mxu0
      %v2249 = vadd.f32 %v2169, %v2248
      %v2250 = vpop.f32.mrb[0].mxu0
      %v2251 = vpop.f32.mrb[0].mxu0
      %v2252 = vadd.f32 %v2169, %v2251
      %v2253 = vpop.f32.mrb[0].mxu0
      %2254 = vmatprep.mubr.bf16.mxu0 0
      %2255 = vmatmul.mubr.bf16.gmra.mrb[0].mxu0 %v1969
      %v2256 = vpop.f32.mrb[0].mxu0
      %v2257 = vadd.f32 %v2169, %v2256
      %v2258 = vpop.f32.mrb[0].mxu0
      %v2259 = vpop.f32.mrb[0].mxu0
      %v2260 = vadd.f32 %v2169, %v2259
      %v2261 = vpop.f32.mrb[0].mxu0
      %2262 = vmatprep.mubr.bf16.mxu0 0
      %2263 = vmatmul.mubr.bf16.gmra.mrb[0].mxu0 %v1972
      %v2264 = vpop.f32.mrb[0].mxu0
      %v2265 = vadd.f32 %v2169, %v2264
      %v2266 = vpop.f32.mrb[0].mxu0
      %v2267 = vpop.f32.mrb[0].mxu0
      %v2268 = vadd.f32 %v2169, %v2267
      %v2269 = vpop.f32.mrb[0].mxu0
      %2270 = vmatprep.mubr.bf16.mxu0 0
      %2271 = vmatmul.mubr.bf16.gmra.mrb[0].mxu0 %v1975
      %v2272 = vpop.f32.mrb[0].mxu0
      %v2273 = vadd.f32 %v2169, %v2272
      %v2274 = vpop.f32.mrb[0].mxu0
      %v2275 = vpop.f32.mrb[0].mxu0
      %v2276 = vadd.f32 %v2169, %v2275
      %v2277 = vpop.f32.mrb[0].mxu0
      %2278 = vmatprep.mubr.bf16.mxu0 0
      %2279 = vmatmul.mubr.bf16.gmra.mrb[0].mxu0 %v1978
      %v2280 = vpop.f32.mrb[0].mxu0
      %v2281 = vadd.f32 %v2169, %v2280
      %v2282 = vpop.f32.mrb[0].mxu0
      %v2283 = vpop.f32.mrb[0].mxu0
      %v2284 = vadd.f32 %v2169, %v2283
      %v2285 = vpop.f32.mrb[0].mxu0
      %2286 = vmatprep.mubr.bf16.mxu0 0
      %2287 = vmatmul.mubr.bf16.gmra.mrb[0].mxu0 %v1981
      %v2288 = vpop.f32.mrb[0].mxu0
      %v2289 = vadd.f32 %v2169, %v2288
      %v2290 = vpop.f32.mrb[0].mxu0
      %v2291 = vpop.f32.mrb[0].mxu0
      %v2292 = vadd.f32 %v2169, %v2291
      %v2293 = vpop.f32.mrb[0].mxu0
      %2294 = vmatprep.mubr.bf16.mxu0 0
      %2295 = vmatmul.mubr.bf16.gmra.mrb[0].mxu0 %v1984
      %v2296 = vpop.f32.mrb[0].mxu0
      %v2297 = vadd.f32 %v2169, %v2296
      %v2298 = vpop.f32.mrb[0].mxu0
      %v2299 = vpop.f32.mrb[0].mxu0
      %v2300 = vadd.f32 %v2169, %v2299
      %v2301 = vpop.f32.mrb[0].mxu0
      %2302 = vmatprep.mubr.bf16.mxu0 0
      %2303 = vmatmul.mubr.bf16.gmra.mrb[0].mxu0 %v1987
      %v2304 = vpop.f32.mrb[0].mxu0
      %v2305 = vadd.f32 %v2169, %v2304
      %v2306 = vpop.f32.mrb[0].mxu0
      %v2307 = vpop.f32.mrb[0].mxu0
      %v2308 = vadd.f32 %v2169, %v2307
      %v2309 = vpop.f32.mrb[0].mxu0
      %2310 = vmatprep.mubr.bf16.mxu0 0
      %2311 = vmatmul.mubr.bf16.gmra.mrb[0].mxu0 %v1990
      %v2312 = vpop.f32.mrb[0].mxu0
      %v2313 = vadd.f32 %v2169, %v2312
      %v2314 = vpop.f32.mrb[0].mxu0
      %v2315 = vpop.f32.mrb[0].mxu0
      %v2316 = vadd.f32 %v2169, %v2315
      %v2317 = vpop.f32.mrb[0].mxu0
      %2318 = vmatprep.mubr.bf16.mxu0 0
      %2319 = vmatmul.mubr.bf16.gmra.mrb[0].mxu0 %v1993
      %v2320 = vpop.f32.mrb[0].mxu0
      %v2321 = vadd.f32 %v2169, %v2320
      %v2322 = vpop.f32.mrb[0].mxu0
      %v2323 = vpop.f32.mrb[0].mxu0
      %v2324 = vadd.f32 %v2169, %v2323
      %v2325 = vpop.f32.mrb[0].mxu0
      %2326 = vmatprep.mubr.bf16.mxu0 0
      %2327 = vmatmul.mubr.bf16.gmra.mrb[0].mxu0 %v1996
      %v2328 = vpop.f32.mrb[0].mxu0
      %v2329 = vadd.f32 %v2169, %v2328
      %v2330 = vpop.f32.mrb[0].mxu0
      %v2331 = vpop.f32.mrb[0].mxu0
      %v2332 = vadd.f32 %v2169, %v2331
      %v2333 = vpop.f32.mrb[0].mxu0
      %2334 = vdwg.mxu0
      %v2335 = vld [vmem:[%s705] sm:$0xf]
      %v2336 = vld [vmem:[%s708] sm:$0x1]
      %v2338 = vlaneseq
      %v2339 = vshrl.u32 %v2338, 7
      %v2340 = vsub.s32 0, %v2339
      %v2341 = vrot.slane %v2336, %v2340
      %v2344 = vsel %vm1998, %v2335, 0
      %2346 = vmatprep.subr.bf16.mxu0 0
      %2347 = vmatpush1.bf16.msra.mxu0 %v2344
      %2348 = vmatprep.subr.bf16.mxu0 0
      %2349 = vmatpush1.bf16.msra.mxu0 0
      %2350 = vmatprep.subr.bf16.mxu0 0
      %2351 = vmatpush1.bf16.msra.mxu0 0
      %2352 = vmatprep.subr.bf16.mxu0 0
      %2353 = vmatpush1.bf16.msra.mxu0 0
      %2354 = vmatprep.subr.bf16.mxu0 0
      %2355 = vmatpush1.bf16.msra.mxu0 0
      %2356 = vmatprep.subr.bf16.mxu0 0
      %2357 = vmatpush1.bf16.msra.mxu0 0
      %2358 = vmatprep.subr.bf16.mxu0 0
      %2359 = vmatpush1.bf16.msra.mxu0 0
      %2360 = vmatprep.subr.bf16.mxu0 0
      %2361 = vmatpush1.bf16.msra.mxu0 0
      %2362 = vmatprep.subr.bf16.mxu0 0
      %2363 = vmatpush1.bf16.msra.mxu0 0
      %2364 = vmatprep.subr.bf16.mxu0 0
      %2365 = vmatpush1.bf16.msra.mxu0 0
      %2366 = vmatprep.subr.bf16.mxu0 0
      %2367 = vmatpush1.bf16.msra.mxu0 0
      %2368 = vmatprep.subr.bf16.mxu0 0
      %2369 = vmatpush1.bf16.msra.mxu0 0
      %2370 = vmatprep.subr.bf16.mxu0 0
      %2371 = vmatpush1.bf16.msra.mxu0 0
      %2372 = vmatprep.subr.bf16.mxu0 0
      %2373 = vmatpush1.bf16.msra.mxu0 0
      %2374 = vmatprep.subr.bf16.mxu0 0
      %2375 = vmatpush1.bf16.msra.mxu0 0
      %2376 = vmatprep.subr.bf16.mxu0 0
      %2377 = vmatpush1.bf16.msra.mxu0 0
      %2378 = vmatprep.mubr.bf16.mxu0 0
      %2379 = vmatmul.mubr.bf16.gmra.mrb[0].mxu0 %v1951
      %v2380 = vpop.f32.mrb[0].mxu0
      %v2381 = vadd.f32 %v2341, %v2380
      %v2382 = vpop.f32.mrb[0].mxu0
      %v2383 = vpop.f32.mrb[0].mxu0
      %v2384 = vadd.f32 %v2341, %v2383
      %v2385 = vpop.f32.mrb[0].mxu0
      %2386 = vmatprep.mubr.bf16.mxu0 0
      %2387 = vmatmul.mubr.bf16.gmra.mrb[0].mxu0 %v1954
      %v2388 = vpop.f32.mrb[0].mxu0
      %v2389 = vadd.f32 %v2341, %v2388
      %v2390 = vpop.f32.mrb[0].mxu0
      %v2391 = vpop.f32.mrb[0].mxu0
      %v2392 = vadd.f32 %v2341, %v2391
      %v2393 = vpop.f32.mrb[0].mxu0
      %2394 = vmatprep.mubr.bf16.mxu0 0
      %2395 = vmatmul.mubr.bf16.gmra.mrb[0].mxu0 %v1957
      %v2396 = vpop.f32.mrb[0].mxu0
      %v2397 = vadd.f32 %v2341, %v2396
      %v2398 = vpop.f32.mrb[0].mxu0
      %v2399 = vpop.f32.mrb[0].mxu0
      %v2400 = vadd.f32 %v2341, %v2399
      %v2401 = vpop.f32.mrb[0].mxu0
      %2402 = vmatprep.mubr.bf16.mxu0 0
      %2403 = vmatmul.mubr.bf16.gmra.mrb[0].mxu0 %v1960
      %v2404 = vpop.f32.mrb[0].mxu0
      %v2405 = vadd.f32 %v2341, %v2404
      %v2406 = vpop.f32.mrb[0].mxu0
      %v2407 = vpop.f32.mrb[0].mxu0
      %v2408 = vadd.f32 %v2341, %v2407
      %v2409 = vpop.f32.mrb[0].mxu0
      %2410 = vmatprep.mubr.bf16.mxu0 0
      %2411 = vmatmul.mubr.bf16.gmra.mrb[0].mxu0 %v1963
      %v2412 = vpop.f32.mrb[0].mxu0
      %v2413 = vadd.f32 %v2341, %v2412
      %v2414 = vpop.f32.mrb[0].mxu0
      %v2415 = vpop.f32.mrb[0].mxu0
      %v2416 = vadd.f32 %v2341, %v2415
      %v2417 = vpop.f32.mrb[0].mxu0
      %2418 = vmatprep.mubr.bf16.mxu0 0
      %2419 = vmatmul.mubr.bf16.gmra.mrb[0].mxu0 %v1966
      %v2420 = vpop.f32.mrb[0].mxu0
      %v2421 = vadd.f32 %v2341, %v2420
      %v2422 = vpop.f32.mrb[0].mxu0
      %v2423 = vpop.f32.mrb[0].mxu0
      %v2424 = vadd.f32 %v2341, %v2423
      %v2425 = vpop.f32.mrb[0].mxu0
      %2426 = vmatprep.mubr.bf16.mxu0 0
      %2427 = vmatmul.mubr.bf16.gmra.mrb[0].mxu0 %v1969
      %v2428 = vpop.f32.mrb[0].mxu0
      %v2429 = vadd.f32 %v2341, %v2428
      %v2430 = vpop.f32.mrb[0].mxu0
      %v2431 = vpop.f32.mrb[0].mxu0
      %v2432 = vadd.f32 %v2341, %v2431
      %v2433 = vpop.f32.mrb[0].mxu0
      %2434 = vmatprep.mubr.bf16.mxu0 0
      %2435 = vmatmul.mubr.bf16.gmra.mrb[0].mxu0 %v1972
      %v2436 = vpop.f32.mrb[0].mxu0
      %v2437 = vadd.f32 %v2341, %v2436
      %v2438 = vpop.f32.mrb[0].mxu0
      %v2439 = vpop.f32.mrb[0].mxu0
      %v2440 = vadd.f32 %v2341, %v2439
      %v2441 = vpop.f32.mrb[0].mxu0
      %2442 = vmatprep.mubr.bf16.mxu0 0
      %2443 = vmatmul.mubr.bf16.gmra.mrb[0].mxu0 %v1975
      %v2444 = vpop.f32.mrb[0].mxu0
      %v2445 = vadd.f32 %v2341, %v2444
      %v2446 = vpop.f32.mrb[0].mxu0
      %v2447 = vpop.f32.mrb[0].mxu0
      %v2448 = vadd.f32 %v2341, %v2447
      %v2449 = vpop.f32.mrb[0].mxu0
      %2450 = vmatprep.mubr.bf16.mxu0 0
      %2451 = vmatmul.mubr.bf16.gmra.mrb[0].mxu0 %v1978
      %v2452 = vpop.f32.mrb[0].mxu0
      %v2453 = vadd.f32 %v2341, %v2452
      %v2454 = vpop.f32.mrb[0].mxu0
      %v2455 = vpop.f32.mrb[0].mxu0
      %v2456 = vadd.f32 %v2341, %v2455
      %v2457 = vpop.f32.mrb[0].mxu0
      %2458 = vmatprep.mubr.bf16.mxu0 0
      %2459 = vmatmul.mubr.bf16.gmra.mrb[0].mxu0 %v1981
      %v2460 = vpop.f32.mrb[0].mxu0
      %v2461 = vadd.f32 %v2341, %v2460
      %v2462 = vpop.f32.mrb[0].mxu0
      %v2463 = vpop.f32.mrb[0].mxu0
      %v2464 = vadd.f32 %v2341, %v2463
      %v2465 = vpop.f32.mrb[0].mxu0
      %2466 = vmatprep.mubr.bf16.mxu0 0
      %2467 = vmatmul.mubr.bf16.gmra.mrb[0].mxu0 %v1984
      %v2468 = vpop.f32.mrb[0].mxu0
      %v2469 = vadd.f32 %v2341, %v2468
      %v2470 = vpop.f32.mrb[0].mxu0
      %v2471 = vpop.f32.mrb[0].mxu0
      %v2472 = vadd.f32 %v2341, %v2471
      %v2473 = vpop.f32.mrb[0].mxu0
      %2474 = vmatprep.mubr.bf16.mxu0 0
      %2475 = vmatmul.mubr.bf16.gmra.mrb[0].mxu0 %v1987
      %v2476 = vpop.f32.mrb[0].mxu0
      %v2477 = vadd.f32 %v2341, %v2476
      %v2478 = vpop.f32.mrb[0].mxu0
      %v2479 = vpop.f32.mrb[0].mxu0
      %v2480 = vadd.f32 %v2341, %v2479
      %v2481 = vpop.f32.mrb[0].mxu0
      %2482 = vmatprep.mubr.bf16.mxu0 0
      %2483 = vmatmul.mubr.bf16.gmra.mrb[0].mxu0 %v1990
      %v2484 = vpop.f32.mrb[0].mxu0
      %v2485 = vadd.f32 %v2341, %v2484
      %v2486 = vpop.f32.mrb[0].mxu0
      %v2487 = vpop.f32.mrb[0].mxu0
      %v2488 = vadd.f32 %v2341, %v2487
      %v2489 = vpop.f32.mrb[0].mxu0
      %2490 = vmatprep.mubr.bf16.mxu0 0
      %2491 = vmatmul.mubr.bf16.gmra.mrb[0].mxu0 %v1993
      %v2492 = vpop.f32.mrb[0].mxu0
      %v2493 = vadd.f32 %v2341, %v2492
      %v2494 = vpop.f32.mrb[0].mxu0
      %v2495 = vpop.f32.mrb[0].mxu0
      %v2496 = vadd.f32 %v2341, %v2495
      %v2497 = vpop.f32.mrb[0].mxu0
      %2498 = vmatprep.mubr.bf16.mxu0 0
      %2499 = vmatmul.mubr.bf16.gmra.mrb[0].mxu0 %v1996
      %v2500 = vpop.f32.mrb[0].mxu0
      %v2501 = vadd.f32 %v2341, %v2500
      %v2502 = vpop.f32.mrb[0].mxu0
      %v2503 = vpop.f32.mrb[0].mxu0
      %v2504 = vadd.f32 %v2341, %v2503
      %v2505 = vpop.f32.mrb[0].mxu0
      %2506 = vdwg.mxu0
      %v2507 = vmul.f32 %v2037, 0.70710677
      %v2508 = vmul.f32 %v2040, 0.70710677
      %v2509 = vmul.f32 %v2045, 0.70710677
      %v2510 = vmul.f32 %v2048, 0.70710677
      %v2511 = vmul.f32 %v2053, 0.70710677
      %v2512 = vmul.f32 %v2056, 0.70710677
      %v2513 = vmul.f32 %v2061, 0.70710677
      %v2514 = vmul.f32 %v2064, 0.70710677
      %v2515 = vmul.f32 %v2069, 0.70710677
      %v2516 = vmul.f32 %v2072, 0.70710677
      %v2517 = vmul.f32 %v2077, 0.70710677
      %v2518 = vmul.f32 %v2080, 0.70710677
      %v2519 = vmul.f32 %v2085, 0.70710677
      %v2520 = vmul.f32 %v2088, 0.70710677
      %v2521 = vmul.f32 %v2093, 0.70710677
      %v2522 = vmul.f32 %v2096, 0.70710677
      %v2523 = vmul.f32 %v2101, 0.70710677
      %v2524 = vmul.f32 %v2104, 0.70710677
      %v2525 = vmul.f32 %v2109, 0.70710677
      %v2526 = vmul.f32 %v2112, 0.70710677
      %v2527 = vmul.f32 %v2117, 0.70710677
      %v2528 = vmul.f32 %v2120, 0.70710677
      %v2529 = vmul.f32 %v2125, 0.70710677
      %v2530 = vmul.f32 %v2128, 0.70710677
      %v2531 = vmul.f32 %v2133, 0.70710677
      %v2532 = vmul.f32 %v2136, 0.70710677
      %v2533 = vmul.f32 %v2141, 0.70710677
      %v2534 = vmul.f32 %v2144, 0.70710677
      %v2535 = vmul.f32 %v2149, 0.70710677
      %v2536 = vmul.f32 %v2152, 0.70710677
      %v2537 = vmul.f32 %v2157, 0.70710677
      %v2538 = vmul.f32 %v2160, 0.70710677
      %v2539 = vpack.c.bf16 %v2212, %v2209
      %v2540 = vpack.c.bf16 %v2220, %v2217
      %v2541 = vpack.c.bf16 %v2228, %v2225
      %v2542 = vpack.c.bf16 %v2236, %v2233
      %v2543 = vpack.c.bf16 %v2244, %v2241
      %v2544 = vpack.c.bf16 %v2252, %v2249
      %v2545 = vpack.c.bf16 %v2260, %v2257
      %v2546 = vpack.c.bf16 %v2268, %v2265
      %v2547 = vpack.c.bf16 %v2276, %v2273
      %v2548 = vpack.c.bf16 %v2284, %v2281
      %v2549 = vpack.c.bf16 %v2292, %v2289
      %v2550 = vpack.c.bf16 %v2300, %v2297
      %v2551 = vpack.c.bf16 %v2308, %v2305
      %v2552 = vpack.c.bf16 %v2316, %v2313
      %v2553 = vpack.c.bf16 %v2324, %v2321
      %v2554 = vpack.c.bf16 %v2332, %v2329
      %v2555 = vpack.c.bf16 %v2384, %v2381
      %v2556 = vpack.c.bf16 %v2392, %v2389
      %v2557 = vpack.c.bf16 %v2400, %v2397
      %v2558 = vpack.c.bf16 %v2408, %v2405
      %v2559 = vpack.c.bf16 %v2416, %v2413
      %v2560 = vpack.c.bf16 %v2424, %v2421
      %v2561 = vpack.c.bf16 %v2432, %v2429
      %v2562 = vpack.c.bf16 %v2440, %v2437
      %v2563 = vpack.c.bf16 %v2448, %v2445
      %v2564 = vpack.c.bf16 %v2456, %v2453
      %v2565 = vpack.c.bf16 %v2464, %v2461
      %v2566 = vpack.c.bf16 %v2472, %v2469
      %v2567 = vpack.c.bf16 %v2480, %v2477
      %v2568 = vpack.c.bf16 %v2488, %v2485
      %v2569 = vpack.c.bf16 %v2496, %v2493
      %v2570 = vpack.c.bf16 %v2504, %v2501
      %v2571 = vlaneseq
      %v2572 = vand.u32 %v2571, 127
      %vm2573 = vcmp.ge.s32.totalorder %v2572, 0
      %vm2574 = vcmp.lt.s32.totalorder %v2572, 2
      %vm2575 = vmand %vm2573, %vm2574
      %vm2576 = vcmp.ge.s32.totalorder %v2572, 2
      %vm2577 = vcmp.lt.s32.totalorder %v2572, 4
      %vm2578 = vmand %vm2576, %vm2577
      %vm2579 = vcmp.ge.s32.totalorder %v2572, 4
      %vm2580 = vcmp.lt.s32.totalorder %v2572, 6
      %vm2581 = vmand %vm2579, %vm2580
      %vm2582 = vcmp.ge.s32.totalorder %v2572, 6
      %vm2583 = vcmp.lt.s32.totalorder %v2572, 8
      %vm2584 = vmand %vm2582, %vm2583
      %v2585 = vsel %vm2575, 1, 0
      %vm2586 = vcmp.eq.s32.totalorder %v2585, 1
      %v2587 = vsel %vm2586, %v2507, 0.0
      %v2588 = vsel %vm2586, %v2508, 0.0
      %v2589 = vsel %vm2586, %v2509, 0.0
      %v2590 = vsel %vm2586, %v2510, 0.0
      %v2591 = vsel %vm2586, %v2511, 0.0
      %v2592 = vsel %vm2586, %v2512, 0.0
      %v2593 = vsel %vm2586, %v2513, 0.0
      %v2594 = vsel %vm2586, %v2514, 0.0
      %v2595 = vsel %vm2586, %v2515, 0.0
      %v2596 = vsel %vm2586, %v2516, 0.0
      %v2597 = vsel %vm2586, %v2517, 0.0
      %v2598 = vsel %vm2586, %v2518, 0.0
      %v2599 = vsel %vm2586, %v2519, 0.0
      %v2600 = vsel %vm2586, %v2520, 0.0
      %v2601 = vsel %vm2586, %v2521, 0.0
      %v2602 = vsel %vm2586, %v2522, 0.0
      %v2603 = vsel %vm2586, %v2523, 0.0
      %v2604 = vsel %vm2586, %v2524, 0.0
      %v2605 = vsel %vm2586, %v2525, 0.0
      %v2606 = vsel %vm2586, %v2526, 0.0
      %v2607 = vsel %vm2586, %v2527, 0.0
      %v2608 = vsel %vm2586, %v2528, 0.0
      %v2609 = vsel %vm2586, %v2529, 0.0
      %v2610 = vsel %vm2586, %v2530, 0.0
      %v2611 = vsel %vm2586, %v2531, 0.0
      %v2612 = vsel %vm2586, %v2532, 0.0
      %v2613 = vsel %vm2586, %v2533, 0.0
      %v2614 = vsel %vm2586, %v2534, 0.0
      %v2615 = vsel %vm2586, %v2535, 0.0
      %v2616 = vsel %vm2586, %v2536, 0.0
      %v2617 = vsel %vm2586, %v2537, 0.0
      %v2618 = vsel %vm2586, %v2538, 0.0
      %v2619 = vpack.c.bf16 %v2588, %v2587
      %v2620 = vpack.c.bf16 %v2590, %v2589
      %v2621 = vpack.c.bf16 %v2592, %v2591
      %v2622 = vpack.c.bf16 %v2594, %v2593
      %v2623 = vpack.c.bf16 %v2596, %v2595
      %v2624 = vpack.c.bf16 %v2598, %v2597
      %v2625 = vpack.c.bf16 %v2600, %v2599
      %v2626 = vpack.c.bf16 %v2602, %v2601
      %v2627 = vpack.c.bf16 %v2604, %v2603
      %v2628 = vpack.c.bf16 %v2606, %v2605
      %v2629 = vpack.c.bf16 %v2608, %v2607
      %v2630 = vpack.c.bf16 %v2610, %v2609
      %v2631 = vpack.c.bf16 %v2612, %v2611
      %v2632 = vpack.c.bf16 %v2614, %v2613
      %v2633 = vpack.c.bf16 %v2616, %v2615
      %v2634 = vpack.c.bf16 %v2618, %v2617
      %v2636 = vlaneseq
      %v2637 = vshrl.u32 %v2636, 7
      %v2638 = vsub.s32 0, %v2637
      %v2639 = vrot.slane %v1924, %v2638
      %v2640 = vlaneseq
      %v2641 = vshrl.u32 %v2640, 7
      %v2642 = vsub.s32 1, %v2641
      %v2643 = vrot.slane %v1924, %v2642
      %v2647 = vsel %vm1949, %v2619, 0
      %v2650 = vsel %vm1949, %v2620, 0
      %v2653 = vsel %vm1949, %v2621, 0
      %v2656 = vsel %vm1949, %v2622, 0
      %v2659 = vsel %vm1949, %v2623, 0
      %v2662 = vsel %vm1949, %v2624, 0
      %v2665 = vsel %vm1949, %v2625, 0
      %v2668 = vsel %vm1949, %v2626, 0
      %v2671 = vsel %vm1949, %v2627, 0
      %v2674 = vsel %vm1949, %v2628, 0
      %v2677 = vsel %vm1949, %v2629, 0
      %v2680 = vsel %vm1949, %v2630, 0
      %v2683 = vsel %vm1949, %v2631, 0
      %v2686 = vsel %vm1949, %v2632, 0
      %v2689 = vsel %vm1949, %v2633, 0
      %v2692 = vsel %vm1949, %v2634, 0
      %v2695 = vsel %vm1949, %v2539, 0
      %v2698 = vsel %vm1949, %v2540, 0
      %v2701 = vsel %vm1949, %v2541, 0
      %v2704 = vsel %vm1949, %v2542, 0
      %v2707 = vsel %vm1949, %v2543, 0
      %v2710 = vsel %vm1949, %v2544, 0
      %v2713 = vsel %vm1949, %v2545, 0
      %v2716 = vsel %vm1949, %v2546, 0
      %v2719 = vsel %vm1949, %v2547, 0
      %v2722 = vsel %vm1949, %v2548, 0
      %v2725 = vsel %vm1949, %v2549, 0
      %v2728 = vsel %vm1949, %v2550, 0
      %v2731 = vsel %vm1949, %v2551, 0
      %v2734 = vsel %vm1949, %v2552, 0
      %v2737 = vsel %vm1949, %v2553, 0
      %v2740 = vsel %vm1949, %v2554, 0
      %2742 = vmatprep.subr.bf16.mxu0 0
      %2743 = vmatpush1.bf16.xpose.msra.mxu0 %v2695
      %2744 = vmatprep.subr.bf16.mxu0 0
      %2745 = vmatpush1.bf16.xpose.msra.mxu0 %v2698
      %2746 = vmatprep.subr.bf16.mxu0 0
      %2747 = vmatpush1.bf16.xpose.msra.mxu0 %v2701
      %2748 = vmatprep.subr.bf16.mxu0 0
      %2749 = vmatpush1.bf16.xpose.msra.mxu0 %v2704
      %2750 = vmatprep.subr.bf16.mxu0 0
      %2751 = vmatpush1.bf16.xpose.msra.mxu0 %v2707
      %2752 = vmatprep.subr.bf16.mxu0 0
      %2753 = vmatpush1.bf16.xpose.msra.mxu0 %v2710
      %2754 = vmatprep.subr.bf16.mxu0 0
      %2755 = vmatpush1.bf16.xpose.msra.mxu0 %v2713
      %2756 = vmatprep.subr.bf16.mxu0 0
      %2757 = vmatpush1.bf16.xpose.msra.mxu0 %v2716
      %2758 = vmatprep.subr.bf16.mxu0 0
      %2759 = vmatpush1.bf16.xpose.msra.mxu0 %v2719
      %2760 = vmatprep.subr.bf16.mxu0 0
      %2761 = vmatpush1.bf16.xpose.msra.mxu0 %v2722
      %2762 = vmatprep.subr.bf16.mxu0 0
      %2763 = vmatpush1.bf16.xpose.msra.mxu0 %v2725
      %2764 = vmatprep.subr.bf16.mxu0 0
      %2765 = vmatpush1.bf16.xpose.msra.mxu0 %v2728
      %2766 = vmatprep.subr.bf16.mxu0 0
      %2767 = vmatpush1.bf16.xpose.msra.mxu0 %v2731
      %2768 = vmatprep.subr.bf16.mxu0 0
      %2769 = vmatpush1.bf16.xpose.msra.mxu0 %v2734
      %2770 = vmatprep.subr.bf16.mxu0 0
      %2771 = vmatpush1.bf16.xpose.msra.mxu0 %v2737
      %2772 = vmatprep.subr.bf16.mxu0 0
      %2773 = vmatpush1.bf16.xpose.msra.mxu0 %v2740
      %2774 = vmatprep.mubr.bf16.mxu0 0
      %2775 = vmatmul.mubr.bf16.gmra.mrb[0].mxu0 %v2647
      %v2776 = vpop.f32.mrb[0].mxu0
      %v2777 = vadd.f32 %v2639, %v2776
      %v2778 = vpop.f32.mrb[0].mxu0
      %v2779 = vadd.f32 %v2643, %v2778
      %v2780 = vpop.f32.mrb[0].mxu0
      %v2781 = vadd.f32 %v2639, %v2780
      %v2782 = vpop.f32.mrb[0].mxu0
      %v2783 = vadd.f32 %v2643, %v2782
      %2784 = vmatprep.mubr.bf16.mxu0 0
      %2785 = vmatmul.mubr.bf16.gmra.mrb[0].mxu0 %v2650
      %v2786 = vpop.f32.mrb[0].mxu0
      %v2787 = vadd.f32 %v2639, %v2786
      %v2788 = vpop.f32.mrb[0].mxu0
      %v2789 = vadd.f32 %v2643, %v2788
      %v2790 = vpop.f32.mrb[0].mxu0
      %v2791 = vadd.f32 %v2639, %v2790
      %v2792 = vpop.f32.mrb[0].mxu0
      %v2793 = vadd.f32 %v2643, %v2792
      %2794 = vmatprep.mubr.bf16.mxu0 0
      %2795 = vmatmul.mubr.bf16.gmra.mrb[0].mxu0 %v2653
      %v2796 = vpop.f32.mrb[0].mxu0
      %v2797 = vadd.f32 %v2639, %v2796
      %v2798 = vpop.f32.mrb[0].mxu0
      %v2799 = vadd.f32 %v2643, %v2798
      %v2800 = vpop.f32.mrb[0].mxu0
      %v2801 = vadd.f32 %v2639, %v2800
      %v2802 = vpop.f32.mrb[0].mxu0
      %v2803 = vadd.f32 %v2643, %v2802
      %2804 = vmatprep.mubr.bf16.mxu0 0
      %2805 = vmatmul.mubr.bf16.gmra.mrb[0].mxu0 %v2656
      %v2806 = vpop.f32.mrb[0].mxu0
      %v2807 = vadd.f32 %v2639, %v2806
      %v2808 = vpop.f32.mrb[0].mxu0
      %v2809 = vadd.f32 %v2643, %v2808
      %v2810 = vpop.f32.mrb[0].mxu0
      %v2811 = vadd.f32 %v2639, %v2810
      %v2812 = vpop.f32.mrb[0].mxu0
      %v2813 = vadd.f32 %v2643, %v2812
      %2814 = vmatprep.mubr.bf16.mxu0 0
      %2815 = vmatmul.mubr.bf16.gmra.mrb[0].mxu0 %v2659
      %v2816 = vpop.f32.mrb[0].mxu0
      %v2817 = vadd.f32 %v2639, %v2816
      %v2818 = vpop.f32.mrb[0].mxu0
      %v2819 = vadd.f32 %v2643, %v2818
      %v2820 = vpop.f32.mrb[0].mxu0
      %v2821 = vadd.f32 %v2639, %v2820
      %v2822 = vpop.f32.mrb[0].mxu0
      %v2823 = vadd.f32 %v2643, %v2822
      %2824 = vmatprep.mubr.bf16.mxu0 0
      %2825 = vmatmul.mubr.bf16.gmra.mrb[0].mxu0 %v2662
      %v2826 = vpop.f32.mrb[0].mxu0
      %v2827 = vadd.f32 %v2639, %v2826
      %v2828 = vpop.f32.mrb[0].mxu0
      %v2829 = vadd.f32 %v2643, %v2828
      %v2830 = vpop.f32.mrb[0].mxu0
      %v2831 = vadd.f32 %v2639, %v2830
      %v2832 = vpop.f32.mrb[0].mxu0
      %v2833 = vadd.f32 %v2643, %v2832
      %2834 = vmatprep.mubr.bf16.mxu0 0
      %2835 = vmatmul.mubr.bf16.gmra.mrb[0].mxu0 %v2665
      %v2836 = vpop.f32.mrb[0].mxu0
      %v2837 = vadd.f32 %v2639, %v2836
      %v2838 = vpop.f32.mrb[0].mxu0
      %v2839 = vadd.f32 %v2643, %v2838
      %v2840 = vpop.f32.mrb[0].mxu0
      %v2841 = vadd.f32 %v2639, %v2840
      %v2842 = vpop.f32.mrb[0].mxu0
      %v2843 = vadd.f32 %v2643, %v2842
      %2844 = vmatprep.mubr.bf16.mxu0 0
      %2845 = vmatmul.mubr.bf16.gmra.mrb[0].mxu0 %v2668
      %v2846 = vpop.f32.mrb[0].mxu0
      %v2847 = vadd.f32 %v2639, %v2846
      %v2848 = vpop.f32.mrb[0].mxu0
      %v2849 = vadd.f32 %v2643, %v2848
      %v2850 = vpop.f32.mrb[0].mxu0
      %v2851 = vadd.f32 %v2639, %v2850
      %v2852 = vpop.f32.mrb[0].mxu0
      %v2853 = vadd.f32 %v2643, %v2852
      %2854 = vmatprep.mubr.bf16.mxu0 0
      %2855 = vmatmul.mubr.bf16.gmra.mrb[0].mxu0 %v2671
      %v2856 = vpop.f32.mrb[0].mxu0
      %v2857 = vadd.f32 %v2639, %v2856
      %v2858 = vpop.f32.mrb[0].mxu0
      %v2859 = vadd.f32 %v2643, %v2858
      %v2860 = vpop.f32.mrb[0].mxu0
      %v2861 = vadd.f32 %v2639, %v2860
      %v2862 = vpop.f32.mrb[0].mxu0
      %v2863 = vadd.f32 %v2643, %v2862
      %2864 = vmatprep.mubr.bf16.mxu0 0
      %2865 = vmatmul.mubr.bf16.gmra.mrb[0].mxu0 %v2674
      %v2866 = vpop.f32.mrb[0].mxu0
      %v2867 = vadd.f32 %v2639, %v2866
      %v2868 = vpop.f32.mrb[0].mxu0
      %v2869 = vadd.f32 %v2643, %v2868
      %v2870 = vpop.f32.mrb[0].mxu0
      %v2871 = vadd.f32 %v2639, %v2870
      %v2872 = vpop.f32.mrb[0].mxu0
      %v2873 = vadd.f32 %v2643, %v2872
      %2874 = vmatprep.mubr.bf16.mxu0 0
      %2875 = vmatmul.mubr.bf16.gmra.mrb[0].mxu0 %v2677
      %v2876 = vpop.f32.mrb[0].mxu0
      %v2877 = vadd.f32 %v2639, %v2876
      %v2878 = vpop.f32.mrb[0].mxu0
      %v2879 = vadd.f32 %v2643, %v2878
      %v2880 = vpop.f32.mrb[0].mxu0
      %v2881 = vadd.f32 %v2639, %v2880
      %v2882 = vpop.f32.mrb[0].mxu0
      %v2883 = vadd.f32 %v2643, %v2882
      %2884 = vmatprep.mubr.bf16.mxu0 0
      %2885 = vmatmul.mubr.bf16.gmra.mrb[0].mxu0 %v2680
      %v2886 = vpop.f32.mrb[0].mxu0
      %v2887 = vadd.f32 %v2639, %v2886
      %v2888 = vpop.f32.mrb[0].mxu0
      %v2889 = vadd.f32 %v2643, %v2888
      %v2890 = vpop.f32.mrb[0].mxu0
      %v2891 = vadd.f32 %v2639, %v2890
      %v2892 = vpop.f32.mrb[0].mxu0
      %v2893 = vadd.f32 %v2643, %v2892
      %2894 = vmatprep.mubr.bf16.mxu0 0
      %2895 = vmatmul.mubr.bf16.gmra.mrb[0].mxu0 %v2683
      %v2896 = vpop.f32.mrb[0].mxu0
      %v2897 = vadd.f32 %v2639, %v2896
      %v2898 = vpop.f32.mrb[0].mxu0
      %v2899 = vadd.f32 %v2643, %v2898
      %v2900 = vpop.f32.mrb[0].mxu0
      %v2901 = vadd.f32 %v2639, %v2900
      %v2902 = vpop.f32.mrb[0].mxu0
      %v2903 = vadd.f32 %v2643, %v2902
      %2904 = vmatprep.mubr.bf16.mxu0 0
      %2905 = vmatmul.mubr.bf16.gmra.mrb[0].mxu0 %v2686
      %v2906 = vpop.f32.mrb[0].mxu0
      %v2907 = vadd.f32 %v2639, %v2906
      %v2908 = vpop.f32.mrb[0].mxu0
      %v2909 = vadd.f32 %v2643, %v2908
      %v2910 = vpop.f32.mrb[0].mxu0
      %v2911 = vadd.f32 %v2639, %v2910
      %v2912 = vpop.f32.mrb[0].mxu0
      %v2913 = vadd.f32 %v2643, %v2912
      %2914 = vmatprep.mubr.bf16.mxu0 0
      %2915 = vmatmul.mubr.bf16.gmra.mrb[0].mxu0 %v2689
      %v2916 = vpop.f32.mrb[0].mxu0
      %v2917 = vadd.f32 %v2639, %v2916
      %v2918 = vpop.f32.mrb[0].mxu0
      %v2919 = vadd.f32 %v2643, %v2918
      %v2920 = vpop.f32.mrb[0].mxu0
      %v2921 = vadd.f32 %v2639, %v2920
      %v2922 = vpop.f32.mrb[0].mxu0
      %v2923 = vadd.f32 %v2643, %v2922
      %2924 = vmatprep.mubr.bf16.mxu0 0
      %2925 = vmatmul.mubr.bf16.gmra.mrb[0].mxu0 %v2692
      %v2926 = vpop.f32.mrb[0].mxu0
      %v2927 = vadd.f32 %v2639, %v2926
      %v2928 = vpop.f32.mrb[0].mxu0
      %v2929 = vadd.f32 %v2643, %v2928
      %v2930 = vpop.f32.mrb[0].mxu0
      %v2931 = vadd.f32 %v2639, %v2930
      %v2932 = vpop.f32.mrb[0].mxu0
      %v2933 = vadd.f32 %v2643, %v2932
      %2934 = vdwg.mxu0
      %v2935 = vmax.f32 %v2777, %v2779
      %2936 = vmax.xlane.f32.xlu0 %v2935
      %v2937 = vpop.xlane.xlu0 %2936
      %v2938 = vmax.f32 %v2781, %v2783
      %2939 = vmax.xlane.f32.xlu0 %v2938
      %v2940 = vpop.xlane.xlu0 %2939
      %v2941 = vmax.f32 %v2787, %v2789
      %2942 = vmax.xlane.f32.xlu0 %v2941
      %v2943 = vpop.xlane.xlu0 %2942
      %v2944 = vmax.f32 %v2791, %v2793
      %2945 = vmax.xlane.f32.xlu0 %v2944
      %v2946 = vpop.xlane.xlu0 %2945
      %v2947 = vmax.f32 %v2797, %v2799
      %2948 = vmax.xlane.f32.xlu0 %v2947
      %v2949 = vpop.xlane.xlu0 %2948
      %v2950 = vmax.f32 %v2801, %v2803
      %2951 = vmax.xlane.f32.xlu0 %v2950
      %v2952 = vpop.xlane.xlu0 %2951
      %v2953 = vmax.f32 %v2807, %v2809
      %2954 = vmax.xlane.f32.xlu0 %v2953
      %v2955 = vpop.xlane.xlu0 %2954
      %v2956 = vmax.f32 %v2811, %v2813
      %2957 = vmax.xlane.f32.xlu0 %v2956
      %v2958 = vpop.xlane.xlu0 %2957
      %v2959 = vmax.f32 %v2817, %v2819
      %2960 = vmax.xlane.f32.xlu0 %v2959
      %v2961 = vpop.xlane.xlu0 %2960
      %v2962 = vmax.f32 %v2821, %v2823
      %2963 = vmax.xlane.f32.xlu0 %v2962
      %v2964 = vpop.xlane.xlu0 %2963
      %v2965 = vmax.f32 %v2827, %v2829
      %2966 = vmax.xlane.f32.xlu0 %v2965
      %v2967 = vpop.xlane.xlu0 %2966
      %v2968 = vmax.f32 %v2831, %v2833
      %2969 = vmax.xlane.f32.xlu0 %v2968
      %v2970 = vpop.xlane.xlu0 %2969
      %v2971 = vmax.f32 %v2837, %v2839
      %2972 = vmax.xlane.f32.xlu0 %v2971
      %v2973 = vpop.xlane.xlu0 %2972
      %v2974 = vmax.f32 %v2841, %v2843
      %2975 = vmax.xlane.f32.xlu0 %v2974
      %v2976 = vpop.xlane.xlu0 %2975
      %v2977 = vmax.f32 %v2847, %v2849
      %2978 = vmax.xlane.f32.xlu0 %v2977
      %v2979 = vpop.xlane.xlu0 %2978
      %v2980 = vmax.f32 %v2851, %v2853
      %2981 = vmax.xlane.f32.xlu0 %v2980
      %v2982 = vpop.xlane.xlu0 %2981
      %v2983 = vmax.f32 %v2857, %v2859
      %2984 = vmax.xlane.f32.xlu0 %v2983
      %v2985 = vpop.xlane.xlu0 %2984
      %v2986 = vmax.f32 %v2861, %v2863
      %2987 = vmax.xlane.f32.xlu0 %v2986
      %v2988 = vpop.xlane.xlu0 %2987
      %v2989 = vmax.f32 %v2867, %v2869
      %2990 = vmax.xlane.f32.xlu0 %v2989
      %v2991 = vpop.xlane.xlu0 %2990
      %v2992 = vmax.f32 %v2871, %v2873
      %2993 = vmax.xlane.f32.xlu0 %v2992
      %v2994 = vpop.xlane.xlu0 %2993
      %v2995 = vmax.f32 %v2877, %v2879
      %2996 = vmax.xlane.f32.xlu0 %v2995
      %v2997 = vpop.xlane.xlu0 %2996
      %v2998 = vmax.f32 %v2881, %v2883
      %2999 = vmax.xlane.f32.xlu0 %v2998
      %v3000 = vpop.xlane.xlu0 %2999
      %v3001 = vmax.f32 %v2887, %v2889
      %3002 = vmax.xlane.f32.xlu0 %v3001
      %v3003 = vpop.xlane.xlu0 %3002
      %v3004 = vmax.f32 %v2891, %v2893
      %3005 = vmax.xlane.f32.xlu0 %v3004
      %v3006 = vpop.xlane.xlu0 %3005
      %v3007 = vmax.f32 %v2897, %v2899
      %3008 = vmax.xlane.f32.xlu0 %v3007
      %v3009 = vpop.xlane.xlu0 %3008
      %v3010 = vmax.f32 %v2901, %v2903
      %3011 = vmax.xlane.f32.xlu0 %v3010
      %v3012 = vpop.xlane.xlu0 %3011
      %v3013 = vmax.f32 %v2907, %v2909
      %3014 = vmax.xlane.f32.xlu0 %v3013
      %v3015 = vpop.xlane.xlu0 %3014
      %v3016 = vmax.f32 %v2911, %v2913
      %3017 = vmax.xlane.f32.xlu0 %v3016
      %v3018 = vpop.xlane.xlu0 %3017
      %v3019 = vmax.f32 %v2917, %v2919
      %3020 = vmax.xlane.f32.xlu0 %v3019
      %v3021 = vpop.xlane.xlu0 %3020
      %v3022 = vmax.f32 %v2921, %v2923
      %3023 = vmax.xlane.f32.xlu0 %v3022
      %v3024 = vpop.xlane.xlu0 %3023
      %v3025 = vmax.f32 %v2927, %v2929
      %3026 = vmax.xlane.f32.xlu0 %v3025
      %v3027 = vpop.xlane.xlu0 %3026
      %v3028 = vmax.f32 %v2931, %v2933
      %3029 = vmax.xlane.f32.xlu0 %v3028
      %v3030 = vpop.xlane.xlu0 %3029
      %v3031 = vsub.f32 %v2777, %v2937
      %v3032 = vsub.f32 %v2779, %v2937
      %v3033 = vsub.f32 %v2781, %v2940
      %v3034 = vsub.f32 %v2783, %v2940
      %v3035 = vsub.f32 %v2787, %v2943
      %v3036 = vsub.f32 %v2789, %v2943
      %v3037 = vsub.f32 %v2791, %v2946
      %v3038 = vsub.f32 %v2793, %v2946
      %v3039 = vsub.f32 %v2797, %v2949
      %v3040 = vsub.f32 %v2799, %v2949
      %v3041 = vsub.f32 %v2801, %v2952
      %v3042 = vsub.f32 %v2803, %v2952
      %v3043 = vsub.f32 %v2807, %v2955
      %v3044 = vsub.f32 %v2809, %v2955
      %v3045 = vsub.f32 %v2811, %v2958
      %v3046 = vsub.f32 %v2813, %v2958
      %v3047 = vsub.f32 %v2817, %v2961
      %v3048 = vsub.f32 %v2819, %v2961
      %v3049 = vsub.f32 %v2821, %v2964
      %v3050 = vsub.f32 %v2823, %v2964
      %v3051 = vsub.f32 %v2827, %v2967
      %v3052 = vsub.f32 %v2829, %v2967
      %v3053 = vsub.f32 %v2831, %v2970
      %v3054 = vsub.f32 %v2833, %v2970
      %v3055 = vsub.f32 %v2837, %v2973
      %v3056 = vsub.f32 %v2839, %v2973
      %v3057 = vsub.f32 %v2841, %v2976
      %v3058 = vsub.f32 %v2843, %v2976
      %v3059 = vsub.f32 %v2847, %v2979
      %v3060 = vsub.f32 %v2849, %v2979
      %v3061 = vsub.f32 %v2851, %v2982
      %v3062 = vsub.f32 %v2853, %v2982
      %v3063 = vsub.f32 %v2857, %v2985
      %v3064 = vsub.f32 %v2859, %v2985
      %v3065 = vsub.f32 %v2861, %v2988
      %v3066 = vsub.f32 %v2863, %v2988
      %v3067 = vsub.f32 %v2867, %v2991
      %v3068 = vsub.f32 %v2869, %v2991
      %v3069 = vsub.f32 %v2871, %v2994
      %v3070 = vsub.f32 %v2873, %v2994
      %v3071 = vsub.f32 %v2877, %v2997
      %v3072 = vsub.f32 %v2879, %v2997
      %v3073 = vsub.f32 %v2881, %v3000
      %v3074 = vsub.f32 %v2883, %v3000
      %v3075 = vsub.f32 %v2887, %v3003
      %v3076 = vsub.f32 %v2889, %v3003
      %v3077 = vsub.f32 %v2891, %v3006
      %v3078 = vsub.f32 %v2893, %v3006
      %v3079 = vsub.f32 %v2897, %v3009
      %v3080 = vsub.f32 %v2899, %v3009
      %v3081 = vsub.f32 %v2901, %v3012
      %v3082 = vsub.f32 %v2903, %v3012
      %v3083 = vsub.f32 %v2907, %v3015
      %v3084 = vsub.f32 %v2909, %v3015
      %v3085 = vsub.f32 %v2911, %v3018
      %v3086 = vsub.f32 %v2913, %v3018
      %v3087 = vsub.f32 %v2917, %v3021
      %v3088 = vsub.f32 %v2919, %v3021
      %v3089 = vsub.f32 %v2921, %v3024
      %v3090 = vsub.f32 %v2923, %v3024
      %v3091 = vsub.f32 %v2927, %v3027
      %v3092 = vsub.f32 %v2929, %v3027
      %v3093 = vsub.f32 %v2931, %v3030
      %v3094 = vsub.f32 %v2933, %v3030
      %v3095 = vmul.f32 %v3031, 1.442695
      %v3096 = vpow.pop %v3095
      %v3097 = vmul.f32 %v3032, 1.442695
      %v3098 = vpow.pop %v3097
      %v3099 = vmul.f32 %v3033, 1.442695
      %v3100 = vpow.pop %v3099
      %v3101 = vmul.f32 %v3034, 1.442695
      %v3102 = vpow.pop %v3101
      %v3103 = vmul.f32 %v3035, 1.442695
      %v3104 = vpow.pop %v3103
      %v3105 = vmul.f32 %v3036, 1.442695
      %v3106 = vpow.pop %v3105
      %v3107 = vmul.f32 %v3037, 1.442695
      %v3108 = vpow.pop %v3107
      %v3109 = vmul.f32 %v3038, 1.442695
      %v3110 = vpow.pop %v3109
      %v3111 = vmul.f32 %v3039, 1.442695
      %v3112 = vpow.pop %v3111
      %v3113 = vmul.f32 %v3040, 1.442695
      %v3114 = vpow.pop %v3113
      %v3115 = vmul.f32 %v3041, 1.442695
      %v3116 = vpow.pop %v3115
      %v3117 = vmul.f32 %v3042, 1.442695
      %v3118 = vpow.pop %v3117
      %v3119 = vmul.f32 %v3043, 1.442695
      %v3120 = vpow.pop %v3119
      %v3121 = vmul.f32 %v3044, 1.442695
      %v3122 = vpow.pop %v3121
      %v3123 = vmul.f32 %v3045, 1.442695
      %v3124 = vpow.pop %v3123
      %v3125 = vmul.f32 %v3046, 1.442695
      %v3126 = vpow.pop %v3125
      %v3127 = vmul.f32 %v3047, 1.442695
      %v3128 = vpow.pop %v3127
      %v3129 = vmul.f32 %v3048, 1.442695
      %v3130 = vpow.pop %v3129
      %v3131 = vmul.f32 %v3049, 1.442695
      %v3132 = vpow.pop %v3131
      %v3133 = vmul.f32 %v3050, 1.442695
      %v3134 = vpow.pop %v3133
      %v3135 = vmul.f32 %v3051, 1.442695
      %v3136 = vpow.pop %v3135
      %v3137 = vmul.f32 %v3052, 1.442695
      %v3138 = vpow.pop %v3137
      %v3139 = vmul.f32 %v3053, 1.442695
      %v3140 = vpow.pop %v3139
      %v3141 = vmul.f32 %v3054, 1.442695
      %v3142 = vpow.pop %v3141
      %v3143 = vmul.f32 %v3055, 1.442695
      %v3144 = vpow.pop %v3143
      %v3145 = vmul.f32 %v3056, 1.442695
      %v3146 = vpow.pop %v3145
      %v3147 = vmul.f32 %v3057, 1.442695
      %v3148 = vpow.pop %v3147
      %v3149 = vmul.f32 %v3058, 1.442695
      %v3150 = vpow.pop %v3149
      %v3151 = vmul.f32 %v3059, 1.442695
      %v3152 = vpow.pop %v3151
      %v3153 = vmul.f32 %v3060, 1.442695
      %v3154 = vpow.pop %v3153
      %v3155 = vmul.f32 %v3061, 1.442695
      %v3156 = vpow.pop %v3155
      %v3157 = vmul.f32 %v3062, 1.442695
      %v3158 = vpow.pop %v3157
      %v3159 = vmul.f32 %v3063, 1.442695
      %v3160 = vpow.pop %v3159
      %v3161 = vmul.f32 %v3064, 1.442695
      %v3162 = vpow.pop %v3161
      %v3163 = vmul.f32 %v3065, 1.442695
      %v3164 = vpow.pop %v3163
      %v3165 = vmul.f32 %v3066, 1.442695
      %v3166 = vpow.pop %v3165
      %v3167 = vmul.f32 %v3067, 1.442695
      %v3168 = vpow.pop %v3167
      %v3169 = vmul.f32 %v3068, 1.442695
      %v3170 = vpow.pop %v3169
      %v3171 = vmul.f32 %v3069, 1.442695
      %v3172 = vpow.pop %v3171
      %v3173 = vmul.f32 %v3070, 1.442695
      %v3174 = vpow.pop %v3173
      %v3175 = vmul.f32 %v3071, 1.442695
      %v3176 = vpow.pop %v3175
      %v3177 = vmul.f32 %v3072, 1.442695
      %v3178 = vpow.pop %v3177
      %v3179 = vmul.f32 %v3073, 1.442695
      %v3180 = vpow.pop %v3179
      %v3181 = vmul.f32 %v3074, 1.442695
      %v3182 = vpow.pop %v3181
      %v3183 = vmul.f32 %v3075, 1.442695
      %v3184 = vpow.pop %v3183
      %v3185 = vmul.f32 %v3076, 1.442695
      %v3186 = vpow.pop %v3185
      %v3187 = vmul.f32 %v3077, 1.442695
      %v3188 = vpow.pop %v3187
      %v3189 = vmul.f32 %v3078, 1.442695
      %v3190 = vpow.pop %v3189
      %v3191 = vmul.f32 %v3079, 1.442695
      %v3192 = vpow.pop %v3191
      %v3193 = vmul.f32 %v3080, 1.442695
      %v3194 = vpow.pop %v3193
      %v3195 = vmul.f32 %v3081, 1.442695
      %v3196 = vpow.pop %v3195
      %v3197 = vmul.f32 %v3082, 1.442695
      %v3198 = vpow.pop %v3197
      %v3199 = vmul.f32 %v3083, 1.442695
      %v3200 = vpow.pop %v3199
      %v3201 = vmul.f32 %v3084, 1.442695
      %v3202 = vpow.pop %v3201
      %v3203 = vmul.f32 %v3085, 1.442695
      %v3204 = vpow.pop %v3203
      %v3205 = vmul.f32 %v3086, 1.442695
      %v3206 = vpow.pop %v3205
      %v3207 = vmul.f32 %v3087, 1.442695
      %v3208 = vpow.pop %v3207
      %v3209 = vmul.f32 %v3088, 1.442695
      %v3210 = vpow.pop %v3209
      %v3211 = vmul.f32 %v3089, 1.442695
      %v3212 = vpow.pop %v3211
      %v3213 = vmul.f32 %v3090, 1.442695
      %v3214 = vpow.pop %v3213
      %v3215 = vmul.f32 %v3091, 1.442695
      %v3216 = vpow.pop %v3215
      %v3217 = vmul.f32 %v3092, 1.442695
      %v3218 = vpow.pop %v3217
      %v3219 = vmul.f32 %v3093, 1.442695
      %v3220 = vpow.pop %v3219
      %v3221 = vmul.f32 %v3094, 1.442695
      %v3222 = vpow.pop %v3221
      %v3223 = vadd.f32 %v3096, %v3098
      %3224 = vadd.xlane.f32.xlu0 %v3223
      %v3225 = vpop.xlane.xlu0 %3224
      %v3226 = vadd.f32 %v3100, %v3102
      %3227 = vadd.xlane.f32.xlu0 %v3226
      %v3228 = vpop.xlane.xlu0 %3227
      %v3229 = vadd.f32 %v3104, %v3106
      %3230 = vadd.xlane.f32.xlu0 %v3229
      %v3231 = vpop.xlane.xlu0 %3230
      %v3232 = vadd.f32 %v3108, %v3110
      %3233 = vadd.xlane.f32.xlu0 %v3232
      %v3234 = vpop.xlane.xlu0 %3233
      %v3235 = vadd.f32 %v3112, %v3114
      %3236 = vadd.xlane.f32.xlu0 %v3235
      %v3237 = vpop.xlane.xlu0 %3236
      %v3238 = vadd.f32 %v3116, %v3118
      %3239 = vadd.xlane.f32.xlu0 %v3238
      %v3240 = vpop.xlane.xlu0 %3239
      %v3241 = vadd.f32 %v3120, %v3122
      %3242 = vadd.xlane.f32.xlu0 %v3241
      %v3243 = vpop.xlane.xlu0 %3242
      %v3244 = vadd.f32 %v3124, %v3126
      %3245 = vadd.xlane.f32.xlu0 %v3244
      %v3246 = vpop.xlane.xlu0 %3245
      %v3247 = vadd.f32 %v3128, %v3130
      %3248 = vadd.xlane.f32.xlu0 %v3247
      %v3249 = vpop.xlane.xlu0 %3248
      %v3250 = vadd.f32 %v3132, %v3134
      %3251 = vadd.xlane.f32.xlu0 %v3250
      %v3252 = vpop.xlane.xlu0 %3251
      %v3253 = vadd.f32 %v3136, %v3138
      %3254 = vadd.xlane.f32.xlu0 %v3253
      %v3255 = vpop.xlane.xlu0 %3254
      %v3256 = vadd.f32 %v3140, %v3142
      %3257 = vadd.xlane.f32.xlu0 %v3256
      %v3258 = vpop.xlane.xlu0 %3257
      %v3259 = vadd.f32 %v3144, %v3146
      %3260 = vadd.xlane.f32.xlu0 %v3259
      %v3261 = vpop.xlane.xlu0 %3260
      %v3262 = vadd.f32 %v3148, %v3150
      %3263 = vadd.xlane.f32.xlu0 %v3262
      %v3264 = vpop.xlane.xlu0 %3263
      %v3265 = vadd.f32 %v3152, %v3154
      %3266 = vadd.xlane.f32.xlu0 %v3265
      %v3267 = vpop.xlane.xlu0 %3266
      %v3268 = vadd.f32 %v3156, %v3158
      %3269 = vadd.xlane.f32.xlu0 %v3268
      %v3270 = vpop.xlane.xlu0 %3269
      %v3271 = vadd.f32 %v3160, %v3162
      %3272 = vadd.xlane.f32.xlu0 %v3271
      %v3273 = vpop.xlane.xlu0 %3272
      %v3274 = vadd.f32 %v3164, %v3166
      %3275 = vadd.xlane.f32.xlu0 %v3274
      %v3276 = vpop.xlane.xlu0 %3275
      %v3277 = vadd.f32 %v3168, %v3170
      %3278 = vadd.xlane.f32.xlu0 %v3277
      %v3279 = vpop.xlane.xlu0 %3278
      %v3280 = vadd.f32 %v3172, %v3174
      %3281 = vadd.xlane.f32.xlu0 %v3280
      %v3282 = vpop.xlane.xlu0 %3281
      %v3283 = vadd.f32 %v3176, %v3178
      %3284 = vadd.xlane.f32.xlu0 %v3283
      %v3285 = vpop.xlane.xlu0 %3284
      %v3286 = vadd.f32 %v3180, %v3182
      %3287 = vadd.xlane.f32.xlu0 %v3286
      %v3288 = vpop.xlane.xlu0 %3287
      %v3289 = vadd.f32 %v3184, %v3186
      %3290 = vadd.xlane.f32.xlu0 %v3289
      %v3291 = vpop.xlane.xlu0 %3290
      %v3292 = vadd.f32 %v3188, %v3190
      %3293 = vadd.xlane.f32.xlu0 %v3292
      %v3294 = vpop.xlane.xlu0 %3293
      %v3295 = vadd.f32 %v3192, %v3194
      %3296 = vadd.xlane.f32.xlu0 %v3295
      %v3297 = vpop.xlane.xlu0 %3296
      %v3298 = vadd.f32 %v3196, %v3198
      %3299 = vadd.xlane.f32.xlu0 %v3298
      %v3300 = vpop.xlane.xlu0 %3299
      %v3301 = vadd.f32 %v3200, %v3202
      %3302 = vadd.xlane.f32.xlu0 %v3301
      %v3303 = vpop.xlane.xlu0 %3302
      %v3304 = vadd.f32 %v3204, %v3206
      %3305 = vadd.xlane.f32.xlu0 %v3304
      %v3306 = vpop.xlane.xlu0 %3305
      %v3307 = vadd.f32 %v3208, %v3210
      %3308 = vadd.xlane.f32.xlu0 %v3307
      %v3309 = vpop.xlane.xlu0 %3308
      %v3310 = vadd.f32 %v3212, %v3214
      %3311 = vadd.xlane.f32.xlu0 %v3310
      %v3312 = vpop.xlane.xlu0 %3311
      %v3313 = vadd.f32 %v3216, %v3218
      %3314 = vadd.xlane.f32.xlu0 %v3313
      %v3315 = vpop.xlane.xlu0 %3314
      %v3316 = vadd.f32 %v3220, %v3222
      %3317 = vadd.xlane.f32.xlu0 %v3316
      %v3318 = vpop.xlane.xlu0 %3317
      %v3319 = vrcp.pop %v3225
      %v3320 = vrcp.pop %v3228
      %v3321 = vrcp.pop %v3231
      %v3322 = vrcp.pop %v3234
      %v3323 = vrcp.pop %v3237
      %v3324 = vrcp.pop %v3240
      %v3325 = vrcp.pop %v3243
      %v3326 = vrcp.pop %v3246
      %v3327 = vrcp.pop %v3249
      %v3328 = vrcp.pop %v3252
      %v3329 = vrcp.pop %v3255
      %v3330 = vrcp.pop %v3258
      %v3331 = vrcp.pop %v3261
      %v3332 = vrcp.pop %v3264
      %v3333 = vrcp.pop %v3267
      %v3334 = vrcp.pop %v3270
      %v3335 = vrcp.pop %v3273
      %v3336 = vrcp.pop %v3276
      %v3337 = vrcp.pop %v3279
      %v3338 = vrcp.pop %v3282
      %v3339 = vrcp.pop %v3285
      %v3340 = vrcp.pop %v3288
      %v3341 = vrcp.pop %v3291
      %v3342 = vrcp.pop %v3294
      %v3343 = vrcp.pop %v3297
      %v3344 = vrcp.pop %v3300
      %v3345 = vrcp.pop %v3303
      %v3346 = vrcp.pop %v3306
      %v3347 = vrcp.pop %v3309
      %v3348 = vrcp.pop %v3312
      %v3349 = vrcp.pop %v3315
      %v3350 = vrcp.pop %v3318
      %v3351 = vmul.f32 %v3096, %v3319
      %v3352 = vmul.f32 %v3098, %v3319
      %v3353 = vmul.f32 %v3100, %v3320
      %v3354 = vmul.f32 %v3102, %v3320
      %v3355 = vmul.f32 %v3104, %v3321
      %v3356 = vmul.f32 %v3106, %v3321
      %v3357 = vmul.f32 %v3108, %v3322
      %v3358 = vmul.f32 %v3110, %v3322
      %v3359 = vmul.f32 %v3112, %v3323
      %v3360 = vmul.f32 %v3114, %v3323
      %v3361 = vmul.f32 %v3116, %v3324
      %v3362 = vmul.f32 %v3118, %v3324
      %v3363 = vmul.f32 %v3120, %v3325
      %v3364 = vmul.f32 %v3122, %v3325
      %v3365 = vmul.f32 %v3124, %v3326
      %v3366 = vmul.f32 %v3126, %v3326
      %v3367 = vmul.f32 %v3128, %v3327
      %v3368 = vmul.f32 %v3130, %v3327
      %v3369 = vmul.f32 %v3132, %v3328
      %v3370 = vmul.f32 %v3134, %v3328
      %v3371 = vmul.f32 %v3136, %v3329
      %v3372 = vmul.f32 %v3138, %v3329
      %v3373 = vmul.f32 %v3140, %v3330
      %v3374 = vmul.f32 %v3142, %v3330
      %v3375 = vmul.f32 %v3144, %v3331
      %v3376 = vmul.f32 %v3146, %v3331
      %v3377 = vmul.f32 %v3148, %v3332
      %v3378 = vmul.f32 %v3150, %v3332
      %v3379 = vmul.f32 %v3152, %v3333
      %v3380 = vmul.f32 %v3154, %v3333
      %v3381 = vmul.f32 %v3156, %v3334
      %v3382 = vmul.f32 %v3158, %v3334
      %v3383 = vmul.f32 %v3160, %v3335
      %v3384 = vmul.f32 %v3162, %v3335
      %v3385 = vmul.f32 %v3164, %v3336
      %v3386 = vmul.f32 %v3166, %v3336
      %v3387 = vmul.f32 %v3168, %v3337
      %v3388 = vmul.f32 %v3170, %v3337
      %v3389 = vmul.f32 %v3172, %v3338
      %v3390 = vmul.f32 %v3174, %v3338
      %v3391 = vmul.f32 %v3176, %v3339
      %v3392 = vmul.f32 %v3178, %v3339
      %v3393 = vmul.f32 %v3180, %v3340
      %v3394 = vmul.f32 %v3182, %v3340
      %v3395 = vmul.f32 %v3184, %v3341
      %v3396 = vmul.f32 %v3186, %v3341
      %v3397 = vmul.f32 %v3188, %v3342
      %v3398 = vmul.f32 %v3190, %v3342
      %v3399 = vmul.f32 %v3192, %v3343
      %v3400 = vmul.f32 %v3194, %v3343
      %v3401 = vmul.f32 %v3196, %v3344
      %v3402 = vmul.f32 %v3198, %v3344
      %v3403 = vmul.f32 %v3200, %v3345
      %v3404 = vmul.f32 %v3202, %v3345
      %v3405 = vmul.f32 %v3204, %v3346
      %v3406 = vmul.f32 %v3206, %v3346
      %v3407 = vmul.f32 %v3208, %v3347
      %v3408 = vmul.f32 %v3210, %v3347
      %v3409 = vmul.f32 %v3212, %v3348
      %v3410 = vmul.f32 %v3214, %v3348
      %v3411 = vmul.f32 %v3216, %v3349
      %v3412 = vmul.f32 %v3218, %v3349
      %v3413 = vmul.f32 %v3220, %v3350
      %v3414 = vmul.f32 %v3222, %v3350
      %v3415 = vpack.c.bf16 %v3353, %v3351
      %v3416 = vpack.c.bf16 %v3354, %v3352
      %v3417 = vpack.c.bf16 %v3357, %v3355
      %v3418 = vpack.c.bf16 %v3358, %v3356
      %v3419 = vpack.c.bf16 %v3361, %v3359
      %v3420 = vpack.c.bf16 %v3362, %v3360
      %v3421 = vpack.c.bf16 %v3365, %v3363
      %v3422 = vpack.c.bf16 %v3366, %v3364
      %v3423 = vpack.c.bf16 %v3369, %v3367
      %v3424 = vpack.c.bf16 %v3370, %v3368
      %v3425 = vpack.c.bf16 %v3373, %v3371
      %v3426 = vpack.c.bf16 %v3374, %v3372
      %v3427 = vpack.c.bf16 %v3377, %v3375
      %v3428 = vpack.c.bf16 %v3378, %v3376
      %v3429 = vpack.c.bf16 %v3381, %v3379
      %v3430 = vpack.c.bf16 %v3382, %v3380
      %v3431 = vpack.c.bf16 %v3385, %v3383
      %v3432 = vpack.c.bf16 %v3386, %v3384
      %v3433 = vpack.c.bf16 %v3389, %v3387
      %v3434 = vpack.c.bf16 %v3390, %v3388
      %v3435 = vpack.c.bf16 %v3393, %v3391
      %v3436 = vpack.c.bf16 %v3394, %v3392
      %v3437 = vpack.c.bf16 %v3397, %v3395
      %v3438 = vpack.c.bf16 %v3398, %v3396
      %v3439 = vpack.c.bf16 %v3401, %v3399
      %v3440 = vpack.c.bf16 %v3402, %v3400
      %v3441 = vpack.c.bf16 %v3405, %v3403
      %v3442 = vpack.c.bf16 %v3406, %v3404
      %v3443 = vpack.c.bf16 %v3409, %v3407
      %v3444 = vpack.c.bf16 %v3410, %v3408
      %v3445 = vpack.c.bf16 %v3413, %v3411
      %v3446 = vpack.c.bf16 %v3414, %v3412
      %3447 = vmatprep.subr.bf16.mxu0 0
      %3448 = vmatpush1.bf16.msra.mxu0 %v2555
      %3449 = vmatprep.subr.bf16.mxu0 0
      %3450 = vmatpush1.bf16.msra.mxu0 %v2556
      %3451 = vmatprep.subr.bf16.mxu0 0
      %3452 = vmatpush1.bf16.msra.mxu0 %v2557
      %3453 = vmatprep.subr.bf16.mxu0 0
      %3454 = vmatpush1.bf16.msra.mxu0 %v2558
      %3455 = vmatprep.subr.bf16.mxu0 0
      %3456 = vmatpush1.bf16.msra.mxu0 %v2559
      %3457 = vmatprep.subr.bf16.mxu0 0
      %3458 = vmatpush1.bf16.msra.mxu0 %v2560
      %3459 = vmatprep.subr.bf16.mxu0 0
      %3460 = vmatpush1.bf16.msra.mxu0 %v2561
      %3461 = vmatprep.subr.bf16.mxu0 0
      %3462 = vmatpush1.bf16.msra.mxu0 %v2562
      %3463 = vmatprep.subr.bf16.mxu0 0
      %3464 = vmatpush1.bf16.msra.mxu0 %v2563
      %3465 = vmatprep.subr.bf16.mxu0 0
      %3466 = vmatpush1.bf16.msra.mxu0 %v2564
      %3467 = vmatprep.subr.bf16.mxu0 0
      %3468 = vmatpush1.bf16.msra.mxu0 %v2565
      %3469 = vmatprep.subr.bf16.mxu0 0
      %3470 = vmatpush1.bf16.msra.mxu0 %v2566
      %3471 = vmatprep.subr.bf16.mxu0 0
      %3472 = vmatpush1.bf16.msra.mxu0 %v2567
      %3473 = vmatprep.subr.bf16.mxu0 0
      %3474 = vmatpush1.bf16.msra.mxu0 %v2568
      %3475 = vmatprep.subr.bf16.mxu0 0
      %3476 = vmatpush1.bf16.msra.mxu0 %v2569
      %3477 = vmatprep.subr.bf16.mxu0 0
      %3478 = vmatpush1.bf16.msra.mxu0 %v2570
      %3479 = vmatprep.mubr.bf16.mxu0 %v3416
      %3480 = vmatmul.mubr.bf16.gmra.mrb[0].mxu0 %v3415
      %v3481 = vpop.f32.mrb[0].mxu0
      %v3482 = vadd.f32 0.0, %v3481
      %v3483 = vpop.f32.mrb[0].mxu0
      %v3484 = vpop.f32.mrb[0].mxu0
      %v3485 = vadd.f32 0.0, %v3484
      %v3486 = vpop.f32.mrb[0].mxu0
      %3487 = vmatprep.mubr.bf16.mxu0 %v3418
      %3488 = vmatmul.mubr.bf16.gmra.mrb[0].mxu0 %v3417
      %v3489 = vpop.f32.mrb[0].mxu0
      %v3490 = vadd.f32 0.0, %v3489
      %v3491 = vpop.f32.mrb[0].mxu0
      %v3492 = vpop.f32.mrb[0].mxu0
      %v3493 = vadd.f32 0.0, %v3492
      %v3494 = vpop.f32.mrb[0].mxu0
      %3495 = vmatprep.mubr.bf16.mxu0 %v3420
      %3496 = vmatmul.mubr.bf16.gmra.mrb[0].mxu0 %v3419
      %v3497 = vpop.f32.mrb[0].mxu0
      %v3498 = vadd.f32 0.0, %v3497
      %v3499 = vpop.f32.mrb[0].mxu0
      %v3500 = vpop.f32.mrb[0].mxu0
      %v3501 = vadd.f32 0.0, %v3500
      %v3502 = vpop.f32.mrb[0].mxu0
      %3503 = vmatprep.mubr.bf16.mxu0 %v3422
      %3504 = vmatmul.mubr.bf16.gmra.mrb[0].mxu0 %v3421
      %v3505 = vpop.f32.mrb[0].mxu0
      %v3506 = vadd.f32 0.0, %v3505
      %v3507 = vpop.f32.mrb[0].mxu0
      %v3508 = vpop.f32.mrb[0].mxu0
      %v3509 = vadd.f32 0.0, %v3508
      %v3510 = vpop.f32.mrb[0].mxu0
      %3511 = vmatprep.mubr.bf16.mxu0 %v3424
      %3512 = vmatmul.mubr.bf16.gmra.mrb[0].mxu0 %v3423
      %v3513 = vpop.f32.mrb[0].mxu0
      %v3514 = vadd.f32 0.0, %v3513
      %v3515 = vpop.f32.mrb[0].mxu0
      %v3516 = vpop.f32.mrb[0].mxu0
      %v3517 = vadd.f32 0.0, %v3516
      %v3518 = vpop.f32.mrb[0].mxu0
      %3519 = vmatprep.mubr.bf16.mxu0 %v3426
      %3520 = vmatmul.mubr.bf16.gmra.mrb[0].mxu0 %v3425
      %v3521 = vpop.f32.mrb[0].mxu0
      %v3522 = vadd.f32 0.0, %v3521
      %v3523 = vpop.f32.mrb[0].mxu0
      %v3524 = vpop.f32.mrb[0].mxu0
      %v3525 = vadd.f32 0.0, %v3524
      %v3526 = vpop.f32.mrb[0].mxu0
      %3527 = vmatprep.mubr.bf16.mxu0 %v3428
      %3528 = vmatmul.mubr.bf16.gmra.mrb[0].mxu0 %v3427
      %v3529 = vpop.f32.mrb[0].mxu0
      %v3530 = vadd.f32 0.0, %v3529
      %v3531 = vpop.f32.mrb[0].mxu0
      %v3532 = vpop.f32.mrb[0].mxu0
      %v3533 = vadd.f32 0.0, %v3532
      %v3534 = vpop.f32.mrb[0].mxu0
      %3535 = vmatprep.mubr.bf16.mxu0 %v3430
      %3536 = vmatmul.mubr.bf16.gmra.mrb[0].mxu0 %v3429
      %v3537 = vpop.f32.mrb[0].mxu0
      %v3538 = vadd.f32 0.0, %v3537
      %v3539 = vpop.f32.mrb[0].mxu0
      %v3540 = vpop.f32.mrb[0].mxu0
      %v3541 = vadd.f32 0.0, %v3540
      %v3542 = vpop.f32.mrb[0].mxu0
      %3543 = vmatprep.mubr.bf16.mxu0 %v3432
      %3544 = vmatmul.mubr.bf16.gmra.mrb[0].mxu0 %v3431
      %v3545 = vpop.f32.mrb[0].mxu0
      %v3546 = vadd.f32 0.0, %v3545
      %v3547 = vpop.f32.mrb[0].mxu0
      %v3548 = vpop.f32.mrb[0].mxu0
      %v3549 = vadd.f32 0.0, %v3548
      %v3550 = vpop.f32.mrb[0].mxu0
      %3551 = vmatprep.mubr.bf16.mxu0 %v3434
      %3552 = vmatmul.mubr.bf16.gmra.mrb[0].mxu0 %v3433
      %v3553 = vpop.f32.mrb[0].mxu0
      %v3554 = vadd.f32 0.0, %v3553
      %v3555 = vpop.f32.mrb[0].mxu0
      %v3556 = vpop.f32.mrb[0].mxu0
      %v3557 = vadd.f32 0.0, %v3556
      %v3558 = vpop.f32.mrb[0].mxu0
      %3559 = vmatprep.mubr.bf16.mxu0 %v3436
      %3560 = vmatmul.mubr.bf16.gmra.mrb[0].mxu0 %v3435
      %v3561 = vpop.f32.mrb[0].mxu0
      %v3562 = vadd.f32 0.0, %v3561
      %v3563 = vpop.f32.mrb[0].mxu0
      %v3564 = vpop.f32.mrb[0].mxu0
      %v3565 = vadd.f32 0.0, %v3564
      %v3566 = vpop.f32.mrb[0].mxu0
      %3567 = vmatprep.mubr.bf16.mxu0 %v3438
      %3568 = vmatmul.mubr.bf16.gmra.mrb[0].mxu0 %v3437
      %v3569 = vpop.f32.mrb[0].mxu0
      %v3570 = vadd.f32 0.0, %v3569
      %v3571 = vpop.f32.mrb[0].mxu0
      %v3572 = vpop.f32.mrb[0].mxu0
      %v3573 = vadd.f32 0.0, %v3572
      %v3574 = vpop.f32.mrb[0].mxu0
      %3575 = vmatprep.mubr.bf16.mxu0 %v3440
      %3576 = vmatmul.mubr.bf16.gmra.mrb[0].mxu0 %v3439
      %v3577 = vpop.f32.mrb[0].mxu0
      %v3578 = vadd.f32 0.0, %v3577
      %v3579 = vpop.f32.mrb[0].mxu0
      %v3580 = vpop.f32.mrb[0].mxu0
      %v3581 = vadd.f32 0.0, %v3580
      %v3582 = vpop.f32.mrb[0].mxu0
      %3583 = vmatprep.mubr.bf16.mxu0 %v3442
      %3584 = vmatmul.mubr.bf16.gmra.mrb[0].mxu0 %v3441
      %v3585 = vpop.f32.mrb[0].mxu0
      %v3586 = vadd.f32 0.0, %v3585
      %v3587 = vpop.f32.mrb[0].mxu0
      %v3588 = vpop.f32.mrb[0].mxu0
      %v3589 = vadd.f32 0.0, %v3588
      %v3590 = vpop.f32.mrb[0].mxu0
      %3591 = vmatprep.mubr.bf16.mxu0 %v3444
      %3592 = vmatmul.mubr.bf16.gmra.mrb[0].mxu0 %v3443
      %v3593 = vpop.f32.mrb[0].mxu0
      %v3594 = vadd.f32 0.0, %v3593
      %v3595 = vpop.f32.mrb[0].mxu0
      %v3596 = vpop.f32.mrb[0].mxu0
      %v3597 = vadd.f32 0.0, %v3596
      %v3598 = vpop.f32.mrb[0].mxu0
      %3599 = vmatprep.mubr.bf16.mxu0 %v3446
      %3600 = vmatmul.mubr.bf16.gmra.mrb[0].mxu0 %v3445
      %v3601 = vpop.f32.mrb[0].mxu0
      %v3602 = vadd.f32 0.0, %v3601
      %v3603 = vpop.f32.mrb[0].mxu0
      %v3604 = vpop.f32.mrb[0].mxu0
      %v3605 = vadd.f32 0.0, %v3604
      %v3606 = vpop.f32.mrb[0].mxu0
      %3607 = vdwg.mxu0
      %v3608 = vsel %vm2586, %v3482, 0.0
      %v3609 = vsel %vm2586, %v3485, 0.0
      %v3610 = vsel %vm2586, %v3490, 0.0
      %v3611 = vsel %vm2586, %v3493, 0.0
      %v3612 = vsel %vm2586, %v3498, 0.0
      %v3613 = vsel %vm2586, %v3501, 0.0
      %v3614 = vsel %vm2586, %v3506, 0.0
      %v3615 = vsel %vm2586, %v3509, 0.0
      %v3616 = vsel %vm2586, %v3514, 0.0
      %v3617 = vsel %vm2586, %v3517, 0.0
      %v3618 = vsel %vm2586, %v3522, 0.0
      %v3619 = vsel %vm2586, %v3525, 0.0
      %v3620 = vsel %vm2586, %v3530, 0.0
      %v3621 = vsel %vm2586, %v3533, 0.0
      %v3622 = vsel %vm2586, %v3538, 0.0
      %v3623 = vsel %vm2586, %v3541, 0.0
      %v3624 = vsel %vm2586, %v3546, 0.0
      %v3625 = vsel %vm2586, %v3549, 0.0
      %v3626 = vsel %vm2586, %v3554, 0.0
      %v3627 = vsel %vm2586, %v3557, 0.0
      %v3628 = vsel %vm2586, %v3562, 0.0
      %v3629 = vsel %vm2586, %v3565, 0.0
      %v3630 = vsel %vm2586, %v3570, 0.0
      %v3631 = vsel %vm2586, %v3573, 0.0
      %v3632 = vsel %vm2586, %v3578, 0.0
      %v3633 = vsel %vm2586, %v3581, 0.0
      %v3634 = vsel %vm2586, %v3586, 0.0
      %v3635 = vsel %vm2586, %v3589, 0.0
      %v3636 = vsel %vm2586, %v3594, 0.0
      %v3637 = vsel %vm2586, %v3597, 0.0
      %v3638 = vsel %vm2586, %v3602, 0.0
      %v3639 = vsel %vm2586, %v3605, 0.0
      %v3640 = vadd.f32 %v3608, 0.0
      %v3641 = vadd.f32 %v3609, 0.0
      %v3642 = vadd.f32 %v3610, 0.0
      %v3643 = vadd.f32 %v3611, 0.0
      %v3644 = vadd.f32 %v3612, 0.0
      %v3645 = vadd.f32 %v3613, 0.0
      %v3646 = vadd.f32 %v3614, 0.0
      %v3647 = vadd.f32 %v3615, 0.0
      %v3648 = vadd.f32 %v3616, 0.0
      %v3649 = vadd.f32 %v3617, 0.0
      %v3650 = vadd.f32 %v3618, 0.0
      %v3651 = vadd.f32 %v3619, 0.0
      %v3652 = vadd.f32 %v3620, 0.0
      %v3653 = vadd.f32 %v3621, 0.0
      %v3654 = vadd.f32 %v3622, 0.0
      %v3655 = vadd.f32 %v3623, 0.0
      %v3656 = vadd.f32 %v3624, 0.0
      %v3657 = vadd.f32 %v3625, 0.0
      %v3658 = vadd.f32 %v3626, 0.0
      %v3659 = vadd.f32 %v3627, 0.0
      %v3660 = vadd.f32 %v3628, 0.0
      %v3661 = vadd.f32 %v3629, 0.0
      %v3662 = vadd.f32 %v3630, 0.0
      %v3663 = vadd.f32 %v3631, 0.0
      %v3664 = vadd.f32 %v3632, 0.0
      %v3665 = vadd.f32 %v3633, 0.0
      %v3666 = vadd.f32 %v3634, 0.0
      %v3667 = vadd.f32 %v3635, 0.0
      %v3668 = vadd.f32 %v3636, 0.0
      %v3669 = vadd.f32 %v3637, 0.0
      %v3670 = vadd.f32 %v3638, 0.0
      %v3671 = vadd.f32 %v3639, 0.0
      %v3672 = vsel %vm2578, 1, 0
      %vm3673 = vcmp.eq.s32.totalorder %v3672, 1
      %v3674 = vsel %vm3673, %v2507, 0.0
      %v3675 = vsel %vm3673, %v2508, 0.0
      %v3676 = vsel %vm3673, %v2509, 0.0
      %v3677 = vsel %vm3673, %v2510, 0.0
      %v3678 = vsel %vm3673, %v2511, 0.0
      %v3679 = vsel %vm3673, %v2512, 0.0
      %v3680 = vsel %vm3673, %v2513, 0.0
      %v3681 = vsel %vm3673, %v2514, 0.0
      %v3682 = vsel %vm3673, %v2515, 0.0
      %v3683 = vsel %vm3673, %v2516, 0.0
      %v3684 = vsel %vm3673, %v2517, 0.0
      %v3685 = vsel %vm3673, %v2518, 0.0
      %v3686 = vsel %vm3673, %v2519, 0.0
      %v3687 = vsel %vm3673, %v2520, 0.0
      %v3688 = vsel %vm3673, %v2521, 0.0
      %v3689 = vsel %vm3673, %v2522, 0.0
      %v3690 = vsel %vm3673, %v2523, 0.0
      %v3691 = vsel %vm3673, %v2524, 0.0
      %v3692 = vsel %vm3673, %v2525, 0.0
      %v3693 = vsel %vm3673, %v2526, 0.0
      %v3694 = vsel %vm3673, %v2527, 0.0
      %v3695 = vsel %vm3673, %v2528, 0.0
      %v3696 = vsel %vm3673, %v2529, 0.0
      %v3697 = vsel %vm3673, %v2530, 0.0
      %v3698 = vsel %vm3673, %v2531, 0.0
      %v3699 = vsel %vm3673, %v2532, 0.0
      %v3700 = vsel %vm3673, %v2533, 0.0
      %v3701 = vsel %vm3673, %v2534, 0.0
      %v3702 = vsel %vm3673, %v2535, 0.0
      %v3703 = vsel %vm3673, %v2536, 0.0
      %v3704 = vsel %vm3673, %v2537, 0.0
      %v3705 = vsel %vm3673, %v2538, 0.0
      %v3706 = vpack.c.bf16 %v3675, %v3674
      %v3707 = vpack.c.bf16 %v3677, %v3676
      %v3708 = vpack.c.bf16 %v3679, %v3678
      %v3709 = vpack.c.bf16 %v3681, %v3680
      %v3710 = vpack.c.bf16 %v3683, %v3682
      %v3711 = vpack.c.bf16 %v3685, %v3684
      %v3712 = vpack.c.bf16 %v3687, %v3686
      %v3713 = vpack.c.bf16 %v3689, %v3688
      %v3714 = vpack.c.bf16 %v3691, %v3690
      %v3715 = vpack.c.bf16 %v3693, %v3692
      %v3716 = vpack.c.bf16 %v3695, %v3694
      %v3717 = vpack.c.bf16 %v3697, %v3696
      %v3718 = vpack.c.bf16 %v3699, %v3698
      %v3719 = vpack.c.bf16 %v3701, %v3700
      %v3720 = vpack.c.bf16 %v3703, %v3702
      %v3721 = vpack.c.bf16 %v3705, %v3704
      %v3723 = vsel %vm1949, %v3706, 0
      %v3726 = vsel %vm1949, %v3707, 0
      %v3729 = vsel %vm1949, %v3708, 0
      %v3732 = vsel %vm1949, %v3709, 0
      %v3735 = vsel %vm1949, %v3710, 0
      %v3738 = vsel %vm1949, %v3711, 0
      %v3741 = vsel %vm1949, %v3712, 0
      %v3744 = vsel %vm1949, %v3713, 0
      %v3747 = vsel %vm1949, %v3714, 0
      %v3750 = vsel %vm1949, %v3715, 0
      %v3753 = vsel %vm1949, %v3716, 0
      %v3756 = vsel %vm1949, %v3717, 0
      %v3759 = vsel %vm1949, %v3718, 0
      %v3762 = vsel %vm1949, %v3719, 0
      %v3765 = vsel %vm1949, %v3720, 0
      %v3768 = vsel %vm1949, %v3721, 0
      %3770 = vmatprep.subr.bf16.mxu0 0
      %3771 = vmatpush1.bf16.xpose.msra.mxu0 %v2695
      %3772 = vmatprep.subr.bf16.mxu0 0
      %3773 = vmatpush1.bf16.xpose.msra.mxu0 %v2698
      %3774 = vmatprep.subr.bf16.mxu0 0
      %3775 = vmatpush1.bf16.xpose.msra.mxu0 %v2701
      %3776 = vmatprep.subr.bf16.mxu0 0
      %3777 = vmatpush1.bf16.xpose.msra.mxu0 %v2704
      %3778 = vmatprep.subr.bf16.mxu0 0
      %3779 = vmatpush1.bf16.xpose.msra.mxu0 %v2707
      %3780 = vmatprep.subr.bf16.mxu0 0
      %3781 = vmatpush1.bf16.xpose.msra.mxu0 %v2710
      %3782 = vmatprep.subr.bf16.mxu0 0
      %3783 = vmatpush1.bf16.xpose.msra.mxu0 %v2713
      %3784 = vmatprep.subr.bf16.mxu0 0
      %3785 = vmatpush1.bf16.xpose.msra.mxu0 %v2716
      %3786 = vmatprep.subr.bf16.mxu0 0
      %3787 = vmatpush1.bf16.xpose.msra.mxu0 %v2719
      %3788 = vmatprep.subr.bf16.mxu0 0
      %3789 = vmatpush1.bf16.xpose.msra.mxu0 %v2722
      %3790 = vmatprep.subr.bf16.mxu0 0
      %3791 = vmatpush1.bf16.xpose.msra.mxu0 %v2725
      %3792 = vmatprep.subr.bf16.mxu0 0
      %3793 = vmatpush1.bf16.xpose.msra.mxu0 %v2728
      %3794 = vmatprep.subr.bf16.mxu0 0
      %3795 = vmatpush1.bf16.xpose.msra.mxu0 %v2731
      %3796 = vmatprep.subr.bf16.mxu0 0
      %3797 = vmatpush1.bf16.xpose.msra.mxu0 %v2734
      %3798 = vmatprep.subr.bf16.mxu0 0
      %3799 = vmatpush1.bf16.xpose.msra.mxu0 %v2737
      %3800 = vmatprep.subr.bf16.mxu0 0
      %3801 = vmatpush1.bf16.xpose.msra.mxu0 %v2740
      %3802 = vmatprep.mubr.bf16.mxu0 0
      %3803 = vmatmul.mubr.bf16.gmra.mrb[0].mxu0 %v3723
      %v3804 = vpop.f32.mrb[0].mxu0
      %v3805 = vadd.f32 %v2639, %v3804
      %v3806 = vpop.f32.mrb[0].mxu0
      %v3807 = vadd.f32 %v2643, %v3806
      %v3808 = vpop.f32.mrb[0].mxu0
      %v3809 = vadd.f32 %v2639, %v3808
      %v3810 = vpop.f32.mrb[0].mxu0
      %v3811 = vadd.f32 %v2643, %v3810
      %3812 = vmatprep.mubr.bf16.mxu0 0
      %3813 = vmatmul.mubr.bf16.gmra.mrb[0].mxu0 %v3726
      %v3814 = vpop.f32.mrb[0].mxu0
      %v3815 = vadd.f32 %v2639, %v3814
      %v3816 = vpop.f32.mrb[0].mxu0
      %v3817 = vadd.f32 %v2643, %v3816
      %v3818 = vpop.f32.mrb[0].mxu0
      %v3819 = vadd.f32 %v2639, %v3818
      %v3820 = vpop.f32.mrb[0].mxu0
      %v3821 = vadd.f32 %v2643, %v3820
      %3822 = vmatprep.mubr.bf16.mxu0 0
      %3823 = vmatmul.mubr.bf16.gmra.mrb[0].mxu0 %v3729
      %v3824 = vpop.f32.mrb[0].mxu0
      %v3825 = vadd.f32 %v2639, %v3824
      %v3826 = vpop.f32.mrb[0].mxu0
      %v3827 = vadd.f32 %v2643, %v3826
      %v3828 = vpop.f32.mrb[0].mxu0
      %v3829 = vadd.f32 %v2639, %v3828
      %v3830 = vpop.f32.mrb[0].mxu0
      %v3831 = vadd.f32 %v2643, %v3830
      %3832 = vmatprep.mubr.bf16.mxu0 0
      %3833 = vmatmul.mubr.bf16.gmra.mrb[0].mxu0 %v3732
      %v3834 = vpop.f32.mrb[0].mxu0
      %v3835 = vadd.f32 %v2639, %v3834
      %v3836 = vpop.f32.mrb[0].mxu0
      %v3837 = vadd.f32 %v2643, %v3836
      %v3838 = vpop.f32.mrb[0].mxu0
      %v3839 = vadd.f32 %v2639, %v3838
      %v3840 = vpop.f32.mrb[0].mxu0
      %v3841 = vadd.f32 %v2643, %v3840
      %3842 = vmatprep.mubr.bf16.mxu0 0
      %3843 = vmatmul.mubr.bf16.gmra.mrb[0].mxu0 %v3735
      %v3844 = vpop.f32.mrb[0].mxu0
      %v3845 = vadd.f32 %v2639, %v3844
      %v3846 = vpop.f32.mrb[0].mxu0
      %v3847 = vadd.f32 %v2643, %v3846
      %v3848 = vpop.f32.mrb[0].mxu0
      %v3849 = vadd.f32 %v2639, %v3848
      %v3850 = vpop.f32.mrb[0].mxu0
      %v3851 = vadd.f32 %v2643, %v3850
      %3852 = vmatprep.mubr.bf16.mxu0 0
      %3853 = vmatmul.mubr.bf16.gmra.mrb[0].mxu0 %v3738
      %v3854 = vpop.f32.mrb[0].mxu0
      %v3855 = vadd.f32 %v2639, %v3854
      %v3856 = vpop.f32.mrb[0].mxu0
      %v3857 = vadd.f32 %v2643, %v3856
      %v3858 = vpop.f32.mrb[0].mxu0
      %v3859 = vadd.f32 %v2639, %v3858
      %v3860 = vpop.f32.mrb[0].mxu0
      %v3861 = vadd.f32 %v2643, %v3860
      %3862 = vmatprep.mubr.bf16.mxu0 0
      %3863 = vmatmul.mubr.bf16.gmra.mrb[0].mxu0 %v3741
      %v3864 = vpop.f32.mrb[0].mxu0
      %v3865 = vadd.f32 %v2639, %v3864
      %v3866 = vpop.f32.mrb[0].mxu0
      %v3867 = vadd.f32 %v2643, %v3866
      %v3868 = vpop.f32.mrb[0].mxu0
      %v3869 = vadd.f32 %v2639, %v3868
      %v3870 = vpop.f32.mrb[0].mxu0
      %v3871 = vadd.f32 %v2643, %v3870
      %3872 = vmatprep.mubr.bf16.mxu0 0
      %3873 = vmatmul.mubr.bf16.gmra.mrb[0].mxu0 %v3744
      %v3874 = vpop.f32.mrb[0].mxu0
      %v3875 = vadd.f32 %v2639, %v3874
      %v3876 = vpop.f32.mrb[0].mxu0
      %v3877 = vadd.f32 %v2643, %v3876
      %v3878 = vpop.f32.mrb[0].mxu0
      %v3879 = vadd.f32 %v2639, %v3878
      %v3880 = vpop.f32.mrb[0].mxu0
      %v3881 = vadd.f32 %v2643, %v3880
      %3882 = vmatprep.mubr.bf16.mxu0 0
      %3883 = vmatmul.mubr.bf16.gmra.mrb[0].mxu0 %v3747
      %v3884 = vpop.f32.mrb[0].mxu0
      %v3885 = vadd.f32 %v2639, %v3884
      %v3886 = vpop.f32.mrb[0].mxu0
      %v3887 = vadd.f32 %v2643, %v3886
      %v3888 = vpop.f32.mrb[0].mxu0
      %v3889 = vadd.f32 %v2639, %v3888
      %v3890 = vpop.f32.mrb[0].mxu0
      %v3891 = vadd.f32 %v2643, %v3890
      %3892 = vmatprep.mubr.bf16.mxu0 0
      %3893 = vmatmul.mubr.bf16.gmra.mrb[0].mxu0 %v3750
      %v3894 = vpop.f32.mrb[0].mxu0
      %v3895 = vadd.f32 %v2639, %v3894
      %v3896 = vpop.f32.mrb[0].mxu0
      %v3897 = vadd.f32 %v2643, %v3896
      %v3898 = vpop.f32.mrb[0].mxu0
      %v3899 = vadd.f32 %v2639, %v3898
      %v3900 = vpop.f32.mrb[0].mxu0
      %v3901 = vadd.f32 %v2643, %v3900
      %3902 = vmatprep.mubr.bf16.mxu0 0
      %3903 = vmatmul.mubr.bf16.gmra.mrb[0].mxu0 %v3753
      %v3904 = vpop.f32.mrb[0].mxu0
      %v3905 = vadd.f32 %v2639, %v3904
      %v3906 = vpop.f32.mrb[0].mxu0
      %v3907 = vadd.f32 %v2643, %v3906
      %v3908 = vpop.f32.mrb[0].mxu0
      %v3909 = vadd.f32 %v2639, %v3908
      %v3910 = vpop.f32.mrb[0].mxu0
      %v3911 = vadd.f32 %v2643, %v3910
      %3912 = vmatprep.mubr.bf16.mxu0 0
      %3913 = vmatmul.mubr.bf16.gmra.mrb[0].mxu0 %v3756
      %v3914 = vpop.f32.mrb[0].mxu0
      %v3915 = vadd.f32 %v2639, %v3914
      %v3916 = vpop.f32.mrb[0].mxu0
      %v3917 = vadd.f32 %v2643, %v3916
      %v3918 = vpop.f32.mrb[0].mxu0
      %v3919 = vadd.f32 %v2639, %v3918
      %v3920 = vpop.f32.mrb[0].mxu0
      %v3921 = vadd.f32 %v2643, %v3920
      %3922 = vmatprep.mubr.bf16.mxu0 0
      %3923 = vmatmul.mubr.bf16.gmra.mrb[0].mxu0 %v3759
      %v3924 = vpop.f32.mrb[0].mxu0
      %v3925 = vadd.f32 %v2639, %v3924
      %v3926 = vpop.f32.mrb[0].mxu0
      %v3927 = vadd.f32 %v2643, %v3926
      %v3928 = vpop.f32.mrb[0].mxu0
      %v3929 = vadd.f32 %v2639, %v3928
      %v3930 = vpop.f32.mrb[0].mxu0
      %v3931 = vadd.f32 %v2643, %v3930
      %3932 = vmatprep.mubr.bf16.mxu0 0
      %3933 = vmatmul.mubr.bf16.gmra.mrb[0].mxu0 %v3762
      %v3934 = vpop.f32.mrb[0].mxu0
      %v3935 = vadd.f32 %v2639, %v3934
      %v3936 = vpop.f32.mrb[0].mxu0
      %v3937 = vadd.f32 %v2643, %v3936
      %v3938 = vpop.f32.mrb[0].mxu0
      %v3939 = vadd.f32 %v2639, %v3938
      %v3940 = vpop.f32.mrb[0].mxu0
      %v3941 = vadd.f32 %v2643, %v3940
      %3942 = vmatprep.mubr.bf16.mxu0 0
      %3943 = vmatmul.mubr.bf16.gmra.mrb[0].mxu0 %v3765
      %v3944 = vpop.f32.mrb[0].mxu0
      %v3945 = vadd.f32 %v2639, %v3944
      %v3946 = vpop.f32.mrb[0].mxu0
      %v3947 = vadd.f32 %v2643, %v3946
      %v3948 = vpop.f32.mrb[0].mxu0
      %v3949 = vadd.f32 %v2639, %v3948
      %v3950 = vpop.f32.mrb[0].mxu0
      %v3951 = vadd.f32 %v2643, %v3950
      %3952 = vmatprep.mubr.bf16.mxu0 0
      %3953 = vmatmul.mubr.bf16.gmra.mrb[0].mxu0 %v3768
      %v3954 = vpop.f32.mrb[0].mxu0
      %v3955 = vadd.f32 %v2639, %v3954
      %v3956 = vpop.f32.mrb[0].mxu0
      %v3957 = vadd.f32 %v2643, %v3956
      %v3958 = vpop.f32.mrb[0].mxu0
      %v3959 = vadd.f32 %v2639, %v3958
      %v3960 = vpop.f32.mrb[0].mxu0
      %v3961 = vadd.f32 %v2643, %v3960
      %3962 = vdwg.mxu0
      %v3963 = vmax.f32 %v3805, %v3807
      %3964 = vmax.xlane.f32.xlu0 %v3963
      %v3965 = vpop.xlane.xlu0 %3964
      %v3966 = vmax.f32 %v3809, %v3811
      %3967 = vmax.xlane.f32.xlu0 %v3966
      %v3968 = vpop.xlane.xlu0 %3967
      %v3969 = vmax.f32 %v3815, %v3817
      %3970 = vmax.xlane.f32.xlu0 %v3969
      %v3971 = vpop.xlane.xlu0 %3970
      %v3972 = vmax.f32 %v3819, %v3821
      %3973 = vmax.xlane.f32.xlu0 %v3972
      %v3974 = vpop.xlane.xlu0 %3973
      %v3975 = vmax.f32 %v3825, %v3827
      %3976 = vmax.xlane.f32.xlu0 %v3975
      %v3977 = vpop.xlane.xlu0 %3976
      %v3978 = vmax.f32 %v3829, %v3831
      %3979 = vmax.xlane.f32.xlu0 %v3978
      %v3980 = vpop.xlane.xlu0 %3979
      %v3981 = vmax.f32 %v3835, %v3837
      %3982 = vmax.xlane.f32.xlu0 %v3981
      %v3983 = vpop.xlane.xlu0 %3982
      %v3984 = vmax.f32 %v3839, %v3841
      %3985 = vmax.xlane.f32.xlu0 %v3984
      %v3986 = vpop.xlane.xlu0 %3985
      %v3987 = vmax.f32 %v3845, %v3847
      %3988 = vmax.xlane.f32.xlu0 %v3987
      %v3989 = vpop.xlane.xlu0 %3988
      %v3990 = vmax.f32 %v3849, %v3851
      %3991 = vmax.xlane.f32.xlu0 %v3990
      %v3992 = vpop.xlane.xlu0 %3991
      %v3993 = vmax.f32 %v3855, %v3857
      %3994 = vmax.xlane.f32.xlu0 %v3993
      %v3995 = vpop.xlane.xlu0 %3994
      %v3996 = vmax.f32 %v3859, %v3861
      %3997 = vmax.xlane.f32.xlu0 %v3996
      %v3998 = vpop.xlane.xlu0 %3997
      %v3999 = vmax.f32 %v3865, %v3867
      %4000 = vmax.xlane.f32.xlu0 %v3999
      %v4001 = vpop.xlane.xlu0 %4000
      %v4002 = vmax.f32 %v3869, %v3871
      %4003 = vmax.xlane.f32.xlu0 %v4002
      %v4004 = vpop.xlane.xlu0 %4003
      %v4005 = vmax.f32 %v3875, %v3877
      %4006 = vmax.xlane.f32.xlu0 %v4005
      %v4007 = vpop.xlane.xlu0 %4006
      %v4008 = vmax.f32 %v3879, %v3881
      %4009 = vmax.xlane.f32.xlu0 %v4008
      %v4010 = vpop.xlane.xlu0 %4009
      %v4011 = vmax.f32 %v3885, %v3887
      %4012 = vmax.xlane.f32.xlu0 %v4011
      %v4013 = vpop.xlane.xlu0 %4012
      %v4014 = vmax.f32 %v3889, %v3891
      %4015 = vmax.xlane.f32.xlu0 %v4014
      %v4016 = vpop.xlane.xlu0 %4015
      %v4017 = vmax.f32 %v3895, %v3897
      %4018 = vmax.xlane.f32.xlu0 %v4017
      %v4019 = vpop.xlane.xlu0 %4018
      %v4020 = vmax.f32 %v3899, %v3901
      %4021 = vmax.xlane.f32.xlu0 %v4020
      %v4022 = vpop.xlane.xlu0 %4021
      %v4023 = vmax.f32 %v3905, %v3907
      %4024 = vmax.xlane.f32.xlu0 %v4023
      %v4025 = vpop.xlane.xlu0 %4024
      %v4026 = vmax.f32 %v3909, %v3911
      %4027 = vmax.xlane.f32.xlu0 %v4026
      %v4028 = vpop.xlane.xlu0 %4027
      %v4029 = vmax.f32 %v3915, %v3917
      %4030 = vmax.xlane.f32.xlu0 %v4029
      %v4031 = vpop.xlane.xlu0 %4030
      %v4032 = vmax.f32 %v3919, %v3921
      %4033 = vmax.xlane.f32.xlu0 %v4032
      %v4034 = vpop.xlane.xlu0 %4033
      %v4035 = vmax.f32 %v3925, %v3927
      %4036 = vmax.xlane.f32.xlu0 %v4035
      %v4037 = vpop.xlane.xlu0 %4036
      %v4038 = vmax.f32 %v3929, %v3931
      %4039 = vmax.xlane.f32.xlu0 %v4038
      %v4040 = vpop.xlane.xlu0 %4039
      %v4041 = vmax.f32 %v3935, %v3937
      %4042 = vmax.xlane.f32.xlu0 %v4041
      %v4043 = vpop.xlane.xlu0 %4042
      %v4044 = vmax.f32 %v3939, %v3941
      %4045 = vmax.xlane.f32.xlu0 %v4044
      %v4046 = vpop.xlane.xlu0 %4045
      %v4047 = vmax.f32 %v3945, %v3947
      %4048 = vmax.xlane.f32.xlu0 %v4047
      %v4049 = vpop.xlane.xlu0 %4048
      %v4050 = vmax.f32 %v3949, %v3951
      %4051 = vmax.xlane.f32.xlu0 %v4050
      %v4052 = vpop.xlane.xlu0 %4051
      %v4053 = vmax.f32 %v3955, %v3957
      %4054 = vmax.xlane.f32.xlu0 %v4053
      %v4055 = vpop.xlane.xlu0 %4054
      %v4056 = vmax.f32 %v3959, %v3961
      %4057 = vmax.xlane.f32.xlu0 %v4056
      %v4058 = vpop.xlane.xlu0 %4057
      %v4059 = vsub.f32 %v3805, %v3965
      %v4060 = vsub.f32 %v3807, %v3965
      %v4061 = vsub.f32 %v3809, %v3968
      %v4062 = vsub.f32 %v3811, %v3968
      %v4063 = vsub.f32 %v3815, %v3971
      %v4064 = vsub.f32 %v3817, %v3971
      %v4065 = vsub.f32 %v3819, %v3974
      %v4066 = vsub.f32 %v3821, %v3974
      %v4067 = vsub.f32 %v3825, %v3977
      %v4068 = vsub.f32 %v3827, %v3977
      %v4069 = vsub.f32 %v3829, %v3980
      %v4070 = vsub.f32 %v3831, %v3980
      %v4071 = vsub.f32 %v3835, %v3983
      %v4072 = vsub.f32 %v3837, %v3983
      %v4073 = vsub.f32 %v3839, %v3986
      %v4074 = vsub.f32 %v3841, %v3986
      %v4075 = vsub.f32 %v3845, %v3989
      %v4076 = vsub.f32 %v3847, %v3989
      %v4077 = vsub.f32 %v3849, %v3992
      %v4078 = vsub.f32 %v3851, %v3992
      %v4079 = vsub.f32 %v3855, %v3995
      %v4080 = vsub.f32 %v3857, %v3995
      %v4081 = vsub.f32 %v3859, %v3998
      %v4082 = vsub.f32 %v3861, %v3998
      %v4083 = vsub.f32 %v3865, %v4001
      %v4084 = vsub.f32 %v3867, %v4001
      %v4085 = vsub.f32 %v3869, %v4004
      %v4086 = vsub.f32 %v3871, %v4004
      %v4087 = vsub.f32 %v3875, %v4007
      %v4088 = vsub.f32 %v3877, %v4007
      %v4089 = vsub.f32 %v3879, %v4010
      %v4090 = vsub.f32 %v3881, %v4010
      %v4091 = vsub.f32 %v3885, %v4013
      %v4092 = vsub.f32 %v3887, %v4013
      %v4093 = vsub.f32 %v3889, %v4016
      %v4094 = vsub.f32 %v3891, %v4016
      %v4095 = vsub.f32 %v3895, %v4019
      %v4096 = vsub.f32 %v3897, %v4019
      %v4097 = vsub.f32 %v3899, %v4022
      %v4098 = vsub.f32 %v3901, %v4022
      %v4099 = vsub.f32 %v3905, %v4025
      %v4100 = vsub.f32 %v3907, %v4025
      %v4101 = vsub.f32 %v3909, %v4028
      %v4102 = vsub.f32 %v3911, %v4028
      %v4103 = vsub.f32 %v3915, %v4031
      %v4104 = vsub.f32 %v3917, %v4031
      %v4105 = vsub.f32 %v3919, %v4034
      %v4106 = vsub.f32 %v3921, %v4034
      %v4107 = vsub.f32 %v3925, %v4037
      %v4108 = vsub.f32 %v3927, %v4037
      %v4109 = vsub.f32 %v3929, %v4040
      %v4110 = vsub.f32 %v3931, %v4040
      %v4111 = vsub.f32 %v3935, %v4043
      %v4112 = vsub.f32 %v3937, %v4043
      %v4113 = vsub.f32 %v3939, %v4046
      %v4114 = vsub.f32 %v3941, %v4046
      %v4115 = vsub.f32 %v3945, %v4049
      %v4116 = vsub.f32 %v3947, %v4049
      %v4117 = vsub.f32 %v3949, %v4052
      %v4118 = vsub.f32 %v3951, %v4052
      %v4119 = vsub.f32 %v3955, %v4055
      %v4120 = vsub.f32 %v3957, %v4055
      %v4121 = vsub.f32 %v3959, %v4058
      %v4122 = vsub.f32 %v3961, %v4058
      %v4123 = vmul.f32 %v4059, 1.442695
      %v4124 = vpow.pop %v4123
      %v4125 = vmul.f32 %v4060, 1.442695
      %v4126 = vpow.pop %v4125
      %v4127 = vmul.f32 %v4061, 1.442695
      %v4128 = vpow.pop %v4127
      %v4129 = vmul.f32 %v4062, 1.442695
      %v4130 = vpow.pop %v4129
      %v4131 = vmul.f32 %v4063, 1.442695
      %v4132 = vpow.pop %v4131
      %v4133 = vmul.f32 %v4064, 1.442695
      %v4134 = vpow.pop %v4133
      %v4135 = vmul.f32 %v4065, 1.442695
      %v4136 = vpow.pop %v4135
      %v4137 = vmul.f32 %v4066, 1.442695
      %v4138 = vpow.pop %v4137
      %v4139 = vmul.f32 %v4067, 1.442695
      %v4140 = vpow.pop %v4139
      %v4141 = vmul.f32 %v4068, 1.442695
      %v4142 = vpow.pop %v4141
      %v4143 = vmul.f32 %v4069, 1.442695
      %v4144 = vpow.pop %v4143
      %v4145 = vmul.f32 %v4070, 1.442695
      %v4146 = vpow.pop %v4145
      %v4147 = vmul.f32 %v4071, 1.442695
      %v4148 = vpow.pop %v4147
      %v4149 = vmul.f32 %v4072, 1.442695
      %v4150 = vpow.pop %v4149
      %v4151 = vmul.f32 %v4073, 1.442695
      %v4152 = vpow.pop %v4151
      %v4153 = vmul.f32 %v4074, 1.442695
      %v4154 = vpow.pop %v4153
      %v4155 = vmul.f32 %v4075, 1.442695
      %v4156 = vpow.pop %v4155
      %v4157 = vmul.f32 %v4076, 1.442695
      %v4158 = vpow.pop %v4157
      %v4159 = vmul.f32 %v4077, 1.442695
      %v4160 = vpow.pop %v4159
      %v4161 = vmul.f32 %v4078, 1.442695
      %v4162 = vpow.pop %v4161
      %v4163 = vmul.f32 %v4079, 1.442695
      %v4164 = vpow.pop %v4163
      %v4165 = vmul.f32 %v4080, 1.442695
      %v4166 = vpow.pop %v4165
      %v4167 = vmul.f32 %v4081, 1.442695
      %v4168 = vpow.pop %v4167
      %v4169 = vmul.f32 %v4082, 1.442695
      %v4170 = vpow.pop %v4169
      %v4171 = vmul.f32 %v4083, 1.442695
      %v4172 = vpow.pop %v4171
      %v4173 = vmul.f32 %v4084, 1.442695
      %v4174 = vpow.pop %v4173
      %v4175 = vmul.f32 %v4085, 1.442695
      %v4176 = vpow.pop %v4175
      %v4177 = vmul.f32 %v4086, 1.442695
      %v4178 = vpow.pop %v4177
      %v4179 = vmul.f32 %v4087, 1.442695
      %v4180 = vpow.pop %v4179
      %v4181 = vmul.f32 %v4088, 1.442695
      %v4182 = vpow.pop %v4181
      %v4183 = vmul.f32 %v4089, 1.442695
      %v4184 = vpow.pop %v4183
      %v4185 = vmul.f32 %v4090, 1.442695
      %v4186 = vpow.pop %v4185
      %v4187 = vmul.f32 %v4091, 1.442695
      %v4188 = vpow.pop %v4187
      %v4189 = vmul.f32 %v4092, 1.442695
      %v4190 = vpow.pop %v4189
      %v4191 = vmul.f32 %v4093, 1.442695
      %v4192 = vpow.pop %v4191
      %v4193 = vmul.f32 %v4094, 1.442695
      %v4194 = vpow.pop %v4193
      %v4195 = vmul.f32 %v4095, 1.442695
      %v4196 = vpow.pop %v4195
      %v4197 = vmul.f32 %v4096, 1.442695
      %v4198 = vpow.pop %v4197
      %v4199 = vmul.f32 %v4097, 1.442695
      %v4200 = vpow.pop %v4199
      %v4201 = vmul.f32 %v4098, 1.442695
      %v4202 = vpow.pop %v4201
      %v4203 = vmul.f32 %v4099, 1.442695
      %v4204 = vpow.pop %v4203
      %v4205 = vmul.f32 %v4100, 1.442695
      %v4206 = vpow.pop %v4205
      %v4207 = vmul.f32 %v4101, 1.442695
      %v4208 = vpow.pop %v4207
      %v4209 = vmul.f32 %v4102, 1.442695
      %v4210 = vpow.pop %v4209
      %v4211 = vmul.f32 %v4103, 1.442695
      %v4212 = vpow.pop %v4211
      %v4213 = vmul.f32 %v4104, 1.442695
      %v4214 = vpow.pop %v4213
      %v4215 = vmul.f32 %v4105, 1.442695
      %v4216 = vpow.pop %v4215
      %v4217 = vmul.f32 %v4106, 1.442695
      %v4218 = vpow.pop %v4217
      %v4219 = vmul.f32 %v4107, 1.442695
      %v4220 = vpow.pop %v4219
      %v4221 = vmul.f32 %v4108, 1.442695
      %v4222 = vpow.pop %v4221
      %v4223 = vmul.f32 %v4109, 1.442695
      %v4224 = vpow.pop %v4223
      %v4225 = vmul.f32 %v4110, 1.442695
      %v4226 = vpow.pop %v4225
      %v4227 = vmul.f32 %v4111, 1.442695
      %v4228 = vpow.pop %v4227
      %v4229 = vmul.f32 %v4112, 1.442695
      %v4230 = vpow.pop %v4229
      %v4231 = vmul.f32 %v4113, 1.442695
      %v4232 = vpow.pop %v4231
      %v4233 = vmul.f32 %v4114, 1.442695
      %v4234 = vpow.pop %v4233
      %v4235 = vmul.f32 %v4115, 1.442695
      %v4236 = vpow.pop %v4235
      %v4237 = vmul.f32 %v4116, 1.442695
      %v4238 = vpow.pop %v4237
      %v4239 = vmul.f32 %v4117, 1.442695
      %v4240 = vpow.pop %v4239
      %v4241 = vmul.f32 %v4118, 1.442695
      %v4242 = vpow.pop %v4241
      %v4243 = vmul.f32 %v4119, 1.442695
      %v4244 = vpow.pop %v4243
      %v4245 = vmul.f32 %v4120, 1.442695
      %v4246 = vpow.pop %v4245
      %v4247 = vmul.f32 %v4121, 1.442695
      %v4248 = vpow.pop %v4247
      %v4249 = vmul.f32 %v4122, 1.442695
      %v4250 = vpow.pop %v4249
      %v4251 = vadd.f32 %v4124, %v4126
      %4252 = vadd.xlane.f32.xlu0 %v4251
      %v4253 = vpop.xlane.xlu0 %4252
      %v4254 = vadd.f32 %v4128, %v4130
      %4255 = vadd.xlane.f32.xlu0 %v4254
      %v4256 = vpop.xlane.xlu0 %4255
      %v4257 = vadd.f32 %v4132, %v4134
      %4258 = vadd.xlane.f32.xlu0 %v4257
      %v4259 = vpop.xlane.xlu0 %4258
      %v4260 = vadd.f32 %v4136, %v4138
      %4261 = vadd.xlane.f32.xlu0 %v4260
      %v4262 = vpop.xlane.xlu0 %4261
      %v4263 = vadd.f32 %v4140, %v4142
      %4264 = vadd.xlane.f32.xlu0 %v4263
      %v4265 = vpop.xlane.xlu0 %4264
      %v4266 = vadd.f32 %v4144, %v4146
      %4267 = vadd.xlane.f32.xlu0 %v4266
      %v4268 = vpop.xlane.xlu0 %4267
      %v4269 = vadd.f32 %v4148, %v4150
      %4270 = vadd.xlane.f32.xlu0 %v4269
      %v4271 = vpop.xlane.xlu0 %4270
      %v4272 = vadd.f32 %v4152, %v4154
      %4273 = vadd.xlane.f32.xlu0 %v4272
      %v4274 = vpop.xlane.xlu0 %4273
      %v4275 = vadd.f32 %v4156, %v4158
      %4276 = vadd.xlane.f32.xlu0 %v4275
      %v4277 = vpop.xlane.xlu0 %4276
      %v4278 = vadd.f32 %v4160, %v4162
      %4279 = vadd.xlane.f32.xlu0 %v4278
      %v4280 = vpop.xlane.xlu0 %4279
      %v4281 = vadd.f32 %v4164, %v4166
      %4282 = vadd.xlane.f32.xlu0 %v4281
      %v4283 = vpop.xlane.xlu0 %4282
      %v4284 = vadd.f32 %v4168, %v4170
      %4285 = vadd.xlane.f32.xlu0 %v4284
      %v4286 = vpop.xlane.xlu0 %4285
      %v4287 = vadd.f32 %v4172, %v4174
      %4288 = vadd.xlane.f32.xlu0 %v4287
      %v4289 = vpop.xlane.xlu0 %4288
      %v4290 = vadd.f32 %v4176, %v4178
      %4291 = vadd.xlane.f32.xlu0 %v4290
      %v4292 = vpop.xlane.xlu0 %4291
      %v4293 = vadd.f32 %v4180, %v4182
      %4294 = vadd.xlane.f32.xlu0 %v4293
      %v4295 = vpop.xlane.xlu0 %4294
      %v4296 = vadd.f32 %v4184, %v4186
      %4297 = vadd.xlane.f32.xlu0 %v4296
      %v4298 = vpop.xlane.xlu0 %4297
      %v4299 = vadd.f32 %v4188, %v4190
      %4300 = vadd.xlane.f32.xlu0 %v4299
      %v4301 = vpop.xlane.xlu0 %4300
      %v4302 = vadd.f32 %v4192, %v4194
      %4303 = vadd.xlane.f32.xlu0 %v4302
      %v4304 = vpop.xlane.xlu0 %4303
      %v4305 = vadd.f32 %v4196, %v4198
      %4306 = vadd.xlane.f32.xlu0 %v4305
      %v4307 = vpop.xlane.xlu0 %4306
      %v4308 = vadd.f32 %v4200, %v4202
      %4309 = vadd.xlane.f32.xlu0 %v4308
      %v4310 = vpop.xlane.xlu0 %4309
      %v4311 = vadd.f32 %v4204, %v4206
      %4312 = vadd.xlane.f32.xlu0 %v4311
      %v4313 = vpop.xlane.xlu0 %4312
      %v4314 = vadd.f32 %v4208, %v4210
      %4315 = vadd.xlane.f32.xlu0 %v4314
      %v4316 = vpop.xlane.xlu0 %4315
      %v4317 = vadd.f32 %v4212, %v4214
      %4318 = vadd.xlane.f32.xlu0 %v4317
      %v4319 = vpop.xlane.xlu0 %4318
      %v4320 = vadd.f32 %v4216, %v4218
      %4321 = vadd.xlane.f32.xlu0 %v4320
      %v4322 = vpop.xlane.xlu0 %4321
      %v4323 = vadd.f32 %v4220, %v4222
      %4324 = vadd.xlane.f32.xlu0 %v4323
      %v4325 = vpop.xlane.xlu0 %4324
      %v4326 = vadd.f32 %v4224, %v4226
      %4327 = vadd.xlane.f32.xlu0 %v4326
      %v4328 = vpop.xlane.xlu0 %4327
      %v4329 = vadd.f32 %v4228, %v4230
      %4330 = vadd.xlane.f32.xlu0 %v4329
      %v4331 = vpop.xlane.xlu0 %4330
      %v4332 = vadd.f32 %v4232, %v4234
      %4333 = vadd.xlane.f32.xlu0 %v4332
      %v4334 = vpop.xlane.xlu0 %4333
      %v4335 = vadd.f32 %v4236, %v4238
      %4336 = vadd.xlane.f32.xlu0 %v4335
      %v4337 = vpop.xlane.xlu0 %4336
      %v4338 = vadd.f32 %v4240, %v4242
      %4339 = vadd.xlane.f32.xlu0 %v4338
      %v4340 = vpop.xlane.xlu0 %4339
      %v4341 = vadd.f32 %v4244, %v4246
      %4342 = vadd.xlane.f32.xlu0 %v4341
      %v4343 = vpop.xlane.xlu0 %4342
      %v4344 = vadd.f32 %v4248, %v4250
      %4345 = vadd.xlane.f32.xlu0 %v4344
      %v4346 = vpop.xlane.xlu0 %4345
      %v4347 = vrcp.pop %v4253
      %v4348 = vrcp.pop %v4256
      %v4349 = vrcp.pop %v4259
      %v4350 = vrcp.pop %v4262
      %v4351 = vrcp.pop %v4265
      %v4352 = vrcp.pop %v4268
      %v4353 = vrcp.pop %v4271
      %v4354 = vrcp.pop %v4274
      %v4355 = vrcp.pop %v4277
      %v4356 = vrcp.pop %v4280
      %v4357 = vrcp.pop %v4283
      %v4358 = vrcp.pop %v4286
      %v4359 = vrcp.pop %v4289
      %v4360 = vrcp.pop %v4292
      %v4361 = vrcp.pop %v4295
      %v4362 = vrcp.pop %v4298
      %v4363 = vrcp.pop %v4301
      %v4364 = vrcp.pop %v4304
      %v4365 = vrcp.pop %v4307
      %v4366 = vrcp.pop %v4310
      %v4367 = vrcp.pop %v4313
      %v4368 = vrcp.pop %v4316
      %v4369 = vrcp.pop %v4319
      %v4370 = vrcp.pop %v4322
      %v4371 = vrcp.pop %v4325
      %v4372 = vrcp.pop %v4328
      %v4373 = vrcp.pop %v4331
      %v4374 = vrcp.pop %v4334
      %v4375 = vrcp.pop %v4337
      %v4376 = vrcp.pop %v4340
      %v4377 = vrcp.pop %v4343
      %v4378 = vrcp.pop %v4346
      %v4379 = vmul.f32 %v4124, %v4347
      %v4380 = vmul.f32 %v4126, %v4347
      %v4381 = vmul.f32 %v4128, %v4348
      %v4382 = vmul.f32 %v4130, %v4348
      %v4383 = vmul.f32 %v4132, %v4349
      %v4384 = vmul.f32 %v4134, %v4349
      %v4385 = vmul.f32 %v4136, %v4350
      %v4386 = vmul.f32 %v4138, %v4350
      %v4387 = vmul.f32 %v4140, %v4351
      %v4388 = vmul.f32 %v4142, %v4351
      %v4389 = vmul.f32 %v4144, %v4352
      %v4390 = vmul.f32 %v4146, %v4352
      %v4391 = vmul.f32 %v4148, %v4353
      %v4392 = vmul.f32 %v4150, %v4353
      %v4393 = vmul.f32 %v4152, %v4354
      %v4394 = vmul.f32 %v4154, %v4354
      %v4395 = vmul.f32 %v4156, %v4355
      %v4396 = vmul.f32 %v4158, %v4355
      %v4397 = vmul.f32 %v4160, %v4356
      %v4398 = vmul.f32 %v4162, %v4356
      %v4399 = vmul.f32 %v4164, %v4357
      %v4400 = vmul.f32 %v4166, %v4357
      %v4401 = vmul.f32 %v4168, %v4358
      %v4402 = vmul.f32 %v4170, %v4358
      %v4403 = vmul.f32 %v4172, %v4359
      %v4404 = vmul.f32 %v4174, %v4359
      %v4405 = vmul.f32 %v4176, %v4360
      %v4406 = vmul.f32 %v4178, %v4360
      %v4407 = vmul.f32 %v4180, %v4361
      %v4408 = vmul.f32 %v4182, %v4361
      %v4409 = vmul.f32 %v4184, %v4362
      %v4410 = vmul.f32 %v4186, %v4362
      %v4411 = vmul.f32 %v4188, %v4363
      %v4412 = vmul.f32 %v4190, %v4363
      %v4413 = vmul.f32 %v4192, %v4364
      %v4414 = vmul.f32 %v4194, %v4364
      %v4415 = vmul.f32 %v4196, %v4365
      %v4416 = vmul.f32 %v4198, %v4365
      %v4417 = vmul.f32 %v4200, %v4366
      %v4418 = vmul.f32 %v4202, %v4366
      %v4419 = vmul.f32 %v4204, %v4367
      %v4420 = vmul.f32 %v4206, %v4367
      %v4421 = vmul.f32 %v4208, %v4368
      %v4422 = vmul.f32 %v4210, %v4368
      %v4423 = vmul.f32 %v4212, %v4369
      %v4424 = vmul.f32 %v4214, %v4369
      %v4425 = vmul.f32 %v4216, %v4370
      %v4426 = vmul.f32 %v4218, %v4370
      %v4427 = vmul.f32 %v4220, %v4371
      %v4428 = vmul.f32 %v4222, %v4371
      %v4429 = vmul.f32 %v4224, %v4372
      %v4430 = vmul.f32 %v4226, %v4372
      %v4431 = vmul.f32 %v4228, %v4373
      %v4432 = vmul.f32 %v4230, %v4373
      %v4433 = vmul.f32 %v4232, %v4374
      %v4434 = vmul.f32 %v4234, %v4374
      %v4435 = vmul.f32 %v4236, %v4375
      %v4436 = vmul.f32 %v4238, %v4375
      %v4437 = vmul.f32 %v4240, %v4376
      %v4438 = vmul.f32 %v4242, %v4376
      %v4439 = vmul.f32 %v4244, %v4377
      %v4440 = vmul.f32 %v4246, %v4377
      %v4441 = vmul.f32 %v4248, %v4378
      %v4442 = vmul.f32 %v4250, %v4378
      %v4443 = vpack.c.bf16 %v4381, %v4379
      %v4444 = vpack.c.bf16 %v4382, %v4380
      %v4445 = vpack.c.bf16 %v4385, %v4383
      %v4446 = vpack.c.bf16 %v4386, %v4384
      %v4447 = vpack.c.bf16 %v4389, %v4387
      %v4448 = vpack.c.bf16 %v4390, %v4388
      %v4449 = vpack.c.bf16 %v4393, %v4391
      %v4450 = vpack.c.bf16 %v4394, %v4392
      %v4451 = vpack.c.bf16 %v4397, %v4395
      %v4452 = vpack.c.bf16 %v4398, %v4396
      %v4453 = vpack.c.bf16 %v4401, %v4399
      %v4454 = vpack.c.bf16 %v4402, %v4400
      %v4455 = vpack.c.bf16 %v4405, %v4403
      %v4456 = vpack.c.bf16 %v4406, %v4404
      %v4457 = vpack.c.bf16 %v4409, %v4407
      %v4458 = vpack.c.bf16 %v4410, %v4408
      %v4459 = vpack.c.bf16 %v4413, %v4411
      %v4460 = vpack.c.bf16 %v4414, %v4412
      %v4461 = vpack.c.bf16 %v4417, %v4415
      %v4462 = vpack.c.bf16 %v4418, %v4416
      %v4463 = vpack.c.bf16 %v4421, %v4419
      %v4464 = vpack.c.bf16 %v4422, %v4420
      %v4465 = vpack.c.bf16 %v4425, %v4423
      %v4466 = vpack.c.bf16 %v4426, %v4424
      %v4467 = vpack.c.bf16 %v4429, %v4427
      %v4468 = vpack.c.bf16 %v4430, %v4428
      %v4469 = vpack.c.bf16 %v4433, %v4431
      %v4470 = vpack.c.bf16 %v4434, %v4432
      %v4471 = vpack.c.bf16 %v4437, %v4435
      %v4472 = vpack.c.bf16 %v4438, %v4436
      %v4473 = vpack.c.bf16 %v4441, %v4439
      %v4474 = vpack.c.bf16 %v4442, %v4440
      %4475 = vmatprep.subr.bf16.mxu0 0
      %4476 = vmatpush1.bf16.msra.mxu0 %v2555
      %4477 = vmatprep.subr.bf16.mxu0 0
      %4478 = vmatpush1.bf16.msra.mxu0 %v2556
      %4479 = vmatprep.subr.bf16.mxu0 0
      %4480 = vmatpush1.bf16.msra.mxu0 %v2557
      %4481 = vmatprep.subr.bf16.mxu0 0
      %4482 = vmatpush1.bf16.msra.mxu0 %v2558
      %4483 = vmatprep.subr.bf16.mxu0 0
      %4484 = vmatpush1.bf16.msra.mxu0 %v2559
      %4485 = vmatprep.subr.bf16.mxu0 0
      %4486 = vmatpush1.bf16.msra.mxu0 %v2560
      %4487 = vmatprep.subr.bf16.mxu0 0
      %4488 = vmatpush1.bf16.msra.mxu0 %v2561
      %4489 = vmatprep.subr.bf16.mxu0 0
      %4490 = vmatpush1.bf16.msra.mxu0 %v2562
      %4491 = vmatprep.subr.bf16.mxu0 0
      %4492 = vmatpush1.bf16.msra.mxu0 %v2563
      %4493 = vmatprep.subr.bf16.mxu0 0
      %4494 = vmatpush1.bf16.msra.mxu0 %v2564
      %4495 = vmatprep.subr.bf16.mxu0 0
      %4496 = vmatpush1.bf16.msra.mxu0 %v2565
      %4497 = vmatprep.subr.bf16.mxu0 0
      %4498 = vmatpush1.bf16.msra.mxu0 %v2566
      %4499 = vmatprep.subr.bf16.mxu0 0
      %4500 = vmatpush1.bf16.msra.mxu0 %v2567
      %4501 = vmatprep.subr.bf16.mxu0 0
      %4502 = vmatpush1.bf16.msra.mxu0 %v2568
      %4503 = vmatprep.subr.bf16.mxu0 0
      %4504 = vmatpush1.bf16.msra.mxu0 %v2569
      %4505 = vmatprep.subr.bf16.mxu0 0
      %4506 = vmatpush1.bf16.msra.mxu0 %v2570
      %4507 = vmatprep.mubr.bf16.mxu0 %v4444
      %4508 = vmatmul.mubr.bf16.gmra.mrb[0].mxu0 %v4443
      %v4509 = vpop.f32.mrb[0].mxu0
      %v4510 = vadd.f32 0.0, %v4509
      %v4511 = vpop.f32.mrb[0].mxu0
      %v4512 = vpop.f32.mrb[0].mxu0
      %v4513 = vadd.f32 0.0, %v4512
      %v4514 = vpop.f32.mrb[0].mxu0
      %4515 = vmatprep.mubr.bf16.mxu0 %v4446
      %4516 = vmatmul.mubr.bf16.gmra.mrb[0].mxu0 %v4445
      %v4517 = vpop.f32.mrb[0].mxu0
      %v4518 = vadd.f32 0.0, %v4517
      %v4519 = vpop.f32.mrb[0].mxu0
      %v4520 = vpop.f32.mrb[0].mxu0
      %v4521 = vadd.f32 0.0, %v4520
      %v4522 = vpop.f32.mrb[0].mxu0
      %4523 = vmatprep.mubr.bf16.mxu0 %v4448
      %4524 = vmatmul.mubr.bf16.gmra.mrb[0].mxu0 %v4447
      %v4525 = vpop.f32.mrb[0].mxu0
      %v4526 = vadd.f32 0.0, %v4525
      %v4527 = vpop.f32.mrb[0].mxu0
      %v4528 = vpop.f32.mrb[0].mxu0
      %v4529 = vadd.f32 0.0, %v4528
      %v4530 = vpop.f32.mrb[0].mxu0
      %4531 = vmatprep.mubr.bf16.mxu0 %v4450
      %4532 = vmatmul.mubr.bf16.gmra.mrb[0].mxu0 %v4449
      %v4533 = vpop.f32.mrb[0].mxu0
      %v4534 = vadd.f32 0.0, %v4533
      %v4535 = vpop.f32.mrb[0].mxu0
      %v4536 = vpop.f32.mrb[0].mxu0
      %v4537 = vadd.f32 0.0, %v4536
      %v4538 = vpop.f32.mrb[0].mxu0
      %4539 = vmatprep.mubr.bf16.mxu0 %v4452
      %4540 = vmatmul.mubr.bf16.gmra.mrb[0].mxu0 %v4451
      %v4541 = vpop.f32.mrb[0].mxu0
      %v4542 = vadd.f32 0.0, %v4541
      %v4543 = vpop.f32.mrb[0].mxu0
      %v4544 = vpop.f32.mrb[0].mxu0
      %v4545 = vadd.f32 0.0, %v4544
      %v4546 = vpop.f32.mrb[0].mxu0
      %4547 = vmatprep.mubr.bf16.mxu0 %v4454
      %4548 = vmatmul.mubr.bf16.gmra.mrb[0].mxu0 %v4453
      %v4549 = vpop.f32.mrb[0].mxu0
      %v4550 = vadd.f32 0.0, %v4549
      %v4551 = vpop.f32.mrb[0].mxu0
      %v4552 = vpop.f32.mrb[0].mxu0
      %v4553 = vadd.f32 0.0, %v4552
      %v4554 = vpop.f32.mrb[0].mxu0
      %4555 = vmatprep.mubr.bf16.mxu0 %v4456
      %4556 = vmatmul.mubr.bf16.gmra.mrb[0].mxu0 %v4455
      %v4557 = vpop.f32.mrb[0].mxu0
      %v4558 = vadd.f32 0.0, %v4557
      %v4559 = vpop.f32.mrb[0].mxu0
      %v4560 = vpop.f32.mrb[0].mxu0
      %v4561 = vadd.f32 0.0, %v4560
      %v4562 = vpop.f32.mrb[0].mxu0
      %4563 = vmatprep.mubr.bf16.mxu0 %v4458
      %4564 = vmatmul.mubr.bf16.gmra.mrb[0].mxu0 %v4457
      %v4565 = vpop.f32.mrb[0].mxu0
      %v4566 = vadd.f32 0.0, %v4565
      %v4567 = vpop.f32.mrb[0].mxu0
      %v4568 = vpop.f32.mrb[0].mxu0
      %v4569 = vadd.f32 0.0, %v4568
      %v4570 = vpop.f32.mrb[0].mxu0
      %4571 = vmatprep.mubr.bf16.mxu0 %v4460
      %4572 = vmatmul.mubr.bf16.gmra.mrb[0].mxu0 %v4459
      %v4573 = vpop.f32.mrb[0].mxu0
      %v4574 = vadd.f32 0.0, %v4573
      %v4575 = vpop.f32.mrb[0].mxu0
      %v4576 = vpop.f32.mrb[0].mxu0
      %v4577 = vadd.f32 0.0, %v4576
      %v4578 = vpop.f32.mrb[0].mxu0
      %4579 = vmatprep.mubr.bf16.mxu0 %v4462
      %4580 = vmatmul.mubr.bf16.gmra.mrb[0].mxu0 %v4461
      %v4581 = vpop.f32.mrb[0].mxu0
      %v4582 = vadd.f32 0.0, %v4581
      %v4583 = vpop.f32.mrb[0].mxu0
      %v4584 = vpop.f32.mrb[0].mxu0
      %v4585 = vadd.f32 0.0, %v4584
      %v4586 = vpop.f32.mrb[0].mxu0
      %4587 = vmatprep.mubr.bf16.mxu0 %v4464
      %4588 = vmatmul.mubr.bf16.gmra.mrb[0].mxu0 %v4463
      %v4589 = vpop.f32.mrb[0].mxu0
      %v4590 = vadd.f32 0.0, %v4589
      %v4591 = vpop.f32.mrb[0].mxu0
      %v4592 = vpop.f32.mrb[0].mxu0
      %v4593 = vadd.f32 0.0, %v4592
      %v4594 = vpop.f32.mrb[0].mxu0
      %4595 = vmatprep.mubr.bf16.mxu0 %v4466
      %4596 = vmatmul.mubr.bf16.gmra.mrb[0].mxu0 %v4465
      %v4597 = vpop.f32.mrb[0].mxu0
      %v4598 = vadd.f32 0.0, %v4597
      %v4599 = vpop.f32.mrb[0].mxu0
      %v4600 = vpop.f32.mrb[0].mxu0
      %v4601 = vadd.f32 0.0, %v4600
      %v4602 = vpop.f32.mrb[0].mxu0
      %4603 = vmatprep.mubr.bf16.mxu0 %v4468
      %4604 = vmatmul.mubr.bf16.gmra.mrb[0].mxu0 %v4467
      %v4605 = vpop.f32.mrb[0].mxu0
      %v4606 = vadd.f32 0.0, %v4605
      %v4607 = vpop.f32.mrb[0].mxu0
      %v4608 = vpop.f32.mrb[0].mxu0
      %v4609 = vadd.f32 0.0, %v4608
      %v4610 = vpop.f32.mrb[0].mxu0
      %4611 = vmatprep.mubr.bf16.mxu0 %v4470
      %4612 = vmatmul.mubr.bf16.gmra.mrb[0].mxu0 %v4469
      %v4613 = vpop.f32.mrb[0].mxu0
      %v4614 = vadd.f32 0.0, %v4613
      %v4615 = vpop.f32.mrb[0].mxu0
      %v4616 = vpop.f32.mrb[0].mxu0
      %v4617 = vadd.f32 0.0, %v4616
      %v4618 = vpop.f32.mrb[0].mxu0
      %4619 = vmatprep.mubr.bf16.mxu0 %v4472
      %4620 = vmatmul.mubr.bf16.gmra.mrb[0].mxu0 %v4471
      %v4621 = vpop.f32.mrb[0].mxu0
      %v4622 = vadd.f32 0.0, %v4621
      %v4623 = vpop.f32.mrb[0].mxu0
      %v4624 = vpop.f32.mrb[0].mxu0
      %v4625 = vadd.f32 0.0, %v4624
      %v4626 = vpop.f32.mrb[0].mxu0
      %4627 = vmatprep.mubr.bf16.mxu0 %v4474
      %4628 = vmatmul.mubr.bf16.gmra.mrb[0].mxu0 %v4473
      %v4629 = vpop.f32.mrb[0].mxu0
      %v4630 = vadd.f32 0.0, %v4629
      %v4631 = vpop.f32.mrb[0].mxu0
      %v4632 = vpop.f32.mrb[0].mxu0
      %v4633 = vadd.f32 0.0, %v4632
      %v4634 = vpop.f32.mrb[0].mxu0
      %4635 = vdwg.mxu0
      %v4636 = vsel %vm3673, %v4510, 0.0
      %v4637 = vsel %vm3673, %v4513, 0.0
      %v4638 = vsel %vm3673, %v4518, 0.0
      %v4639 = vsel %vm3673, %v4521, 0.0
      %v4640 = vsel %vm3673, %v4526, 0.0
      %v4641 = vsel %vm3673, %v4529, 0.0
      %v4642 = vsel %vm3673, %v4534, 0.0
      %v4643 = vsel %vm3673, %v4537, 0.0
      %v4644 = vsel %vm3673, %v4542, 0.0
      %v4645 = vsel %vm3673, %v4545, 0.0
      %v4646 = vsel %vm3673, %v4550, 0.0
      %v4647 = vsel %vm3673, %v4553, 0.0
      %v4648 = vsel %vm3673, %v4558, 0.0
      %v4649 = vsel %vm3673, %v4561, 0.0
      %v4650 = vsel %vm3673, %v4566, 0.0
      %v4651 = vsel %vm3673, %v4569, 0.0
      %v4652 = vsel %vm3673, %v4574, 0.0
      %v4653 = vsel %vm3673, %v4577, 0.0
      %v4654 = vsel %vm3673, %v4582, 0.0
      %v4655 = vsel %vm3673, %v4585, 0.0
      %v4656 = vsel %vm3673, %v4590, 0.0
      %v4657 = vsel %vm3673, %v4593, 0.0
      %v4658 = vsel %vm3673, %v4598, 0.0
      %v4659 = vsel %vm3673, %v4601, 0.0
      %v4660 = vsel %vm3673, %v4606, 0.0
      %v4661 = vsel %vm3673, %v4609, 0.0
      %v4662 = vsel %vm3673, %v4614, 0.0
      %v4663 = vsel %vm3673, %v4617, 0.0
      %v4664 = vsel %vm3673, %v4622, 0.0
      %v4665 = vsel %vm3673, %v4625, 0.0
      %v4666 = vsel %vm3673, %v4630, 0.0
      %v4667 = vsel %vm3673, %v4633, 0.0
      %v4668 = vadd.f32 %v3640, %v4636
      %v4669 = vadd.f32 %v3641, %v4637
      %v4670 = vadd.f32 %v3642, %v4638
      %v4671 = vadd.f32 %v3643, %v4639
      %v4672 = vadd.f32 %v3644, %v4640
      %v4673 = vadd.f32 %v3645, %v4641
      %v4674 = vadd.f32 %v3646, %v4642
      %v4675 = vadd.f32 %v3647, %v4643
      %v4676 = vadd.f32 %v3648, %v4644
      %v4677 = vadd.f32 %v3649, %v4645
      %v4678 = vadd.f32 %v3650, %v4646
      %v4679 = vadd.f32 %v3651, %v4647
      %v4680 = vadd.f32 %v3652, %v4648
      %v4681 = vadd.f32 %v3653, %v4649
      %v4682 = vadd.f32 %v3654, %v4650
      %v4683 = vadd.f32 %v3655, %v4651
      %v4684 = vadd.f32 %v3656, %v4652
      %v4685 = vadd.f32 %v3657, %v4653
      %v4686 = vadd.f32 %v3658, %v4654
      %v4687 = vadd.f32 %v3659, %v4655
      %v4688 = vadd.f32 %v3660, %v4656
      %v4689 = vadd.f32 %v3661, %v4657
      %v4690 = vadd.f32 %v3662, %v4658
      %v4691 = vadd.f32 %v3663, %v4659
      %v4692 = vadd.f32 %v3664, %v4660
      %v4693 = vadd.f32 %v3665, %v4661
      %v4694 = vadd.f32 %v3666, %v4662
      %v4695 = vadd.f32 %v3667, %v4663
      %v4696 = vadd.f32 %v3668, %v4664
      %v4697 = vadd.f32 %v3669, %v4665
      %v4698 = vadd.f32 %v3670, %v4666
      %v4699 = vadd.f32 %v3671, %v4667
      %v4700 = vsel %vm2581, 1, 0
      %vm4701 = vcmp.eq.s32.totalorder %v4700, 1
      %v4702 = vsel %vm4701, %v2507, 0.0
      %v4703 = vsel %vm4701, %v2508, 0.0
      %v4704 = vsel %vm4701, %v2509, 0.0
      %v4705 = vsel %vm4701, %v2510, 0.0
      %v4706 = vsel %vm4701, %v2511, 0.0
      %v4707 = vsel %vm4701, %v2512, 0.0
      %v4708 = vsel %vm4701, %v2513, 0.0
      %v4709 = vsel %vm4701, %v2514, 0.0
      %v4710 = vsel %vm4701, %v2515, 0.0
      %v4711 = vsel %vm4701, %v2516, 0.0
      %v4712 = vsel %vm4701, %v2517, 0.0
      %v4713 = vsel %vm4701, %v2518, 0.0
      %v4714 = vsel %vm4701, %v2519, 0.0
      %v4715 = vsel %vm4701, %v2520, 0.0
      %v4716 = vsel %vm4701, %v2521, 0.0
      %v4717 = vsel %vm4701, %v2522, 0.0
      %v4718 = vsel %vm4701, %v2523, 0.0
      %v4719 = vsel %vm4701, %v2524, 0.0
      %v4720 = vsel %vm4701, %v2525, 0.0
      %v4721 = vsel %vm4701, %v2526, 0.0
      %v4722 = vsel %vm4701, %v2527, 0.0
      %v4723 = vsel %vm4701, %v2528, 0.0
      %v4724 = vsel %vm4701, %v2529, 0.0
      %v4725 = vsel %vm4701, %v2530, 0.0
      %v4726 = vsel %vm4701, %v2531, 0.0
      %v4727 = vsel %vm4701, %v2532, 0.0
      %v4728 = vsel %vm4701, %v2533, 0.0
      %v4729 = vsel %vm4701, %v2534, 0.0
      %v4730 = vsel %vm4701, %v2535, 0.0
      %v4731 = vsel %vm4701, %v2536, 0.0
      %v4732 = vsel %vm4701, %v2537, 0.0
      %v4733 = vsel %vm4701, %v2538, 0.0
      %v4734 = vpack.c.bf16 %v4703, %v4702
      %v4735 = vpack.c.bf16 %v4705, %v4704
      %v4736 = vpack.c.bf16 %v4707, %v4706
      %v4737 = vpack.c.bf16 %v4709, %v4708
      %v4738 = vpack.c.bf16 %v4711, %v4710
      %v4739 = vpack.c.bf16 %v4713, %v4712
      %v4740 = vpack.c.bf16 %v4715, %v4714
      %v4741 = vpack.c.bf16 %v4717, %v4716
      %v4742 = vpack.c.bf16 %v4719, %v4718
      %v4743 = vpack.c.bf16 %v4721, %v4720
      %v4744 = vpack.c.bf16 %v4723, %v4722
      %v4745 = vpack.c.bf16 %v4725, %v4724
      %v4746 = vpack.c.bf16 %v4727, %v4726
      %v4747 = vpack.c.bf16 %v4729, %v4728
      %v4748 = vpack.c.bf16 %v4731, %v4730
      %v4749 = vpack.c.bf16 %v4733, %v4732
      %v4751 = vsel %vm1949, %v4734, 0
      %v4754 = vsel %vm1949, %v4735, 0
      %v4757 = vsel %vm1949, %v4736, 0
      %v4760 = vsel %vm1949, %v4737, 0
      %v4763 = vsel %vm1949, %v4738, 0
      %v4766 = vsel %vm1949, %v4739, 0
      %v4769 = vsel %vm1949, %v4740, 0
      %v4772 = vsel %vm1949, %v4741, 0
      %v4775 = vsel %vm1949, %v4742, 0
      %v4778 = vsel %vm1949, %v4743, 0
      %v4781 = vsel %vm1949, %v4744, 0
      %v4784 = vsel %vm1949, %v4745, 0
      %v4787 = vsel %vm1949, %v4746, 0
      %v4790 = vsel %vm1949, %v4747, 0
      %v4793 = vsel %vm1949, %v4748, 0
      %v4796 = vsel %vm1949, %v4749, 0
      %4798 = vmatprep.subr.bf16.mxu0 0
      %4799 = vmatpush1.bf16.xpose.msra.mxu0 %v2695
      %4800 = vmatprep.subr.bf16.mxu0 0
      %4801 = vmatpush1.bf16.xpose.msra.mxu0 %v2698
      %4802 = vmatprep.subr.bf16.mxu0 0
      %4803 = vmatpush1.bf16.xpose.msra.mxu0 %v2701
      %4804 = vmatprep.subr.bf16.mxu0 0
      %4805 = vmatpush1.bf16.xpose.msra.mxu0 %v2704
      %4806 = vmatprep.subr.bf16.mxu0 0
      %4807 = vmatpush1.bf16.xpose.msra.mxu0 %v2707
      %4808 = vmatprep.subr.bf16.mxu0 0
      %4809 = vmatpush1.bf16.xpose.msra.mxu0 %v2710
      %4810 = vmatprep.subr.bf16.mxu0 0
      %4811 = vmatpush1.bf16.xpose.msra.mxu0 %v2713
      %4812 = vmatprep.subr.bf16.mxu0 0
      %4813 = vmatpush1.bf16.xpose.msra.mxu0 %v2716
      %4814 = vmatprep.subr.bf16.mxu0 0
      %4815 = vmatpush1.bf16.xpose.msra.mxu0 %v2719
      %4816 = vmatprep.subr.bf16.mxu0 0
      %4817 = vmatpush1.bf16.xpose.msra.mxu0 %v2722
      %4818 = vmatprep.subr.bf16.mxu0 0
      %4819 = vmatpush1.bf16.xpose.msra.mxu0 %v2725
      %4820 = vmatprep.subr.bf16.mxu0 0
      %4821 = vmatpush1.bf16.xpose.msra.mxu0 %v2728
      %4822 = vmatprep.subr.bf16.mxu0 0
      %4823 = vmatpush1.bf16.xpose.msra.mxu0 %v2731
      %4824 = vmatprep.subr.bf16.mxu0 0
      %4825 = vmatpush1.bf16.xpose.msra.mxu0 %v2734
      %4826 = vmatprep.subr.bf16.mxu0 0
      %4827 = vmatpush1.bf16.xpose.msra.mxu0 %v2737
      %4828 = vmatprep.subr.bf16.mxu0 0
      %4829 = vmatpush1.bf16.xpose.msra.mxu0 %v2740
      %4830 = vmatprep.mubr.bf16.mxu0 0
      %4831 = vmatmul.mubr.bf16.gmra.mrb[0].mxu0 %v4751
      %v4832 = vpop.f32.mrb[0].mxu0
      %v4833 = vadd.f32 %v2639, %v4832
      %v4834 = vpop.f32.mrb[0].mxu0
      %v4835 = vadd.f32 %v2643, %v4834
      %v4836 = vpop.f32.mrb[0].mxu0
      %v4837 = vadd.f32 %v2639, %v4836
      %v4838 = vpop.f32.mrb[0].mxu0
      %v4839 = vadd.f32 %v2643, %v4838
      %4840 = vmatprep.mubr.bf16.mxu0 0
      %4841 = vmatmul.mubr.bf16.gmra.mrb[0].mxu0 %v4754
      %v4842 = vpop.f32.mrb[0].mxu0
      %v4843 = vadd.f32 %v2639, %v4842
      %v4844 = vpop.f32.mrb[0].mxu0
      %v4845 = vadd.f32 %v2643, %v4844
      %v4846 = vpop.f32.mrb[0].mxu0
      %v4847 = vadd.f32 %v2639, %v4846
      %v4848 = vpop.f32.mrb[0].mxu0
      %v4849 = vadd.f32 %v2643, %v4848
      %4850 = vmatprep.mubr.bf16.mxu0 0
      %4851 = vmatmul.mubr.bf16.gmra.mrb[0].mxu0 %v4757
      %v4852 = vpop.f32.mrb[0].mxu0
      %v4853 = vadd.f32 %v2639, %v4852
      %v4854 = vpop.f32.mrb[0].mxu0
      %v4855 = vadd.f32 %v2643, %v4854
      %v4856 = vpop.f32.mrb[0].mxu0
      %v4857 = vadd.f32 %v2639, %v4856
      %v4858 = vpop.f32.mrb[0].mxu0
      %v4859 = vadd.f32 %v2643, %v4858
      %4860 = vmatprep.mubr.bf16.mxu0 0
      %4861 = vmatmul.mubr.bf16.gmra.mrb[0].mxu0 %v4760
      %v4862 = vpop.f32.mrb[0].mxu0
      %v4863 = vadd.f32 %v2639, %v4862
      %v4864 = vpop.f32.mrb[0].mxu0
      %v4865 = vadd.f32 %v2643, %v4864
      %v4866 = vpop.f32.mrb[0].mxu0
      %v4867 = vadd.f32 %v2639, %v4866
      %v4868 = vpop.f32.mrb[0].mxu0
      %v4869 = vadd.f32 %v2643, %v4868
      %4870 = vmatprep.mubr.bf16.mxu0 0
      %4871 = vmatmul.mubr.bf16.gmra.mrb[0].mxu0 %v4763
      %v4872 = vpop.f32.mrb[0].mxu0
      %v4873 = vadd.f32 %v2639, %v4872
      %v4874 = vpop.f32.mrb[0].mxu0
      %v4875 = vadd.f32 %v2643, %v4874
      %v4876 = vpop.f32.mrb[0].mxu0
      %v4877 = vadd.f32 %v2639, %v4876
      %v4878 = vpop.f32.mrb[0].mxu0
      %v4879 = vadd.f32 %v2643, %v4878
      %4880 = vmatprep.mubr.bf16.mxu0 0
      %4881 = vmatmul.mubr.bf16.gmra.mrb[0].mxu0 %v4766
      %v4882 = vpop.f32.mrb[0].mxu0
      %v4883 = vadd.f32 %v2639, %v4882
      %v4884 = vpop.f32.mrb[0].mxu0
      %v4885 = vadd.f32 %v2643, %v4884
      %v4886 = vpop.f32.mrb[0].mxu0
      %v4887 = vadd.f32 %v2639, %v4886
      %v4888 = vpop.f32.mrb[0].mxu0
      %v4889 = vadd.f32 %v2643, %v4888
      %4890 = vmatprep.mubr.bf16.mxu0 0
      %4891 = vmatmul.mubr.bf16.gmra.mrb[0].mxu0 %v4769
      %v4892 = vpop.f32.mrb[0].mxu0
      %v4893 = vadd.f32 %v2639, %v4892
      %v4894 = vpop.f32.mrb[0].mxu0
      %v4895 = vadd.f32 %v2643, %v4894
      %v4896 = vpop.f32.mrb[0].mxu0
      %v4897 = vadd.f32 %v2639, %v4896
      %v4898 = vpop.f32.mrb[0].mxu0
      %v4899 = vadd.f32 %v2643, %v4898
      %4900 = vmatprep.mubr.bf16.mxu0 0
      %4901 = vmatmul.mubr.bf16.gmra.mrb[0].mxu0 %v4772
      %v4902 = vpop.f32.mrb[0].mxu0
      %v4903 = vadd.f32 %v2639, %v4902
      %v4904 = vpop.f32.mrb[0].mxu0
      %v4905 = vadd.f32 %v2643, %v4904
      %v4906 = vpop.f32.mrb[0].mxu0
      %v4907 = vadd.f32 %v2639, %v4906
      %v4908 = vpop.f32.mrb[0].mxu0
      %v4909 = vadd.f32 %v2643, %v4908
      %4910 = vmatprep.mubr.bf16.mxu0 0
      %4911 = vmatmul.mubr.bf16.gmra.mrb[0].mxu0 %v4775
      %v4912 = vpop.f32.mrb[0].mxu0
      %v4913 = vadd.f32 %v2639, %v4912
      %v4914 = vpop.f32.mrb[0].mxu0
      %v4915 = vadd.f32 %v2643, %v4914
      %v4916 = vpop.f32.mrb[0].mxu0
      %v4917 = vadd.f32 %v2639, %v4916
      %v4918 = vpop.f32.mrb[0].mxu0
      %v4919 = vadd.f32 %v2643, %v4918
      %4920 = vmatprep.mubr.bf16.mxu0 0
      %4921 = vmatmul.mubr.bf16.gmra.mrb[0].mxu0 %v4778
      %v4922 = vpop.f32.mrb[0].mxu0
      %v4923 = vadd.f32 %v2639, %v4922
      %v4924 = vpop.f32.mrb[0].mxu0
      %v4925 = vadd.f32 %v2643, %v4924
      %v4926 = vpop.f32.mrb[0].mxu0
      %v4927 = vadd.f32 %v2639, %v4926
      %v4928 = vpop.f32.mrb[0].mxu0
      %v4929 = vadd.f32 %v2643, %v4928
      %4930 = vmatprep.mubr.bf16.mxu0 0
      %4931 = vmatmul.mubr.bf16.gmra.mrb[0].mxu0 %v4781
      %v4932 = vpop.f32.mrb[0].mxu0
      %v4933 = vadd.f32 %v2639, %v4932
      %v4934 = vpop.f32.mrb[0].mxu0
      %v4935 = vadd.f32 %v2643, %v4934
      %v4936 = vpop.f32.mrb[0].mxu0
      %v4937 = vadd.f32 %v2639, %v4936
      %v4938 = vpop.f32.mrb[0].mxu0
      %v4939 = vadd.f32 %v2643, %v4938
      %4940 = vmatprep.mubr.bf16.mxu0 0
      %4941 = vmatmul.mubr.bf16.gmra.mrb[0].mxu0 %v4784
      %v4942 = vpop.f32.mrb[0].mxu0
      %v4943 = vadd.f32 %v2639, %v4942
      %v4944 = vpop.f32.mrb[0].mxu0
      %v4945 = vadd.f32 %v2643, %v4944
      %v4946 = vpop.f32.mrb[0].mxu0
      %v4947 = vadd.f32 %v2639, %v4946
      %v4948 = vpop.f32.mrb[0].mxu0
      %v4949 = vadd.f32 %v2643, %v4948
      %4950 = vmatprep.mubr.bf16.mxu0 0
      %4951 = vmatmul.mubr.bf16.gmra.mrb[0].mxu0 %v4787
      %v4952 = vpop.f32.mrb[0].mxu0
      %v4953 = vadd.f32 %v2639, %v4952
      %v4954 = vpop.f32.mrb[0].mxu0
      %v4955 = vadd.f32 %v2643, %v4954
      %v4956 = vpop.f32.mrb[0].mxu0
      %v4957 = vadd.f32 %v2639, %v4956
      %v4958 = vpop.f32.mrb[0].mxu0
      %v4959 = vadd.f32 %v2643, %v4958
      %4960 = vmatprep.mubr.bf16.mxu0 0
      %4961 = vmatmul.mubr.bf16.gmra.mrb[0].mxu0 %v4790
      %v4962 = vpop.f32.mrb[0].mxu0
      %v4963 = vadd.f32 %v2639, %v4962
      %v4964 = vpop.f32.mrb[0].mxu0
      %v4965 = vadd.f32 %v2643, %v4964
      %v4966 = vpop.f32.mrb[0].mxu0
      %v4967 = vadd.f32 %v2639, %v4966
      %v4968 = vpop.f32.mrb[0].mxu0
      %v4969 = vadd.f32 %v2643, %v4968
      %4970 = vmatprep.mubr.bf16.mxu0 0
      %4971 = vmatmul.mubr.bf16.gmra.mrb[0].mxu0 %v4793
      %v4972 = vpop.f32.mrb[0].mxu0
      %v4973 = vadd.f32 %v2639, %v4972
      %v4974 = vpop.f32.mrb[0].mxu0
      %v4975 = vadd.f32 %v2643, %v4974
      %v4976 = vpop.f32.mrb[0].mxu0
      %v4977 = vadd.f32 %v2639, %v4976
      %v4978 = vpop.f32.mrb[0].mxu0
      %v4979 = vadd.f32 %v2643, %v4978
      %4980 = vmatprep.mubr.bf16.mxu0 0
      %4981 = vmatmul.mubr.bf16.gmra.mrb[0].mxu0 %v4796
      %v4982 = vpop.f32.mrb[0].mxu0
      %v4983 = vadd.f32 %v2639, %v4982
      %v4984 = vpop.f32.mrb[0].mxu0
      %v4985 = vadd.f32 %v2643, %v4984
      %v4986 = vpop.f32.mrb[0].mxu0
      %v4987 = vadd.f32 %v2639, %v4986
      %v4988 = vpop.f32.mrb[0].mxu0
      %v4989 = vadd.f32 %v2643, %v4988
      %4990 = vdwg.mxu0
      %v4991 = vmax.f32 %v4833, %v4835
      %4992 = vmax.xlane.f32.xlu0 %v4991
      %v4993 = vpop.xlane.xlu0 %4992
      %v4994 = vmax.f32 %v4837, %v4839
      %4995 = vmax.xlane.f32.xlu0 %v4994
      %v4996 = vpop.xlane.xlu0 %4995
      %v4997 = vmax.f32 %v4843, %v4845
      %4998 = vmax.xlane.f32.xlu0 %v4997
      %v4999 = vpop.xlane.xlu0 %4998
      %v5000 = vmax.f32 %v4847, %v4849
      %5001 = vmax.xlane.f32.xlu0 %v5000
      %v5002 = vpop.xlane.xlu0 %5001
      %v5003 = vmax.f32 %v4853, %v4855
      %5004 = vmax.xlane.f32.xlu0 %v5003
      %v5005 = vpop.xlane.xlu0 %5004
      %v5006 = vmax.f32 %v4857, %v4859
      %5007 = vmax.xlane.f32.xlu0 %v5006
      %v5008 = vpop.xlane.xlu0 %5007
      %v5009 = vmax.f32 %v4863, %v4865
      %5010 = vmax.xlane.f32.xlu0 %v5009
      %v5011 = vpop.xlane.xlu0 %5010
      %v5012 = vmax.f32 %v4867, %v4869
      %5013 = vmax.xlane.f32.xlu0 %v5012
      %v5014 = vpop.xlane.xlu0 %5013
      %v5015 = vmax.f32 %v4873, %v4875
      %5016 = vmax.xlane.f32.xlu0 %v5015
      %v5017 = vpop.xlane.xlu0 %5016
      %v5018 = vmax.f32 %v4877, %v4879
      %5019 = vmax.xlane.f32.xlu0 %v5018
      %v5020 = vpop.xlane.xlu0 %5019
      %v5021 = vmax.f32 %v4883, %v4885
      %5022 = vmax.xlane.f32.xlu0 %v5021
      %v5023 = vpop.xlane.xlu0 %5022
      %v5024 = vmax.f32 %v4887, %v4889
      %5025 = vmax.xlane.f32.xlu0 %v5024
      %v5026 = vpop.xlane.xlu0 %5025
      %v5027 = vmax.f32 %v4893, %v4895
      %5028 = vmax.xlane.f32.xlu0 %v5027
      %v5029 = vpop.xlane.xlu0 %5028
      %v5030 = vmax.f32 %v4897, %v4899
      %5031 = vmax.xlane.f32.xlu0 %v5030
      %v5032 = vpop.xlane.xlu0 %5031
      %v5033 = vmax.f32 %v4903, %v4905
      %5034 = vmax.xlane.f32.xlu0 %v5033
      %v5035 = vpop.xlane.xlu0 %5034
      %v5036 = vmax.f32 %v4907, %v4909
      %5037 = vmax.xlane.f32.xlu0 %v5036
      %v5038 = vpop.xlane.xlu0 %5037
      %v5039 = vmax.f32 %v4913, %v4915
      %5040 = vmax.xlane.f32.xlu0 %v5039
      %v5041 = vpop.xlane.xlu0 %5040
      %v5042 = vmax.f32 %v4917, %v4919
      %5043 = vmax.xlane.f32.xlu0 %v5042
      %v5044 = vpop.xlane.xlu0 %5043
      %v5045 = vmax.f32 %v4923, %v4925
      %5046 = vmax.xlane.f32.xlu0 %v5045
      %v5047 = vpop.xlane.xlu0 %5046
      %v5048 = vmax.f32 %v4927, %v4929
      %5049 = vmax.xlane.f32.xlu0 %v5048
      %v5050 = vpop.xlane.xlu0 %5049
      %v5051 = vmax.f32 %v4933, %v4935
      %5052 = vmax.xlane.f32.xlu0 %v5051
      %v5053 = vpop.xlane.xlu0 %5052
      %v5054 = vmax.f32 %v4937, %v4939
      %5055 = vmax.xlane.f32.xlu0 %v5054
      %v5056 = vpop.xlane.xlu0 %5055
      %v5057 = vmax.f32 %v4943, %v4945
      %5058 = vmax.xlane.f32.xlu0 %v5057
      %v5059 = vpop.xlane.xlu0 %5058
      %v5060 = vmax.f32 %v4947, %v4949
      %5061 = vmax.xlane.f32.xlu0 %v5060
      %v5062 = vpop.xlane.xlu0 %5061
      %v5063 = vmax.f32 %v4953, %v4955
      %5064 = vmax.xlane.f32.xlu0 %v5063
      %v5065 = vpop.xlane.xlu0 %5064
      %v5066 = vmax.f32 %v4957, %v4959
      %5067 = vmax.xlane.f32.xlu0 %v5066
      %v5068 = vpop.xlane.xlu0 %5067
      %v5069 = vmax.f32 %v4963, %v4965
      %5070 = vmax.xlane.f32.xlu0 %v5069
      %v5071 = vpop.xlane.xlu0 %5070
      %v5072 = vmax.f32 %v4967, %v4969
      %5073 = vmax.xlane.f32.xlu0 %v5072
      %v5074 = vpop.xlane.xlu0 %5073
      %v5075 = vmax.f32 %v4973, %v4975
      %5076 = vmax.xlane.f32.xlu0 %v5075
      %v5077 = vpop.xlane.xlu0 %5076
      %v5078 = vmax.f32 %v4977, %v4979
      %5079 = vmax.xlane.f32.xlu0 %v5078
      %v5080 = vpop.xlane.xlu0 %5079
      %v5081 = vmax.f32 %v4983, %v4985
      %5082 = vmax.xlane.f32.xlu0 %v5081
      %v5083 = vpop.xlane.xlu0 %5082
      %v5084 = vmax.f32 %v4987, %v4989
      %5085 = vmax.xlane.f32.xlu0 %v5084
      %v5086 = vpop.xlane.xlu0 %5085
      %v5087 = vsub.f32 %v4833, %v4993
      %v5088 = vsub.f32 %v4835, %v4993
      %v5089 = vsub.f32 %v4837, %v4996
      %v5090 = vsub.f32 %v4839, %v4996
      %v5091 = vsub.f32 %v4843, %v4999
      %v5092 = vsub.f32 %v4845, %v4999
      %v5093 = vsub.f32 %v4847, %v5002
      %v5094 = vsub.f32 %v4849, %v5002
      %v5095 = vsub.f32 %v4853, %v5005
      %v5096 = vsub.f32 %v4855, %v5005
      %v5097 = vsub.f32 %v4857, %v5008
      %v5098 = vsub.f32 %v4859, %v5008
      %v5099 = vsub.f32 %v4863, %v5011
      %v5100 = vsub.f32 %v4865, %v5011
      %v5101 = vsub.f32 %v4867, %v5014
      %v5102 = vsub.f32 %v4869, %v5014
      %v5103 = vsub.f32 %v4873, %v5017
      %v5104 = vsub.f32 %v4875, %v5017
      %v5105 = vsub.f32 %v4877, %v5020
      %v5106 = vsub.f32 %v4879, %v5020
      %v5107 = vsub.f32 %v4883, %v5023
      %v5108 = vsub.f32 %v4885, %v5023
      %v5109 = vsub.f32 %v4887, %v5026
      %v5110 = vsub.f32 %v4889, %v5026
      %v5111 = vsub.f32 %v4893, %v5029
      %v5112 = vsub.f32 %v4895, %v5029
      %v5113 = vsub.f32 %v4897, %v5032
      %v5114 = vsub.f32 %v4899, %v5032
      %v5115 = vsub.f32 %v4903, %v5035
      %v5116 = vsub.f32 %v4905, %v5035
      %v5117 = vsub.f32 %v4907, %v5038
      %v5118 = vsub.f32 %v4909, %v5038
      %v5119 = vsub.f32 %v4913, %v5041
      %v5120 = vsub.f32 %v4915, %v5041
      %v5121 = vsub.f32 %v4917, %v5044
      %v5122 = vsub.f32 %v4919, %v5044
      %v5123 = vsub.f32 %v4923, %v5047
      %v5124 = vsub.f32 %v4925, %v5047
      %v5125 = vsub.f32 %v4927, %v5050
      %v5126 = vsub.f32 %v4929, %v5050
      %v5127 = vsub.f32 %v4933, %v5053
      %v5128 = vsub.f32 %v4935, %v5053
      %v5129 = vsub.f32 %v4937, %v5056
      %v5130 = vsub.f32 %v4939, %v5056
      %v5131 = vsub.f32 %v4943, %v5059
      %v5132 = vsub.f32 %v4945, %v5059
      %v5133 = vsub.f32 %v4947, %v5062
      %v5134 = vsub.f32 %v4949, %v5062
      %v5135 = vsub.f32 %v4953, %v5065
      %v5136 = vsub.f32 %v4955, %v5065
      %v5137 = vsub.f32 %v4957, %v5068
      %v5138 = vsub.f32 %v4959, %v5068
      %v5139 = vsub.f32 %v4963, %v5071
      %v5140 = vsub.f32 %v4965, %v5071
      %v5141 = vsub.f32 %v4967, %v5074
      %v5142 = vsub.f32 %v4969, %v5074
      %v5143 = vsub.f32 %v4973, %v5077
      %v5144 = vsub.f32 %v4975, %v5077
      %v5145 = vsub.f32 %v4977, %v5080
      %v5146 = vsub.f32 %v4979, %v5080
      %v5147 = vsub.f32 %v4983, %v5083
      %v5148 = vsub.f32 %v4985, %v5083
      %v5149 = vsub.f32 %v4987, %v5086
      %v5150 = vsub.f32 %v4989, %v5086
      %v5151 = vmul.f32 %v5087, 1.442695
      %v5152 = vpow.pop %v5151
      %v5153 = vmul.f32 %v5088, 1.442695
      %v5154 = vpow.pop %v5153
      %v5155 = vmul.f32 %v5089, 1.442695
      %v5156 = vpow.pop %v5155
      %v5157 = vmul.f32 %v5090, 1.442695
      %v5158 = vpow.pop %v5157
      %v5159 = vmul.f32 %v5091, 1.442695
      %v5160 = vpow.pop %v5159
      %v5161 = vmul.f32 %v5092, 1.442695
      %v5162 = vpow.pop %v5161
      %v5163 = vmul.f32 %v5093, 1.442695
      %v5164 = vpow.pop %v5163
      %v5165 = vmul.f32 %v5094, 1.442695
      %v5166 = vpow.pop %v5165
      %v5167 = vmul.f32 %v5095, 1.442695
      %v5168 = vpow.pop %v5167
      %v5169 = vmul.f32 %v5096, 1.442695
      %v5170 = vpow.pop %v5169
      %v5171 = vmul.f32 %v5097, 1.442695
      %v5172 = vpow.pop %v5171
      %v5173 = vmul.f32 %v5098, 1.442695
      %v5174 = vpow.pop %v5173
      %v5175 = vmul.f32 %v5099, 1.442695
      %v5176 = vpow.pop %v5175
      %v5177 = vmul.f32 %v5100, 1.442695
      %v5178 = vpow.pop %v5177
      %v5179 = vmul.f32 %v5101, 1.442695
      %v5180 = vpow.pop %v5179
      %v5181 = vmul.f32 %v5102, 1.442695
      %v5182 = vpow.pop %v5181
      %v5183 = vmul.f32 %v5103, 1.442695
      %v5184 = vpow.pop %v5183
      %v5185 = vmul.f32 %v5104, 1.442695
      %v5186 = vpow.pop %v5185
      %v5187 = vmul.f32 %v5105, 1.442695
      %v5188 = vpow.pop %v5187
      %v5189 = vmul.f32 %v5106, 1.442695
      %v5190 = vpow.pop %v5189
      %v5191 = vmul.f32 %v5107, 1.442695
      %v5192 = vpow.pop %v5191
      %v5193 = vmul.f32 %v5108, 1.442695
      %v5194 = vpow.pop %v5193
      %v5195 = vmul.f32 %v5109, 1.442695
      %v5196 = vpow.pop %v5195
      %v5197 = vmul.f32 %v5110, 1.442695
      %v5198 = vpow.pop %v5197
      %v5199 = vmul.f32 %v5111, 1.442695
      %v5200 = vpow.pop %v5199
      %v5201 = vmul.f32 %v5112, 1.442695
      %v5202 = vpow.pop %v5201
      %v5203 = vmul.f32 %v5113, 1.442695
      %v5204 = vpow.pop %v5203
      %v5205 = vmul.f32 %v5114, 1.442695
      %v5206 = vpow.pop %v5205
      %v5207 = vmul.f32 %v5115, 1.442695
      %v5208 = vpow.pop %v5207
      %v5209 = vmul.f32 %v5116, 1.442695
      %v5210 = vpow.pop %v5209
      %v5211 = vmul.f32 %v5117, 1.442695
      %v5212 = vpow.pop %v5211
      %v5213 = vmul.f32 %v5118, 1.442695
      %v5214 = vpow.pop %v5213
      %v5215 = vmul.f32 %v5119, 1.442695
      %v5216 = vpow.pop %v5215
      %v5217 = vmul.f32 %v5120, 1.442695
      %v5218 = vpow.pop %v5217
      %v5219 = vmul.f32 %v5121, 1.442695
      %v5220 = vpow.pop %v5219
      %v5221 = vmul.f32 %v5122, 1.442695
      %v5222 = vpow.pop %v5221
      %v5223 = vmul.f32 %v5123, 1.442695
      %v5224 = vpow.pop %v5223
      %v5225 = vmul.f32 %v5124, 1.442695
      %v5226 = vpow.pop %v5225
      %v5227 = vmul.f32 %v5125, 1.442695
      %v5228 = vpow.pop %v5227
      %v5229 = vmul.f32 %v5126, 1.442695
      %v5230 = vpow.pop %v5229
      %v5231 = vmul.f32 %v5127, 1.442695
      %v5232 = vpow.pop %v5231
      %v5233 = vmul.f32 %v5128, 1.442695
      %v5234 = vpow.pop %v5233
      %v5235 = vmul.f32 %v5129, 1.442695
      %v5236 = vpow.pop %v5235
      %v5237 = vmul.f32 %v5130, 1.442695
      %v5238 = vpow.pop %v5237
      %v5239 = vmul.f32 %v5131, 1.442695
      %v5240 = vpow.pop %v5239
      %v5241 = vmul.f32 %v5132, 1.442695
      %v5242 = vpow.pop %v5241
      %v5243 = vmul.f32 %v5133, 1.442695
      %v5244 = vpow.pop %v5243
      %v5245 = vmul.f32 %v5134, 1.442695
      %v5246 = vpow.pop %v5245
      %v5247 = vmul.f32 %v5135, 1.442695
      %v5248 = vpow.pop %v5247
      %v5249 = vmul.f32 %v5136, 1.442695
      %v5250 = vpow.pop %v5249
      %v5251 = vmul.f32 %v5137, 1.442695
      %v5252 = vpow.pop %v5251
      %v5253 = vmul.f32 %v5138, 1.442695
      %v5254 = vpow.pop %v5253
      %v5255 = vmul.f32 %v5139, 1.442695
      %v5256 = vpow.pop %v5255
      %v5257 = vmul.f32 %v5140, 1.442695
      %v5258 = vpow.pop %v5257
      %v5259 = vmul.f32 %v5141, 1.442695
      %v5260 = vpow.pop %v5259
      %v5261 = vmul.f32 %v5142, 1.442695
      %v5262 = vpow.pop %v5261
      %v5263 = vmul.f32 %v5143, 1.442695
      %v5264 = vpow.pop %v5263
      %v5265 = vmul.f32 %v5144, 1.442695
      %v5266 = vpow.pop %v5265
      %v5267 = vmul.f32 %v5145, 1.442695
      %v5268 = vpow.pop %v5267
      %v5269 = vmul.f32 %v5146, 1.442695
      %v5270 = vpow.pop %v5269
      %v5271 = vmul.f32 %v5147, 1.442695
      %v5272 = vpow.pop %v5271
      %v5273 = vmul.f32 %v5148, 1.442695
      %v5274 = vpow.pop %v5273
      %v5275 = vmul.f32 %v5149, 1.442695
      %v5276 = vpow.pop %v5275
      %v5277 = vmul.f32 %v5150, 1.442695
      %v5278 = vpow.pop %v5277
      %v5279 = vadd.f32 %v5152, %v5154
      %5280 = vadd.xlane.f32.xlu0 %v5279
      %v5281 = vpop.xlane.xlu0 %5280
      %v5282 = vadd.f32 %v5156, %v5158
      %5283 = vadd.xlane.f32.xlu0 %v5282
      %v5284 = vpop.xlane.xlu0 %5283
      %v5285 = vadd.f32 %v5160, %v5162
      %5286 = vadd.xlane.f32.xlu0 %v5285
      %v5287 = vpop.xlane.xlu0 %5286
      %v5288 = vadd.f32 %v5164, %v5166
      %5289 = vadd.xlane.f32.xlu0 %v5288
      %v5290 = vpop.xlane.xlu0 %5289
      %v5291 = vadd.f32 %v5168, %v5170
      %5292 = vadd.xlane.f32.xlu0 %v5291
      %v5293 = vpop.xlane.xlu0 %5292
      %v5294 = vadd.f32 %v5172, %v5174
      %5295 = vadd.xlane.f32.xlu0 %v5294
      %v5296 = vpop.xlane.xlu0 %5295
      %v5297 = vadd.f32 %v5176, %v5178
      %5298 = vadd.xlane.f32.xlu0 %v5297
      %v5299 = vpop.xlane.xlu0 %5298
      %v5300 = vadd.f32 %v5180, %v5182
      %5301 = vadd.xlane.f32.xlu0 %v5300
      %v5302 = vpop.xlane.xlu0 %5301
      %v5303 = vadd.f32 %v5184, %v5186
      %5304 = vadd.xlane.f32.xlu0 %v5303
      %v5305 = vpop.xlane.xlu0 %5304
      %v5306 = vadd.f32 %v5188, %v5190
      %5307 = vadd.xlane.f32.xlu0 %v5306
      %v5308 = vpop.xlane.xlu0 %5307
      %v5309 = vadd.f32 %v5192, %v5194
      %5310 = vadd.xlane.f32.xlu0 %v5309
      %v5311 = vpop.xlane.xlu0 %5310
      %v5312 = vadd.f32 %v5196, %v5198
      %5313 = vadd.xlane.f32.xlu0 %v5312
      %v5314 = vpop.xlane.xlu0 %5313
      %v5315 = vadd.f32 %v5200, %v5202
      %5316 = vadd.xlane.f32.xlu0 %v5315
      %v5317 = vpop.xlane.xlu0 %5316
      %v5318 = vadd.f32 %v5204, %v5206
      %5319 = vadd.xlane.f32.xlu0 %v5318
      %v5320 = vpop.xlane.xlu0 %5319
      %v5321 = vadd.f32 %v5208, %v5210
      %5322 = vadd.xlane.f32.xlu0 %v5321
      %v5323 = vpop.xlane.xlu0 %5322
      %v5324 = vadd.f32 %v5212, %v5214
      %5325 = vadd.xlane.f32.xlu0 %v5324
      %v5326 = vpop.xlane.xlu0 %5325
      %v5327 = vadd.f32 %v5216, %v5218
      %5328 = vadd.xlane.f32.xlu0 %v5327
      %v5329 = vpop.xlane.xlu0 %5328
      %v5330 = vadd.f32 %v5220, %v5222
      %5331 = vadd.xlane.f32.xlu0 %v5330
      %v5332 = vpop.xlane.xlu0 %5331
      %v5333 = vadd.f32 %v5224, %v5226
      %5334 = vadd.xlane.f32.xlu0 %v5333
      %v5335 = vpop.xlane.xlu0 %5334
      %v5336 = vadd.f32 %v5228, %v5230
      %5337 = vadd.xlane.f32.xlu0 %v5336
      %v5338 = vpop.xlane.xlu0 %5337
      %v5339 = vadd.f32 %v5232, %v5234
      %5340 = vadd.xlane.f32.xlu0 %v5339
      %v5341 = vpop.xlane.xlu0 %5340
      %v5342 = vadd.f32 %v5236, %v5238
      %5343 = vadd.xlane.f32.xlu0 %v5342
      %v5344 = vpop.xlane.xlu0 %5343
      %v5345 = vadd.f32 %v5240, %v5242
      %5346 = vadd.xlane.f32.xlu0 %v5345
      %v5347 = vpop.xlane.xlu0 %5346
      %v5348 = vadd.f32 %v5244, %v5246
      %5349 = vadd.xlane.f32.xlu0 %v5348
      %v5350 = vpop.xlane.xlu0 %5349
      %v5351 = vadd.f32 %v5248, %v5250
      %5352 = vadd.xlane.f32.xlu0 %v5351
      %v5353 = vpop.xlane.xlu0 %5352
      %v5354 = vadd.f32 %v5252, %v5254
      %5355 = vadd.xlane.f32.xlu0 %v5354
      %v5356 = vpop.xlane.xlu0 %5355
      %v5357 = vadd.f32 %v5256, %v5258
      %5358 = vadd.xlane.f32.xlu0 %v5357
      %v5359 = vpop.xlane.xlu0 %5358
      %v5360 = vadd.f32 %v5260, %v5262
      %5361 = vadd.xlane.f32.xlu0 %v5360
      %v5362 = vpop.xlane.xlu0 %5361
      %v5363 = vadd.f32 %v5264, %v5266
      %5364 = vadd.xlane.f32.xlu0 %v5363
      %v5365 = vpop.xlane.xlu0 %5364
      %v5366 = vadd.f32 %v5268, %v5270
      %5367 = vadd.xlane.f32.xlu0 %v5366
      %v5368 = vpop.xlane.xlu0 %5367
      %v5369 = vadd.f32 %v5272, %v5274
      %5370 = vadd.xlane.f32.xlu0 %v5369
      %v5371 = vpop.xlane.xlu0 %5370
      %v5372 = vadd.f32 %v5276, %v5278
      %5373 = vadd.xlane.f32.xlu0 %v5372
      %v5374 = vpop.xlane.xlu0 %5373
      %v5375 = vrcp.pop %v5281
      %v5376 = vrcp.pop %v5284
      %v5377 = vrcp.pop %v5287
      %v5378 = vrcp.pop %v5290
      %v5379 = vrcp.pop %v5293
      %v5380 = vrcp.pop %v5296
      %v5381 = vrcp.pop %v5299
      %v5382 = vrcp.pop %v5302
      %v5383 = vrcp.pop %v5305
      %v5384 = vrcp.pop %v5308
      %v5385 = vrcp.pop %v5311
      %v5386 = vrcp.pop %v5314
      %v5387 = vrcp.pop %v5317
      %v5388 = vrcp.pop %v5320
      %v5389 = vrcp.pop %v5323
      %v5390 = vrcp.pop %v5326
      %v5391 = vrcp.pop %v5329
      %v5392 = vrcp.pop %v5332
      %v5393 = vrcp.pop %v5335
      %v5394 = vrcp.pop %v5338
      %v5395 = vrcp.pop %v5341
      %v5396 = vrcp.pop %v5344
      %v5397 = vrcp.pop %v5347
      %v5398 = vrcp.pop %v5350
      %v5399 = vrcp.pop %v5353
      %v5400 = vrcp.pop %v5356
      %v5401 = vrcp.pop %v5359
      %v5402 = vrcp.pop %v5362
      %v5403 = vrcp.pop %v5365
      %v5404 = vrcp.pop %v5368
      %v5405 = vrcp.pop %v5371
      %v5406 = vrcp.pop %v5374
      %v5407 = vmul.f32 %v5152, %v5375
      %v5408 = vmul.f32 %v5154, %v5375
      %v5409 = vmul.f32 %v5156, %v5376
      %v5410 = vmul.f32 %v5158, %v5376
      %v5411 = vmul.f32 %v5160, %v5377
      %v5412 = vmul.f32 %v5162, %v5377
      %v5413 = vmul.f32 %v5164, %v5378
      %v5414 = vmul.f32 %v5166, %v5378
      %v5415 = vmul.f32 %v5168, %v5379
      %v5416 = vmul.f32 %v5170, %v5379
      %v5417 = vmul.f32 %v5172, %v5380
      %v5418 = vmul.f32 %v5174, %v5380
      %v5419 = vmul.f32 %v5176, %v5381
      %v5420 = vmul.f32 %v5178, %v5381
      %v5421 = vmul.f32 %v5180, %v5382
      %v5422 = vmul.f32 %v5182, %v5382
      %v5423 = vmul.f32 %v5184, %v5383
      %v5424 = vmul.f32 %v5186, %v5383
      %v5425 = vmul.f32 %v5188, %v5384
      %v5426 = vmul.f32 %v5190, %v5384
      %v5427 = vmul.f32 %v5192, %v5385
      %v5428 = vmul.f32 %v5194, %v5385
      %v5429 = vmul.f32 %v5196, %v5386
      %v5430 = vmul.f32 %v5198, %v5386
      %v5431 = vmul.f32 %v5200, %v5387
      %v5432 = vmul.f32 %v5202, %v5387
      %v5433 = vmul.f32 %v5204, %v5388
      %v5434 = vmul.f32 %v5206, %v5388
      %v5435 = vmul.f32 %v5208, %v5389
      %v5436 = vmul.f32 %v5210, %v5389
      %v5437 = vmul.f32 %v5212, %v5390
      %v5438 = vmul.f32 %v5214, %v5390
      %v5439 = vmul.f32 %v5216, %v5391
      %v5440 = vmul.f32 %v5218, %v5391
      %v5441 = vmul.f32 %v5220, %v5392
      %v5442 = vmul.f32 %v5222, %v5392
      %v5443 = vmul.f32 %v5224, %v5393
      %v5444 = vmul.f32 %v5226, %v5393
      %v5445 = vmul.f32 %v5228, %v5394
      %v5446 = vmul.f32 %v5230, %v5394
      %v5447 = vmul.f32 %v5232, %v5395
      %v5448 = vmul.f32 %v5234, %v5395
      %v5449 = vmul.f32 %v5236, %v5396
      %v5450 = vmul.f32 %v5238, %v5396
      %v5451 = vmul.f32 %v5240, %v5397
      %v5452 = vmul.f32 %v5242, %v5397
      %v5453 = vmul.f32 %v5244, %v5398
      %v5454 = vmul.f32 %v5246, %v5398
      %v5455 = vmul.f32 %v5248, %v5399
      %v5456 = vmul.f32 %v5250, %v5399
      %v5457 = vmul.f32 %v5252, %v5400
      %v5458 = vmul.f32 %v5254, %v5400
      %v5459 = vmul.f32 %v5256, %v5401
      %v5460 = vmul.f32 %v5258, %v5401
      %v5461 = vmul.f32 %v5260, %v5402
      %v5462 = vmul.f32 %v5262, %v5402
      %v5463 = vmul.f32 %v5264, %v5403
      %v5464 = vmul.f32 %v5266, %v5403
      %v5465 = vmul.f32 %v5268, %v5404
      %v5466 = vmul.f32 %v5270, %v5404
      %v5467 = vmul.f32 %v5272, %v5405
      %v5468 = vmul.f32 %v5274, %v5405
      %v5469 = vmul.f32 %v5276, %v5406
      %v5470 = vmul.f32 %v5278, %v5406
      %v5471 = vpack.c.bf16 %v5409, %v5407
      %v5472 = vpack.c.bf16 %v5410, %v5408
      %v5473 = vpack.c.bf16 %v5413, %v5411
      %v5474 = vpack.c.bf16 %v5414, %v5412
      %v5475 = vpack.c.bf16 %v5417, %v5415
      %v5476 = vpack.c.bf16 %v5418, %v5416
      %v5477 = vpack.c.bf16 %v5421, %v5419
      %v5478 = vpack.c.bf16 %v5422, %v5420
      %v5479 = vpack.c.bf16 %v5425, %v5423
      %v5480 = vpack.c.bf16 %v5426, %v5424
      %v5481 = vpack.c.bf16 %v5429, %v5427
      %v5482 = vpack.c.bf16 %v5430, %v5428
      %v5483 = vpack.c.bf16 %v5433, %v5431
      %v5484 = vpack.c.bf16 %v5434, %v5432
      %v5485 = vpack.c.bf16 %v5437, %v5435
      %v5486 = vpack.c.bf16 %v5438, %v5436
      %v5487 = vpack.c.bf16 %v5441, %v5439
      %v5488 = vpack.c.bf16 %v5442, %v5440
      %v5489 = vpack.c.bf16 %v5445, %v5443
      %v5490 = vpack.c.bf16 %v5446, %v5444
      %v5491 = vpack.c.bf16 %v5449, %v5447
      %v5492 = vpack.c.bf16 %v5450, %v5448
      %v5493 = vpack.c.bf16 %v5453, %v5451
      %v5494 = vpack.c.bf16 %v5454, %v5452
      %v5495 = vpack.c.bf16 %v5457, %v5455
      %v5496 = vpack.c.bf16 %v5458, %v5456
      %v5497 = vpack.c.bf16 %v5461, %v5459
      %v5498 = vpack.c.bf16 %v5462, %v5460
      %v5499 = vpack.c.bf16 %v5465, %v5463
      %v5500 = vpack.c.bf16 %v5466, %v5464
      %v5501 = vpack.c.bf16 %v5469, %v5467
      %v5502 = vpack.c.bf16 %v5470, %v5468
      %5503 = vmatprep.subr.bf16.mxu0 0
      %5504 = vmatpush1.bf16.msra.mxu0 %v2555
      %5505 = vmatprep.subr.bf16.mxu0 0
      %5506 = vmatpush1.bf16.msra.mxu0 %v2556
      %5507 = vmatprep.subr.bf16.mxu0 0
      %5508 = vmatpush1.bf16.msra.mxu0 %v2557
      %5509 = vmatprep.subr.bf16.mxu0 0
      %5510 = vmatpush1.bf16.msra.mxu0 %v2558
      %5511 = vmatprep.subr.bf16.mxu0 0
      %5512 = vmatpush1.bf16.msra.mxu0 %v2559
      %5513 = vmatprep.subr.bf16.mxu0 0
      %5514 = vmatpush1.bf16.msra.mxu0 %v2560
      %5515 = vmatprep.subr.bf16.mxu0 0
      %5516 = vmatpush1.bf16.msra.mxu0 %v2561
      %5517 = vmatprep.subr.bf16.mxu0 0
      %5518 = vmatpush1.bf16.msra.mxu0 %v2562
      %5519 = vmatprep.subr.bf16.mxu0 0
      %5520 = vmatpush1.bf16.msra.mxu0 %v2563
      %5521 = vmatprep.subr.bf16.mxu0 0
      %5522 = vmatpush1.bf16.msra.mxu0 %v2564
      %5523 = vmatprep.subr.bf16.mxu0 0
      %5524 = vmatpush1.bf16.msra.mxu0 %v2565
      %5525 = vmatprep.subr.bf16.mxu0 0
      %5526 = vmatpush1.bf16.msra.mxu0 %v2566
      %5527 = vmatprep.subr.bf16.mxu0 0
      %5528 = vmatpush1.bf16.msra.mxu0 %v2567
      %5529 = vmatprep.subr.bf16.mxu0 0
      %5530 = vmatpush1.bf16.msra.mxu0 %v2568
      %5531 = vmatprep.subr.bf16.mxu0 0
      %5532 = vmatpush1.bf16.msra.mxu0 %v2569
      %5533 = vmatprep.subr.bf16.mxu0 0
      %5534 = vmatpush1.bf16.msra.mxu0 %v2570
      %5535 = vmatprep.mubr.bf16.mxu0 %v5472
      %5536 = vmatmul.mubr.bf16.gmra.mrb[0].mxu0 %v5471
      %v5537 = vpop.f32.mrb[0].mxu0
      %v5538 = vadd.f32 0.0, %v5537
      %v5539 = vpop.f32.mrb[0].mxu0
      %v5540 = vpop.f32.mrb[0].mxu0
      %v5541 = vadd.f32 0.0, %v5540
      %v5542 = vpop.f32.mrb[0].mxu0
      %5543 = vmatprep.mubr.bf16.mxu0 %v5474
      %5544 = vmatmul.mubr.bf16.gmra.mrb[0].mxu0 %v5473
      %v5545 = vpop.f32.mrb[0].mxu0
      %v5546 = vadd.f32 0.0, %v5545
      %v5547 = vpop.f32.mrb[0].mxu0
      %v5548 = vpop.f32.mrb[0].mxu0
      %v5549 = vadd.f32 0.0, %v5548
      %v5550 = vpop.f32.mrb[0].mxu0
      %5551 = vmatprep.mubr.bf16.mxu0 %v5476
      %5552 = vmatmul.mubr.bf16.gmra.mrb[0].mxu0 %v5475
      %v5553 = vpop.f32.mrb[0].mxu0
      %v5554 = vadd.f32 0.0, %v5553
      %v5555 = vpop.f32.mrb[0].mxu0
      %v5556 = vpop.f32.mrb[0].mxu0
      %v5557 = vadd.f32 0.0, %v5556
      %v5558 = vpop.f32.mrb[0].mxu0
      %5559 = vmatprep.mubr.bf16.mxu0 %v5478
      %5560 = vmatmul.mubr.bf16.gmra.mrb[0].mxu0 %v5477
      %v5561 = vpop.f32.mrb[0].mxu0
      %v5562 = vadd.f32 0.0, %v5561
      %v5563 = vpop.f32.mrb[0].mxu0
      %v5564 = vpop.f32.mrb[0].mxu0
      %v5565 = vadd.f32 0.0, %v5564
      %v5566 = vpop.f32.mrb[0].mxu0
      %5567 = vmatprep.mubr.bf16.mxu0 %v5480
      %5568 = vmatmul.mubr.bf16.gmra.mrb[0].mxu0 %v5479
      %v5569 = vpop.f32.mrb[0].mxu0
      %v5570 = vadd.f32 0.0, %v5569
      %v5571 = vpop.f32.mrb[0].mxu0
      %v5572 = vpop.f32.mrb[0].mxu0
      %v5573 = vadd.f32 0.0, %v5572
      %v5574 = vpop.f32.mrb[0].mxu0
      %5575 = vmatprep.mubr.bf16.mxu0 %v5482
      %5576 = vmatmul.mubr.bf16.gmra.mrb[0].mxu0 %v5481
      %v5577 = vpop.f32.mrb[0].mxu0
      %v5578 = vadd.f32 0.0, %v5577
      %v5579 = vpop.f32.mrb[0].mxu0
      %v5580 = vpop.f32.mrb[0].mxu0
      %v5581 = vadd.f32 0.0, %v5580
      %v5582 = vpop.f32.mrb[0].mxu0
      %5583 = vmatprep.mubr.bf16.mxu0 %v5484
      %5584 = vmatmul.mubr.bf16.gmra.mrb[0].mxu0 %v5483
      %v5585 = vpop.f32.mrb[0].mxu0
      %v5586 = vadd.f32 0.0, %v5585
      %v5587 = vpop.f32.mrb[0].mxu0
      %v5588 = vpop.f32.mrb[0].mxu0
      %v5589 = vadd.f32 0.0, %v5588
      %v5590 = vpop.f32.mrb[0].mxu0
      %5591 = vmatprep.mubr.bf16.mxu0 %v5486
      %5592 = vmatmul.mubr.bf16.gmra.mrb[0].mxu0 %v5485
      %v5593 = vpop.f32.mrb[0].mxu0
      %v5594 = vadd.f32 0.0, %v5593
      %v5595 = vpop.f32.mrb[0].mxu0
      %v5596 = vpop.f32.mrb[0].mxu0
      %v5597 = vadd.f32 0.0, %v5596
      %v5598 = vpop.f32.mrb[0].mxu0
      %5599 = vmatprep.mubr.bf16.mxu0 %v5488
      %5600 = vmatmul.mubr.bf16.gmra.mrb[0].mxu0 %v5487
      %v5601 = vpop.f32.mrb[0].mxu0
      %v5602 = vadd.f32 0.0, %v5601
      %v5603 = vpop.f32.mrb[0].mxu0
      %v5604 = vpop.f32.mrb[0].mxu0
      %v5605 = vadd.f32 0.0, %v5604
      %v5606 = vpop.f32.mrb[0].mxu0
      %5607 = vmatprep.mubr.bf16.mxu0 %v5490
      %5608 = vmatmul.mubr.bf16.gmra.mrb[0].mxu0 %v5489
      %v5609 = vpop.f32.mrb[0].mxu0
      %v5610 = vadd.f32 0.0, %v5609
      %v5611 = vpop.f32.mrb[0].mxu0
      %v5612 = vpop.f32.mrb[0].mxu0
      %v5613 = vadd.f32 0.0, %v5612
      %v5614 = vpop.f32.mrb[0].mxu0
      %5615 = vmatprep.mubr.bf16.mxu0 %v5492
      %5616 = vmatmul.mubr.bf16.gmra.mrb[0].mxu0 %v5491
      %v5617 = vpop.f32.mrb[0].mxu0
      %v5618 = vadd.f32 0.0, %v5617
      %v5619 = vpop.f32.mrb[0].mxu0
      %v5620 = vpop.f32.mrb[0].mxu0
      %v5621 = vadd.f32 0.0, %v5620
      %v5622 = vpop.f32.mrb[0].mxu0
      %5623 = vmatprep.mubr.bf16.mxu0 %v5494
      %5624 = vmatmul.mubr.bf16.gmra.mrb[0].mxu0 %v5493
      %v5625 = vpop.f32.mrb[0].mxu0
      %v5626 = vadd.f32 0.0, %v5625
      %v5627 = vpop.f32.mrb[0].mxu0
      %v5628 = vpop.f32.mrb[0].mxu0
      %v5629 = vadd.f32 0.0, %v5628
      %v5630 = vpop.f32.mrb[0].mxu0
      %5631 = vmatprep.mubr.bf16.mxu0 %v5496
      %5632 = vmatmul.mubr.bf16.gmra.mrb[0].mxu0 %v5495
      %v5633 = vpop.f32.mrb[0].mxu0
      %v5634 = vadd.f32 0.0, %v5633
      %v5635 = vpop.f32.mrb[0].mxu0
      %v5636 = vpop.f32.mrb[0].mxu0
      %v5637 = vadd.f32 0.0, %v5636
      %v5638 = vpop.f32.mrb[0].mxu0
      %5639 = vmatprep.mubr.bf16.mxu0 %v5498
      %5640 = vmatmul.mubr.bf16.gmra.mrb[0].mxu0 %v5497
      %v5641 = vpop.f32.mrb[0].mxu0
      %v5642 = vadd.f32 0.0, %v5641
      %v5643 = vpop.f32.mrb[0].mxu0
      %v5644 = vpop.f32.mrb[0].mxu0
      %v5645 = vadd.f32 0.0, %v5644
      %v5646 = vpop.f32.mrb[0].mxu0
      %5647 = vmatprep.mubr.bf16.mxu0 %v5500
      %5648 = vmatmul.mubr.bf16.gmra.mrb[0].mxu0 %v5499
      %v5649 = vpop.f32.mrb[0].mxu0
      %v5650 = vadd.f32 0.0, %v5649
      %v5651 = vpop.f32.mrb[0].mxu0
      %v5652 = vpop.f32.mrb[0].mxu0
      %v5653 = vadd.f32 0.0, %v5652
      %v5654 = vpop.f32.mrb[0].mxu0
      %5655 = vmatprep.mubr.bf16.mxu0 %v5502
      %5656 = vmatmul.mubr.bf16.gmra.mrb[0].mxu0 %v5501
      %v5657 = vpop.f32.mrb[0].mxu0
      %v5658 = vadd.f32 0.0, %v5657
      %v5659 = vpop.f32.mrb[0].mxu0
      %v5660 = vpop.f32.mrb[0].mxu0
      %v5661 = vadd.f32 0.0, %v5660
      %v5662 = vpop.f32.mrb[0].mxu0
      %5663 = vdwg.mxu0
      %v5664 = vsel %vm4701, %v5538, 0.0
      %v5665 = vsel %vm4701, %v5541, 0.0
      %v5666 = vsel %vm4701, %v5546, 0.0
      %v5667 = vsel %vm4701, %v5549, 0.0
      %v5668 = vsel %vm4701, %v5554, 0.0
      %v5669 = vsel %vm4701, %v5557, 0.0
      %v5670 = vsel %vm4701, %v5562, 0.0
      %v5671 = vsel %vm4701, %v5565, 0.0
      %v5672 = vsel %vm4701, %v5570, 0.0
      %v5673 = vsel %vm4701, %v5573, 0.0
      %v5674 = vsel %vm4701, %v5578, 0.0
      %v5675 = vsel %vm4701, %v5581, 0.0
      %v5676 = vsel %vm4701, %v5586, 0.0
      %v5677 = vsel %vm4701, %v5589, 0.0
      %v5678 = vsel %vm4701, %v5594, 0.0
      %v5679 = vsel %vm4701, %v5597, 0.0
      %v5680 = vsel %vm4701, %v5602, 0.0
      %v5681 = vsel %vm4701, %v5605, 0.0
      %v5682 = vsel %vm4701, %v5610, 0.0
      %v5683 = vsel %vm4701, %v5613, 0.0
      %v5684 = vsel %vm4701, %v5618, 0.0
      %v5685 = vsel %vm4701, %v5621, 0.0
      %v5686 = vsel %vm4701, %v5626, 0.0
      %v5687 = vsel %vm4701, %v5629, 0.0
      %v5688 = vsel %vm4701, %v5634, 0.0
      %v5689 = vsel %vm4701, %v5637, 0.0
      %v5690 = vsel %vm4701, %v5642, 0.0
      %v5691 = vsel %vm4701, %v5645, 0.0
      %v5692 = vsel %vm4701, %v5650, 0.0
      %v5693 = vsel %vm4701, %v5653, 0.0
      %v5694 = vsel %vm4701, %v5658, 0.0
      %v5695 = vsel %vm4701, %v5661, 0.0
      %v5696 = vadd.f32 %v4668, %v5664
      %v5697 = vadd.f32 %v4669, %v5665
      %v5698 = vadd.f32 %v4670, %v5666
      %v5699 = vadd.f32 %v4671, %v5667
      %v5700 = vadd.f32 %v4672, %v5668
      %v5701 = vadd.f32 %v4673, %v5669
      %v5702 = vadd.f32 %v4674, %v5670
      %v5703 = vadd.f32 %v4675, %v5671
      %v5704 = vadd.f32 %v4676, %v5672
      %v5705 = vadd.f32 %v4677, %v5673
      %v5706 = vadd.f32 %v4678, %v5674
      %v5707 = vadd.f32 %v4679, %v5675
      %v5708 = vadd.f32 %v4680, %v5676
      %v5709 = vadd.f32 %v4681, %v5677
      %v5710 = vadd.f32 %v4682, %v5678
      %v5711 = vadd.f32 %v4683, %v5679
      %v5712 = vadd.f32 %v4684, %v5680
      %v5713 = vadd.f32 %v4685, %v5681
      %v5714 = vadd.f32 %v4686, %v5682
      %v5715 = vadd.f32 %v4687, %v5683
      %v5716 = vadd.f32 %v4688, %v5684
      %v5717 = vadd.f32 %v4689, %v5685
      %v5718 = vadd.f32 %v4690, %v5686
      %v5719 = vadd.f32 %v4691, %v5687
      %v5720 = vadd.f32 %v4692, %v5688
      %v5721 = vadd.f32 %v4693, %v5689
      %v5722 = vadd.f32 %v4694, %v5690
      %v5723 = vadd.f32 %v4695, %v5691
      %v5724 = vadd.f32 %v4696, %v5692
      %v5725 = vadd.f32 %v4697, %v5693
      %v5726 = vadd.f32 %v4698, %v5694
      %v5727 = vadd.f32 %v4699, %v5695
      %v5728 = vsel %vm2584, 1, 0
      %vm5729 = vcmp.eq.s32.totalorder %v5728, 1
      %v5730 = vsel %vm5729, %v2507, 0.0
      %v5731 = vsel %vm5729, %v2508, 0.0
      %v5732 = vsel %vm5729, %v2509, 0.0
      %v5733 = vsel %vm5729, %v2510, 0.0
      %v5734 = vsel %vm5729, %v2511, 0.0
      %v5735 = vsel %vm5729, %v2512, 0.0
      %v5736 = vsel %vm5729, %v2513, 0.0
      %v5737 = vsel %vm5729, %v2514, 0.0
      %v5738 = vsel %vm5729, %v2515, 0.0
      %v5739 = vsel %vm5729, %v2516, 0.0
      %v5740 = vsel %vm5729, %v2517, 0.0
      %v5741 = vsel %vm5729, %v2518, 0.0
      %v5742 = vsel %vm5729, %v2519, 0.0
      %v5743 = vsel %vm5729, %v2520, 0.0
      %v5744 = vsel %vm5729, %v2521, 0.0
      %v5745 = vsel %vm5729, %v2522, 0.0
      %v5746 = vsel %vm5729, %v2523, 0.0
      %v5747 = vsel %vm5729, %v2524, 0.0
      %v5748 = vsel %vm5729, %v2525, 0.0
      %v5749 = vsel %vm5729, %v2526, 0.0
      %v5750 = vsel %vm5729, %v2527, 0.0
      %v5751 = vsel %vm5729, %v2528, 0.0
      %v5752 = vsel %vm5729, %v2529, 0.0
      %v5753 = vsel %vm5729, %v2530, 0.0
      %v5754 = vsel %vm5729, %v2531, 0.0
      %v5755 = vsel %vm5729, %v2532, 0.0
      %v5756 = vsel %vm5729, %v2533, 0.0
      %v5757 = vsel %vm5729, %v2534, 0.0
      %v5758 = vsel %vm5729, %v2535, 0.0
      %v5759 = vsel %vm5729, %v2536, 0.0
      %v5760 = vsel %vm5729, %v2537, 0.0
      %v5761 = vsel %vm5729, %v2538, 0.0
      %v5762 = vpack.c.bf16 %v5731, %v5730
      %v5763 = vpack.c.bf16 %v5733, %v5732
      %v5764 = vpack.c.bf16 %v5735, %v5734
      %v5765 = vpack.c.bf16 %v5737, %v5736
      %v5766 = vpack.c.bf16 %v5739, %v5738
      %v5767 = vpack.c.bf16 %v5741, %v5740
      %v5768 = vpack.c.bf16 %v5743, %v5742
      %v5769 = vpack.c.bf16 %v5745, %v5744
      %v5770 = vpack.c.bf16 %v5747, %v5746
      %v5771 = vpack.c.bf16 %v5749, %v5748
      %v5772 = vpack.c.bf16 %v5751, %v5750
      %v5773 = vpack.c.bf16 %v5753, %v5752
      %v5774 = vpack.c.bf16 %v5755, %v5754
      %v5775 = vpack.c.bf16 %v5757, %v5756
      %v5776 = vpack.c.bf16 %v5759, %v5758
      %v5777 = vpack.c.bf16 %v5761, %v5760
      %v5779 = vsel %vm1949, %v5762, 0
      %v5782 = vsel %vm1949, %v5763, 0
      %v5785 = vsel %vm1949, %v5764, 0
      %v5788 = vsel %vm1949, %v5765, 0
      %v5791 = vsel %vm1949, %v5766, 0
      %v5794 = vsel %vm1949, %v5767, 0
      %v5797 = vsel %vm1949, %v5768, 0
      %v5800 = vsel %vm1949, %v5769, 0
      %v5803 = vsel %vm1949, %v5770, 0
      %v5806 = vsel %vm1949, %v5771, 0
      %v5809 = vsel %vm1949, %v5772, 0
      %v5812 = vsel %vm1949, %v5773, 0
      %v5815 = vsel %vm1949, %v5774, 0
      %v5818 = vsel %vm1949, %v5775, 0
      %v5821 = vsel %vm1949, %v5776, 0
      %v5824 = vsel %vm1949, %v5777, 0
      %5826 = vmatprep.subr.bf16.mxu0 0
      %5827 = vmatpush1.bf16.xpose.msra.mxu0 %v2695
      %5828 = vmatprep.subr.bf16.mxu0 0
      %5829 = vmatpush1.bf16.xpose.msra.mxu0 %v2698
      %5830 = vmatprep.subr.bf16.mxu0 0
      %5831 = vmatpush1.bf16.xpose.msra.mxu0 %v2701
      %5832 = vmatprep.subr.bf16.mxu0 0
      %5833 = vmatpush1.bf16.xpose.msra.mxu0 %v2704
      %5834 = vmatprep.subr.bf16.mxu0 0
      %5835 = vmatpush1.bf16.xpose.msra.mxu0 %v2707
      %5836 = vmatprep.subr.bf16.mxu0 0
      %5837 = vmatpush1.bf16.xpose.msra.mxu0 %v2710
      %5838 = vmatprep.subr.bf16.mxu0 0
      %5839 = vmatpush1.bf16.xpose.msra.mxu0 %v2713
      %5840 = vmatprep.subr.bf16.mxu0 0
      %5841 = vmatpush1.bf16.xpose.msra.mxu0 %v2716
      %5842 = vmatprep.subr.bf16.mxu0 0
      %5843 = vmatpush1.bf16.xpose.msra.mxu0 %v2719
      %5844 = vmatprep.subr.bf16.mxu0 0
      %5845 = vmatpush1.bf16.xpose.msra.mxu0 %v2722
      %5846 = vmatprep.subr.bf16.mxu0 0
      %5847 = vmatpush1.bf16.xpose.msra.mxu0 %v2725
      %5848 = vmatprep.subr.bf16.mxu0 0
      %5849 = vmatpush1.bf16.xpose.msra.mxu0 %v2728
      %5850 = vmatprep.subr.bf16.mxu0 0
      %5851 = vmatpush1.bf16.xpose.msra.mxu0 %v2731
      %5852 = vmatprep.subr.bf16.mxu0 0
      %5853 = vmatpush1.bf16.xpose.msra.mxu0 %v2734
      %5854 = vmatprep.subr.bf16.mxu0 0
      %5855 = vmatpush1.bf16.xpose.msra.mxu0 %v2737
      %5856 = vmatprep.subr.bf16.mxu0 0
      %5857 = vmatpush1.bf16.xpose.msra.mxu0 %v2740
      %5858 = vmatprep.mubr.bf16.mxu0 0
      %5859 = vmatmul.mubr.bf16.gmra.mrb[0].mxu0 %v5779
      %v5860 = vpop.f32.mrb[0].mxu0
      %v5861 = vadd.f32 %v2639, %v5860
      %v5862 = vpop.f32.mrb[0].mxu0
      %v5863 = vadd.f32 %v2643, %v5862
      %v5864 = vpop.f32.mrb[0].mxu0
      %v5865 = vadd.f32 %v2639, %v5864
      %v5866 = vpop.f32.mrb[0].mxu0
      %v5867 = vadd.f32 %v2643, %v5866
      %5868 = vmatprep.mubr.bf16.mxu0 0
      %5869 = vmatmul.mubr.bf16.gmra.mrb[0].mxu0 %v5782
      %v5870 = vpop.f32.mrb[0].mxu0
      %v5871 = vadd.f32 %v2639, %v5870
      %v5872 = vpop.f32.mrb[0].mxu0
      %v5873 = vadd.f32 %v2643, %v5872
      %v5874 = vpop.f32.mrb[0].mxu0
      %v5875 = vadd.f32 %v2639, %v5874
      %v5876 = vpop.f32.mrb[0].mxu0
      %v5877 = vadd.f32 %v2643, %v5876
      %5878 = vmatprep.mubr.bf16.mxu0 0
      %5879 = vmatmul.mubr.bf16.gmra.mrb[0].mxu0 %v5785
      %v5880 = vpop.f32.mrb[0].mxu0
      %v5881 = vadd.f32 %v2639, %v5880
      %v5882 = vpop.f32.mrb[0].mxu0
      %v5883 = vadd.f32 %v2643, %v5882
      %v5884 = vpop.f32.mrb[0].mxu0
      %v5885 = vadd.f32 %v2639, %v5884
      %v5886 = vpop.f32.mrb[0].mxu0
      %v5887 = vadd.f32 %v2643, %v5886
      %5888 = vmatprep.mubr.bf16.mxu0 0
      %5889 = vmatmul.mubr.bf16.gmra.mrb[0].mxu0 %v5788
      %v5890 = vpop.f32.mrb[0].mxu0
      %v5891 = vadd.f32 %v2639, %v5890
      %v5892 = vpop.f32.mrb[0].mxu0
      %v5893 = vadd.f32 %v2643, %v5892
      %v5894 = vpop.f32.mrb[0].mxu0
      %v5895 = vadd.f32 %v2639, %v5894
      %v5896 = vpop.f32.mrb[0].mxu0
      %v5897 = vadd.f32 %v2643, %v5896
      %5898 = vmatprep.mubr.bf16.mxu0 0
      %5899 = vmatmul.mubr.bf16.gmra.mrb[0].mxu0 %v5791
      %v5900 = vpop.f32.mrb[0].mxu0
      %v5901 = vadd.f32 %v2639, %v5900
      %v5902 = vpop.f32.mrb[0].mxu0
      %v5903 = vadd.f32 %v2643, %v5902
      %v5904 = vpop.f32.mrb[0].mxu0
      %v5905 = vadd.f32 %v2639, %v5904
      %v5906 = vpop.f32.mrb[0].mxu0
      %v5907 = vadd.f32 %v2643, %v5906
      %5908 = vmatprep.mubr.bf16.mxu0 0
      %5909 = vmatmul.mubr.bf16.gmra.mrb[0].mxu0 %v5794
      %v5910 = vpop.f32.mrb[0].mxu0
      %v5911 = vadd.f32 %v2639, %v5910
      %v5912 = vpop.f32.mrb[0].mxu0
      %v5913 = vadd.f32 %v2643, %v5912
      %v5914 = vpop.f32.mrb[0].mxu0
      %v5915 = vadd.f32 %v2639, %v5914
      %v5916 = vpop.f32.mrb[0].mxu0
      %v5917 = vadd.f32 %v2643, %v5916
      %5918 = vmatprep.mubr.bf16.mxu0 0
      %5919 = vmatmul.mubr.bf16.gmra.mrb[0].mxu0 %v5797
      %v5920 = vpop.f32.mrb[0].mxu0
      %v5921 = vadd.f32 %v2639, %v5920
      %v5922 = vpop.f32.mrb[0].mxu0
      %v5923 = vadd.f32 %v2643, %v5922
      %v5924 = vpop.f32.mrb[0].mxu0
      %v5925 = vadd.f32 %v2639, %v5924
      %v5926 = vpop.f32.mrb[0].mxu0
      %v5927 = vadd.f32 %v2643, %v5926
      %5928 = vmatprep.mubr.bf16.mxu0 0
      %5929 = vmatmul.mubr.bf16.gmra.mrb[0].mxu0 %v5800
      %v5930 = vpop.f32.mrb[0].mxu0
      %v5931 = vadd.f32 %v2639, %v5930
      %v5932 = vpop.f32.mrb[0].mxu0
      %v5933 = vadd.f32 %v2643, %v5932
      %v5934 = vpop.f32.mrb[0].mxu0
      %v5935 = vadd.f32 %v2639, %v5934
      %v5936 = vpop.f32.mrb[0].mxu0
      %v5937 = vadd.f32 %v2643, %v5936
      %5938 = vmatprep.mubr.bf16.mxu0 0
      %5939 = vmatmul.mubr.bf16.gmra.mrb[0].mxu0 %v5803
      %v5940 = vpop.f32.mrb[0].mxu0
      %v5941 = vadd.f32 %v2639, %v5940
      %v5942 = vpop.f32.mrb[0].mxu0
      %v5943 = vadd.f32 %v2643, %v5942
      %v5944 = vpop.f32.mrb[0].mxu0
      %v5945 = vadd.f32 %v2639, %v5944
      %v5946 = vpop.f32.mrb[0].mxu0
      %v5947 = vadd.f32 %v2643, %v5946
      %5948 = vmatprep.mubr.bf16.mxu0 0
      %5949 = vmatmul.mubr.bf16.gmra.mrb[0].mxu0 %v5806
      %v5950 = vpop.f32.mrb[0].mxu0
      %v5951 = vadd.f32 %v2639, %v5950
      %v5952 = vpop.f32.mrb[0].mxu0
      %v5953 = vadd.f32 %v2643, %v5952
      %v5954 = vpop.f32.mrb[0].mxu0
      %v5955 = vadd.f32 %v2639, %v5954
      %v5956 = vpop.f32.mrb[0].mxu0
      %v5957 = vadd.f32 %v2643, %v5956
      %5958 = vmatprep.mubr.bf16.mxu0 0
      %5959 = vmatmul.mubr.bf16.gmra.mrb[0].mxu0 %v5809
      %v5960 = vpop.f32.mrb[0].mxu0
      %v5961 = vadd.f32 %v2639, %v5960
      %v5962 = vpop.f32.mrb[0].mxu0
      %v5963 = vadd.f32 %v2643, %v5962
      %v5964 = vpop.f32.mrb[0].mxu0
      %v5965 = vadd.f32 %v2639, %v5964
      %v5966 = vpop.f32.mrb[0].mxu0
      %v5967 = vadd.f32 %v2643, %v5966
      %5968 = vmatprep.mubr.bf16.mxu0 0
      %5969 = vmatmul.mubr.bf16.gmra.mrb[0].mxu0 %v5812
      %v5970 = vpop.f32.mrb[0].mxu0
      %v5971 = vadd.f32 %v2639, %v5970
      %v5972 = vpop.f32.mrb[0].mxu0
      %v5973 = vadd.f32 %v2643, %v5972
      %v5974 = vpop.f32.mrb[0].mxu0
      %v5975 = vadd.f32 %v2639, %v5974
      %v5976 = vpop.f32.mrb[0].mxu0
      %v5977 = vadd.f32 %v2643, %v5976
      %5978 = vmatprep.mubr.bf16.mxu0 0
      %5979 = vmatmul.mubr.bf16.gmra.mrb[0].mxu0 %v5815
      %v5980 = vpop.f32.mrb[0].mxu0
      %v5981 = vadd.f32 %v2639, %v5980
      %v5982 = vpop.f32.mrb[0].mxu0
      %v5983 = vadd.f32 %v2643, %v5982
      %v5984 = vpop.f32.mrb[0].mxu0
      %v5985 = vadd.f32 %v2639, %v5984
      %v5986 = vpop.f32.mrb[0].mxu0
      %v5987 = vadd.f32 %v2643, %v5986
      %5988 = vmatprep.mubr.bf16.mxu0 0
      %5989 = vmatmul.mubr.bf16.gmra.mrb[0].mxu0 %v5818
      %v5990 = vpop.f32.mrb[0].mxu0
      %v5991 = vadd.f32 %v2639, %v5990
      %v5992 = vpop.f32.mrb[0].mxu0
      %v5993 = vadd.f32 %v2643, %v5992
      %v5994 = vpop.f32.mrb[0].mxu0
      %v5995 = vadd.f32 %v2639, %v5994
      %v5996 = vpop.f32.mrb[0].mxu0
      %v5997 = vadd.f32 %v2643, %v5996
      %5998 = vmatprep.mubr.bf16.mxu0 0
      %5999 = vmatmul.mubr.bf16.gmra.mrb[0].mxu0 %v5821
      %v6000 = vpop.f32.mrb[0].mxu0
      %v6001 = vadd.f32 %v2639, %v6000
      %v6002 = vpop.f32.mrb[0].mxu0
      %v6003 = vadd.f32 %v2643, %v6002
      %v6004 = vpop.f32.mrb[0].mxu0
      %v6005 = vadd.f32 %v2639, %v6004
      %v6006 = vpop.f32.mrb[0].mxu0
      %v6007 = vadd.f32 %v2643, %v6006
      %6008 = vmatprep.mubr.bf16.mxu0 0
      %6009 = vmatmul.mubr.bf16.gmra.mrb[0].mxu0 %v5824
      %v6010 = vpop.f32.mrb[0].mxu0
      %v6011 = vadd.f32 %v2639, %v6010
      %v6012 = vpop.f32.mrb[0].mxu0
      %v6013 = vadd.f32 %v2643, %v6012
      %v6014 = vpop.f32.mrb[0].mxu0
      %v6015 = vadd.f32 %v2639, %v6014
      %v6016 = vpop.f32.mrb[0].mxu0
      %v6017 = vadd.f32 %v2643, %v6016
      %6018 = vdwg.mxu0
      %v6019 = vmax.f32 %v5861, %v5863
      %6020 = vmax.xlane.f32.xlu0 %v6019
      %v6021 = vpop.xlane.xlu0 %6020
      %v6022 = vmax.f32 %v5865, %v5867
      %6023 = vmax.xlane.f32.xlu0 %v6022
      %v6024 = vpop.xlane.xlu0 %6023
      %v6025 = vmax.f32 %v5871, %v5873
      %6026 = vmax.xlane.f32.xlu0 %v6025
      %v6027 = vpop.xlane.xlu0 %6026
      %v6028 = vmax.f32 %v5875, %v5877
      %6029 = vmax.xlane.f32.xlu0 %v6028
      %v6030 = vpop.xlane.xlu0 %6029
      %v6031 = vmax.f32 %v5881, %v5883
      %6032 = vmax.xlane.f32.xlu0 %v6031
      %v6033 = vpop.xlane.xlu0 %6032
      %v6034 = vmax.f32 %v5885, %v5887
      %6035 = vmax.xlane.f32.xlu0 %v6034
      %v6036 = vpop.xlane.xlu0 %6035
      %v6037 = vmax.f32 %v5891, %v5893
      %6038 = vmax.xlane.f32.xlu0 %v6037
      %v6039 = vpop.xlane.xlu0 %6038
      %v6040 = vmax.f32 %v5895, %v5897
      %6041 = vmax.xlane.f32.xlu0 %v6040
      %v6042 = vpop.xlane.xlu0 %6041
      %v6043 = vmax.f32 %v5901, %v5903
      %6044 = vmax.xlane.f32.xlu0 %v6043
      %v6045 = vpop.xlane.xlu0 %6044
      %v6046 = vmax.f32 %v5905, %v5907
      %6047 = vmax.xlane.f32.xlu0 %v6046
      %v6048 = vpop.xlane.xlu0 %6047
      %v6049 = vmax.f32 %v5911, %v5913
      %6050 = vmax.xlane.f32.xlu0 %v6049
      %v6051 = vpop.xlane.xlu0 %6050
      %v6052 = vmax.f32 %v5915, %v5917
      %6053 = vmax.xlane.f32.xlu0 %v6052
      %v6054 = vpop.xlane.xlu0 %6053
      %v6055 = vmax.f32 %v5921, %v5923
      %6056 = vmax.xlane.f32.xlu0 %v6055
      %v6057 = vpop.xlane.xlu0 %6056
      %v6058 = vmax.f32 %v5925, %v5927
      %6059 = vmax.xlane.f32.xlu0 %v6058
      %v6060 = vpop.xlane.xlu0 %6059
      %v6061 = vmax.f32 %v5931, %v5933
      %6062 = vmax.xlane.f32.xlu0 %v6061
      %v6063 = vpop.xlane.xlu0 %6062
      %v6064 = vmax.f32 %v5935, %v5937
      %6065 = vmax.xlane.f32.xlu0 %v6064
      %v6066 = vpop.xlane.xlu0 %6065
      %v6067 = vmax.f32 %v5941, %v5943
      %6068 = vmax.xlane.f32.xlu0 %v6067
      %v6069 = vpop.xlane.xlu0 %6068
      %v6070 = vmax.f32 %v5945, %v5947
      %6071 = vmax.xlane.f32.xlu0 %v6070
      %v6072 = vpop.xlane.xlu0 %6071
      %v6073 = vmax.f32 %v5951, %v5953
      %6074 = vmax.xlane.f32.xlu0 %v6073
      %v6075 = vpop.xlane.xlu0 %6074
      %v6076 = vmax.f32 %v5955, %v5957
      %6077 = vmax.xlane.f32.xlu0 %v6076
      %v6078 = vpop.xlane.xlu0 %6077
      %v6079 = vmax.f32 %v5961, %v5963
      %6080 = vmax.xlane.f32.xlu0 %v6079
      %v6081 = vpop.xlane.xlu0 %6080
      %v6082 = vmax.f32 %v5965, %v5967
      %6083 = vmax.xlane.f32.xlu0 %v6082
      %v6084 = vpop.xlane.xlu0 %6083
      %v6085 = vmax.f32 %v5971, %v5973
      %6086 = vmax.xlane.f32.xlu0 %v6085
      %v6087 = vpop.xlane.xlu0 %6086
      %v6088 = vmax.f32 %v5975, %v5977
      %6089 = vmax.xlane.f32.xlu0 %v6088
      %v6090 = vpop.xlane.xlu0 %6089
      %v6091 = vmax.f32 %v5981, %v5983
      %6092 = vmax.xlane.f32.xlu0 %v6091
      %v6093 = vpop.xlane.xlu0 %6092
      %v6094 = vmax.f32 %v5985, %v5987
      %6095 = vmax.xlane.f32.xlu0 %v6094
      %v6096 = vpop.xlane.xlu0 %6095
      %v6097 = vmax.f32 %v5991, %v5993
      %6098 = vmax.xlane.f32.xlu0 %v6097
      %v6099 = vpop.xlane.xlu0 %6098
      %v6100 = vmax.f32 %v5995, %v5997
      %6101 = vmax.xlane.f32.xlu0 %v6100
      %v6102 = vpop.xlane.xlu0 %6101
      %v6103 = vmax.f32 %v6001, %v6003
      %6104 = vmax.xlane.f32.xlu0 %v6103
      %v6105 = vpop.xlane.xlu0 %6104
      %v6106 = vmax.f32 %v6005, %v6007
      %6107 = vmax.xlane.f32.xlu0 %v6106
      %v6108 = vpop.xlane.xlu0 %6107
      %v6109 = vmax.f32 %v6011, %v6013
      %6110 = vmax.xlane.f32.xlu0 %v6109
      %v6111 = vpop.xlane.xlu0 %6110
      %v6112 = vmax.f32 %v6015, %v6017
      %6113 = vmax.xlane.f32.xlu0 %v6112
      %v6114 = vpop.xlane.xlu0 %6113
      %v6115 = vsub.f32 %v5861, %v6021
      %v6116 = vsub.f32 %v5863, %v6021
      %v6117 = vsub.f32 %v5865, %v6024
      %v6118 = vsub.f32 %v5867, %v6024
      %v6119 = vsub.f32 %v5871, %v6027
      %v6120 = vsub.f32 %v5873, %v6027
      %v6121 = vsub.f32 %v5875, %v6030
      %v6122 = vsub.f32 %v5877, %v6030
      %v6123 = vsub.f32 %v5881, %v6033
      %v6124 = vsub.f32 %v5883, %v6033
      %v6125 = vsub.f32 %v5885, %v6036
      %v6126 = vsub.f32 %v5887, %v6036
      %v6127 = vsub.f32 %v5891, %v6039
      %v6128 = vsub.f32 %v5893, %v6039
      %v6129 = vsub.f32 %v5895, %v6042
      %v6130 = vsub.f32 %v5897, %v6042
      %v6131 = vsub.f32 %v5901, %v6045
      %v6132 = vsub.f32 %v5903, %v6045
      %v6133 = vsub.f32 %v5905, %v6048
      %v6134 = vsub.f32 %v5907, %v6048
      %v6135 = vsub.f32 %v5911, %v6051
      %v6136 = vsub.f32 %v5913, %v6051
      %v6137 = vsub.f32 %v5915, %v6054
      %v6138 = vsub.f32 %v5917, %v6054
      %v6139 = vsub.f32 %v5921, %v6057
      %v6140 = vsub.f32 %v5923, %v6057
      %v6141 = vsub.f32 %v5925, %v6060
      %v6142 = vsub.f32 %v5927, %v6060
      %v6143 = vsub.f32 %v5931, %v6063
      %v6144 = vsub.f32 %v5933, %v6063
      %v6145 = vsub.f32 %v5935, %v6066
      %v6146 = vsub.f32 %v5937, %v6066
      %v6147 = vsub.f32 %v5941, %v6069
      %v6148 = vsub.f32 %v5943, %v6069
      %v6149 = vsub.f32 %v5945, %v6072
      %v6150 = vsub.f32 %v5947, %v6072
      %v6151 = vsub.f32 %v5951, %v6075
      %v6152 = vsub.f32 %v5953, %v6075
      %v6153 = vsub.f32 %v5955, %v6078
      %v6154 = vsub.f32 %v5957, %v6078
      %v6155 = vsub.f32 %v5961, %v6081
      %v6156 = vsub.f32 %v5963, %v6081
      %v6157 = vsub.f32 %v5965, %v6084
      %v6158 = vsub.f32 %v5967, %v6084
      %v6159 = vsub.f32 %v5971, %v6087
      %v6160 = vsub.f32 %v5973, %v6087
      %v6161 = vsub.f32 %v5975, %v6090
      %v6162 = vsub.f32 %v5977, %v6090
      %v6163 = vsub.f32 %v5981, %v6093
      %v6164 = vsub.f32 %v5983, %v6093
      %v6165 = vsub.f32 %v5985, %v6096
      %v6166 = vsub.f32 %v5987, %v6096
      %v6167 = vsub.f32 %v5991, %v6099
      %v6168 = vsub.f32 %v5993, %v6099
      %v6169 = vsub.f32 %v5995, %v6102
      %v6170 = vsub.f32 %v5997, %v6102
      %v6171 = vsub.f32 %v6001, %v6105
      %v6172 = vsub.f32 %v6003, %v6105
      %v6173 = vsub.f32 %v6005, %v6108
      %v6174 = vsub.f32 %v6007, %v6108
      %v6175 = vsub.f32 %v6011, %v6111
      %v6176 = vsub.f32 %v6013, %v6111
      %v6177 = vsub.f32 %v6015, %v6114
      %v6178 = vsub.f32 %v6017, %v6114
      %v6179 = vmul.f32 %v6115, 1.442695
      %v6180 = vpow.pop %v6179
      %v6181 = vmul.f32 %v6116, 1.442695
      %v6182 = vpow.pop %v6181
      %v6183 = vmul.f32 %v6117, 1.442695
      %v6184 = vpow.pop %v6183
      %v6185 = vmul.f32 %v6118, 1.442695
      %v6186 = vpow.pop %v6185
      %v6187 = vmul.f32 %v6119, 1.442695
      %v6188 = vpow.pop %v6187
      %v6189 = vmul.f32 %v6120, 1.442695
      %v6190 = vpow.pop %v6189
      %v6191 = vmul.f32 %v6121, 1.442695
      %v6192 = vpow.pop %v6191
      %v6193 = vmul.f32 %v6122, 1.442695
      %v6194 = vpow.pop %v6193
      %v6195 = vmul.f32 %v6123, 1.442695
      %v6196 = vpow.pop %v6195
      %v6197 = vmul.f32 %v6124, 1.442695
      %v6198 = vpow.pop %v6197
      %v6199 = vmul.f32 %v6125, 1.442695
      %v6200 = vpow.pop %v6199
      %v6201 = vmul.f32 %v6126, 1.442695
      %v6202 = vpow.pop %v6201
      %v6203 = vmul.f32 %v6127, 1.442695
      %v6204 = vpow.pop %v6203
      %v6205 = vmul.f32 %v6128, 1.442695
      %v6206 = vpow.pop %v6205
      %v6207 = vmul.f32 %v6129, 1.442695
      %v6208 = vpow.pop %v6207
      %v6209 = vmul.f32 %v6130, 1.442695
      %v6210 = vpow.pop %v6209
      %v6211 = vmul.f32 %v6131, 1.442695
      %v6212 = vpow.pop %v6211
      %v6213 = vmul.f32 %v6132, 1.442695
      %v6214 = vpow.pop %v6213
      %v6215 = vmul.f32 %v6133, 1.442695
      %v6216 = vpow.pop %v6215
      %v6217 = vmul.f32 %v6134, 1.442695
      %v6218 = vpow.pop %v6217
      %v6219 = vmul.f32 %v6135, 1.442695
      %v6220 = vpow.pop %v6219
      %v6221 = vmul.f32 %v6136, 1.442695
      %v6222 = vpow.pop %v6221
      %v6223 = vmul.f32 %v6137, 1.442695
      %v6224 = vpow.pop %v6223
      %v6225 = vmul.f32 %v6138, 1.442695
      %v6226 = vpow.pop %v6225
      %v6227 = vmul.f32 %v6139, 1.442695
      %v6228 = vpow.pop %v6227
      %v6229 = vmul.f32 %v6140, 1.442695
      %v6230 = vpow.pop %v6229
      %v6231 = vmul.f32 %v6141, 1.442695
      %v6232 = vpow.pop %v6231
      %v6233 = vmul.f32 %v6142, 1.442695
      %v6234 = vpow.pop %v6233
      %v6235 = vmul.f32 %v6143, 1.442695
      %v6236 = vpow.pop %v6235
      %v6237 = vmul.f32 %v6144, 1.442695
      %v6238 = vpow.pop %v6237
      %v6239 = vmul.f32 %v6145, 1.442695
      %v6240 = vpow.pop %v6239
      %v6241 = vmul.f32 %v6146, 1.442695
      %v6242 = vpow.pop %v6241
      %v6243 = vmul.f32 %v6147, 1.442695
      %v6244 = vpow.pop %v6243
      %v6245 = vmul.f32 %v6148, 1.442695
      %v6246 = vpow.pop %v6245
      %v6247 = vmul.f32 %v6149, 1.442695
      %v6248 = vpow.pop %v6247
      %v6249 = vmul.f32 %v6150, 1.442695
      %v6250 = vpow.pop %v6249
      %v6251 = vmul.f32 %v6151, 1.442695
      %v6252 = vpow.pop %v6251
      %v6253 = vmul.f32 %v6152, 1.442695
      %v6254 = vpow.pop %v6253
      %v6255 = vmul.f32 %v6153, 1.442695
      %v6256 = vpow.pop %v6255
      %v6257 = vmul.f32 %v6154, 1.442695
      %v6258 = vpow.pop %v6257
      %v6259 = vmul.f32 %v6155, 1.442695
      %v6260 = vpow.pop %v6259
      %v6261 = vmul.f32 %v6156, 1.442695
      %v6262 = vpow.pop %v6261
      %v6263 = vmul.f32 %v6157, 1.442695
      %v6264 = vpow.pop %v6263
      %v6265 = vmul.f32 %v6158, 1.442695
      %v6266 = vpow.pop %v6265
      %v6267 = vmul.f32 %v6159, 1.442695
      %v6268 = vpow.pop %v6267
      %v6269 = vmul.f32 %v6160, 1.442695
      %v6270 = vpow.pop %v6269
      %v6271 = vmul.f32 %v6161, 1.442695
      %v6272 = vpow.pop %v6271
      %v6273 = vmul.f32 %v6162, 1.442695
      %v6274 = vpow.pop %v6273
      %v6275 = vmul.f32 %v6163, 1.442695
      %v6276 = vpow.pop %v6275
      %v6277 = vmul.f32 %v6164, 1.442695
      %v6278 = vpow.pop %v6277
      %v6279 = vmul.f32 %v6165, 1.442695
      %v6280 = vpow.pop %v6279
      %v6281 = vmul.f32 %v6166, 1.442695
      %v6282 = vpow.pop %v6281
      %v6283 = vmul.f32 %v6167, 1.442695
      %v6284 = vpow.pop %v6283
      %v6285 = vmul.f32 %v6168, 1.442695
      %v6286 = vpow.pop %v6285
      %v6287 = vmul.f32 %v6169, 1.442695
      %v6288 = vpow.pop %v6287
      %v6289 = vmul.f32 %v6170, 1.442695
      %v6290 = vpow.pop %v6289
      %v6291 = vmul.f32 %v6171, 1.442695
      %v6292 = vpow.pop %v6291
      %v6293 = vmul.f32 %v6172, 1.442695
      %v6294 = vpow.pop %v6293
      %v6295 = vmul.f32 %v6173, 1.442695
      %v6296 = vpow.pop %v6295
      %v6297 = vmul.f32 %v6174, 1.442695
      %v6298 = vpow.pop %v6297
      %v6299 = vmul.f32 %v6175, 1.442695
      %v6300 = vpow.pop %v6299
      %v6301 = vmul.f32 %v6176, 1.442695
      %v6302 = vpow.pop %v6301
      %v6303 = vmul.f32 %v6177, 1.442695
      %v6304 = vpow.pop %v6303
      %v6305 = vmul.f32 %v6178, 1.442695
      %v6306 = vpow.pop %v6305
      %v6307 = vadd.f32 %v6180, %v6182
      %6308 = vadd.xlane.f32.xlu0 %v6307
      %v6309 = vpop.xlane.xlu0 %6308
      %v6310 = vadd.f32 %v6184, %v6186
      %6311 = vadd.xlane.f32.xlu0 %v6310
      %v6312 = vpop.xlane.xlu0 %6311
      %v6313 = vadd.f32 %v6188, %v6190
      %6314 = vadd.xlane.f32.xlu0 %v6313
      %v6315 = vpop.xlane.xlu0 %6314
      %v6316 = vadd.f32 %v6192, %v6194
      %6317 = vadd.xlane.f32.xlu0 %v6316
      %v6318 = vpop.xlane.xlu0 %6317
      %v6319 = vadd.f32 %v6196, %v6198
      %6320 = vadd.xlane.f32.xlu0 %v6319
      %v6321 = vpop.xlane.xlu0 %6320
      %v6322 = vadd.f32 %v6200, %v6202
      %6323 = vadd.xlane.f32.xlu0 %v6322
      %v6324 = vpop.xlane.xlu0 %6323
      %v6325 = vadd.f32 %v6204, %v6206
      %6326 = vadd.xlane.f32.xlu0 %v6325
      %v6327 = vpop.xlane.xlu0 %6326
      %v6328 = vadd.f32 %v6208, %v6210
      %6329 = vadd.xlane.f32.xlu0 %v6328
      %v6330 = vpop.xlane.xlu0 %6329
      %v6331 = vadd.f32 %v6212, %v6214
      %6332 = vadd.xlane.f32.xlu0 %v6331
      %v6333 = vpop.xlane.xlu0 %6332
      %v6334 = vadd.f32 %v6216, %v6218
      %6335 = vadd.xlane.f32.xlu0 %v6334
      %v6336 = vpop.xlane.xlu0 %6335
      %v6337 = vadd.f32 %v6220, %v6222
      %6338 = vadd.xlane.f32.xlu0 %v6337
      %v6339 = vpop.xlane.xlu0 %6338
      %v6340 = vadd.f32 %v6224, %v6226
      %6341 = vadd.xlane.f32.xlu0 %v6340
      %v6342 = vpop.xlane.xlu0 %6341
      %v6343 = vadd.f32 %v6228, %v6230
      %6344 = vadd.xlane.f32.xlu0 %v6343
      %v6345 = vpop.xlane.xlu0 %6344
      %v6346 = vadd.f32 %v6232, %v6234
      %6347 = vadd.xlane.f32.xlu0 %v6346
      %v6348 = vpop.xlane.xlu0 %6347
      %v6349 = vadd.f32 %v6236, %v6238
      %6350 = vadd.xlane.f32.xlu0 %v6349
      %v6351 = vpop.xlane.xlu0 %6350
      %v6352 = vadd.f32 %v6240, %v6242
      %6353 = vadd.xlane.f32.xlu0 %v6352
      %v6354 = vpop.xlane.xlu0 %6353
      %v6355 = vadd.f32 %v6244, %v6246
      %6356 = vadd.xlane.f32.xlu0 %v6355
      %v6357 = vpop.xlane.xlu0 %6356
      %v6358 = vadd.f32 %v6248, %v6250
      %6359 = vadd.xlane.f32.xlu0 %v6358
      %v6360 = vpop.xlane.xlu0 %6359
      %v6361 = vadd.f32 %v6252, %v6254
      %6362 = vadd.xlane.f32.xlu0 %v6361
      %v6363 = vpop.xlane.xlu0 %6362
      %v6364 = vadd.f32 %v6256, %v6258
      %6365 = vadd.xlane.f32.xlu0 %v6364
      %v6366 = vpop.xlane.xlu0 %6365
      %v6367 = vadd.f32 %v6260, %v6262
      %6368 = vadd.xlane.f32.xlu0 %v6367
      %v6369 = vpop.xlane.xlu0 %6368
      %v6370 = vadd.f32 %v6264, %v6266
      %6371 = vadd.xlane.f32.xlu0 %v6370
      %v6372 = vpop.xlane.xlu0 %6371
      %v6373 = vadd.f32 %v6268, %v6270
      %6374 = vadd.xlane.f32.xlu0 %v6373
      %v6375 = vpop.xlane.xlu0 %6374
      %v6376 = vadd.f32 %v6272, %v6274
      %6377 = vadd.xlane.f32.xlu0 %v6376
      %v6378 = vpop.xlane.xlu0 %6377
      %v6379 = vadd.f32 %v6276, %v6278
      %6380 = vadd.xlane.f32.xlu0 %v6379
      %v6381 = vpop.xlane.xlu0 %6380
      %v6382 = vadd.f32 %v6280, %v6282
      %6383 = vadd.xlane.f32.xlu0 %v6382
      %v6384 = vpop.xlane.xlu0 %6383
      %v6385 = vadd.f32 %v6284, %v6286
      %6386 = vadd.xlane.f32.xlu0 %v6385
      %v6387 = vpop.xlane.xlu0 %6386
      %v6388 = vadd.f32 %v6288, %v6290
      %6389 = vadd.xlane.f32.xlu0 %v6388
      %v6390 = vpop.xlane.xlu0 %6389
      %v6391 = vadd.f32 %v6292, %v6294
      %6392 = vadd.xlane.f32.xlu0 %v6391
      %v6393 = vpop.xlane.xlu0 %6392
      %v6394 = vadd.f32 %v6296, %v6298
      %6395 = vadd.xlane.f32.xlu0 %v6394
      %v6396 = vpop.xlane.xlu0 %6395
      %v6397 = vadd.f32 %v6300, %v6302
      %6398 = vadd.xlane.f32.xlu0 %v6397
      %v6399 = vpop.xlane.xlu0 %6398
      %v6400 = vadd.f32 %v6304, %v6306
      %6401 = vadd.xlane.f32.xlu0 %v6400
      %v6402 = vpop.xlane.xlu0 %6401
      %v6403 = vrcp.pop %v6309
      %v6404 = vrcp.pop %v6312
      %v6405 = vrcp.pop %v6315
      %v6406 = vrcp.pop %v6318
      %v6407 = vrcp.pop %v6321
      %v6408 = vrcp.pop %v6324
      %v6409 = vrcp.pop %v6327
      %v6410 = vrcp.pop %v6330
      %v6411 = vrcp.pop %v6333
      %v6412 = vrcp.pop %v6336
      %v6413 = vrcp.pop %v6339
      %v6414 = vrcp.pop %v6342
      %v6415 = vrcp.pop %v6345
      %v6416 = vrcp.pop %v6348
      %v6417 = vrcp.pop %v6351
      %v6418 = vrcp.pop %v6354
      %v6419 = vrcp.pop %v6357
      %v6420 = vrcp.pop %v6360
      %v6421 = vrcp.pop %v6363
      %v6422 = vrcp.pop %v6366
      %v6423 = vrcp.pop %v6369
      %v6424 = vrcp.pop %v6372
      %v6425 = vrcp.pop %v6375
      %v6426 = vrcp.pop %v6378
      %v6427 = vrcp.pop %v6381
      %v6428 = vrcp.pop %v6384
      %v6429 = vrcp.pop %v6387
      %v6430 = vrcp.pop %v6390
      %v6431 = vrcp.pop %v6393
      %v6432 = vrcp.pop %v6396
      %v6433 = vrcp.pop %v6399
      %v6434 = vrcp.pop %v6402
      %v6435 = vmul.f32 %v6180, %v6403
      %v6436 = vmul.f32 %v6182, %v6403
      %v6437 = vmul.f32 %v6184, %v6404
      %v6438 = vmul.f32 %v6186, %v6404
      %v6439 = vmul.f32 %v6188, %v6405
      %v6440 = vmul.f32 %v6190, %v6405
      %v6441 = vmul.f32 %v6192, %v6406
      %v6442 = vmul.f32 %v6194, %v6406
      %v6443 = vmul.f32 %v6196, %v6407
      %v6444 = vmul.f32 %v6198, %v6407
      %v6445 = vmul.f32 %v6200, %v6408
      %v6446 = vmul.f32 %v6202, %v6408
      %v6447 = vmul.f32 %v6204, %v6409
      %v6448 = vmul.f32 %v6206, %v6409
      %v6449 = vmul.f32 %v6208, %v6410
      %v6450 = vmul.f32 %v6210, %v6410
      %v6451 = vmul.f32 %v6212, %v6411
      %v6452 = vmul.f32 %v6214, %v6411
      %v6453 = vmul.f32 %v6216, %v6412
      %v6454 = vmul.f32 %v6218, %v6412
      %v6455 = vmul.f32 %v6220, %v6413
      %v6456 = vmul.f32 %v6222, %v6413
      %v6457 = vmul.f32 %v6224, %v6414
      %v6458 = vmul.f32 %v6226, %v6414
      %v6459 = vmul.f32 %v6228, %v6415
      %v6460 = vmul.f32 %v6230, %v6415
      %v6461 = vmul.f32 %v6232, %v6416
      %v6462 = vmul.f32 %v6234, %v6416
      %v6463 = vmul.f32 %v6236, %v6417
      %v6464 = vmul.f32 %v6238, %v6417
      %v6465 = vmul.f32 %v6240, %v6418
      %v6466 = vmul.f32 %v6242, %v6418
      %v6467 = vmul.f32 %v6244, %v6419
      %v6468 = vmul.f32 %v6246, %v6419
      %v6469 = vmul.f32 %v6248, %v6420
      %v6470 = vmul.f32 %v6250, %v6420
      %v6471 = vmul.f32 %v6252, %v6421
      %v6472 = vmul.f32 %v6254, %v6421
      %v6473 = vmul.f32 %v6256, %v6422
      %v6474 = vmul.f32 %v6258, %v6422
      %v6475 = vmul.f32 %v6260, %v6423
      %v6476 = vmul.f32 %v6262, %v6423
      %v6477 = vmul.f32 %v6264, %v6424
      %v6478 = vmul.f32 %v6266, %v6424
      %v6479 = vmul.f32 %v6268, %v6425
      %v6480 = vmul.f32 %v6270, %v6425
      %v6481 = vmul.f32 %v6272, %v6426
      %v6482 = vmul.f32 %v6274, %v6426
      %v6483 = vmul.f32 %v6276, %v6427
      %v6484 = vmul.f32 %v6278, %v6427
      %v6485 = vmul.f32 %v6280, %v6428
      %v6486 = vmul.f32 %v6282, %v6428
      %v6487 = vmul.f32 %v6284, %v6429
      %v6488 = vmul.f32 %v6286, %v6429
      %v6489 = vmul.f32 %v6288, %v6430
      %v6490 = vmul.f32 %v6290, %v6430
      %v6491 = vmul.f32 %v6292, %v6431
      %v6492 = vmul.f32 %v6294, %v6431
      %v6493 = vmul.f32 %v6296, %v6432
      %v6494 = vmul.f32 %v6298, %v6432
      %v6495 = vmul.f32 %v6300, %v6433
      %v6496 = vmul.f32 %v6302, %v6433
      %v6497 = vmul.f32 %v6304, %v6434
      %v6498 = vmul.f32 %v6306, %v6434
      %v6499 = vpack.c.bf16 %v6437, %v6435
      %v6500 = vpack.c.bf16 %v6438, %v6436
      %v6501 = vpack.c.bf16 %v6441, %v6439
      %v6502 = vpack.c.bf16 %v6442, %v6440
      %v6503 = vpack.c.bf16 %v6445, %v6443
      %v6504 = vpack.c.bf16 %v6446, %v6444
      %v6505 = vpack.c.bf16 %v6449, %v6447
      %v6506 = vpack.c.bf16 %v6450, %v6448
      %v6507 = vpack.c.bf16 %v6453, %v6451
      %v6508 = vpack.c.bf16 %v6454, %v6452
      %v6509 = vpack.c.bf16 %v6457, %v6455
      %v6510 = vpack.c.bf16 %v6458, %v6456
      %v6511 = vpack.c.bf16 %v6461, %v6459
      %v6512 = vpack.c.bf16 %v6462, %v6460
      %v6513 = vpack.c.bf16 %v6465, %v6463
      %v6514 = vpack.c.bf16 %v6466, %v6464
      %v6515 = vpack.c.bf16 %v6469, %v6467
      %v6516 = vpack.c.bf16 %v6470, %v6468
      %v6517 = vpack.c.bf16 %v6473, %v6471
      %v6518 = vpack.c.bf16 %v6474, %v6472
      %v6519 = vpack.c.bf16 %v6477, %v6475
      %v6520 = vpack.c.bf16 %v6478, %v6476
      %v6521 = vpack.c.bf16 %v6481, %v6479
      %v6522 = vpack.c.bf16 %v6482, %v6480
      %v6523 = vpack.c.bf16 %v6485, %v6483
      %v6524 = vpack.c.bf16 %v6486, %v6484
      %v6525 = vpack.c.bf16 %v6489, %v6487
      %v6526 = vpack.c.bf16 %v6490, %v6488
      %v6527 = vpack.c.bf16 %v6493, %v6491
      %v6528 = vpack.c.bf16 %v6494, %v6492
      %v6529 = vpack.c.bf16 %v6497, %v6495
      %v6530 = vpack.c.bf16 %v6498, %v6496
      %6531 = vmatprep.subr.bf16.mxu0 0
      %6532 = vmatpush1.bf16.msra.mxu0 %v2555
      %6533 = vmatprep.subr.bf16.mxu0 0
      %6534 = vmatpush1.bf16.msra.mxu0 %v2556
      %6535 = vmatprep.subr.bf16.mxu0 0
      %6536 = vmatpush1.bf16.msra.mxu0 %v2557
      %6537 = vmatprep.subr.bf16.mxu0 0
      %6538 = vmatpush1.bf16.msra.mxu0 %v2558
      %6539 = vmatprep.subr.bf16.mxu0 0
      %6540 = vmatpush1.bf16.msra.mxu0 %v2559
      %6541 = vmatprep.subr.bf16.mxu0 0
      %6542 = vmatpush1.bf16.msra.mxu0 %v2560
      %6543 = vmatprep.subr.bf16.mxu0 0
      %6544 = vmatpush1.bf16.msra.mxu0 %v2561
      %6545 = vmatprep.subr.bf16.mxu0 0
      %6546 = vmatpush1.bf16.msra.mxu0 %v2562
      %6547 = vmatprep.subr.bf16.mxu0 0
      %6548 = vmatpush1.bf16.msra.mxu0 %v2563
      %6549 = vmatprep.subr.bf16.mxu0 0
      %6550 = vmatpush1.bf16.msra.mxu0 %v2564
      %6551 = vmatprep.subr.bf16.mxu0 0
      %6552 = vmatpush1.bf16.msra.mxu0 %v2565
      %6553 = vmatprep.subr.bf16.mxu0 0
      %6554 = vmatpush1.bf16.msra.mxu0 %v2566
      %6555 = vmatprep.subr.bf16.mxu0 0
      %6556 = vmatpush1.bf16.msra.mxu0 %v2567
      %6557 = vmatprep.subr.bf16.mxu0 0
      %6558 = vmatpush1.bf16.msra.mxu0 %v2568
      %6559 = vmatprep.subr.bf16.mxu0 0
      %6560 = vmatpush1.bf16.msra.mxu0 %v2569
      %6561 = vmatprep.subr.bf16.mxu0 0
      %6562 = vmatpush1.bf16.msra.mxu0 %v2570
      %6563 = vmatprep.mubr.bf16.mxu0 %v6500
      %6564 = vmatmul.mubr.bf16.gmra.mrb[0].mxu0 %v6499
      %v6565 = vpop.f32.mrb[0].mxu0
      %v6566 = vadd.f32 0.0, %v6565
      %v6567 = vpop.f32.mrb[0].mxu0
      %v6568 = vpop.f32.mrb[0].mxu0
      %v6569 = vadd.f32 0.0, %v6568
      %v6570 = vpop.f32.mrb[0].mxu0
      %6571 = vmatprep.mubr.bf16.mxu0 %v6502
      %6572 = vmatmul.mubr.bf16.gmra.mrb[0].mxu0 %v6501
      %v6573 = vpop.f32.mrb[0].mxu0
      %v6574 = vadd.f32 0.0, %v6573
      %v6575 = vpop.f32.mrb[0].mxu0
      %v6576 = vpop.f32.mrb[0].mxu0
      %v6577 = vadd.f32 0.0, %v6576
      %v6578 = vpop.f32.mrb[0].mxu0
      %6579 = vmatprep.mubr.bf16.mxu0 %v6504
      %6580 = vmatmul.mubr.bf16.gmra.mrb[0].mxu0 %v6503
      %v6581 = vpop.f32.mrb[0].mxu0
      %v6582 = vadd.f32 0.0, %v6581
      %v6583 = vpop.f32.mrb[0].mxu0
      %v6584 = vpop.f32.mrb[0].mxu0
      %v6585 = vadd.f32 0.0, %v6584
      %v6586 = vpop.f32.mrb[0].mxu0
      %6587 = vmatprep.mubr.bf16.mxu0 %v6506
      %6588 = vmatmul.mubr.bf16.gmra.mrb[0].mxu0 %v6505
      %v6589 = vpop.f32.mrb[0].mxu0
      %v6590 = vadd.f32 0.0, %v6589
      %v6591 = vpop.f32.mrb[0].mxu0
      %v6592 = vpop.f32.mrb[0].mxu0
      %v6593 = vadd.f32 0.0, %v6592
      %v6594 = vpop.f32.mrb[0].mxu0
      %6595 = vmatprep.mubr.bf16.mxu0 %v6508
      %6596 = vmatmul.mubr.bf16.gmra.mrb[0].mxu0 %v6507
      %v6597 = vpop.f32.mrb[0].mxu0
      %v6598 = vadd.f32 0.0, %v6597
      %v6599 = vpop.f32.mrb[0].mxu0
      %v6600 = vpop.f32.mrb[0].mxu0
      %v6601 = vadd.f32 0.0, %v6600
      %v6602 = vpop.f32.mrb[0].mxu0
      %6603 = vmatprep.mubr.bf16.mxu0 %v6510
      %6604 = vmatmul.mubr.bf16.gmra.mrb[0].mxu0 %v6509
      %v6605 = vpop.f32.mrb[0].mxu0
      %v6606 = vadd.f32 0.0, %v6605
      %v6607 = vpop.f32.mrb[0].mxu0
      %v6608 = vpop.f32.mrb[0].mxu0
      %v6609 = vadd.f32 0.0, %v6608
      %v6610 = vpop.f32.mrb[0].mxu0
      %6611 = vmatprep.mubr.bf16.mxu0 %v6512
      %6612 = vmatmul.mubr.bf16.gmra.mrb[0].mxu0 %v6511
      %v6613 = vpop.f32.mrb[0].mxu0
      %v6614 = vadd.f32 0.0, %v6613
      %v6615 = vpop.f32.mrb[0].mxu0
      %v6616 = vpop.f32.mrb[0].mxu0
      %v6617 = vadd.f32 0.0, %v6616
      %v6618 = vpop.f32.mrb[0].mxu0
      %6619 = vmatprep.mubr.bf16.mxu0 %v6514
      %6620 = vmatmul.mubr.bf16.gmra.mrb[0].mxu0 %v6513
      %v6621 = vpop.f32.mrb[0].mxu0
      %v6622 = vadd.f32 0.0, %v6621
      %v6623 = vpop.f32.mrb[0].mxu0
      %v6624 = vpop.f32.mrb[0].mxu0
      %v6625 = vadd.f32 0.0, %v6624
      %v6626 = vpop.f32.mrb[0].mxu0
      %6627 = vmatprep.mubr.bf16.mxu0 %v6516
      %6628 = vmatmul.mubr.bf16.gmra.mrb[0].mxu0 %v6515
      %v6629 = vpop.f32.mrb[0].mxu0
      %v6630 = vadd.f32 0.0, %v6629
      %v6631 = vpop.f32.mrb[0].mxu0
      %v6632 = vpop.f32.mrb[0].mxu0
      %v6633 = vadd.f32 0.0, %v6632
      %v6634 = vpop.f32.mrb[0].mxu0
      %6635 = vmatprep.mubr.bf16.mxu0 %v6518
      %6636 = vmatmul.mubr.bf16.gmra.mrb[0].mxu0 %v6517
      %v6637 = vpop.f32.mrb[0].mxu0
      %v6638 = vadd.f32 0.0, %v6637
      %v6639 = vpop.f32.mrb[0].mxu0
      %v6640 = vpop.f32.mrb[0].mxu0
      %v6641 = vadd.f32 0.0, %v6640
      %v6642 = vpop.f32.mrb[0].mxu0
      %6643 = vmatprep.mubr.bf16.mxu0 %v6520
      %6644 = vmatmul.mubr.bf16.gmra.mrb[0].mxu0 %v6519
      %v6645 = vpop.f32.mrb[0].mxu0
      %v6646 = vadd.f32 0.0, %v6645
      %v6647 = vpop.f32.mrb[0].mxu0
      %v6648 = vpop.f32.mrb[0].mxu0
      %v6649 = vadd.f32 0.0, %v6648
      %v6650 = vpop.f32.mrb[0].mxu0
      %6651 = vmatprep.mubr.bf16.mxu0 %v6522
      %6652 = vmatmul.mubr.bf16.gmra.mrb[0].mxu0 %v6521
      %v6653 = vpop.f32.mrb[0].mxu0
      %v6654 = vadd.f32 0.0, %v6653
      %v6655 = vpop.f32.mrb[0].mxu0
      %v6656 = vpop.f32.mrb[0].mxu0
      %v6657 = vadd.f32 0.0, %v6656
      %v6658 = vpop.f32.mrb[0].mxu0
      %6659 = vmatprep.mubr.bf16.mxu0 %v6524
      %6660 = vmatmul.mubr.bf16.gmra.mrb[0].mxu0 %v6523
      %v6661 = vpop.f32.mrb[0].mxu0
      %v6662 = vadd.f32 0.0, %v6661
      %v6663 = vpop.f32.mrb[0].mxu0
      %v6664 = vpop.f32.mrb[0].mxu0
      %v6665 = vadd.f32 0.0, %v6664
      %v6666 = vpop.f32.mrb[0].mxu0
      %6667 = vmatprep.mubr.bf16.mxu0 %v6526
      %6668 = vmatmul.mubr.bf16.gmra.mrb[0].mxu0 %v6525
      %v6669 = vpop.f32.mrb[0].mxu0
      %v6670 = vadd.f32 0.0, %v6669
      %v6671 = vpop.f32.mrb[0].mxu0
      %v6672 = vpop.f32.mrb[0].mxu0
      %v6673 = vadd.f32 0.0, %v6672
      %v6674 = vpop.f32.mrb[0].mxu0
      %6675 = vmatprep.mubr.bf16.mxu0 %v6528
      %6676 = vmatmul.mubr.bf16.gmra.mrb[0].mxu0 %v6527
      %v6677 = vpop.f32.mrb[0].mxu0
      %v6678 = vadd.f32 0.0, %v6677
      %v6679 = vpop.f32.mrb[0].mxu0
      %v6680 = vpop.f32.mrb[0].mxu0
      %v6681 = vadd.f32 0.0, %v6680
      %v6682 = vpop.f32.mrb[0].mxu0
      %6683 = vmatprep.mubr.bf16.mxu0 %v6530
      %6684 = vmatmul.mubr.bf16.gmra.mrb[0].mxu0 %v6529
      %v6685 = vpop.f32.mrb[0].mxu0
      %v6686 = vadd.f32 0.0, %v6685
      %v6687 = vpop.f32.mrb[0].mxu0
      %v6688 = vpop.f32.mrb[0].mxu0
      %v6689 = vadd.f32 0.0, %v6688
      %v6690 = vpop.f32.mrb[0].mxu0
      %6691 = vdwg.mxu0
      %v6692 = vsel %vm5729, %v6566, 0.0
      %v6693 = vsel %vm5729, %v6569, 0.0
      %v6694 = vsel %vm5729, %v6574, 0.0
      %v6695 = vsel %vm5729, %v6577, 0.0
      %v6696 = vsel %vm5729, %v6582, 0.0
      %v6697 = vsel %vm5729, %v6585, 0.0
      %v6698 = vsel %vm5729, %v6590, 0.0
      %v6699 = vsel %vm5729, %v6593, 0.0
      %v6700 = vsel %vm5729, %v6598, 0.0
      %v6701 = vsel %vm5729, %v6601, 0.0
      %v6702 = vsel %vm5729, %v6606, 0.0
      %v6703 = vsel %vm5729, %v6609, 0.0
      %v6704 = vsel %vm5729, %v6614, 0.0
      %v6705 = vsel %vm5729, %v6617, 0.0
      %v6706 = vsel %vm5729, %v6622, 0.0
      %v6707 = vsel %vm5729, %v6625, 0.0
      %v6708 = vsel %vm5729, %v6630, 0.0
      %v6709 = vsel %vm5729, %v6633, 0.0
      %v6710 = vsel %vm5729, %v6638, 0.0
      %v6711 = vsel %vm5729, %v6641, 0.0
      %v6712 = vsel %vm5729, %v6646, 0.0
      %v6713 = vsel %vm5729, %v6649, 0.0
      %v6714 = vsel %vm5729, %v6654, 0.0
      %v6715 = vsel %vm5729, %v6657, 0.0
      %v6716 = vsel %vm5729, %v6662, 0.0
      %v6717 = vsel %vm5729, %v6665, 0.0
      %v6718 = vsel %vm5729, %v6670, 0.0
      %v6719 = vsel %vm5729, %v6673, 0.0
      %v6720 = vsel %vm5729, %v6678, 0.0
      %v6721 = vsel %vm5729, %v6681, 0.0
      %v6722 = vsel %vm5729, %v6686, 0.0
      %v6723 = vsel %vm5729, %v6689, 0.0
      %v6724 = vadd.f32 %v5696, %v6692
      %v6725 = vadd.f32 %v5697, %v6693
      %v6726 = vadd.f32 %v5698, %v6694
      %v6727 = vadd.f32 %v5699, %v6695
      %v6728 = vadd.f32 %v5700, %v6696
      %v6729 = vadd.f32 %v5701, %v6697
      %v6730 = vadd.f32 %v5702, %v6698
      %v6731 = vadd.f32 %v5703, %v6699
      %v6732 = vadd.f32 %v5704, %v6700
      %v6733 = vadd.f32 %v5705, %v6701
      %v6734 = vadd.f32 %v5706, %v6702
      %v6735 = vadd.f32 %v5707, %v6703
      %v6736 = vadd.f32 %v5708, %v6704
      %v6737 = vadd.f32 %v5709, %v6705
      %v6738 = vadd.f32 %v5710, %v6706
      %v6739 = vadd.f32 %v5711, %v6707
      %v6740 = vadd.f32 %v5712, %v6708
      %v6741 = vadd.f32 %v5713, %v6709
      %v6742 = vadd.f32 %v5714, %v6710
      %v6743 = vadd.f32 %v5715, %v6711
      %v6744 = vadd.f32 %v5716, %v6712
      %v6745 = vadd.f32 %v5717, %v6713
      %v6746 = vadd.f32 %v5718, %v6714
      %v6747 = vadd.f32 %v5719, %v6715
      %v6748 = vadd.f32 %v5720, %v6716
      %v6749 = vadd.f32 %v5721, %v6717
      %v6750 = vadd.f32 %v5722, %v6718
      %v6751 = vadd.f32 %v5723, %v6719
      %v6752 = vadd.f32 %v5724, %v6720
      %v6753 = vadd.f32 %v5725, %v6721
      %v6754 = vadd.f32 %v5726, %v6722
      %v6755 = vadd.f32 %v5727, %v6723
      %v6756 = vpack.c.bf16 %v6725, %v6724
      %v6757 = vpack.c.bf16 %v6727, %v6726
      %v6758 = vpack.c.bf16 %v6729, %v6728
      %v6759 = vpack.c.bf16 %v6731, %v6730
      %v6760 = vpack.c.bf16 %v6733, %v6732
      %v6761 = vpack.c.bf16 %v6735, %v6734
      %v6762 = vpack.c.bf16 %v6737, %v6736
      %v6763 = vpack.c.bf16 %v6739, %v6738
      %v6764 = vpack.c.bf16 %v6741, %v6740
      %v6765 = vpack.c.bf16 %v6743, %v6742
      %v6766 = vpack.c.bf16 %v6745, %v6744
      %v6767 = vpack.c.bf16 %v6747, %v6746
      %v6768 = vpack.c.bf16 %v6749, %v6748
      %v6769 = vpack.c.bf16 %v6751, %v6750
      %v6770 = vpack.c.bf16 %v6753, %v6752
      %v6771 = vpack.c.bf16 %v6755, %v6754
      %v6772 = vld [vmem:[%s712] sm:$0xf]
      %v6773 = vld [vmem:[%s715] sm:$0x1]
      %v6775 = vlaneseq
      %v6776 = vshrl.u32 %v6775, 7
      %v6777 = vsub.s32 0, %v6776
      %v6778 = vrot.slane %v6773, %v6777
      %v6781 = vsel %vm1949, %v6756, 0
      %v6784 = vsel %vm1949, %v6757, 0
      %v6787 = vsel %vm1949, %v6758, 0
      %v6790 = vsel %vm1949, %v6759, 0
      %v6793 = vsel %vm1949, %v6760, 0
      %v6796 = vsel %vm1949, %v6761, 0
      %v6799 = vsel %vm1949, %v6762, 0
      %v6802 = vsel %vm1949, %v6763, 0
      %v6805 = vsel %vm1949, %v6764, 0
      %v6808 = vsel %vm1949, %v6765, 0
      %v6811 = vsel %vm1949, %v6766, 0
      %v6814 = vsel %vm1949, %v6767, 0
      %v6817 = vsel %vm1949, %v6768, 0
      %v6820 = vsel %vm1949, %v6769, 0
      %v6823 = vsel %vm1949, %v6770, 0
      %v6826 = vsel %vm1949, %v6771, 0
      %v6829 = vsel %vm1998, %v6772, 0
      %6831 = vmatprep.subr.bf16.mxu0 0
      %6832 = vmatpush1.bf16.msra.mxu0 %v6829
      %6833 = vmatprep.subr.bf16.mxu0 0
      %6834 = vmatpush1.bf16.msra.mxu0 0
      %6835 = vmatprep.subr.bf16.mxu0 0
      %6836 = vmatpush1.bf16.msra.mxu0 0
      %6837 = vmatprep.subr.bf16.mxu0 0
      %6838 = vmatpush1.bf16.msra.mxu0 0
      %6839 = vmatprep.subr.bf16.mxu0 0
      %6840 = vmatpush1.bf16.msra.mxu0 0
      %6841 = vmatprep.subr.bf16.mxu0 0
      %6842 = vmatpush1.bf16.msra.mxu0 0
      %6843 = vmatprep.subr.bf16.mxu0 0
      %6844 = vmatpush1.bf16.msra.mxu0 0
      %6845 = vmatprep.subr.bf16.mxu0 0
      %6846 = vmatpush1.bf16.msra.mxu0 0
      %6847 = vmatprep.subr.bf16.mxu0 0
      %6848 = vmatpush1.bf16.msra.mxu0 0
      %6849 = vmatprep.subr.bf16.mxu0 0
      %6850 = vmatpush1.bf16.msra.mxu0 0
      %6851 = vmatprep.subr.bf16.mxu0 0
      %6852 = vmatpush1.bf16.msra.mxu0 0
      %6853 = vmatprep.subr.bf16.mxu0 0
      %6854 = vmatpush1.bf16.msra.mxu0 0
      %6855 = vmatprep.subr.bf16.mxu0 0
      %6856 = vmatpush1.bf16.msra.mxu0 0
      %6857 = vmatprep.subr.bf16.mxu0 0
      %6858 = vmatpush1.bf16.msra.mxu0 0
      %6859 = vmatprep.subr.bf16.mxu0 0
      %6860 = vmatpush1.bf16.msra.mxu0 0
      %6861 = vmatprep.subr.bf16.mxu0 0
      %6862 = vmatpush1.bf16.msra.mxu0 0
      %6863 = vmatprep.mubr.bf16.mxu0 0
      %6864 = vmatmul.mubr.bf16.gmra.mrb[0].mxu0 %v6781
      %v6865 = vpop.f32.mrb[0].mxu0
      %v6866 = vadd.f32 %v6778, %v6865
      %v6867 = vpop.f32.mrb[0].mxu0
      %v6868 = vpop.f32.mrb[0].mxu0
      %v6869 = vadd.f32 %v6778, %v6868
      %v6870 = vpop.f32.mrb[0].mxu0
      %6871 = vmatprep.mubr.bf16.mxu0 0
      %6872 = vmatmul.mubr.bf16.gmra.mrb[0].mxu0 %v6784
      %v6873 = vpop.f32.mrb[0].mxu0
      %v6874 = vadd.f32 %v6778, %v6873
      %v6875 = vpop.f32.mrb[0].mxu0
      %v6876 = vpop.f32.mrb[0].mxu0
      %v6877 = vadd.f32 %v6778, %v6876
      %v6878 = vpop.f32.mrb[0].mxu0
      %6879 = vmatprep.mubr.bf16.mxu0 0
      %6880 = vmatmul.mubr.bf16.gmra.mrb[0].mxu0 %v6787
      %v6881 = vpop.f32.mrb[0].mxu0
      %v6882 = vadd.f32 %v6778, %v6881
      %v6883 = vpop.f32.mrb[0].mxu0
      %v6884 = vpop.f32.mrb[0].mxu0
      %v6885 = vadd.f32 %v6778, %v6884
      %v6886 = vpop.f32.mrb[0].mxu0
      %6887 = vmatprep.mubr.bf16.mxu0 0
      %6888 = vmatmul.mubr.bf16.gmra.mrb[0].mxu0 %v6790
      %v6889 = vpop.f32.mrb[0].mxu0
      %v6890 = vadd.f32 %v6778, %v6889
      %v6891 = vpop.f32.mrb[0].mxu0
      %v6892 = vpop.f32.mrb[0].mxu0
      %v6893 = vadd.f32 %v6778, %v6892
      %v6894 = vpop.f32.mrb[0].mxu0
      %6895 = vmatprep.mubr.bf16.mxu0 0
      %6896 = vmatmul.mubr.bf16.gmra.mrb[0].mxu0 %v6793
      %v6897 = vpop.f32.mrb[0].mxu0
      %v6898 = vadd.f32 %v6778, %v6897
      %v6899 = vpop.f32.mrb[0].mxu0
      %v6900 = vpop.f32.mrb[0].mxu0
      %v6901 = vadd.f32 %v6778, %v6900
      %v6902 = vpop.f32.mrb[0].mxu0
      %6903 = vmatprep.mubr.bf16.mxu0 0
      %6904 = vmatmul.mubr.bf16.gmra.mrb[0].mxu0 %v6796
      %v6905 = vpop.f32.mrb[0].mxu0
      %v6906 = vadd.f32 %v6778, %v6905
      %v6907 = vpop.f32.mrb[0].mxu0
      %v6908 = vpop.f32.mrb[0].mxu0
      %v6909 = vadd.f32 %v6778, %v6908
      %v6910 = vpop.f32.mrb[0].mxu0
      %6911 = vmatprep.mubr.bf16.mxu0 0
      %6912 = vmatmul.mubr.bf16.gmra.mrb[0].mxu0 %v6799
      %v6913 = vpop.f32.mrb[0].mxu0
      %v6914 = vadd.f32 %v6778, %v6913
      %v6915 = vpop.f32.mrb[0].mxu0
      %v6916 = vpop.f32.mrb[0].mxu0
      %v6917 = vadd.f32 %v6778, %v6916
      %v6918 = vpop.f32.mrb[0].mxu0
      %6919 = vmatprep.mubr.bf16.mxu0 0
      %6920 = vmatmul.mubr.bf16.gmra.mrb[0].mxu0 %v6802
      %v6921 = vpop.f32.mrb[0].mxu0
      %v6922 = vadd.f32 %v6778, %v6921
      %v6923 = vpop.f32.mrb[0].mxu0
      %v6924 = vpop.f32.mrb[0].mxu0
      %v6925 = vadd.f32 %v6778, %v6924
      %v6926 = vpop.f32.mrb[0].mxu0
      %6927 = vmatprep.mubr.bf16.mxu0 0
      %6928 = vmatmul.mubr.bf16.gmra.mrb[0].mxu0 %v6805
      %v6929 = vpop.f32.mrb[0].mxu0
      %v6930 = vadd.f32 %v6778, %v6929
      %v6931 = vpop.f32.mrb[0].mxu0
      %v6932 = vpop.f32.mrb[0].mxu0
      %v6933 = vadd.f32 %v6778, %v6932
      %v6934 = vpop.f32.mrb[0].mxu0
      %6935 = vmatprep.mubr.bf16.mxu0 0
      %6936 = vmatmul.mubr.bf16.gmra.mrb[0].mxu0 %v6808
      %v6937 = vpop.f32.mrb[0].mxu0
      %v6938 = vadd.f32 %v6778, %v6937
      %v6939 = vpop.f32.mrb[0].mxu0
      %v6940 = vpop.f32.mrb[0].mxu0
      %v6941 = vadd.f32 %v6778, %v6940
      %v6942 = vpop.f32.mrb[0].mxu0
      %6943 = vmatprep.mubr.bf16.mxu0 0
      %6944 = vmatmul.mubr.bf16.gmra.mrb[0].mxu0 %v6811
      %v6945 = vpop.f32.mrb[0].mxu0
      %v6946 = vadd.f32 %v6778, %v6945
      %v6947 = vpop.f32.mrb[0].mxu0
      %v6948 = vpop.f32.mrb[0].mxu0
      %v6949 = vadd.f32 %v6778, %v6948
      %v6950 = vpop.f32.mrb[0].mxu0
      %6951 = vmatprep.mubr.bf16.mxu0 0
      %6952 = vmatmul.mubr.bf16.gmra.mrb[0].mxu0 %v6814
      %v6953 = vpop.f32.mrb[0].mxu0
      %v6954 = vadd.f32 %v6778, %v6953
      %v6955 = vpop.f32.mrb[0].mxu0
      %v6956 = vpop.f32.mrb[0].mxu0
      %v6957 = vadd.f32 %v6778, %v6956
      %v6958 = vpop.f32.mrb[0].mxu0
      %6959 = vmatprep.mubr.bf16.mxu0 0
      %6960 = vmatmul.mubr.bf16.gmra.mrb[0].mxu0 %v6817
      %v6961 = vpop.f32.mrb[0].mxu0
      %v6962 = vadd.f32 %v6778, %v6961
      %v6963 = vpop.f32.mrb[0].mxu0
      %v6964 = vpop.f32.mrb[0].mxu0
      %v6965 = vadd.f32 %v6778, %v6964
      %v6966 = vpop.f32.mrb[0].mxu0
      %6967 = vmatprep.mubr.bf16.mxu0 0
      %6968 = vmatmul.mubr.bf16.gmra.mrb[0].mxu0 %v6820
      %v6969 = vpop.f32.mrb[0].mxu0
      %v6970 = vadd.f32 %v6778, %v6969
      %v6971 = vpop.f32.mrb[0].mxu0
      %v6972 = vpop.f32.mrb[0].mxu0
      %v6973 = vadd.f32 %v6778, %v6972
      %v6974 = vpop.f32.mrb[0].mxu0
      %6975 = vmatprep.mubr.bf16.mxu0 0
      %6976 = vmatmul.mubr.bf16.gmra.mrb[0].mxu0 %v6823
      %v6977 = vpop.f32.mrb[0].mxu0
      %v6978 = vadd.f32 %v6778, %v6977
      %v6979 = vpop.f32.mrb[0].mxu0
      %v6980 = vpop.f32.mrb[0].mxu0
      %v6981 = vadd.f32 %v6778, %v6980
      %v6982 = vpop.f32.mrb[0].mxu0
      %6983 = vmatprep.mubr.bf16.mxu0 0
      %6984 = vmatmul.mubr.bf16.gmra.mrb[0].mxu0 %v6826
      %v6985 = vpop.f32.mrb[0].mxu0
      %v6986 = vadd.f32 %v6778, %v6985
      %v6987 = vpop.f32.mrb[0].mxu0
      %v6988 = vpop.f32.mrb[0].mxu0
      %v6989 = vadd.f32 %v6778, %v6988
      %v6990 = vpop.f32.mrb[0].mxu0
      %6991 = vdwg.mxu0
      %v6992 = vadd.f32 %v6866, %v1892
      %v6993 = vadd.f32 %v6869, %v1893
      %v6994 = vadd.f32 %v6874, %v1894
      %v6995 = vadd.f32 %v6877, %v1895
      %v6996 = vadd.f32 %v6882, %v1896
      %v6997 = vadd.f32 %v6885, %v1897
      %v6998 = vadd.f32 %v6890, %v1898
      %v6999 = vadd.f32 %v6893, %v1899
      %v7000 = vadd.f32 %v6898, %v1900
      %v7001 = vadd.f32 %v6901, %v1901
      %v7002 = vadd.f32 %v6906, %v1902
      %v7003 = vadd.f32 %v6909, %v1903
      %v7004 = vadd.f32 %v6914, %v1904
      %v7005 = vadd.f32 %v6917, %v1905
      %v7006 = vadd.f32 %v6922, %v1906
      %v7007 = vadd.f32 %v6925, %v1907
      %v7008 = vadd.f32 %v6930, %v1908
      %v7009 = vadd.f32 %v6933, %v1909
      %v7010 = vadd.f32 %v6938, %v1910
      %v7011 = vadd.f32 %v6941, %v1911
      %v7012 = vadd.f32 %v6946, %v1912
      %v7013 = vadd.f32 %v6949, %v1913
      %v7014 = vadd.f32 %v6954, %v1914
      %v7015 = vadd.f32 %v6957, %v1915
      %v7016 = vadd.f32 %v6962, %v1916
      %v7017 = vadd.f32 %v6965, %v1917
      %v7018 = vadd.f32 %v6970, %v1918
      %v7019 = vadd.f32 %v6973, %v1919
      %v7020 = vadd.f32 %v6978, %v1920
      %v7021 = vadd.f32 %v6981, %v1921
      %v7022 = vadd.f32 %v6986, %v1922
      %v7023 = vadd.f32 %v6989, %v1923
      %v7024 = vpack.c.bf16 %v6993, %v6992
      %v7025 = vpack.c.bf16 %v6995, %v6994
      %v7026 = vpack.c.bf16 %v6997, %v6996
      %v7027 = vpack.c.bf16 %v6999, %v6998
      %v7028 = vpack.c.bf16 %v7001, %v7000
      %v7029 = vpack.c.bf16 %v7003, %v7002
      %v7030 = vpack.c.bf16 %v7005, %v7004
      %v7031 = vpack.c.bf16 %v7007, %v7006
      %v7032 = vpack.c.bf16 %v7009, %v7008
      %v7033 = vpack.c.bf16 %v7011, %v7010
      %v7034 = vpack.c.bf16 %v7013, %v7012
      %v7035 = vpack.c.bf16 %v7015, %v7014
      %v7036 = vpack.c.bf16 %v7017, %v7016
      %v7037 = vpack.c.bf16 %v7019, %v7018
      %v7038 = vpack.c.bf16 %v7021, %v7020
      %v7039 = vpack.c.bf16 %v7023, %v7022
      %v7040 = vld [vmem:[%s719] sm:$0xf]
      %v7042 = vsel %vm1949, %v7024, 0
      %v7045 = vsel %vm1949, %v7025, 0
      %v7048 = vsel %vm1949, %v7026, 0
      %v7051 = vsel %vm1949, %v7027, 0
      %v7054 = vsel %vm1949, %v7028, 0
      %v7057 = vsel %vm1949, %v7029, 0
      %v7060 = vsel %vm1949, %v7030, 0
      %v7063 = vsel %vm1949, %v7031, 0
      %v7066 = vsel %vm1949, %v7032, 0
      %v7069 = vsel %vm1949, %v7033, 0
      %v7072 = vsel %vm1949, %v7034, 0
      %v7075 = vsel %vm1949, %v7035, 0
      %v7078 = vsel %vm1949, %v7036, 0
      %v7081 = vsel %vm1949, %v7037, 0
      %v7084 = vsel %vm1949, %v7038, 0
      %v7087 = vsel %vm1949, %v7039, 0
      %v7090 = vsel %vm1998, %v7040, 0
      %7092 = vmatprep.subr.bf16.mxu0 0
      %7093 = vmatpush1.bf16.msra.mxu0 %v7090
      %7094 = vmatprep.subr.bf16.mxu0 0
      %7095 = vmatpush1.bf16.msra.mxu0 0
      %7096 = vmatprep.subr.bf16.mxu0 0
      %7097 = vmatpush1.bf16.msra.mxu0 0
      %7098 = vmatprep.subr.bf16.mxu0 0
      %7099 = vmatpush1.bf16.msra.mxu0 0
      %7100 = vmatprep.subr.bf16.mxu0 0
      %7101 = vmatpush1.bf16.msra.mxu0 0
      %7102 = vmatprep.subr.bf16.mxu0 0
      %7103 = vmatpush1.bf16.msra.mxu0 0
      %7104 = vmatprep.subr.bf16.mxu0 0
      %7105 = vmatpush1.bf16.msra.mxu0 0
      %7106 = vmatprep.subr.bf16.mxu0 0
      %7107 = vmatpush1.bf16.msra.mxu0 0
      %7108 = vmatprep.subr.bf16.mxu0 0
      %7109 = vmatpush1.bf16.msra.mxu0 0
      %7110 = vmatprep.subr.bf16.mxu0 0
      %7111 = vmatpush1.bf16.msra.mxu0 0
      %7112 = vmatprep.subr.bf16.mxu0 0
      %7113 = vmatpush1.bf16.msra.mxu0 0
      %7114 = vmatprep.subr.bf16.mxu0 0
      %7115 = vmatpush1.bf16.msra.mxu0 0
      %7116 = vmatprep.subr.bf16.mxu0 0
      %7117 = vmatpush1.bf16.msra.mxu0 0
      %7118 = vmatprep.subr.bf16.mxu0 0
      %7119 = vmatpush1.bf16.msra.mxu0 0
      %7120 = vmatprep.subr.bf16.mxu0 0
      %7121 = vmatpush1.bf16.msra.mxu0 0
      %7122 = vmatprep.subr.bf16.mxu0 0
      %7123 = vmatpush1.bf16.msra.mxu0 0
      %7124 = vmatprep.mubr.bf16.mxu0 0
      %7125 = vmatmul.mubr.bf16.gmra.mrb[0].mxu0 %v7042
      %v7126 = vpop.f32.mrb[0].mxu0
      %v7127 = vadd.f32 0.0, %v7126
      %v7128 = vpop.f32.mrb[0].mxu0
      %v7129 = vpop.f32.mrb[0].mxu0
      %v7130 = vadd.f32 0.0, %v7129
      %v7131 = vpop.f32.mrb[0].mxu0
      %7132 = vmatprep.mubr.bf16.mxu0 0
      %7133 = vmatmul.mubr.bf16.gmra.mrb[0].mxu0 %v7045
      %v7134 = vpop.f32.mrb[0].mxu0
      %v7135 = vadd.f32 0.0, %v7134
      %v7136 = vpop.f32.mrb[0].mxu0
      %v7137 = vpop.f32.mrb[0].mxu0
      %v7138 = vadd.f32 0.0, %v7137
      %v7139 = vpop.f32.mrb[0].mxu0
      %7140 = vmatprep.mubr.bf16.mxu0 0
      %7141 = vmatmul.mubr.bf16.gmra.mrb[0].mxu0 %v7048
      %v7142 = vpop.f32.mrb[0].mxu0
      %v7143 = vadd.f32 0.0, %v7142
      %v7144 = vpop.f32.mrb[0].mxu0
      %v7145 = vpop.f32.mrb[0].mxu0
      %v7146 = vadd.f32 0.0, %v7145
      %v7147 = vpop.f32.mrb[0].mxu0
      %7148 = vmatprep.mubr.bf16.mxu0 0
      %7149 = vmatmul.mubr.bf16.gmra.mrb[0].mxu0 %v7051
      %v7150 = vpop.f32.mrb[0].mxu0
      %v7151 = vadd.f32 0.0, %v7150
      %v7152 = vpop.f32.mrb[0].mxu0
      %v7153 = vpop.f32.mrb[0].mxu0
      %v7154 = vadd.f32 0.0, %v7153
      %v7155 = vpop.f32.mrb[0].mxu0
      %7156 = vmatprep.mubr.bf16.mxu0 0
      %7157 = vmatmul.mubr.bf16.gmra.mrb[0].mxu0 %v7054
      %v7158 = vpop.f32.mrb[0].mxu0
      %v7159 = vadd.f32 0.0, %v7158
      %v7160 = vpop.f32.mrb[0].mxu0
      %v7161 = vpop.f32.mrb[0].mxu0
      %v7162 = vadd.f32 0.0, %v7161
      %v7163 = vpop.f32.mrb[0].mxu0
      %7164 = vmatprep.mubr.bf16.mxu0 0
      %7165 = vmatmul.mubr.bf16.gmra.mrb[0].mxu0 %v7057
      %v7166 = vpop.f32.mrb[0].mxu0
      %v7167 = vadd.f32 0.0, %v7166
      %v7168 = vpop.f32.mrb[0].mxu0
      %v7169 = vpop.f32.mrb[0].mxu0
      %v7170 = vadd.f32 0.0, %v7169
      %v7171 = vpop.f32.mrb[0].mxu0
      %7172 = vmatprep.mubr.bf16.mxu0 0
      %7173 = vmatmul.mubr.bf16.gmra.mrb[0].mxu0 %v7060
      %v7174 = vpop.f32.mrb[0].mxu0
      %v7175 = vadd.f32 0.0, %v7174
      %v7176 = vpop.f32.mrb[0].mxu0
      %v7177 = vpop.f32.mrb[0].mxu0
      %v7178 = vadd.f32 0.0, %v7177
      %v7179 = vpop.f32.mrb[0].mxu0
      %7180 = vmatprep.mubr.bf16.mxu0 0
      %7181 = vmatmul.mubr.bf16.gmra.mrb[0].mxu0 %v7063
      %v7182 = vpop.f32.mrb[0].mxu0
      %v7183 = vadd.f32 0.0, %v7182
      %v7184 = vpop.f32.mrb[0].mxu0
      %v7185 = vpop.f32.mrb[0].mxu0
      %v7186 = vadd.f32 0.0, %v7185
      %v7187 = vpop.f32.mrb[0].mxu0
      %7188 = vmatprep.mubr.bf16.mxu0 0
      %7189 = vmatmul.mubr.bf16.gmra.mrb[0].mxu0 %v7066
      %v7190 = vpop.f32.mrb[0].mxu0
      %v7191 = vadd.f32 0.0, %v7190
      %v7192 = vpop.f32.mrb[0].mxu0
      %v7193 = vpop.f32.mrb[0].mxu0
      %v7194 = vadd.f32 0.0, %v7193
      %v7195 = vpop.f32.mrb[0].mxu0
      %7196 = vmatprep.mubr.bf16.mxu0 0
      %7197 = vmatmul.mubr.bf16.gmra.mrb[0].mxu0 %v7069
      %v7198 = vpop.f32.mrb[0].mxu0
      %v7199 = vadd.f32 0.0, %v7198
      %v7200 = vpop.f32.mrb[0].mxu0
      %v7201 = vpop.f32.mrb[0].mxu0
      %v7202 = vadd.f32 0.0, %v7201
      %v7203 = vpop.f32.mrb[0].mxu0
      %7204 = vmatprep.mubr.bf16.mxu0 0
      %7205 = vmatmul.mubr.bf16.gmra.mrb[0].mxu0 %v7072
      %v7206 = vpop.f32.mrb[0].mxu0
      %v7207 = vadd.f32 0.0, %v7206
      %v7208 = vpop.f32.mrb[0].mxu0
      %v7209 = vpop.f32.mrb[0].mxu0
      %v7210 = vadd.f32 0.0, %v7209
      %v7211 = vpop.f32.mrb[0].mxu0
      %7212 = vmatprep.mubr.bf16.mxu0 0
      %7213 = vmatmul.mubr.bf16.gmra.mrb[0].mxu0 %v7075
      %v7214 = vpop.f32.mrb[0].mxu0
      %v7215 = vadd.f32 0.0, %v7214
      %v7216 = vpop.f32.mrb[0].mxu0
      %v7217 = vpop.f32.mrb[0].mxu0
      %v7218 = vadd.f32 0.0, %v7217
      %v7219 = vpop.f32.mrb[0].mxu0
      %7220 = vmatprep.mubr.bf16.mxu0 0
      %7221 = vmatmul.mubr.bf16.gmra.mrb[0].mxu0 %v7078
      %v7222 = vpop.f32.mrb[0].mxu0
      %v7223 = vadd.f32 0.0, %v7222
      %v7224 = vpop.f32.mrb[0].mxu0
      %v7225 = vpop.f32.mrb[0].mxu0
      %v7226 = vadd.f32 0.0, %v7225
      %v7227 = vpop.f32.mrb[0].mxu0
      %7228 = vmatprep.mubr.bf16.mxu0 0
      %7229 = vmatmul.mubr.bf16.gmra.mrb[0].mxu0 %v7081
      %v7230 = vpop.f32.mrb[0].mxu0
      %v7231 = vadd.f32 0.0, %v7230
      %v7232 = vpop.f32.mrb[0].mxu0
      %v7233 = vpop.f32.mrb[0].mxu0
      %v7234 = vadd.f32 0.0, %v7233
      %v7235 = vpop.f32.mrb[0].mxu0
      %7236 = vmatprep.mubr.bf16.mxu0 0
      %7237 = vmatmul.mubr.bf16.gmra.mrb[0].mxu0 %v7084
      %v7238 = vpop.f32.mrb[0].mxu0
      %v7239 = vadd.f32 0.0, %v7238
      %v7240 = vpop.f32.mrb[0].mxu0
      %v7241 = vpop.f32.mrb[0].mxu0
      %v7242 = vadd.f32 0.0, %v7241
      %v7243 = vpop.f32.mrb[0].mxu0
      %7244 = vmatprep.mubr.bf16.mxu0 0
      %7245 = vmatmul.mubr.bf16.gmra.mrb[0].mxu0 %v7087
      %v7246 = vpop.f32.mrb[0].mxu0
      %v7247 = vadd.f32 0.0, %v7246
      %v7248 = vpop.f32.mrb[0].mxu0
      %v7249 = vpop.f32.mrb[0].mxu0
      %v7250 = vadd.f32 0.0, %v7249
      %v7251 = vpop.f32.mrb[0].mxu0
      %7252 = vdwg.mxu0
      %v7253 = vpack.c.bf16 %v7130, %v7127
      %v7254 = vpack.c.bf16 %v7138, %v7135
      %v7255 = vpack.c.bf16 %v7146, %v7143
      %v7256 = vpack.c.bf16 %v7154, %v7151
      %v7257 = vpack.c.bf16 %v7162, %v7159
      %v7258 = vpack.c.bf16 %v7170, %v7167
      %v7259 = vpack.c.bf16 %v7178, %v7175
      %v7260 = vpack.c.bf16 %v7186, %v7183
      %v7261 = vpack.c.bf16 %v7194, %v7191
      %v7262 = vpack.c.bf16 %v7202, %v7199
      %v7263 = vpack.c.bf16 %v7210, %v7207
      %v7264 = vpack.c.bf16 %v7218, %v7215
      %v7265 = vpack.c.bf16 %v7226, %v7223
      %v7266 = vpack.c.bf16 %v7234, %v7231
      %v7267 = vpack.c.bf16 %v7242, %v7239
      %v7268 = vpack.c.bf16 %v7250, %v7247
      %v7269 = vld [vmem:[%s723] sm:$0xf]
      %v7271 = vsel %vm1949, %v7253, 0
      %v7274 = vsel %vm1949, %v7254, 0
      %v7277 = vsel %vm1949, %v7255, 0
      %v7280 = vsel %vm1949, %v7256, 0
      %v7283 = vsel %vm1949, %v7257, 0
      %v7286 = vsel %vm1949, %v7258, 0
      %v7289 = vsel %vm1949, %v7259, 0
      %v7292 = vsel %vm1949, %v7260, 0
      %v7295 = vsel %vm1949, %v7261, 0
      %v7298 = vsel %vm1949, %v7262, 0
      %v7301 = vsel %vm1949, %v7263, 0
      %v7304 = vsel %vm1949, %v7264, 0
      %v7307 = vsel %vm1949, %v7265, 0
      %v7310 = vsel %vm1949, %v7266, 0
      %v7313 = vsel %vm1949, %v7267, 0
      %v7316 = vsel %vm1949, %v7268, 0
      %v7319 = vsel %vm1998, %v7269, 0
      %7321 = vmatprep.subr.bf16.mxu0 0
      %7322 = vmatpush1.bf16.msra.mxu0 %v7319
      %7323 = vmatprep.subr.bf16.mxu0 0
      %7324 = vmatpush1.bf16.msra.mxu0 0
      %7325 = vmatprep.subr.bf16.mxu0 0
      %7326 = vmatpush1.bf16.msra.mxu0 0
      %7327 = vmatprep.subr.bf16.mxu0 0
      %7328 = vmatpush1.bf16.msra.mxu0 0
      %7329 = vmatprep.subr.bf16.mxu0 0
      %7330 = vmatpush1.bf16.msra.mxu0 0
      %7331 = vmatprep.subr.bf16.mxu0 0
      %7332 = vmatpush1.bf16.msra.mxu0 0
      %7333 = vmatprep.subr.bf16.mxu0 0
      %7334 = vmatpush1.bf16.msra.mxu0 0
      %7335 = vmatprep.subr.bf16.mxu0 0
      %7336 = vmatpush1.bf16.msra.mxu0 0
      %7337 = vmatprep.subr.bf16.mxu0 0
      %7338 = vmatpush1.bf16.msra.mxu0 0
      %7339 = vmatprep.subr.bf16.mxu0 0
      %7340 = vmatpush1.bf16.msra.mxu0 0
      %7341 = vmatprep.subr.bf16.mxu0 0
      %7342 = vmatpush1.bf16.msra.mxu0 0
      %7343 = vmatprep.subr.bf16.mxu0 0
      %7344 = vmatpush1.bf16.msra.mxu0 0
      %7345 = vmatprep.subr.bf16.mxu0 0
      %7346 = vmatpush1.bf16.msra.mxu0 0
      %7347 = vmatprep.subr.bf16.mxu0 0
      %7348 = vmatpush1.bf16.msra.mxu0 0
      %7349 = vmatprep.subr.bf16.mxu0 0
      %7350 = vmatpush1.bf16.msra.mxu0 0
      %7351 = vmatprep.subr.bf16.mxu0 0
      %7352 = vmatpush1.bf16.msra.mxu0 0
      %7353 = vmatprep.mubr.bf16.mxu0 0
      %7354 = vmatmul.mubr.bf16.gmra.mrb[0].mxu0 %v7271
      %v7355 = vpop.f32.mrb[0].mxu0
      %v7356 = vadd.f32 %v6992, %v7355
      %v7357 = vpop.f32.mrb[0].mxu0
      %v7358 = vpop.f32.mrb[0].mxu0
      %v7359 = vadd.f32 %v6993, %v7358
      %v7360 = vpop.f32.mrb[0].mxu0
      %7361 = vmatprep.mubr.bf16.mxu0 0
      %7362 = vmatmul.mubr.bf16.gmra.mrb[0].mxu0 %v7274
      %v7363 = vpop.f32.mrb[0].mxu0
      %v7364 = vadd.f32 %v6994, %v7363
      %v7365 = vpop.f32.mrb[0].mxu0
      %v7366 = vpop.f32.mrb[0].mxu0
      %v7367 = vadd.f32 %v6995, %v7366
      %v7368 = vpop.f32.mrb[0].mxu0
      %7369 = vmatprep.mubr.bf16.mxu0 0
      %7370 = vmatmul.mubr.bf16.gmra.mrb[0].mxu0 %v7277
      %v7371 = vpop.f32.mrb[0].mxu0
      %v7372 = vadd.f32 %v6996, %v7371
      %v7373 = vpop.f32.mrb[0].mxu0
      %v7374 = vpop.f32.mrb[0].mxu0
      %v7375 = vadd.f32 %v6997, %v7374
      %v7376 = vpop.f32.mrb[0].mxu0
      %7377 = vmatprep.mubr.bf16.mxu0 0
      %7378 = vmatmul.mubr.bf16.gmra.mrb[0].mxu0 %v7280
      %v7379 = vpop.f32.mrb[0].mxu0
      %v7380 = vadd.f32 %v6998, %v7379
      %v7381 = vpop.f32.mrb[0].mxu0
      %v7382 = vpop.f32.mrb[0].mxu0
      %v7383 = vadd.f32 %v6999, %v7382
      %v7384 = vpop.f32.mrb[0].mxu0
      %7385 = vmatprep.mubr.bf16.mxu0 0
      %7386 = vmatmul.mubr.bf16.gmra.mrb[0].mxu0 %v7283
      %v7387 = vpop.f32.mrb[0].mxu0
      %v7388 = vadd.f32 %v7000, %v7387
      %v7389 = vpop.f32.mrb[0].mxu0
      %v7390 = vpop.f32.mrb[0].mxu0
      %v7391 = vadd.f32 %v7001, %v7390
      %v7392 = vpop.f32.mrb[0].mxu0
      %7393 = vmatprep.mubr.bf16.mxu0 0
      %7394 = vmatmul.mubr.bf16.gmra.mrb[0].mxu0 %v7286
      %v7395 = vpop.f32.mrb[0].mxu0
      %v7396 = vadd.f32 %v7002, %v7395
      %v7397 = vpop.f32.mrb[0].mxu0
      %v7398 = vpop.f32.mrb[0].mxu0
      %v7399 = vadd.f32 %v7003, %v7398
      %v7400 = vpop.f32.mrb[0].mxu0
      %7401 = vmatprep.mubr.bf16.mxu0 0
      %7402 = vmatmul.mubr.bf16.gmra.mrb[0].mxu0 %v7289
      %v7403 = vpop.f32.mrb[0].mxu0
      %v7404 = vadd.f32 %v7004, %v7403
      %v7405 = vpop.f32.mrb[0].mxu0
      %v7406 = vpop.f32.mrb[0].mxu0
      %v7407 = vadd.f32 %v7005, %v7406
      %v7408 = vpop.f32.mrb[0].mxu0
      %7409 = vmatprep.mubr.bf16.mxu0 0
      %7410 = vmatmul.mubr.bf16.gmra.mrb[0].mxu0 %v7292
      %v7411 = vpop.f32.mrb[0].mxu0
      %v7412 = vadd.f32 %v7006, %v7411
      %v7413 = vpop.f32.mrb[0].mxu0
      %v7414 = vpop.f32.mrb[0].mxu0
      %v7415 = vadd.f32 %v7007, %v7414
      %v7416 = vpop.f32.mrb[0].mxu0
      %7417 = vmatprep.mubr.bf16.mxu0 0
      %7418 = vmatmul.mubr.bf16.gmra.mrb[0].mxu0 %v7295
      %v7419 = vpop.f32.mrb[0].mxu0
      %v7420 = vadd.f32 %v7008, %v7419
      %v7421 = vpop.f32.mrb[0].mxu0
      %v7422 = vpop.f32.mrb[0].mxu0
      %v7423 = vadd.f32 %v7009, %v7422
      %v7424 = vpop.f32.mrb[0].mxu0
      %7425 = vmatprep.mubr.bf16.mxu0 0
      %7426 = vmatmul.mubr.bf16.gmra.mrb[0].mxu0 %v7298
      %v7427 = vpop.f32.mrb[0].mxu0
      %v7428 = vadd.f32 %v7010, %v7427
      %v7429 = vpop.f32.mrb[0].mxu0
      %v7430 = vpop.f32.mrb[0].mxu0
      %v7431 = vadd.f32 %v7011, %v7430
      %v7432 = vpop.f32.mrb[0].mxu0
      %7433 = vmatprep.mubr.bf16.mxu0 0
      %7434 = vmatmul.mubr.bf16.gmra.mrb[0].mxu0 %v7301
      %v7435 = vpop.f32.mrb[0].mxu0
      %v7436 = vadd.f32 %v7012, %v7435
      %v7437 = vpop.f32.mrb[0].mxu0
      %v7438 = vpop.f32.mrb[0].mxu0
      %v7439 = vadd.f32 %v7013, %v7438
      %v7440 = vpop.f32.mrb[0].mxu0
      %7441 = vmatprep.mubr.bf16.mxu0 0
      %7442 = vmatmul.mubr.bf16.gmra.mrb[0].mxu0 %v7304
      %v7443 = vpop.f32.mrb[0].mxu0
      %v7444 = vadd.f32 %v7014, %v7443
      %v7445 = vpop.f32.mrb[0].mxu0
      %v7446 = vpop.f32.mrb[0].mxu0
      %v7447 = vadd.f32 %v7015, %v7446
      %v7448 = vpop.f32.mrb[0].mxu0
      %7449 = vmatprep.mubr.bf16.mxu0 0
      %7450 = vmatmul.mubr.bf16.gmra.mrb[0].mxu0 %v7307
      %v7451 = vpop.f32.mrb[0].mxu0
      %v7452 = vadd.f32 %v7016, %v7451
      %v7453 = vpop.f32.mrb[0].mxu0
      %v7454 = vpop.f32.mrb[0].mxu0
      %v7455 = vadd.f32 %v7017, %v7454
      %v7456 = vpop.f32.mrb[0].mxu0
      %7457 = vmatprep.mubr.bf16.mxu0 0
      %7458 = vmatmul.mubr.bf16.gmra.mrb[0].mxu0 %v7310
      %v7459 = vpop.f32.mrb[0].mxu0
      %v7460 = vadd.f32 %v7018, %v7459
      %v7461 = vpop.f32.mrb[0].mxu0
      %v7462 = vpop.f32.mrb[0].mxu0
      %v7463 = vadd.f32 %v7019, %v7462
      %v7464 = vpop.f32.mrb[0].mxu0
      %7465 = vmatprep.mubr.bf16.mxu0 0
      %7466 = vmatmul.mubr.bf16.gmra.mrb[0].mxu0 %v7313
      %v7467 = vpop.f32.mrb[0].mxu0
      %v7468 = vadd.f32 %v7020, %v7467
      %v7469 = vpop.f32.mrb[0].mxu0
      %v7470 = vpop.f32.mrb[0].mxu0
      %v7471 = vadd.f32 %v7021, %v7470
      %v7472 = vpop.f32.mrb[0].mxu0
      %7473 = vmatprep.mubr.bf16.mxu0 0
      %7474 = vmatmul.mubr.bf16.gmra.mrb[0].mxu0 %v7316
      %v7475 = vpop.f32.mrb[0].mxu0
      %v7476 = vadd.f32 %v7022, %v7475
      %v7477 = vpop.f32.mrb[0].mxu0
      %v7478 = vpop.f32.mrb[0].mxu0
      %v7479 = vadd.f32 %v7023, %v7478
      %v7480 = vpop.f32.mrb[0].mxu0
      %7481 = vdwg.mxu0
      %7482 = vst.msk [vmem:[#allocation2] sm:$0xff] %vm1949, %v7356
      %7483 = vst.msk [vmem:[#allocation2 + $0x8] sm:$0xff] %vm1949, %v7359
      %7484 = vst.msk [vmem:[#allocation2 + $0x10] sm:$0xff] %vm1949, %v7364
      %7485 = vst.msk [vmem:[#allocation2 + $0x18] sm:$0xff] %vm1949, %v7367
      %7486 = vst.msk [vmem:[#allocation2 + $0x20] sm:$0xff] %vm1949, %v7372
      %7487 = vst.msk [vmem:[#allocation2 + $0x28] sm:$0xff] %vm1949, %v7375
      %7488 = vst.msk [vmem:[#allocation2 + $0x30] sm:$0xff] %vm1949, %v7380
      %7489 = vst.msk [vmem:[#allocation2 + $0x38] sm:$0xff] %vm1949, %v7383
      %7490 = vst.msk [vmem:[#allocation2 + $0x40] sm:$0xff] %vm1949, %v7388
      %7491 = vst.msk [vmem:[#allocation2 + $0x48] sm:$0xff] %vm1949, %v7391
      %7492 = vst.msk [vmem:[#allocation2 + $0x50] sm:$0xff] %vm1949, %v7396
      %7493 = vst.msk [vmem:[#allocation2 + $0x58] sm:$0xff] %vm1949, %v7399
      %7494 = vst.msk [vmem:[#allocation2 + $0x60] sm:$0xff] %vm1949, %v7404
      %7495 = vst.msk [vmem:[#allocation2 + $0x68] sm:$0xff] %vm1949, %v7407
      %7496 = vst.msk [vmem:[#allocation2 + $0x70] sm:$0xff] %vm1949, %v7412
      %7497 = vst.msk [vmem:[#allocation2 + $0x78] sm:$0xff] %vm1949, %v7415
      %7498 = vst.msk [vmem:[#allocation2 + $0x80] sm:$0xff] %vm1949, %v7420
      %7499 = vst.msk [vmem:[#allocation2 + $0x88] sm:$0xff] %vm1949, %v7423
      %7500 = vst.msk [vmem:[#allocation2 + $0x90] sm:$0xff] %vm1949, %v7428
      %7501 = vst.msk [vmem:[#allocation2 + $0x98] sm:$0xff] %vm1949, %v7431
      %7502 = vst.msk [vmem:[#allocation2 + $0xa0] sm:$0xff] %vm1949, %v7436
      %7503 = vst.msk [vmem:[#allocation2 + $0xa8] sm:$0xff] %vm1949, %v7439
      %7504 = vst.msk [vmem:[#allocation2 + $0xb0] sm:$0xff] %vm1949, %v7444
      %7505 = vst.msk [vmem:[#allocation2 + $0xb8] sm:$0xff] %vm1949, %v7447
      %7506 = vst.msk [vmem:[#allocation2 + $0xc0] sm:$0xff] %vm1949, %v7452
      %7507 = vst.msk [vmem:[#allocation2 + $0xc8] sm:$0xff] %vm1949, %v7455
      %7508 = vst.msk [vmem:[#allocation2 + $0xd0] sm:$0xff] %vm1949, %v7460
      %7509 = vst.msk [vmem:[#allocation2 + $0xd8] sm:$0xff] %vm1949, %v7463
      %7510 = vst.msk [vmem:[#allocation2 + $0xe0] sm:$0xff] %vm1949, %v7468
      %7511 = vst.msk [vmem:[#allocation2 + $0xe8] sm:$0xff] %vm1949, %v7471
      %7512 = vst.msk [vmem:[#allocation2 + $0xf0] sm:$0xff] %vm1949, %v7476
      %7513 = vst.msk [vmem:[#allocation2 + $0xf8] sm:$0xff] %vm1949, %v7479
      %p7514 = scmp.eq.s32.totalorder %s31, 1
      // Predicated region
      $region97: #{_lambda_.2} parent=91 // pred_check
        %p7515 = pneg %p7514
      $region98: #{_lambda_.2} parent=91 // pred_check_branch
        %7517 = sbr.rel (%p7515) target = $region100
      $region99: #{_lambda_.2} parent=91 // pred_region
        %v7518 = vld [vmem:[%s7] sm:$0xff]
        %v7519 = vld [vmem:[%s7 + $0x8] sm:$0xff]
        %v7520 = vld [vmem:[%s7 + $0x10] sm:$0xff]
        %v7521 = vld [vmem:[%s7 + $0x18] sm:$0xff]
        %v7522 = vld [vmem:[%s7 + $0x20] sm:$0xff]
        %v7523 = vld [vmem:[%s7 + $0x28] sm:$0xff]
        %v7524 = vld [vmem:[%s7 + $0x30] sm:$0xff]
        %v7525 = vld [vmem:[%s7 + $0x38] sm:$0xff]
        %v7526 = vld [vmem:[%s7 + $0x40] sm:$0xff]
        %v7527 = vld [vmem:[%s7 + $0x48] sm:$0xff]
        %v7528 = vld [vmem:[%s7 + $0x50] sm:$0xff]
        %v7529 = vld [vmem:[%s7 + $0x58] sm:$0xff]
        %v7530 = vld [vmem:[%s7 + $0x60] sm:$0xff]
        %v7531 = vld [vmem:[%s7 + $0x68] sm:$0xff]
        %v7532 = vld [vmem:[%s7 + $0x70] sm:$0xff]
        %v7533 = vld [vmem:[%s7 + $0x78] sm:$0xff]
        %v7534 = vld [vmem:[%s7 + $0x80] sm:$0xff]
        %v7535 = vld [vmem:[%s7 + $0x88] sm:$0xff]
        %v7536 = vld [vmem:[%s7 + $0x90] sm:$0xff]
        %v7537 = vld [vmem:[%s7 + $0x98] sm:$0xff]
        %v7538 = vld [vmem:[%s7 + $0xa0] sm:$0xff]
        %v7539 = vld [vmem:[%s7 + $0xa8] sm:$0xff]
        %v7540 = vld [vmem:[%s7 + $0xb0] sm:$0xff]
        %v7541 = vld [vmem:[%s7 + $0xb8] sm:$0xff]
        %v7542 = vld [vmem:[%s7 + $0xc0] sm:$0xff]
        %v7543 = vld [vmem:[%s7 + $0xc8] sm:$0xff]
        %v7544 = vld [vmem:[%s7 + $0xd0] sm:$0xff]
        %v7545 = vld [vmem:[%s7 + $0xd8] sm:$0xff]
        %v7546 = vld [vmem:[%s7 + $0xe0] sm:$0xff]
        %v7547 = vld [vmem:[%s7 + $0xe8] sm:$0xff]
        %v7548 = vld [vmem:[%s7 + $0xf0] sm:$0xff]
        %v7549 = vld [vmem:[%s7 + $0xf8] sm:$0xff]
        %vm7550 = vcmp.gt.f32.partialorder %v7518, 0.5
        %vm7551 = vcmp.gt.f32.partialorder %v7519, 0.5
        %vm7552 = vcmp.gt.f32.partialorder %v7520, 0.5
        %vm7553 = vcmp.gt.f32.partialorder %v7521, 0.5
        %vm7554 = vcmp.gt.f32.partialorder %v7522, 0.5
        %vm7555 = vcmp.gt.f32.partialorder %v7523, 0.5
        %vm7556 = vcmp.gt.f32.partialorder %v7524, 0.5
        %vm7557 = vcmp.gt.f32.partialorder %v7525, 0.5
        %vm7558 = vcmp.gt.f32.partialorder %v7526, 0.5
        %vm7559 = vcmp.gt.f32.partialorder %v7527, 0.5
        %vm7560 = vcmp.gt.f32.partialorder %v7528, 0.5
        %vm7561 = vcmp.gt.f32.partialorder %v7529, 0.5
        %vm7562 = vcmp.gt.f32.partialorder %v7530, 0.5
        %vm7563 = vcmp.gt.f32.partialorder %v7531, 0.5
        %vm7564 = vcmp.gt.f32.partialorder %v7532, 0.5
        %vm7565 = vcmp.gt.f32.partialorder %v7533, 0.5
        %vm7566 = vcmp.gt.f32.partialorder %v7534, 0.5
        %vm7567 = vcmp.gt.f32.partialorder %v7535, 0.5
        %vm7568 = vcmp.gt.f32.partialorder %v7536, 0.5
        %vm7569 = vcmp.gt.f32.partialorder %v7537, 0.5
        %vm7570 = vcmp.gt.f32.partialorder %v7538, 0.5
        %vm7571 = vcmp.gt.f32.partialorder %v7539, 0.5
        %vm7572 = vcmp.gt.f32.partialorder %v7540, 0.5
        %vm7573 = vcmp.gt.f32.partialorder %v7541, 0.5
        %vm7574 = vcmp.gt.f32.partialorder %v7542, 0.5
        %vm7575 = vcmp.gt.f32.partialorder %v7543, 0.5
        %vm7576 = vcmp.gt.f32.partialorder %v7544, 0.5
        %vm7577 = vcmp.gt.f32.partialorder %v7545, 0.5
        %vm7578 = vcmp.gt.f32.partialorder %v7546, 0.5
        %vm7579 = vcmp.gt.f32.partialorder %v7547, 0.5
        %vm7580 = vcmp.gt.f32.partialorder %v7548, 0.5
        %vm7581 = vcmp.gt.f32.partialorder %v7549, 0.5
        %v7582 = vld [vmem:[#allocation3] sm:$0xff]
        %v7583 = vld [vmem:[#allocation3 + $0x8] sm:$0xff]
        %v7584 = vld [vmem:[#allocation3 + $0x10] sm:$0xff]
        %v7585 = vld [vmem:[#allocation3 + $0x18] sm:$0xff]
        %v7586 = vld [vmem:[#allocation3 + $0x20] sm:$0xff]
        %v7587 = vld [vmem:[#allocation3 + $0x28] sm:$0xff]
        %v7588 = vld [vmem:[#allocation3 + $0x30] sm:$0xff]
        %v7589 = vld [vmem:[#allocation3 + $0x38] sm:$0xff]
        %v7590 = vld [vmem:[#allocation3 + $0x40] sm:$0xff]
        %v7591 = vld [vmem:[#allocation3 + $0x48] sm:$0xff]
        %v7592 = vld [vmem:[#allocation3 + $0x50] sm:$0xff]
        %v7593 = vld [vmem:[#allocation3 + $0x58] sm:$0xff]
        %v7594 = vld [vmem:[#allocation3 + $0x60] sm:$0xff]
        %v7595 = vld [vmem:[#allocation3 + $0x68] sm:$0xff]
        %v7596 = vld [vmem:[#allocation3 + $0x70] sm:$0xff]
        %v7597 = vld [vmem:[#allocation3 + $0x78] sm:$0xff]
        %v7598 = vld [vmem:[#allocation3 + $0x80] sm:$0xff]
        %v7599 = vld [vmem:[#allocation3 + $0x88] sm:$0xff]
        %v7600 = vld [vmem:[#allocation3 + $0x90] sm:$0xff]
        %v7601 = vld [vmem:[#allocation3 + $0x98] sm:$0xff]
        %v7602 = vld [vmem:[#allocation3 + $0xa0] sm:$0xff]
        %v7603 = vld [vmem:[#allocation3 + $0xa8] sm:$0xff]
        %v7604 = vld [vmem:[#allocation3 + $0xb0] sm:$0xff]
        %v7605 = vld [vmem:[#allocation3 + $0xb8] sm:$0xff]
        %v7606 = vld [vmem:[#allocation3 + $0xc0] sm:$0xff]
        %v7607 = vld [vmem:[#allocation3 + $0xc8] sm:$0xff]
        %v7608 = vld [vmem:[#allocation3 + $0xd0] sm:$0xff]
        %v7609 = vld [vmem:[#allocation3 + $0xd8] sm:$0xff]
        %v7610 = vld [vmem:[#allocation3 + $0xe0] sm:$0xff]
        %v7611 = vld [vmem:[#allocation3 + $0xe8] sm:$0xff]
        %v7612 = vld [vmem:[#allocation3 + $0xf0] sm:$0xff]
        %v7613 = vld [vmem:[#allocation3 + $0xf8] sm:$0xff]
        %v7614 = vsel %vm7550, 1, 0
        %v7615 = vsel %vm7551, 1, 0
        %v7616 = vsel %vm7552, 1, 0
        %v7617 = vsel %vm7553, 1, 0
        %v7618 = vsel %vm7554, 1, 0
        %v7619 = vsel %vm7555, 1, 0
        %v7620 = vsel %vm7556, 1, 0
        %v7621 = vsel %vm7557, 1, 0
        %v7622 = vsel %vm7558, 1, 0
        %v7623 = vsel %vm7559, 1, 0
        %v7624 = vsel %vm7560, 1, 0
        %v7625 = vsel %vm7561, 1, 0
        %v7626 = vsel %vm7562, 1, 0
        %v7627 = vsel %vm7563, 1, 0
        %v7628 = vsel %vm7564, 1, 0
        %v7629 = vsel %vm7565, 1, 0
        %v7630 = vsel %vm7566, 1, 0
        %v7631 = vsel %vm7567, 1, 0
        %v7632 = vsel %vm7568, 1, 0
        %v7633 = vsel %vm7569, 1, 0
        %v7634 = vsel %vm7570, 1, 0
        %v7635 = vsel %vm7571, 1, 0
        %v7636 = vsel %vm7572, 1, 0
        %v7637 = vsel %vm7573, 1, 0
        %v7638 = vsel %vm7574, 1, 0
        %v7639 = vsel %vm7575, 1, 0
        %v7640 = vsel %vm7576, 1, 0
        %v7641 = vsel %vm7577, 1, 0
        %v7642 = vsel %vm7578, 1, 0
        %v7643 = vsel %vm7579, 1, 0
        %v7644 = vsel %vm7580, 1, 0
        %v7645 = vsel %vm7581, 1, 0
        %7646 = vset.pattern.permute.xlu0 0
        %7647 = vperm.xlu0 %7646, %v7614
        %v7648 = vpop.permute.xlu0 %7647
        %7649 = vset.pattern.permute.xlu0 0
        %7650 = vperm.xlu0 %7649, %v7615
        %v7651 = vpop.permute.xlu0 %7650
        %7652 = vset.pattern.permute.xlu0 0
        %7653 = vperm.xlu0 %7652, %v7616
        %v7654 = vpop.permute.xlu0 %7653
        %7655 = vset.pattern.permute.xlu0 0
        %7656 = vperm.xlu0 %7655, %v7617
        %v7657 = vpop.permute.xlu0 %7656
        %7658 = vset.pattern.permute.xlu0 0
        %7659 = vperm.xlu0 %7658, %v7618
        %v7660 = vpop.permute.xlu0 %7659
        %7661 = vset.pattern.permute.xlu0 0
        %7662 = vperm.xlu0 %7661, %v7619
        %v7663 = vpop.permute.xlu0 %7662
        %7664 = vset.pattern.permute.xlu0 0
        %7665 = vperm.xlu0 %7664, %v7620
        %v7666 = vpop.permute.xlu0 %7665
        %7667 = vset.pattern.permute.xlu0 0
        %7668 = vperm.xlu0 %7667, %v7621
        %v7669 = vpop.permute.xlu0 %7668
        %7670 = vset.pattern.permute.xlu0 0
        %7671 = vperm.xlu0 %7670, %v7622
        %v7672 = vpop.permute.xlu0 %7671
        %7673 = vset.pattern.permute.xlu0 0
        %7674 = vperm.xlu0 %7673, %v7623
        %v7675 = vpop.permute.xlu0 %7674
        %7676 = vset.pattern.permute.xlu0 0
        %7677 = vperm.xlu0 %7676, %v7624
        %v7678 = vpop.permute.xlu0 %7677
        %7679 = vset.pattern.permute.xlu0 0
        %7680 = vperm.xlu0 %7679, %v7625
        %v7681 = vpop.permute.xlu0 %7680
        %7682 = vset.pattern.permute.xlu0 0
        %7683 = vperm.xlu0 %7682, %v7626
        %v7684 = vpop.permute.xlu0 %7683
        %7685 = vset.pattern.permute.xlu0 0
        %7686 = vperm.xlu0 %7685, %v7627
        %v7687 = vpop.permute.xlu0 %7686
        %7688 = vset.pattern.permute.xlu0 0
        %7689 = vperm.xlu0 %7688, %v7628
        %v7690 = vpop.permute.xlu0 %7689
        %7691 = vset.pattern.permute.xlu0 0
        %7692 = vperm.xlu0 %7691, %v7629
        %v7693 = vpop.permute.xlu0 %7692
        %7694 = vset.pattern.permute.xlu0 0
        %7695 = vperm.xlu0 %7694, %v7630
        %v7696 = vpop.permute.xlu0 %7695
        %7697 = vset.pattern.permute.xlu0 0
        %7698 = vperm.xlu0 %7697, %v7631
        %v7699 = vpop.permute.xlu0 %7698
        %7700 = vset.pattern.permute.xlu0 0
        %7701 = vperm.xlu0 %7700, %v7632
        %v7702 = vpop.permute.xlu0 %7701
        %7703 = vset.pattern.permute.xlu0 0
        %7704 = vperm.xlu0 %7703, %v7633
        %v7705 = vpop.permute.xlu0 %7704
        %7706 = vset.pattern.permute.xlu0 0
        %7707 = vperm.xlu0 %7706, %v7634
        %v7708 = vpop.permute.xlu0 %7707
        %7709 = vset.pattern.permute.xlu0 0
        %7710 = vperm.xlu0 %7709, %v7635
        %v7711 = vpop.permute.xlu0 %7710
        %7712 = vset.pattern.permute.xlu0 0
        %7713 = vperm.xlu0 %7712, %v7636
        %v7714 = vpop.permute.xlu0 %7713
        %7715 = vset.pattern.permute.xlu0 0
        %7716 = vperm.xlu0 %7715, %v7637
        %v7717 = vpop.permute.xlu0 %7716
        %7718 = vset.pattern.permute.xlu0 0
        %7719 = vperm.xlu0 %7718, %v7638
        %v7720 = vpop.permute.xlu0 %7719
        %7721 = vset.pattern.permute.xlu0 0
        %7722 = vperm.xlu0 %7721, %v7639
        %v7723 = vpop.permute.xlu0 %7722
        %7724 = vset.pattern.permute.xlu0 0
        %7725 = vperm.xlu0 %7724, %v7640
        %v7726 = vpop.permute.xlu0 %7725
        %7727 = vset.pattern.permute.xlu0 0
        %7728 = vperm.xlu0 %7727, %v7641
        %v7729 = vpop.permute.xlu0 %7728
        %7730 = vset.pattern.permute.xlu0 0
        %7731 = vperm.xlu0 %7730, %v7642
        %v7732 = vpop.permute.xlu0 %7731
        %7733 = vset.pattern.permute.xlu0 0
        %7734 = vperm.xlu0 %7733, %v7643
        %v7735 = vpop.permute.xlu0 %7734
        %7736 = vset.pattern.permute.xlu0 0
        %7737 = vperm.xlu0 %7736, %v7644
        %v7738 = vpop.permute.xlu0 %7737
        %7739 = vset.pattern.permute.xlu0 0
        %7740 = vperm.xlu0 %7739, %v7645
        %v7741 = vpop.permute.xlu0 %7740
        %vm7742 = vcmp.eq.s32.totalorder %v7648, 1
        %vm7743 = vcmp.eq.s32.totalorder %v7651, 1
        %vm7744 = vcmp.eq.s32.totalorder %v7654, 1
        %vm7745 = vcmp.eq.s32.totalorder %v7657, 1
        %vm7746 = vcmp.eq.s32.totalorder %v7660, 1
        %vm7747 = vcmp.eq.s32.totalorder %v7663, 1
        %vm7748 = vcmp.eq.s32.totalorder %v7666, 1
        %vm7749 = vcmp.eq.s32.totalorder %v7669, 1
        %vm7750 = vcmp.eq.s32.totalorder %v7672, 1
        %vm7751 = vcmp.eq.s32.totalorder %v7675, 1
        %vm7752 = vcmp.eq.s32.totalorder %v7678, 1
        %vm7753 = vcmp.eq.s32.totalorder %v7681, 1
        %vm7754 = vcmp.eq.s32.totalorder %v7684, 1
        %vm7755 = vcmp.eq.s32.totalorder %v7687, 1
        %vm7756 = vcmp.eq.s32.totalorder %v7690, 1
        %vm7757 = vcmp.eq.s32.totalorder %v7693, 1
        %vm7758 = vcmp.eq.s32.totalorder %v7696, 1
        %vm7759 = vcmp.eq.s32.totalorder %v7699, 1
        %vm7760 = vcmp.eq.s32.totalorder %v7702, 1
        %vm7761 = vcmp.eq.s32.totalorder %v7705, 1
        %vm7762 = vcmp.eq.s32.totalorder %v7708, 1
        %vm7763 = vcmp.eq.s32.totalorder %v7711, 1
        %vm7764 = vcmp.eq.s32.totalorder %v7714, 1
        %vm7765 = vcmp.eq.s32.totalorder %v7717, 1
        %vm7766 = vcmp.eq.s32.totalorder %v7720, 1
        %vm7767 = vcmp.eq.s32.totalorder %v7723, 1
        %vm7768 = vcmp.eq.s32.totalorder %v7726, 1
        %vm7769 = vcmp.eq.s32.totalorder %v7729, 1
        %vm7770 = vcmp.eq.s32.totalorder %v7732, 1
        %vm7771 = vcmp.eq.s32.totalorder %v7735, 1
        %vm7772 = vcmp.eq.s32.totalorder %v7738, 1
        %vm7773 = vcmp.eq.s32.totalorder %v7741, 1
        %v7774 = vsel %vm7742, %v7356, %v7582
        %v7775 = vsel %vm7743, %v7359, %v7583
        %v7776 = vsel %vm7744, %v7364, %v7584
        %v7777 = vsel %vm7745, %v7367, %v7585
        %v7778 = vsel %vm7746, %v7372, %v7586
        %v7779 = vsel %vm7747, %v7375, %v7587
        %v7780 = vsel %vm7748, %v7380, %v7588
        %v7781 = vsel %vm7749, %v7383, %v7589
        %v7782 = vsel %vm7750, %v7388, %v7590
        %v7783 = vsel %vm7751, %v7391, %v7591
        %v7784 = vsel %vm7752, %v7396, %v7592
        %v7785 = vsel %vm7753, %v7399, %v7593
        %v7786 = vsel %vm7754, %v7404, %v7594
        %v7787 = vsel %vm7755, %v7407, %v7595
        %v7788 = vsel %vm7756, %v7412, %v7596
        %v7789 = vsel %vm7757, %v7415, %v7597
        %v7790 = vsel %vm7758, %v7420, %v7598
        %v7791 = vsel %vm7759, %v7423, %v7599
        %v7792 = vsel %vm7760, %v7428, %v7600
        %v7793 = vsel %vm7761, %v7431, %v7601
        %v7794 = vsel %vm7762, %v7436, %v7602
        %v7795 = vsel %vm7763, %v7439, %v7603
        %v7796 = vsel %vm7764, %v7444, %v7604
        %v7797 = vsel %vm7765, %v7447, %v7605
        %v7798 = vsel %vm7766, %v7452, %v7606
        %v7799 = vsel %vm7767, %v7455, %v7607
        %v7800 = vsel %vm7768, %v7460, %v7608
        %v7801 = vsel %vm7769, %v7463, %v7609
        %v7802 = vsel %vm7770, %v7468, %v7610
        %v7803 = vsel %vm7771, %v7471, %v7611
        %v7804 = vsel %vm7772, %v7476, %v7612
        %v7805 = vsel %vm7773, %v7479, %v7613
        %7806 = vxpose.xlu0.b32.start [1/16] %v7774, 128
        %7807 = vxpose.xlu0.b32.cont [2/16] %v7775, 128
        %7808 = vxpose.xlu0.b32.cont [3/16] %v7776, 128
        %7809 = vxpose.xlu0.b32.cont [4/16] %v7777, 128
        %7810 = vxpose.xlu0.b32.cont [5/16] %v7778, 128
        %7811 = vxpose.xlu0.b32.cont [6/16] %v7779, 128
        %7812 = vxpose.xlu0.b32.cont [7/16] %v7780, 128
        %7813 = vxpose.xlu0.b32.cont [8/16] %v7781, 128
        %7814 = vxpose.xlu0.b32.cont [9/16] %v7782, 128
        %7815 = vxpose.xlu0.b32.cont [10/16] %v7783, 128
        %7816 = vxpose.xlu0.b32.cont [11/16] %v7784, 128
        %7817 = vxpose.xlu0.b32.cont [12/16] %v7785, 128
        %7818 = vxpose.xlu0.b32.cont [13/16] %v7786, 128
        %7819 = vxpose.xlu0.b32.cont [14/16] %v7787, 128
        %7820 = vxpose.xlu0.b32.cont [15/16] %v7788, 128
        %7821 = vxpose.xlu0.b32.end [16/16] %v7789, 128
        %v7822 = vpop.trf.xlu0
        %v7823 = vpop.trf.xlu0
        %v7824 = vpop.trf.xlu0
        %v7825 = vpop.trf.xlu0
        %v7826 = vpop.trf.xlu0
        %v7827 = vpop.trf.xlu0
        %v7828 = vpop.trf.xlu0
        %v7829 = vpop.trf.xlu0
        %v7830 = vpop.trf.xlu0
        %v7831 = vpop.trf.xlu0
        %v7832 = vpop.trf.xlu0
        %v7833 = vpop.trf.xlu0
        %v7834 = vpop.trf.xlu0
        %v7835 = vpop.trf.xlu0
        %v7836 = vpop.trf.xlu0
        %v7837 = vpop.trf.xlu0
        %7838 = vxpose.xlu0.b32.start [1/16] %v7790, 128
        %7839 = vxpose.xlu0.b32.cont [2/16] %v7791, 128
        %7840 = vxpose.xlu0.b32.cont [3/16] %v7792, 128
        %7841 = vxpose.xlu0.b32.cont [4/16] %v7793, 128
        %7842 = vxpose.xlu0.b32.cont [5/16] %v7794, 128
        %7843 = vxpose.xlu0.b32.cont [6/16] %v7795, 128
        %7844 = vxpose.xlu0.b32.cont [7/16] %v7796, 128
        %7845 = vxpose.xlu0.b32.cont [8/16] %v7797, 128
        %7846 = vxpose.xlu0.b32.cont [9/16] %v7798, 128
        %7847 = vxpose.xlu0.b32.cont [10/16] %v7799, 128
        %7848 = vxpose.xlu0.b32.cont [11/16] %v7800, 128
        %7849 = vxpose.xlu0.b32.cont [12/16] %v7801, 128
        %7850 = vxpose.xlu0.b32.cont [13/16] %v7802, 128
        %7851 = vxpose.xlu0.b32.cont [14/16] %v7803, 128
        %7852 = vxpose.xlu0.b32.cont [15/16] %v7804, 128
        %7853 = vxpose.xlu0.b32.end [16/16] %v7805, 128
        %v7854 = vpop.trf.xlu0
        %v7855 = vpop.trf.xlu0
        %v7856 = vpop.trf.xlu0
        %v7857 = vpop.trf.xlu0
        %v7858 = vpop.trf.xlu0
        %v7859 = vpop.trf.xlu0
        %v7860 = vpop.trf.xlu0
        %v7861 = vpop.trf.xlu0
        %v7862 = vpop.trf.xlu0
        %v7863 = vpop.trf.xlu0
        %v7864 = vpop.trf.xlu0
        %v7865 = vpop.trf.xlu0
        %v7866 = vpop.trf.xlu0
        %v7867 = vpop.trf.xlu0
        %v7868 = vpop.trf.xlu0
        %v7869 = vpop.trf.xlu0
        %v7870 = vpack.c.bf16 %v7822, %v7822
        %v7871 = vpack.c.bf16 %v7854, %v7854
        %v7874 = vunpack.c.l.b16 %v7870
        %v7875 = vunpack.c.l.b16 %v7871
        %v7876 = vpack.c.b16 %v7875, %v7874
        %7878 = vst [vmem:[%s18] sm:$0xff] %v7876
      $region100: #{_lambda_.2} parent=91 // pred_fallthru
        _
      // Predicated region
      $region101: #{_lambda_.2} parent=91 // pred_check
        %p7879 = pneg %p472
      $region102: #{_lambda_.2} parent=91 // pred_check_branch
        %7881 = sbr.rel (%p7879) target = $region104
      $region103: #{_lambda_.2} parent=91 // pred_region
        _
      $region104: #{_lambda_.2} parent=91 // pred_fallthru
        _
      // Predicated region
      $region105: #{_lambda_.2} parent=91 // pred_check
        %p7882 = pneg %p493
      $region106: #{_lambda_.2} parent=91 // pred_check_branch
        %7884 = sbr.rel (%p7882) target = $region108
      $region107: #{_lambda_.2} parent=91 // pred_region
        _
      $region108: #{_lambda_.2} parent=91 // pred_fallthru
        _
      // Predicated region
      $region109: #{_lambda_.2} parent=91 // pred_check
        %p7885 = pneg %p472
      $region110: #{_lambda_.2} parent=91 // pred_check_branch
        %7887 = sbr.rel (%p7885) target = $region112
      $region111: #{_lambda_.2} parent=91 // pred_region
        _
      $region112: #{_lambda_.2} parent=91 // pred_fallthru
        _
      // Predicated region
      $region113: #{_lambda_.2} parent=91 // pred_check
        %p7888 = pneg %p493
      $region114: #{_lambda_.2} parent=91 // pred_check_branch
        %7890 = sbr.rel (%p7888) target = $region116
      $region115: #{_lambda_.2} parent=91 // pred_region
        _
      $region116: #{_lambda_.2} parent=91 // pred_fallthru
        _
    $region92: #{_lambda_.2} parent=5 // pred_fallthru
      _
    %p7891 = scmp.le.s32.totalorder 2, %s26
    // Predicated region
    $region117: #{_lambda_.2} parent=5 // pred_check
      %p7892 = pneg %p7891
    $region118: #{_lambda_.2} parent=5 // pred_check_branch
      %7894 = sbr.rel (%p7892) target = $region120
    $region119: #{_lambda_.2} parent=5 // pred_region
      %s7895 = ssub.s32 %s26, 2
    $region120: #{_lambda_.2} parent=5 // pred_fallthru
      _
  $region6: #{_lambda_.2} parent=0 // loop_footer
    %s30 = sadd.s32 1, %s26
  $region7: #{_lambda_.2} parent=0 // loop_footer_branch
    %25 = sbr.rel target = $region3
  $region8: #{_lambda_.2} parent=0 // loop_exit
    _

</llo_original>
